<compile_context>
chip_gen: v6e
topology: v6e:2x2x1
jax: 0.10.0
libtpu: 0.0.40
codegen_flags: <defaults>
</compile_context>

<pallas_src>
import numpy as np
import jax
import jax.numpy as jnp
from jax.experimental import pallas as pl
from jax.experimental.pallas import tpu as pltpu

N_LAYERS = 2                    # n_layers in the reference module
N_QUBITS = 6                    # n_qubits
QDIM = 2 ** N_QUBITS            # 64 amplitudes per quantum chunk
QFEAT = N_LAYERS * QDIM         # 128 = backbonefc output width
BACKBONE_FEAT = 2048            # resnet50 feature width
NUM_CLASSES = 8                 # small num_classes for the demo
NC_PAD = 128                    # classes padded to a full lane width (dense vst)
EPS = 1e-12                     # guard for all-zero amplitude chunks


# ---------------- quantum circuit -> dense unitary (param setup, numpy) ----------------
def _rx(theta):
    c, s = np.cos(theta / 2.0), np.sin(theta / 2.0)
    return np.array([[c, -1j * s], [-1j * s, c]], dtype=np.complex128)


def _cnot(n, control, target):
    dim = 2 ** n
    m = np.zeros((dim, dim), dtype=np.complex128)
    for k in range(dim):
        cbit = (k >> (n - 1 - control)) & 1
        kp = k ^ (1 << (n - 1 - target)) if cbit else k
        m[kp, k] = 1.0
    return m


def basic_entangler_unitary(weights, n):
    """Unitary of qml.BasicEntanglerLayers(weights, wires=range(n)): RX on every
    wire followed by a CNOT ring, repeated weights.shape[0] times (MSB-first)."""
    dim = 2 ** n
    U = np.eye(dim, dtype=np.complex128)
    for l in range(weights.shape[0]):
        R = np.array([[1.0 + 0j]])
        for w in range(n):                      # wire 0 = most-significant qubit
            R = np.kron(R, _rx(weights[l, w]))
        layer = R
        for w in range(n):                      # CNOT(0,1), ..., CNOT(n-1,0)
            layer = _cnot(n, w, (w + 1) % n) @ layer
        U = layer @ U
    return U


def pauliz_sign_matrix(n):
    """S[k, i] = <k| Z_i |k> = +1/-1 (PennyLane MSB-first wire ordering)."""
    dim = 2 ** n
    S = np.zeros((dim, n), dtype=np.float32)
    for k in range(dim):
        for i in range(n):
            bit = (k >> (n - 1 - i)) & 1
            S[k, i] = 1.0 - 2.0 * bit
    return S


# --------------------------------- Pallas kernel ---------------------------------------
def hybrid_reid_kernel(x_ref, wbig_ref, bbb_ref, wfc1_ref, bfc1_ref,
                       uri_ref, mbd_ref, bfc2_ref, out_ref):
    # TODO(synk): the pretrained torchreid ResNet-50 backbone is replaced by a
    # global-average-pool + Linear(C -> 2048) stand-in (the 1/(H*W) pool scale
    # is folded into wbig); the 50-layer conv stack itself is not reimplemented.
    x = x_ref[...]                                                       # [TB, C*H*W] bf16
    feat = jnp.dot(x, wbig_ref[...],
                   preferred_element_type=jnp.float32) + bbb_ref[...]    # [TB, 2048]
    # self.backbonefc : Linear(2048, n_layers * 2**n_qubits)
    feat = jnp.dot(feat, wfc1_ref[...],
                   preferred_element_type=jnp.float32) + bfc1_ref[...]   # [TB, 128]

    # Both quantum layers fused: block-diagonal (real | imag) circuit unitary,
    # applied to the un-normalized chunks (U is linear; norm applied later).
    psi = jnp.dot(feat, uri_ref[...], preferred_element_type=jnp.float32)  # [TB, 256]
    psi_r = psi[:, :QFEAT]
    psi_i = psi[:, QFEAT:]
    probs = psi_r * psi_r + psi_i * psi_i           # un-normalized Born probs [TB, 128]

    # PauliZ expvals (S) and classifier fc folded into one block-diag matmul;
    # columns are padded to 128 per layer so the final store is lane-dense.
    c = jnp.dot(probs, mbd_ref[...], preferred_element_type=jnp.float32)   # [TB, 2*128]

    acc = None
    for l in range(N_LAYERS):
        chunk = feat[:, l * QDIM:(l + 1) * QDIM]                  # torch.chunk(features, 2)
        s = jnp.sum(chunk * chunk, axis=-1, keepdims=True)        # ||chunk||^2
        inv = pl.reciprocal(jnp.maximum(s, EPS), approx=True)     # EUP slot, eps-guarded
        term = c[:, l * NC_PAD:(l + 1) * NC_PAD] * inv            # AmplitudeEmbedding norm
        acc = term if acc is None else acc + term
    out_ref[...] = acc + bfc2_ref[...]


# ------------------------------------ wrapper -------------------------------------------
def _round_up(x, m):
    return ((x + m - 1) // m) * m


def _pick_batch_tile(batch, chw, bytes_per_elem, budget_bytes=4 << 20):
    # bf16 sublane quantum is 16; keep the per-buffer x tile within a budget
    # that also fits v7x (64 MiB physical VMEM vs 128 MiB on v5e/v6e).
    tb = min(128, _round_up(batch, 16))
    while tb > 16 and tb * chw * bytes_per_elem > budget_bytes:
        tb //= 2
    return max(tb, 16)


def hybrid_reid_forward(x, params):
    B, C, H, W = x.shape
    chw = C * H * W
    # Lane-dense 2-D layout (no sublane padding) + bf16 streaming of the largest tensor.
    x2d = x.reshape(B, chw).astype(jnp.bfloat16)

    tb = _pick_batch_tile(B, chw, 2)
    b_pad = _round_up(B, tb)
    if b_pad != B:
        x2d = jnp.pad(x2d, ((0, b_pad - B), (0, 0)))

    weights = (params["wbig"], params["bbb"], params["wfc1"], params["bfc1"],
               params["uri"], params["mbd"], params["bfc2"])

    in_specs = [pl.BlockSpec((tb, chw), lambda i: (i, 0))]
    # Constant index_map -> weight blocks stay resident across grid steps (no re-DMA).
    in_specs += [pl.BlockSpec(w.shape, lambda i: (0, 0)) for w in weights]
    out_spec = pl.BlockSpec((tb, NC_PAD), lambda i: (i, 0))

    weight_bytes = sum(int(w.size) * w.dtype.itemsize for w in weights)
    tile_bytes = tb * chw * 2 + tb * NC_PAD * 4
    vmem_limit = int(min(2 * weight_bytes + 2 * tile_bytes + (8 << 20), 64 << 20))

    out = pl.pallas_call(
        hybrid_reid_kernel,
        out_shape=jax.ShapeDtypeStruct((b_pad, NC_PAD), jnp.float32),
        grid=(b_pad // tb,),
        in_specs=in_specs,
        out_specs=out_spec,
        compiler_params=pltpu.CompilerParams(
            dimension_semantics=("parallel",),       # shard batch tiles across TCs (v7x)
            vmem_limit_bytes=vmem_limit),
    )(x2d, *weights)
    return out[:B, :NUM_CLASSES]


# ----------------------------- deterministic parameters --------------------------------
def init_params(key, in_channels, hw):
    ks = jax.random.split(key, 7)
    wbb  = np.asarray(jax.random.normal(ks[0], (in_channels, BACKBONE_FEAT), jnp.float32)) * 0.05
    bbb  = np.asarray(jax.random.normal(ks[1], (BACKBONE_FEAT,), jnp.float32)) * 0.01
    wfc1 = np.asarray(jax.random.normal(ks[2], (BACKBONE_FEAT, QFEAT), jnp.float32)) * 0.02
    bfc1 = np.asarray(jax.random.normal(ks[3], (QFEAT,), jnp.float32)) * 0.01
    wfc2 = np.asarray(jax.random.normal(ks[4], (N_LAYERS * N_QUBITS, NUM_CLASSES), jnp.float32)) * 0.1
    bfc2 = np.asarray(jax.random.normal(ks[5], (NUM_CLASSES,), jnp.float32)) * 0.01

    # one (n_layers, n_qubits) weight tensor per quantum TorchLayer
    qweights = np.asarray(
        jax.random.uniform(ks[6], (N_LAYERS, N_LAYERS, N_QUBITS), jnp.float32,
                           0.0, 2.0 * np.pi), dtype=np.float64)

    # GAP (1/HW) + backbone Linear folded into one [C*HW, 2048] streaming weight.
    wbig = np.repeat(wbb / float(hw), hw, axis=0).astype(np.float32)

    # Block-diagonal (real | imag) transposed circuit unitaries for both layers.
    uri = np.zeros((QFEAT, 2 * QFEAT), np.float32)
    # PauliZ signs folded into the classifier fc, block-diagonal, padded to 128 cols/layer.
    S = pauliz_sign_matrix(N_QUBITS)                                   # [64, 6]
    mbd = np.zeros((QFEAT, N_LAYERS * NC_PAD), np.float32)
    for l in range(N_LAYERS):
        U = basic_entangler_unitary(qweights[l], N_QUBITS)
        uri[l * QDIM:(l + 1) * QDIM, l * QDIM:(l + 1) * QDIM] = np.real(U).T
        uri[l * QDIM:(l + 1) * QDIM, QFEAT + l * QDIM:QFEAT + (l + 1) * QDIM] = np.imag(U).T
        mbd[l * QDIM:(l + 1) * QDIM, l * NC_PAD:l * NC_PAD + NUM_CLASSES] = \
            S @ wfc2[l * N_QUBITS:(l + 1) * N_QUBITS, :]

    bfc2_pad = np.zeros((1, NC_PAD), np.float32)
    bfc2_pad[0, :NUM_CLASSES] = bfc2

    return dict(
        wbig=jnp.asarray(wbig, jnp.bfloat16),          # bf16 x bf16 -> f32 MXU matmul
        bbb=jnp.asarray(bbb.reshape(1, -1), jnp.float32),
        wfc1=jnp.asarray(wfc1, jnp.float32),
        bfc1=jnp.asarray(bfc1.reshape(1, -1), jnp.float32),
        uri=jnp.asarray(uri, jnp.float32),
        mbd=jnp.asarray(mbd, jnp.float32),
        bfc2=jnp.asarray(bfc2_pad, jnp.float32),
    )


if __name__ == "__main__":
    key = jax.random.PRNGKey(0)
    xkey, pkey = jax.random.split(key)
    B, C, H, W = 2, 4, 16, 16
    x = jax.random.normal(xkey, (B, C, H, W), jnp.float32)   # NCHW, like the PyTorch module
    params = init_params(pkey, C, H * W)

    out = hybrid_reid_forward(x, params)
    jax.block_until_ready(out)
    assert out.shape == (B, NUM_CLASSES)
    assert bool(jnp.all(jnp.isfinite(out)))
    print("KERNEL_OK")
</pallas_src>

<mosaic_0001>
module attributes {stable_mosaic.version = 11 : i64} {
  func.func @hybrid_reid_kernel(%arg0: i32, %arg1: memref<16x1024xbf16, #tpu.memory_space<vmem>>, %arg2: memref<1024x2048xbf16, #tpu.memory_space<vmem>>, %arg3: memref<1x2048xf32, #tpu.memory_space<vmem>>, %arg4: memref<2048x128xf32, #tpu.memory_space<vmem>>, %arg5: memref<1x128xf32, #tpu.memory_space<vmem>>, %arg6: memref<128x256xf32, #tpu.memory_space<vmem>>, %arg7: memref<128x256xf32, #tpu.memory_space<vmem>>, %arg8: memref<1x128xf32, #tpu.memory_space<vmem>>, %arg9: memref<16x128xf32, #tpu.memory_space<vmem>>) attributes {dimension_semantics = [#tpu.dimension_semantics<parallel>], iteration_bounds = array<i64: 1>, scalar_prefetch = 0 : i64, scratch_operands = 0 : i64, tpu.core_type = #tpu.core_type<tc>, window_params = [{transform_indices = @transform_0, window_bounds = array<i64: 16, 1024>}, {pipeline_mode = #tpu.pipeline_mode<synchronous>, transform_indices = @transform_1, window_bounds = array<i64: 1024, 2048>}, {pipeline_mode = #tpu.pipeline_mode<synchronous>, transform_indices = @transform_2, window_bounds = array<i64: 1, 2048>}, {pipeline_mode = #tpu.pipeline_mode<synchronous>, transform_indices = @transform_3, window_bounds = array<i64: 2048, 128>}, {pipeline_mode = #tpu.pipeline_mode<synchronous>, transform_indices = @transform_4, window_bounds = array<i64: 1, 128>}, {pipeline_mode = #tpu.pipeline_mode<synchronous>, transform_indices = @transform_5, window_bounds = array<i64: 128, 256>}, {pipeline_mode = #tpu.pipeline_mode<synchronous>, transform_indices = @transform_6, window_bounds = array<i64: 128, 256>}, {pipeline_mode = #tpu.pipeline_mode<synchronous>, transform_indices = @transform_7, window_bounds = array<i64: 1, 128>}, {transform_indices = @transform_8, window_bounds = array<i64: 16, 128>}]} {
    %c0 = arith.constant 0 : index
    %c0_0 = arith.constant 0 : index
    %0 = vector.load %arg1[%c0, %c0_0] : memref<16x1024xbf16, #tpu.memory_space<vmem>>, vector<16x1024xbf16>
    %c0_1 = arith.constant 0 : index
    %c0_2 = arith.constant 0 : index
    %1 = vector.load %arg2[%c0_1, %c0_2] : memref<1024x2048xbf16, #tpu.memory_space<vmem>>, vector<1024x2048xbf16>
    %cst = arith.constant dense<0.000000e+00> : vector<16x2048xf32>
    %2 = tpu.matmul %0, %1, %cst {dimension_numbers = #tpu.dot_dimension_numbers<[1], [0], [0], [1], [0, 0, 1, 1], [], []>} : vector<16x1024xbf16>, vector<1024x2048xbf16>, vector<16x2048xf32> -> vector<16x2048xf32>
    %c0_3 = arith.constant 0 : index
    %c0_4 = arith.constant 0 : index
    %3 = vector.load %arg3[%c0_3, %c0_4] : memref<1x2048xf32, #tpu.memory_space<vmem>>, vector<1x2048xf32>
    %4 = vector.broadcast %3 : vector<1x2048xf32> to vector<16x2048xf32>
    %5 = arith.addf %2, %4 : vector<16x2048xf32>
    %c0_5 = arith.constant 0 : index
    %c0_6 = arith.constant 0 : index
    %6 = vector.load %arg4[%c0_5, %c0_6] : memref<2048x128xf32, #tpu.memory_space<vmem>>, vector<2048x128xf32>
    %cst_7 = arith.constant dense<0.000000e+00> : vector<16x128xf32>
    %7 = tpu.matmul %5, %6, %cst_7 {dimension_numbers = #tpu.dot_dimension_numbers<[1], [0], [0], [1], [0, 0, 1, 1], [], []>} : vector<16x2048xf32>, vector<2048x128xf32>, vector<16x128xf32> -> vector<16x128xf32>
    %c0_8 = arith.constant 0 : index
    %c0_9 = arith.constant 0 : index
    %8 = vector.load %arg5[%c0_8, %c0_9] : memref<1x128xf32, #tpu.memory_space<vmem>>, vector<1x128xf32>
    %9 = vector.broadcast %8 : vector<1x128xf32> to vector<16x128xf32>
    %10 = arith.addf %7, %9 : vector<16x128xf32>
    %c0_10 = arith.constant 0 : index
    %c0_11 = arith.constant 0 : index
    %11 = vector.load %arg6[%c0_10, %c0_11] : memref<128x256xf32, #tpu.memory_space<vmem>>, vector<128x256xf32>
    %cst_12 = arith.constant dense<0.000000e+00> : vector<16x256xf32>
    %12 = tpu.matmul %10, %11, %cst_12 {dimension_numbers = #tpu.dot_dimension_numbers<[1], [0], [0], [1], [0, 0, 1, 1], [], []>} : vector<16x128xf32>, vector<128x256xf32>, vector<16x256xf32> -> vector<16x256xf32>
    %13 = vector.extract_strided_slice %12 {offsets = [0, 0], sizes = [16, 128], strides = [1, 1]} : vector<16x256xf32> to vector<16x128xf32>
    %14 = vector.extract_strided_slice %12 {offsets = [0, 128], sizes = [16, 128], strides = [1, 1]} : vector<16x256xf32> to vector<16x128xf32>
    %15 = arith.mulf %13, %13 : vector<16x128xf32>
    %16 = arith.mulf %14, %14 : vector<16x128xf32>
    %17 = arith.addf %15, %16 : vector<16x128xf32>
    %c0_13 = arith.constant 0 : index
    %c0_14 = arith.constant 0 : index
    %18 = vector.load %arg7[%c0_13, %c0_14] : memref<128x256xf32, #tpu.memory_space<vmem>>, vector<128x256xf32>
    %cst_15 = arith.constant dense<0.000000e+00> : vector<16x256xf32>
    %19 = tpu.matmul %17, %18, %cst_15 {dimension_numbers = #tpu.dot_dimension_numbers<[1], [0], [0], [1], [0, 0, 1, 1], [], []>} : vector<16x128xf32>, vector<128x256xf32>, vector<16x256xf32> -> vector<16x256xf32>
    %20 = vector.extract_strided_slice %10 {offsets = [0, 0], sizes = [16, 64], strides = [1, 1]} : vector<16x128xf32> to vector<16x64xf32>
    %21 = arith.mulf %20, %20 : vector<16x64xf32>
    %cst_16 = arith.constant dense<0.000000e+00> : vector<16xf32>
    %22 = vector.multi_reduction <add>, %21, %cst_16 [1] : vector<16x64xf32> to vector<16xf32>
    %23 = vector.shape_cast %22 : vector<16xf32> to vector<16x1xf32>
    %cst_17 = arith.constant 9.99999996E-13 : f32
    %24 = vector.broadcast %cst_17 : f32 to vector<16x1xf32>
    %25 = arith.maximumf %23, %24 : vector<16x1xf32>
    %26 = tpu.reciprocal %25 {approx = true} : vector<16x1xf32> -> vector<16x1xf32>
    %27 = vector.extract_strided_slice %19 {offsets = [0, 0], sizes = [16, 128], strides = [1, 1]} : vector<16x256xf32> to vector<16x128xf32>
    %28 = vector.broadcast %26 : vector<16x1xf32> to vector<16x128xf32>
    %29 = arith.mulf %27, %28 : vector<16x128xf32>
    %30 = vector.extract_strided_slice %10 {offsets = [0, 64], sizes = [16, 64], strides = [1, 1]} : vector<16x128xf32> to vector<16x64xf32>
    %31 = arith.mulf %30, %30 : vector<16x64xf32>
    %cst_18 = arith.constant dense<0.000000e+00> : vector<16xf32>
    %32 = vector.multi_reduction <add>, %31, %cst_18 [1] : vector<16x64xf32> to vector<16xf32>
    %33 = vector.shape_cast %32 : vector<16xf32> to vector<16x1xf32>
    %cst_19 = arith.constant 9.99999996E-13 : f32
    %34 = vector.broadcast %cst_19 : f32 to vector<16x1xf32>
    %35 = arith.maximumf %33, %34 : vector<16x1xf32>
    %36 = tpu.reciprocal %35 {approx = true} : vector<16x1xf32> -> vector<16x1xf32>
    %37 = vector.extract_strided_slice %19 {offsets = [0, 128], sizes = [16, 128], strides = [1, 1]} : vector<16x256xf32> to vector<16x128xf32>
    %38 = vector.broadcast %36 : vector<16x1xf32> to vector<16x128xf32>
    %39 = arith.mulf %37, %38 : vector<16x128xf32>
    %40 = arith.addf %29, %39 : vector<16x128xf32>
    %c0_20 = arith.constant 0 : index
    %c0_21 = arith.constant 0 : index
    %41 = vector.load %arg8[%c0_20, %c0_21] : memref<1x128xf32, #tpu.memory_space<vmem>>, vector<1x128xf32>
    %42 = vector.broadcast %41 : vector<1x128xf32> to vector<16x128xf32>
    %43 = arith.addf %40, %42 : vector<16x128xf32>
    %c0_22 = arith.constant 0 : index
    %c0_23 = arith.constant 0 : index
    %44 = vector.load %arg9[%c0_22, %c0_23] : memref<16x128xf32, #tpu.memory_space<vmem>>, vector<16x128xf32>
    tpu.vector_store %arg9[%c0_22, %c0_23], %43 {strides = array<i32>} : memref<16x128xf32, #tpu.memory_space<vmem>>, vector<16x128xf32>,
    return
  }
  func.func @transform_0(%arg0: i32) -> (i32, i32) {
    %c0_i32 = arith.constant 0 : i32
    %c0_i32_0 = arith.constant 0 : i32
    return %arg0, %c0_i32 : i32, i32
  }
  func.func @transform_1(%arg0: i32) -> (i32, i32) {
    %c0_i32 = arith.constant 0 : i32
    %c0_i32_0 = arith.constant 0 : i32
    %c0_i32_1 = arith.constant 0 : i32
    return %c0_i32, %c0_i32_0 : i32, i32
  }
  func.func @transform_2(%arg0: i32) -> (i32, i32) {
    %c0_i32 = arith.constant 0 : i32
    %c0_i32_0 = arith.constant 0 : i32
    %c0_i32_1 = arith.constant 0 : i32
    return %c0_i32, %c0_i32_0 : i32, i32
  }
  func.func @transform_3(%arg0: i32) -> (i32, i32) {
    %c0_i32 = arith.constant 0 : i32
    %c0_i32_0 = arith.constant 0 : i32
    %c0_i32_1 = arith.constant 0 : i32
    return %c0_i32, %c0_i32_0 : i32, i32
  }
  func.func @transform_4(%arg0: i32) -> (i32, i32) {
    %c0_i32 = arith.constant 0 : i32
    %c0_i32_0 = arith.constant 0 : i32
    %c0_i32_1 = arith.constant 0 : i32
    return %c0_i32, %c0_i32_0 : i32, i32
  }
  func.func @transform_5(%arg0: i32) -> (i32, i32) {
    %c0_i32 = arith.constant 0 : i32
    %c0_i32_0 = arith.constant 0 : i32
    %c0_i32_1 = arith.constant 0 : i32
    return %c0_i32, %c0_i32_0 : i32, i32
  }
  func.func @transform_6(%arg0: i32) -> (i32, i32) {
    %c0_i32 = arith.constant 0 : i32
    %c0_i32_0 = arith.constant 0 : i32
    %c0_i32_1 = arith.constant 0 : i32
    return %c0_i32, %c0_i32_0 : i32, i32
  }
  func.func @transform_7(%arg0: i32) -> (i32, i32) {
    %c0_i32 = arith.constant 0 : i32
    %c0_i32_0 = arith.constant 0 : i32
    %c0_i32_1 = arith.constant 0 : i32
    return %c0_i32, %c0_i32_0 : i32, i32
  }
  func.func @transform_8(%arg0: i32) -> (i32, i32) {
    %c0_i32 = arith.constant 0 : i32
    %c0_i32_0 = arith.constant 0 : i32
    return %arg0, %c0_i32 : i32, i32
  }
}

</mosaic_0001>

<llo_original>
// kernel: tpu_custom_call.1
$region0: #{tpu_custom_call.1}
  #allocation0 [shape = 'u32[]', space=smem, size = 0x4, offset = 0x4, fixed_abs, tag = 'smem constant byte address 0x4 - core index']
  #allocation1 [shape = 'u32[144,128]{1,0:T(1,128)}', space=vmem, size = 0x12000, scoped, tag = 'internal scratch']
  %s0 = inlined_call_operand.hbm [shape: bf16[16,1024], index: 0, kind: input, shape index: {}]
  %s1 = inlined_call_operand.hbm [shape: bf16[1024,2048], index: 1, kind: input, shape index: {}]
  %s2 = inlined_call_operand.hbm [shape: f32[1,2048], index: 2, kind: input, shape index: {}]
  %s3 = inlined_call_operand.hbm [shape: f32[2048,128], index: 3, kind: input, shape index: {}]
  %s4 = inlined_call_operand.hbm [shape: f32[1,128], index: 4, kind: input, shape index: {}]
  %s5 = inlined_call_operand.hbm [shape: f32[128,256], index: 5, kind: input, shape index: {}]
  %s6 = inlined_call_operand.hbm [shape: f32[128,256], index: 6, kind: input, shape index: {}]
  %s7 = inlined_call_operand.hbm [shape: f32[1,128], index: 7, kind: input, shape index: {}]
  %s8 = inlined_call_operand.hbm [shape: f32[16,128], index: 8, kind: output, shape index: {}]
  %s9 = sld [smem:[#allocation0]]
  $region74: #{tpu_custom_call.1} parent=0
    _
  %s11 = ssub.s32 1, %s9
  %s12 = scalar_select 0, %s11, %s9
  $region1: #{tpu_custom_call.1} parent=0
    #allocation2 [shape = 'u8[32768]{0}', space=vmem, size = 0x8000, scoped, tag = 'input window, operand 0, single buffered']
    #allocation3 [shape = 's32[1]{0}', space=sflag, size = 0x4, scoped, tag = 'scoped memory for tpu_custom_call.1']
    #allocation4 [shape = 's32[1]{0}', space=sflag, size = 0x4, scoped, tag = 'scoped memory for tpu_custom_call.1']
    #allocation5 [shape = 'u8[4194304]{0}', space=vmem, size = 0x400000, scoped, tag = 'input window, operand 1, single buffered']
    #allocation6 [shape = 's32[1]{0}', space=sflag, size = 0x4, scoped, tag = 'scoped memory for tpu_custom_call.1']
    #allocation7 [shape = 'u8[8192]{0}', space=vmem, size = 0x2000, scoped, tag = 'input window, operand 2, single buffered']
    #allocation8 [shape = 'u8[1048576]{0}', space=vmem, size = 0x100000, scoped, tag = 'input window, operand 3, single buffered']
    #allocation9 [shape = 's32[1]{0}', space=sflag, size = 0x4, scoped, tag = 'scoped memory for tpu_custom_call.1']
    #allocation10 [shape = 'u8[512]{0}', space=vmem, size = 0x400, scoped, tag = 'input window, operand 4, single buffered']
    #allocation11 [shape = 'u8[131072]{0}', space=vmem, size = 0x20000, scoped, tag = 'input window, operand 5, single buffered']
    #allocation12 [shape = 's32[1]{0}', space=sflag, size = 0x4, scoped, tag = 'scoped memory for tpu_custom_call.1']
    #allocation13 [shape = 'u8[131072]{0}', space=vmem, size = 0x20000, scoped, tag = 'input window, operand 6, single buffered']
    #allocation14 [shape = 'u8[512]{0}', space=vmem, size = 0x400, scoped, tag = 'input window, operand 7, single buffered']
    #allocation15 [shape = 's32[1]{0}', space=sflag, size = 0x4, scoped, tag = 'scoped memory for tpu_custom_call.1']
    #allocation16 [shape = 'u8[8192]{0}', space=vmem, size = 0x2000, scoped, tag = 'output window, operand 0, single buffered']
    %13 = vsyncpa [#allocation3], 0
    %14 = vsyncpa [#allocation6], 0
    %15 = vsyncpa [#allocation9], 0
    %16 = vsyncpa [#allocation12], 0
    %17 = vsyncpa [#allocation15], 0
    %18 = vsyncpa [#allocation4], 0
    // Predicated region
    $region2: #{tpu_custom_call.1} parent=1 // pred_check
      _
    $region3: #{tpu_custom_call.1} parent=1 // pred_check_branch
      %20 = sbr.rel (0) target = $region5
    $region4: #{tpu_custom_call.1} parent=1 // pred_region
      %s22 = ssub.s32 1024, 1024
      %23 = vsyncadd [#allocation3], %s22
      %s24 = sshll.u32 [#allocation2], 4
      %s25 = int_to_ptr.vmem [resolvable:$true] %s24
      %30 = dma.hbm_to_vmem [thread:$0]  %s0, 1024, %s25, [#allocation3], 512, 512, 32
    $region5: #{tpu_custom_call.1} parent=1 // pred_fallthru
      _
    // Predicated region
    $region6: #{tpu_custom_call.1} parent=1 // pred_check
      _
    $region7: #{tpu_custom_call.1} parent=1 // pred_check_branch
      %32 = sbr.rel (0) target = $region9
    $region8: #{tpu_custom_call.1} parent=1 // pred_region
      %s34 = ssub.s32 131072, 131072
      %35 = vsyncadd [#allocation6], %s34
      %s36 = sshll.u32 [#allocation5], 4
      %s37 = int_to_ptr.vmem [resolvable:$true] %s36
      %42 = dma.hbm_to_vmem [thread:$0]  %s1, 131072, %s37, [#allocation6], 1024, 1024, 64
    $region9: #{tpu_custom_call.1} parent=1 // pred_fallthru
      _
    // Predicated region
    $region10: #{tpu_custom_call.1} parent=1 // pred_check
      _
    $region11: #{tpu_custom_call.1} parent=1 // pred_check_branch
      %44 = sbr.rel (0) target = $region13
    $region12: #{tpu_custom_call.1} parent=1 // pred_region
      %s46 = ssub.s32 256, 256
      %47 = vsyncadd [#allocation6], %s46
      %s49 = sshll.u32 [#allocation7], 4
      %s50 = int_to_ptr.vmem [resolvable:$true] %s49
      %52 = dma.hbm_to_vmem [thread:$0]  %s2, 256, %s50, [#allocation6]
    $region13: #{tpu_custom_call.1} parent=1 // pred_fallthru
      _
    // Predicated region
    $region14: #{tpu_custom_call.1} parent=1 // pred_check
      _
    $region15: #{tpu_custom_call.1} parent=1 // pred_check_branch
      %54 = sbr.rel (0) target = $region17
    $region16: #{tpu_custom_call.1} parent=1 // pred_region
      %s56 = ssub.s32 32768, 32768
      %57 = vsyncadd [#allocation9], %s56
      %s58 = sshll.u32 [#allocation8], 4
      %s59 = int_to_ptr.vmem [resolvable:$true] %s58
      %64 = dma.hbm_to_vmem [thread:$0]  %s3, 32768, %s59, [#allocation9], 128, 128, 8
    $region17: #{tpu_custom_call.1} parent=1 // pred_fallthru
      _
    // Predicated region
    $region18: #{tpu_custom_call.1} parent=1 // pred_check
      _
    $region19: #{tpu_custom_call.1} parent=1 // pred_check_branch
      %66 = sbr.rel (0) target = $region21
    $region20: #{tpu_custom_call.1} parent=1 // pred_region
      %s68 = ssub.s32 16, 16
      %69 = vsyncadd [#allocation9], %s68
      %s71 = sshll.u32 [#allocation10], 4
      %s72 = int_to_ptr.vmem [resolvable:$true] %s71
      %74 = dma.hbm_to_vmem [thread:$0]  %s4, 16, %s72, [#allocation9]
    $region21: #{tpu_custom_call.1} parent=1 // pred_fallthru
      _
    // Predicated region
    $region22: #{tpu_custom_call.1} parent=1 // pred_check
      _
    $region23: #{tpu_custom_call.1} parent=1 // pred_check_branch
      %76 = sbr.rel (0) target = $region25
    $region24: #{tpu_custom_call.1} parent=1 // pred_region
      %s78 = ssub.s32 4096, 4096
      %79 = vsyncadd [#allocation12], %s78
      %s80 = sshll.u32 [#allocation11], 4
      %s81 = int_to_ptr.vmem [resolvable:$true] %s80
      %86 = dma.hbm_to_vmem [thread:$0]  %s5, 4096, %s81, [#allocation12], 256, 256, 16
    $region25: #{tpu_custom_call.1} parent=1 // pred_fallthru
      _
    // Predicated region
    $region26: #{tpu_custom_call.1} parent=1 // pred_check
      _
    $region27: #{tpu_custom_call.1} parent=1 // pred_check_branch
      %88 = sbr.rel (0) target = $region29
    $region28: #{tpu_custom_call.1} parent=1 // pred_region
      %s90 = ssub.s32 4096, 4096
      %91 = vsyncadd [#allocation12], %s90
      %s92 = sshll.u32 [#allocation13], 4
      %s93 = int_to_ptr.vmem [resolvable:$true] %s92
      %98 = dma.hbm_to_vmem [thread:$0]  %s6, 4096, %s93, [#allocation12], 256, 256, 16
    $region29: #{tpu_custom_call.1} parent=1 // pred_fallthru
      _
    // Predicated region
    $region30: #{tpu_custom_call.1} parent=1 // pred_check
      _
    $region31: #{tpu_custom_call.1} parent=1 // pred_check_branch
      %100 = sbr.rel (0) target = $region33
    $region32: #{tpu_custom_call.1} parent=1 // pred_region
      %s102 = ssub.s32 16, 16
      %103 = vsyncadd [#allocation15], %s102
      %s105 = sshll.u32 [#allocation14], 4
      %s106 = int_to_ptr.vmem [resolvable:$true] %s105
      %108 = dma.hbm_to_vmem [thread:$0]  %s7, 16, %s106, [#allocation15]
    $region33: #{tpu_custom_call.1} parent=1 // pred_fallthru
      _
    // Predicated region
    $region34: #{tpu_custom_call.1} parent=1 // pred_check
      _
    $region35: #{tpu_custom_call.1} parent=1 // pred_check_branch
      %110 = sbr.rel (0) target = $region37
    $region36: #{tpu_custom_call.1} parent=1 // pred_region
      %111 = dma.done [#allocation3], 1024
    $region37: #{tpu_custom_call.1} parent=1 // pred_fallthru
      _
    // Predicated region
    $region38: #{tpu_custom_call.1} parent=1 // pred_check
      _
    $region39: #{tpu_custom_call.1} parent=1 // pred_check_branch
      %113 = sbr.rel (0) target = $region41
    $region40: #{tpu_custom_call.1} parent=1 // pred_region
      %114 = dma.done [#allocation6], 131072
    $region41: #{tpu_custom_call.1} parent=1 // pred_fallthru
      _
    // Predicated region
    $region42: #{tpu_custom_call.1} parent=1 // pred_check
      _
    $region43: #{tpu_custom_call.1} parent=1 // pred_check_branch
      %116 = sbr.rel (0) target = $region45
    $region44: #{tpu_custom_call.1} parent=1 // pred_region
      %117 = dma.done [#allocation6], 256
    $region45: #{tpu_custom_call.1} parent=1 // pred_fallthru
      _
    // Predicated region
    $region46: #{tpu_custom_call.1} parent=1 // pred_check
      _
    $region47: #{tpu_custom_call.1} parent=1 // pred_check_branch
      %119 = sbr.rel (0) target = $region49
    $region48: #{tpu_custom_call.1} parent=1 // pred_region
      %120 = dma.done [#allocation9], 32768
    $region49: #{tpu_custom_call.1} parent=1 // pred_fallthru
      _
    // Predicated region
    $region50: #{tpu_custom_call.1} parent=1 // pred_check
      _
    $region51: #{tpu_custom_call.1} parent=1 // pred_check_branch
      %122 = sbr.rel (0) target = $region53
    $region52: #{tpu_custom_call.1} parent=1 // pred_region
      %123 = dma.done [#allocation9], 16
    $region53: #{tpu_custom_call.1} parent=1 // pred_fallthru
      _
    // Predicated region
    $region54: #{tpu_custom_call.1} parent=1 // pred_check
      _
    $region55: #{tpu_custom_call.1} parent=1 // pred_check_branch
      %125 = sbr.rel (0) target = $region57
    $region56: #{tpu_custom_call.1} parent=1 // pred_region
      %126 = dma.done [#allocation12], 4096
    $region57: #{tpu_custom_call.1} parent=1 // pred_fallthru
      _
    // Predicated region
    $region58: #{tpu_custom_call.1} parent=1 // pred_check
      _
    $region59: #{tpu_custom_call.1} parent=1 // pred_check_branch
      %128 = sbr.rel (0) target = $region61
    $region60: #{tpu_custom_call.1} parent=1 // pred_region
      %129 = dma.done [#allocation12], 4096
    $region61: #{tpu_custom_call.1} parent=1 // pred_fallthru
      _
    // Predicated region
    $region62: #{tpu_custom_call.1} parent=1 // pred_check
      _
    $region63: #{tpu_custom_call.1} parent=1 // pred_check_branch
      %131 = sbr.rel (0) target = $region65
    $region64: #{tpu_custom_call.1} parent=1 // pred_region
      %132 = dma.done [#allocation15], 16
    $region65: #{tpu_custom_call.1} parent=1 // pred_fallthru
      _
    %v133 = vld [vmem:[#allocation2] sm:$0xff]
    %v134 = vld [vmem:[#allocation2 + $0x8] sm:$0xff]
    %v135 = vld [vmem:[#allocation2 + $0x10] sm:$0xff]
    %v136 = vld [vmem:[#allocation2 + $0x18] sm:$0xff]
    %v137 = vld [vmem:[#allocation2 + $0x20] sm:$0xff]
    %v138 = vld [vmem:[#allocation2 + $0x28] sm:$0xff]
    %v139 = vld [vmem:[#allocation2 + $0x30] sm:$0xff]
    %v140 = vld [vmem:[#allocation2 + $0x38] sm:$0xff]
    %v141 = vld [vmem:[#allocation5] sm:$0xff]
    %v142 = vld [vmem:[#allocation5 + $0x8] sm:$0xff]
    %v143 = vld [vmem:[#allocation5 + $0x10] sm:$0xff]
    %v144 = vld [vmem:[#allocation5 + $0x18] sm:$0xff]
    %v145 = vld [vmem:[#allocation5 + $0x20] sm:$0xff]
    %v146 = vld [vmem:[#allocation5 + $0x28] sm:$0xff]
    %v147 = vld [vmem:[#allocation5 + $0x30] sm:$0xff]
    %v148 = vld [vmem:[#allocation5 + $0x38] sm:$0xff]
    %v149 = vld [vmem:[#allocation5 + $0x40] sm:$0xff]
    %v150 = vld [vmem:[#allocation5 + $0x48] sm:$0xff]
    %v151 = vld [vmem:[#allocation5 + $0x50] sm:$0xff]
    %v152 = vld [vmem:[#allocation5 + $0x58] sm:$0xff]
    %v153 = vld [vmem:[#allocation5 + $0x60] sm:$0xff]
    %v154 = vld [vmem:[#allocation5 + $0x68] sm:$0xff]
    %v155 = vld [vmem:[#allocation5 + $0x70] sm:$0xff]
    %v156 = vld [vmem:[#allocation5 + $0x78] sm:$0xff]
    %v157 = vld [vmem:[#allocation5 + $0x80] sm:$0xff]
    %v158 = vld [vmem:[#allocation5 + $0x88] sm:$0xff]
    %v159 = vld [vmem:[#allocation5 + $0x90] sm:$0xff]
    %v160 = vld [vmem:[#allocation5 + $0x98] sm:$0xff]
    %v161 = vld [vmem:[#allocation5 + $0xa0] sm:$0xff]
    %v162 = vld [vmem:[#allocation5 + $0xa8] sm:$0xff]
    %v163 = vld [vmem:[#allocation5 + $0xb0] sm:$0xff]
    %v164 = vld [vmem:[#allocation5 + $0xb8] sm:$0xff]
    %v165 = vld [vmem:[#allocation5 + $0xc0] sm:$0xff]
    %v166 = vld [vmem:[#allocation5 + $0xc8] sm:$0xff]
    %v167 = vld [vmem:[#allocation5 + $0xd0] sm:$0xff]
    %v168 = vld [vmem:[#allocation5 + $0xd8] sm:$0xff]
    %v169 = vld [vmem:[#allocation5 + $0xe0] sm:$0xff]
    %v170 = vld [vmem:[#allocation5 + $0xe8] sm:$0xff]
    %v171 = vld [vmem:[#allocation5 + $0xf0] sm:$0xff]
    %v172 = vld [vmem:[#allocation5 + $0xf8] sm:$0xff]
    %v173 = vld [vmem:[#allocation5 + $0x100] sm:$0xff]
    %v174 = vld [vmem:[#allocation5 + $0x108] sm:$0xff]
    %v175 = vld [vmem:[#allocation5 + $0x110] sm:$0xff]
    %v176 = vld [vmem:[#allocation5 + $0x118] sm:$0xff]
    %v177 = vld [vmem:[#allocation5 + $0x120] sm:$0xff]
    %v178 = vld [vmem:[#allocation5 + $0x128] sm:$0xff]
    %v179 = vld [vmem:[#allocation5 + $0x130] sm:$0xff]
    %v180 = vld [vmem:[#allocation5 + $0x138] sm:$0xff]
    %v181 = vld [vmem:[#allocation5 + $0x140] sm:$0xff]
    %v182 = vld [vmem:[#allocation5 + $0x148] sm:$0xff]
    %v183 = vld [vmem:[#allocation5 + $0x150] sm:$0xff]
    %v184 = vld [vmem:[#allocation5 + $0x158] sm:$0xff]
    %v185 = vld [vmem:[#allocation5 + $0x160] sm:$0xff]
    %v186 = vld [vmem:[#allocation5 + $0x168] sm:$0xff]
    %v187 = vld [vmem:[#allocation5 + $0x170] sm:$0xff]
    %v188 = vld [vmem:[#allocation5 + $0x178] sm:$0xff]
    %v189 = vld [vmem:[#allocation5 + $0x180] sm:$0xff]
    %v190 = vld [vmem:[#allocation5 + $0x188] sm:$0xff]
    %v191 = vld [vmem:[#allocation5 + $0x190] sm:$0xff]
    %v192 = vld [vmem:[#allocation5 + $0x198] sm:$0xff]
    %v193 = vld [vmem:[#allocation5 + $0x1a0] sm:$0xff]
    %v194 = vld [vmem:[#allocation5 + $0x1a8] sm:$0xff]
    %v195 = vld [vmem:[#allocation5 + $0x1b0] sm:$0xff]
    %v196 = vld [vmem:[#allocation5 + $0x1b8] sm:$0xff]
    %v197 = vld [vmem:[#allocation5 + $0x1c0] sm:$0xff]
    %v198 = vld [vmem:[#allocation5 + $0x1c8] sm:$0xff]
    %v199 = vld [vmem:[#allocation5 + $0x1d0] sm:$0xff]
    %v200 = vld [vmem:[#allocation5 + $0x1d8] sm:$0xff]
    %v201 = vld [vmem:[#allocation5 + $0x1e0] sm:$0xff]
    %v202 = vld [vmem:[#allocation5 + $0x1e8] sm:$0xff]
    %v203 = vld [vmem:[#allocation5 + $0x1f0] sm:$0xff]
    %v204 = vld [vmem:[#allocation5 + $0x1f8] sm:$0xff]
    %v205 = vld [vmem:[#allocation5 + $0x200] sm:$0xff]
    %v206 = vld [vmem:[#allocation5 + $0x208] sm:$0xff]
    %v207 = vld [vmem:[#allocation5 + $0x210] sm:$0xff]
    %v208 = vld [vmem:[#allocation5 + $0x218] sm:$0xff]
    %v209 = vld [vmem:[#allocation5 + $0x220] sm:$0xff]
    %v210 = vld [vmem:[#allocation5 + $0x228] sm:$0xff]
    %v211 = vld [vmem:[#allocation5 + $0x230] sm:$0xff]
    %v212 = vld [vmem:[#allocation5 + $0x238] sm:$0xff]
    %v213 = vld [vmem:[#allocation5 + $0x240] sm:$0xff]
    %v214 = vld [vmem:[#allocation5 + $0x248] sm:$0xff]
    %v215 = vld [vmem:[#allocation5 + $0x250] sm:$0xff]
    %v216 = vld [vmem:[#allocation5 + $0x258] sm:$0xff]
    %v217 = vld [vmem:[#allocation5 + $0x260] sm:$0xff]
    %v218 = vld [vmem:[#allocation5 + $0x268] sm:$0xff]
    %v219 = vld [vmem:[#allocation5 + $0x270] sm:$0xff]
    %v220 = vld [vmem:[#allocation5 + $0x278] sm:$0xff]
    %v221 = vld [vmem:[#allocation5 + $0x280] sm:$0xff]
    %v222 = vld [vmem:[#allocation5 + $0x288] sm:$0xff]
    %v223 = vld [vmem:[#allocation5 + $0x290] sm:$0xff]
    %v224 = vld [vmem:[#allocation5 + $0x298] sm:$0xff]
    %v225 = vld [vmem:[#allocation5 + $0x2a0] sm:$0xff]
    %v226 = vld [vmem:[#allocation5 + $0x2a8] sm:$0xff]
    %v227 = vld [vmem:[#allocation5 + $0x2b0] sm:$0xff]
    %v228 = vld [vmem:[#allocation5 + $0x2b8] sm:$0xff]
    %v229 = vld [vmem:[#allocation5 + $0x2c0] sm:$0xff]
    %v230 = vld [vmem:[#allocation5 + $0x2c8] sm:$0xff]
    %v231 = vld [vmem:[#allocation5 + $0x2d0] sm:$0xff]
    %v232 = vld [vmem:[#allocation5 + $0x2d8] sm:$0xff]
    %v233 = vld [vmem:[#allocation5 + $0x2e0] sm:$0xff]
    %v234 = vld [vmem:[#allocation5 + $0x2e8] sm:$0xff]
    %v235 = vld [vmem:[#allocation5 + $0x2f0] sm:$0xff]
    %v236 = vld [vmem:[#allocation5 + $0x2f8] sm:$0xff]
    %v237 = vld [vmem:[#allocation5 + $0x300] sm:$0xff]
    %v238 = vld [vmem:[#allocation5 + $0x308] sm:$0xff]
    %v239 = vld [vmem:[#allocation5 + $0x310] sm:$0xff]
    %v240 = vld [vmem:[#allocation5 + $0x318] sm:$0xff]
    %v241 = vld [vmem:[#allocation5 + $0x320] sm:$0xff]
    %v242 = vld [vmem:[#allocation5 + $0x328] sm:$0xff]
    %v243 = vld [vmem:[#allocation5 + $0x330] sm:$0xff]
    %v244 = vld [vmem:[#allocation5 + $0x338] sm:$0xff]
    %v245 = vld [vmem:[#allocation5 + $0x340] sm:$0xff]
    %v246 = vld [vmem:[#allocation5 + $0x348] sm:$0xff]
    %v247 = vld [vmem:[#allocation5 + $0x350] sm:$0xff]
    %v248 = vld [vmem:[#allocation5 + $0x358] sm:$0xff]
    %v249 = vld [vmem:[#allocation5 + $0x360] sm:$0xff]
    %v250 = vld [vmem:[#allocation5 + $0x368] sm:$0xff]
    %v251 = vld [vmem:[#allocation5 + $0x370] sm:$0xff]
    %v252 = vld [vmem:[#allocation5 + $0x378] sm:$0xff]
    %v253 = vld [vmem:[#allocation5 + $0x380] sm:$0xff]
    %v254 = vld [vmem:[#allocation5 + $0x388] sm:$0xff]
    %v255 = vld [vmem:[#allocation5 + $0x390] sm:$0xff]
    %v256 = vld [vmem:[#allocation5 + $0x398] sm:$0xff]
    %v257 = vld [vmem:[#allocation5 + $0x3a0] sm:$0xff]
    %v258 = vld [vmem:[#allocation5 + $0x3a8] sm:$0xff]
    %v259 = vld [vmem:[#allocation5 + $0x3b0] sm:$0xff]
    %v260 = vld [vmem:[#allocation5 + $0x3b8] sm:$0xff]
    %v261 = vld [vmem:[#allocation5 + $0x3c0] sm:$0xff]
    %v262 = vld [vmem:[#allocation5 + $0x3c8] sm:$0xff]
    %v263 = vld [vmem:[#allocation5 + $0x3d0] sm:$0xff]
    %v264 = vld [vmem:[#allocation5 + $0x3d8] sm:$0xff]
    %v265 = vld [vmem:[#allocation5 + $0x3e0] sm:$0xff]
    %v266 = vld [vmem:[#allocation5 + $0x3e8] sm:$0xff]
    %v267 = vld [vmem:[#allocation5 + $0x3f0] sm:$0xff]
    %v268 = vld [vmem:[#allocation5 + $0x3f8] sm:$0xff]
    %v269 = vld [vmem:[#allocation5 + $0x400] sm:$0xff]
    %v270 = vld [vmem:[#allocation5 + $0x408] sm:$0xff]
    %v271 = vld [vmem:[#allocation5 + $0x410] sm:$0xff]
    %v272 = vld [vmem:[#allocation5 + $0x418] sm:$0xff]
    %v273 = vld [vmem:[#allocation5 + $0x420] sm:$0xff]
    %v274 = vld [vmem:[#allocation5 + $0x428] sm:$0xff]
    %v275 = vld [vmem:[#allocation5 + $0x430] sm:$0xff]
    %v276 = vld [vmem:[#allocation5 + $0x438] sm:$0xff]
    %v277 = vld [vmem:[#allocation5 + $0x440] sm:$0xff]
    %v278 = vld [vmem:[#allocation5 + $0x448] sm:$0xff]
    %v279 = vld [vmem:[#allocation5 + $0x450] sm:$0xff]
    %v280 = vld [vmem:[#allocation5 + $0x458] sm:$0xff]
    %v281 = vld [vmem:[#allocation5 + $0x460] sm:$0xff]
    %v282 = vld [vmem:[#allocation5 + $0x468] sm:$0xff]
    %v283 = vld [vmem:[#allocation5 + $0x470] sm:$0xff]
    %v284 = vld [vmem:[#allocation5 + $0x478] sm:$0xff]
    %v285 = vld [vmem:[#allocation5 + $0x480] sm:$0xff]
    %v286 = vld [vmem:[#allocation5 + $0x488] sm:$0xff]
    %v287 = vld [vmem:[#allocation5 + $0x490] sm:$0xff]
    %v288 = vld [vmem:[#allocation5 + $0x498] sm:$0xff]
    %v289 = vld [vmem:[#allocation5 + $0x4a0] sm:$0xff]
    %v290 = vld [vmem:[#allocation5 + $0x4a8] sm:$0xff]
    %v291 = vld [vmem:[#allocation5 + $0x4b0] sm:$0xff]
    %v292 = vld [vmem:[#allocation5 + $0x4b8] sm:$0xff]
    %v293 = vld [vmem:[#allocation5 + $0x4c0] sm:$0xff]
    %v294 = vld [vmem:[#allocation5 + $0x4c8] sm:$0xff]
    %v295 = vld [vmem:[#allocation5 + $0x4d0] sm:$0xff]
    %v296 = vld [vmem:[#allocation5 + $0x4d8] sm:$0xff]
    %v297 = vld [vmem:[#allocation5 + $0x4e0] sm:$0xff]
    %v298 = vld [vmem:[#allocation5 + $0x4e8] sm:$0xff]
    %v299 = vld [vmem:[#allocation5 + $0x4f0] sm:$0xff]
    %v300 = vld [vmem:[#allocation5 + $0x4f8] sm:$0xff]
    %v301 = vld [vmem:[#allocation5 + $0x500] sm:$0xff]
    %v302 = vld [vmem:[#allocation5 + $0x508] sm:$0xff]
    %v303 = vld [vmem:[#allocation5 + $0x510] sm:$0xff]
    %v304 = vld [vmem:[#allocation5 + $0x518] sm:$0xff]
    %v305 = vld [vmem:[#allocation5 + $0x520] sm:$0xff]
    %v306 = vld [vmem:[#allocation5 + $0x528] sm:$0xff]
    %v307 = vld [vmem:[#allocation5 + $0x530] sm:$0xff]
    %v308 = vld [vmem:[#allocation5 + $0x538] sm:$0xff]
    %v309 = vld [vmem:[#allocation5 + $0x540] sm:$0xff]
    %v310 = vld [vmem:[#allocation5 + $0x548] sm:$0xff]
    %v311 = vld [vmem:[#allocation5 + $0x550] sm:$0xff]
    %v312 = vld [vmem:[#allocation5 + $0x558] sm:$0xff]
    %v313 = vld [vmem:[#allocation5 + $0x560] sm:$0xff]
    %v314 = vld [vmem:[#allocation5 + $0x568] sm:$0xff]
    %v315 = vld [vmem:[#allocation5 + $0x570] sm:$0xff]
    %v316 = vld [vmem:[#allocation5 + $0x578] sm:$0xff]
    %v317 = vld [vmem:[#allocation5 + $0x580] sm:$0xff]
    %v318 = vld [vmem:[#allocation5 + $0x588] sm:$0xff]
    %v319 = vld [vmem:[#allocation5 + $0x590] sm:$0xff]
    %v320 = vld [vmem:[#allocation5 + $0x598] sm:$0xff]
    %v321 = vld [vmem:[#allocation5 + $0x5a0] sm:$0xff]
    %v322 = vld [vmem:[#allocation5 + $0x5a8] sm:$0xff]
    %v323 = vld [vmem:[#allocation5 + $0x5b0] sm:$0xff]
    %v324 = vld [vmem:[#allocation5 + $0x5b8] sm:$0xff]
    %v325 = vld [vmem:[#allocation5 + $0x5c0] sm:$0xff]
    %v326 = vld [vmem:[#allocation5 + $0x5c8] sm:$0xff]
    %v327 = vld [vmem:[#allocation5 + $0x5d0] sm:$0xff]
    %v328 = vld [vmem:[#allocation5 + $0x5d8] sm:$0xff]
    %v329 = vld [vmem:[#allocation5 + $0x5e0] sm:$0xff]
    %v330 = vld [vmem:[#allocation5 + $0x5e8] sm:$0xff]
    %v331 = vld [vmem:[#allocation5 + $0x5f0] sm:$0xff]
    %v332 = vld [vmem:[#allocation5 + $0x5f8] sm:$0xff]
    %v333 = vld [vmem:[#allocation5 + $0x600] sm:$0xff]
    %v334 = vld [vmem:[#allocation5 + $0x608] sm:$0xff]
    %v335 = vld [vmem:[#allocation5 + $0x610] sm:$0xff]
    %v336 = vld [vmem:[#allocation5 + $0x618] sm:$0xff]
    %v337 = vld [vmem:[#allocation5 + $0x620] sm:$0xff]
    %v338 = vld [vmem:[#allocation5 + $0x628] sm:$0xff]
    %v339 = vld [vmem:[#allocation5 + $0x630] sm:$0xff]
    %v340 = vld [vmem:[#allocation5 + $0x638] sm:$0xff]
    %v341 = vld [vmem:[#allocation5 + $0x640] sm:$0xff]
    %v342 = vld [vmem:[#allocation5 + $0x648] sm:$0xff]
    %v343 = vld [vmem:[#allocation5 + $0x650] sm:$0xff]
    %v344 = vld [vmem:[#allocation5 + $0x658] sm:$0xff]
    %v345 = vld [vmem:[#allocation5 + $0x660] sm:$0xff]
    %v346 = vld [vmem:[#allocation5 + $0x668] sm:$0xff]
    %v347 = vld [vmem:[#allocation5 + $0x670] sm:$0xff]
    %v348 = vld [vmem:[#allocation5 + $0x678] sm:$0xff]
    %v349 = vld [vmem:[#allocation5 + $0x680] sm:$0xff]
    %v350 = vld [vmem:[#allocation5 + $0x688] sm:$0xff]
    %v351 = vld [vmem:[#allocation5 + $0x690] sm:$0xff]
    %v352 = vld [vmem:[#allocation5 + $0x698] sm:$0xff]
    %v353 = vld [vmem:[#allocation5 + $0x6a0] sm:$0xff]
    %v354 = vld [vmem:[#allocation5 + $0x6a8] sm:$0xff]
    %v355 = vld [vmem:[#allocation5 + $0x6b0] sm:$0xff]
    %v356 = vld [vmem:[#allocation5 + $0x6b8] sm:$0xff]
    %v357 = vld [vmem:[#allocation5 + $0x6c0] sm:$0xff]
    %v358 = vld [vmem:[#allocation5 + $0x6c8] sm:$0xff]
    %v359 = vld [vmem:[#allocation5 + $0x6d0] sm:$0xff]
    %v360 = vld [vmem:[#allocation5 + $0x6d8] sm:$0xff]
    %v361 = vld [vmem:[#allocation5 + $0x6e0] sm:$0xff]
    %v362 = vld [vmem:[#allocation5 + $0x6e8] sm:$0xff]
    %v363 = vld [vmem:[#allocation5 + $0x6f0] sm:$0xff]
    %v364 = vld [vmem:[#allocation5 + $0x6f8] sm:$0xff]
    %v365 = vld [vmem:[#allocation5 + $0x700] sm:$0xff]
    %v366 = vld [vmem:[#allocation5 + $0x708] sm:$0xff]
    %v367 = vld [vmem:[#allocation5 + $0x710] sm:$0xff]
    %v368 = vld [vmem:[#allocation5 + $0x718] sm:$0xff]
    %v369 = vld [vmem:[#allocation5 + $0x720] sm:$0xff]
    %v370 = vld [vmem:[#allocation5 + $0x728] sm:$0xff]
    %v371 = vld [vmem:[#allocation5 + $0x730] sm:$0xff]
    %v372 = vld [vmem:[#allocation5 + $0x738] sm:$0xff]
    %v373 = vld [vmem:[#allocation5 + $0x740] sm:$0xff]
    %v374 = vld [vmem:[#allocation5 + $0x748] sm:$0xff]
    %v375 = vld [vmem:[#allocation5 + $0x750] sm:$0xff]
    %v376 = vld [vmem:[#allocation5 + $0x758] sm:$0xff]
    %v377 = vld [vmem:[#allocation5 + $0x760] sm:$0xff]
    %v378 = vld [vmem:[#allocation5 + $0x768] sm:$0xff]
    %v379 = vld [vmem:[#allocation5 + $0x770] sm:$0xff]
    %v380 = vld [vmem:[#allocation5 + $0x778] sm:$0xff]
    %v381 = vld [vmem:[#allocation5 + $0x780] sm:$0xff]
    %v382 = vld [vmem:[#allocation5 + $0x788] sm:$0xff]
    %v383 = vld [vmem:[#allocation5 + $0x790] sm:$0xff]
    %v384 = vld [vmem:[#allocation5 + $0x798] sm:$0xff]
    %v385 = vld [vmem:[#allocation5 + $0x7a0] sm:$0xff]
    %v386 = vld [vmem:[#allocation5 + $0x7a8] sm:$0xff]
    %v387 = vld [vmem:[#allocation5 + $0x7b0] sm:$0xff]
    %v388 = vld [vmem:[#allocation5 + $0x7b8] sm:$0xff]
    %v389 = vld [vmem:[#allocation5 + $0x7c0] sm:$0xff]
    %v390 = vld [vmem:[#allocation5 + $0x7c8] sm:$0xff]
    %v391 = vld [vmem:[#allocation5 + $0x7d0] sm:$0xff]
    %v392 = vld [vmem:[#allocation5 + $0x7d8] sm:$0xff]
    %v393 = vld [vmem:[#allocation5 + $0x7e0] sm:$0xff]
    %v394 = vld [vmem:[#allocation5 + $0x7e8] sm:$0xff]
    %v395 = vld [vmem:[#allocation5 + $0x7f0] sm:$0xff]
    %v396 = vld [vmem:[#allocation5 + $0x7f8] sm:$0xff]
    %v397 = vld [vmem:[#allocation5 + $0x800] sm:$0xff]
    %v398 = vld [vmem:[#allocation5 + $0x808] sm:$0xff]
    %v399 = vld [vmem:[#allocation5 + $0x810] sm:$0xff]
    %v400 = vld [vmem:[#allocation5 + $0x818] sm:$0xff]
    %v401 = vld [vmem:[#allocation5 + $0x820] sm:$0xff]
    %v402 = vld [vmem:[#allocation5 + $0x828] sm:$0xff]
    %v403 = vld [vmem:[#allocation5 + $0x830] sm:$0xff]
    %v404 = vld [vmem:[#allocation5 + $0x838] sm:$0xff]
    %v405 = vld [vmem:[#allocation5 + $0x840] sm:$0xff]
    %v406 = vld [vmem:[#allocation5 + $0x848] sm:$0xff]
    %v407 = vld [vmem:[#allocation5 + $0x850] sm:$0xff]
    %v408 = vld [vmem:[#allocation5 + $0x858] sm:$0xff]
    %v409 = vld [vmem:[#allocation5 + $0x860] sm:$0xff]
    %v410 = vld [vmem:[#allocation5 + $0x868] sm:$0xff]
    %v411 = vld [vmem:[#allocation5 + $0x870] sm:$0xff]
    %v412 = vld [vmem:[#allocation5 + $0x878] sm:$0xff]
    %v413 = vld [vmem:[#allocation5 + $0x880] sm:$0xff]
    %v414 = vld [vmem:[#allocation5 + $0x888] sm:$0xff]
    %v415 = vld [vmem:[#allocation5 + $0x890] sm:$0xff]
    %v416 = vld [vmem:[#allocation5 + $0x898] sm:$0xff]
    %v417 = vld [vmem:[#allocation5 + $0x8a0] sm:$0xff]
    %v418 = vld [vmem:[#allocation5 + $0x8a8] sm:$0xff]
    %v419 = vld [vmem:[#allocation5 + $0x8b0] sm:$0xff]
    %v420 = vld [vmem:[#allocation5 + $0x8b8] sm:$0xff]
    %v421 = vld [vmem:[#allocation5 + $0x8c0] sm:$0xff]
    %v422 = vld [vmem:[#allocation5 + $0x8c8] sm:$0xff]
    %v423 = vld [vmem:[#allocation5 + $0x8d0] sm:$0xff]
    %v424 = vld [vmem:[#allocation5 + $0x8d8] sm:$0xff]
    %v425 = vld [vmem:[#allocation5 + $0x8e0] sm:$0xff]
    %v426 = vld [vmem:[#allocation5 + $0x8e8] sm:$0xff]
    %v427 = vld [vmem:[#allocation5 + $0x8f0] sm:$0xff]
    %v428 = vld [vmem:[#allocation5 + $0x8f8] sm:$0xff]
    %v429 = vld [vmem:[#allocation5 + $0x900] sm:$0xff]
    %v430 = vld [vmem:[#allocation5 + $0x908] sm:$0xff]
    %v431 = vld [vmem:[#allocation5 + $0x910] sm:$0xff]
    %v432 = vld [vmem:[#allocation5 + $0x918] sm:$0xff]
    %v433 = vld [vmem:[#allocation5 + $0x920] sm:$0xff]
    %v434 = vld [vmem:[#allocation5 + $0x928] sm:$0xff]
    %v435 = vld [vmem:[#allocation5 + $0x930] sm:$0xff]
    %v436 = vld [vmem:[#allocation5 + $0x938] sm:$0xff]
    %v437 = vld [vmem:[#allocation5 + $0x940] sm:$0xff]
    %v438 = vld [vmem:[#allocation5 + $0x948] sm:$0xff]
    %v439 = vld [vmem:[#allocation5 + $0x950] sm:$0xff]
    %v440 = vld [vmem:[#allocation5 + $0x958] sm:$0xff]
    %v441 = vld [vmem:[#allocation5 + $0x960] sm:$0xff]
    %v442 = vld [vmem:[#allocation5 + $0x968] sm:$0xff]
    %v443 = vld [vmem:[#allocation5 + $0x970] sm:$0xff]
    %v444 = vld [vmem:[#allocation5 + $0x978] sm:$0xff]
    %v445 = vld [vmem:[#allocation5 + $0x980] sm:$0xff]
    %v446 = vld [vmem:[#allocation5 + $0x988] sm:$0xff]
    %v447 = vld [vmem:[#allocation5 + $0x990] sm:$0xff]
    %v448 = vld [vmem:[#allocation5 + $0x998] sm:$0xff]
    %v449 = vld [vmem:[#allocation5 + $0x9a0] sm:$0xff]
    %v450 = vld [vmem:[#allocation5 + $0x9a8] sm:$0xff]
    %v451 = vld [vmem:[#allocation5 + $0x9b0] sm:$0xff]
    %v452 = vld [vmem:[#allocation5 + $0x9b8] sm:$0xff]
    %v453 = vld [vmem:[#allocation5 + $0x9c0] sm:$0xff]
    %v454 = vld [vmem:[#allocation5 + $0x9c8] sm:$0xff]
    %v455 = vld [vmem:[#allocation5 + $0x9d0] sm:$0xff]
    %v456 = vld [vmem:[#allocation5 + $0x9d8] sm:$0xff]
    %v457 = vld [vmem:[#allocation5 + $0x9e0] sm:$0xff]
    %v458 = vld [vmem:[#allocation5 + $0x9e8] sm:$0xff]
    %v459 = vld [vmem:[#allocation5 + $0x9f0] sm:$0xff]
    %v460 = vld [vmem:[#allocation5 + $0x9f8] sm:$0xff]
    %v461 = vld [vmem:[#allocation5 + $0xa00] sm:$0xff]
    %v462 = vld [vmem:[#allocation5 + $0xa08] sm:$0xff]
    %v463 = vld [vmem:[#allocation5 + $0xa10] sm:$0xff]
    %v464 = vld [vmem:[#allocation5 + $0xa18] sm:$0xff]
    %v465 = vld [vmem:[#allocation5 + $0xa20] sm:$0xff]
    %v466 = vld [vmem:[#allocation5 + $0xa28] sm:$0xff]
    %v467 = vld [vmem:[#allocation5 + $0xa30] sm:$0xff]
    %v468 = vld [vmem:[#allocation5 + $0xa38] sm:$0xff]
    %v469 = vld [vmem:[#allocation5 + $0xa40] sm:$0xff]
    %v470 = vld [vmem:[#allocation5 + $0xa48] sm:$0xff]
    %v471 = vld [vmem:[#allocation5 + $0xa50] sm:$0xff]
    %v472 = vld [vmem:[#allocation5 + $0xa58] sm:$0xff]
    %v473 = vld [vmem:[#allocation5 + $0xa60] sm:$0xff]
    %v474 = vld [vmem:[#allocation5 + $0xa68] sm:$0xff]
    %v475 = vld [vmem:[#allocation5 + $0xa70] sm:$0xff]
    %v476 = vld [vmem:[#allocation5 + $0xa78] sm:$0xff]
    %v477 = vld [vmem:[#allocation5 + $0xa80] sm:$0xff]
    %v478 = vld [vmem:[#allocation5 + $0xa88] sm:$0xff]
    %v479 = vld [vmem:[#allocation5 + $0xa90] sm:$0xff]
    %v480 = vld [vmem:[#allocation5 + $0xa98] sm:$0xff]
    %v481 = vld [vmem:[#allocation5 + $0xaa0] sm:$0xff]
    %v482 = vld [vmem:[#allocation5 + $0xaa8] sm:$0xff]
    %v483 = vld [vmem:[#allocation5 + $0xab0] sm:$0xff]
    %v484 = vld [vmem:[#allocation5 + $0xab8] sm:$0xff]
    %v485 = vld [vmem:[#allocation5 + $0xac0] sm:$0xff]
    %v486 = vld [vmem:[#allocation5 + $0xac8] sm:$0xff]
    %v487 = vld [vmem:[#allocation5 + $0xad0] sm:$0xff]
    %v488 = vld [vmem:[#allocation5 + $0xad8] sm:$0xff]
    %v489 = vld [vmem:[#allocation5 + $0xae0] sm:$0xff]
    %v490 = vld [vmem:[#allocation5 + $0xae8] sm:$0xff]
    %v491 = vld [vmem:[#allocation5 + $0xaf0] sm:$0xff]
    %v492 = vld [vmem:[#allocation5 + $0xaf8] sm:$0xff]
    %v493 = vld [vmem:[#allocation5 + $0xb00] sm:$0xff]
    %v494 = vld [vmem:[#allocation5 + $0xb08] sm:$0xff]
    %v495 = vld [vmem:[#allocation5 + $0xb10] sm:$0xff]
    %v496 = vld [vmem:[#allocation5 + $0xb18] sm:$0xff]
    %v497 = vld [vmem:[#allocation5 + $0xb20] sm:$0xff]
    %v498 = vld [vmem:[#allocation5 + $0xb28] sm:$0xff]
    %v499 = vld [vmem:[#allocation5 + $0xb30] sm:$0xff]
    %v500 = vld [vmem:[#allocation5 + $0xb38] sm:$0xff]
    %v501 = vld [vmem:[#allocation5 + $0xb40] sm:$0xff]
    %v502 = vld [vmem:[#allocation5 + $0xb48] sm:$0xff]
    %v503 = vld [vmem:[#allocation5 + $0xb50] sm:$0xff]
    %v504 = vld [vmem:[#allocation5 + $0xb58] sm:$0xff]
    %v505 = vld [vmem:[#allocation5 + $0xb60] sm:$0xff]
    %v506 = vld [vmem:[#allocation5 + $0xb68] sm:$0xff]
    %v507 = vld [vmem:[#allocation5 + $0xb70] sm:$0xff]
    %v508 = vld [vmem:[#allocation5 + $0xb78] sm:$0xff]
    %v509 = vld [vmem:[#allocation5 + $0xb80] sm:$0xff]
    %v510 = vld [vmem:[#allocation5 + $0xb88] sm:$0xff]
    %v511 = vld [vmem:[#allocation5 + $0xb90] sm:$0xff]
    %v512 = vld [vmem:[#allocation5 + $0xb98] sm:$0xff]
    %v513 = vld [vmem:[#allocation5 + $0xba0] sm:$0xff]
    %v514 = vld [vmem:[#allocation5 + $0xba8] sm:$0xff]
    %v515 = vld [vmem:[#allocation5 + $0xbb0] sm:$0xff]
    %v516 = vld [vmem:[#allocation5 + $0xbb8] sm:$0xff]
    %v517 = vld [vmem:[#allocation5 + $0xbc0] sm:$0xff]
    %v518 = vld [vmem:[#allocation5 + $0xbc8] sm:$0xff]
    %v519 = vld [vmem:[#allocation5 + $0xbd0] sm:$0xff]
    %v520 = vld [vmem:[#allocation5 + $0xbd8] sm:$0xff]
    %v521 = vld [vmem:[#allocation5 + $0xbe0] sm:$0xff]
    %v522 = vld [vmem:[#allocation5 + $0xbe8] sm:$0xff]
    %v523 = vld [vmem:[#allocation5 + $0xbf0] sm:$0xff]
    %v524 = vld [vmem:[#allocation5 + $0xbf8] sm:$0xff]
    %v525 = vld [vmem:[#allocation5 + $0xc00] sm:$0xff]
    %v526 = vld [vmem:[#allocation5 + $0xc08] sm:$0xff]
    %v527 = vld [vmem:[#allocation5 + $0xc10] sm:$0xff]
    %v528 = vld [vmem:[#allocation5 + $0xc18] sm:$0xff]
    %v529 = vld [vmem:[#allocation5 + $0xc20] sm:$0xff]
    %v530 = vld [vmem:[#allocation5 + $0xc28] sm:$0xff]
    %v531 = vld [vmem:[#allocation5 + $0xc30] sm:$0xff]
    %v532 = vld [vmem:[#allocation5 + $0xc38] sm:$0xff]
    %v533 = vld [vmem:[#allocation5 + $0xc40] sm:$0xff]
    %v534 = vld [vmem:[#allocation5 + $0xc48] sm:$0xff]
    %v535 = vld [vmem:[#allocation5 + $0xc50] sm:$0xff]
    %v536 = vld [vmem:[#allocation5 + $0xc58] sm:$0xff]
    %v537 = vld [vmem:[#allocation5 + $0xc60] sm:$0xff]
    %v538 = vld [vmem:[#allocation5 + $0xc68] sm:$0xff]
    %v539 = vld [vmem:[#allocation5 + $0xc70] sm:$0xff]
    %v540 = vld [vmem:[#allocation5 + $0xc78] sm:$0xff]
    %v541 = vld [vmem:[#allocation5 + $0xc80] sm:$0xff]
    %v542 = vld [vmem:[#allocation5 + $0xc88] sm:$0xff]
    %v543 = vld [vmem:[#allocation5 + $0xc90] sm:$0xff]
    %v544 = vld [vmem:[#allocation5 + $0xc98] sm:$0xff]
    %v545 = vld [vmem:[#allocation5 + $0xca0] sm:$0xff]
    %v546 = vld [vmem:[#allocation5 + $0xca8] sm:$0xff]
    %v547 = vld [vmem:[#allocation5 + $0xcb0] sm:$0xff]
    %v548 = vld [vmem:[#allocation5 + $0xcb8] sm:$0xff]
    %v549 = vld [vmem:[#allocation5 + $0xcc0] sm:$0xff]
    %v550 = vld [vmem:[#allocation5 + $0xcc8] sm:$0xff]
    %v551 = vld [vmem:[#allocation5 + $0xcd0] sm:$0xff]
    %v552 = vld [vmem:[#allocation5 + $0xcd8] sm:$0xff]
    %v553 = vld [vmem:[#allocation5 + $0xce0] sm:$0xff]
    %v554 = vld [vmem:[#allocation5 + $0xce8] sm:$0xff]
    %v555 = vld [vmem:[#allocation5 + $0xcf0] sm:$0xff]
    %v556 = vld [vmem:[#allocation5 + $0xcf8] sm:$0xff]
    %v557 = vld [vmem:[#allocation5 + $0xd00] sm:$0xff]
    %v558 = vld [vmem:[#allocation5 + $0xd08] sm:$0xff]
    %v559 = vld [vmem:[#allocation5 + $0xd10] sm:$0xff]
    %v560 = vld [vmem:[#allocation5 + $0xd18] sm:$0xff]
    %v561 = vld [vmem:[#allocation5 + $0xd20] sm:$0xff]
    %v562 = vld [vmem:[#allocation5 + $0xd28] sm:$0xff]
    %v563 = vld [vmem:[#allocation5 + $0xd30] sm:$0xff]
    %v564 = vld [vmem:[#allocation5 + $0xd38] sm:$0xff]
    %v565 = vld [vmem:[#allocation5 + $0xd40] sm:$0xff]
    %v566 = vld [vmem:[#allocation5 + $0xd48] sm:$0xff]
    %v567 = vld [vmem:[#allocation5 + $0xd50] sm:$0xff]
    %v568 = vld [vmem:[#allocation5 + $0xd58] sm:$0xff]
    %v569 = vld [vmem:[#allocation5 + $0xd60] sm:$0xff]
    %v570 = vld [vmem:[#allocation5 + $0xd68] sm:$0xff]
    %v571 = vld [vmem:[#allocation5 + $0xd70] sm:$0xff]
    %v572 = vld [vmem:[#allocation5 + $0xd78] sm:$0xff]
    %v573 = vld [vmem:[#allocation5 + $0xd80] sm:$0xff]
    %v574 = vld [vmem:[#allocation5 + $0xd88] sm:$0xff]
    %v575 = vld [vmem:[#allocation5 + $0xd90] sm:$0xff]
    %v576 = vld [vmem:[#allocation5 + $0xd98] sm:$0xff]
    %v577 = vld [vmem:[#allocation5 + $0xda0] sm:$0xff]
    %v578 = vld [vmem:[#allocation5 + $0xda8] sm:$0xff]
    %v579 = vld [vmem:[#allocation5 + $0xdb0] sm:$0xff]
    %v580 = vld [vmem:[#allocation5 + $0xdb8] sm:$0xff]
    %v581 = vld [vmem:[#allocation5 + $0xdc0] sm:$0xff]
    %v582 = vld [vmem:[#allocation5 + $0xdc8] sm:$0xff]
    %v583 = vld [vmem:[#allocation5 + $0xdd0] sm:$0xff]
    %v584 = vld [vmem:[#allocation5 + $0xdd8] sm:$0xff]
    %v585 = vld [vmem:[#allocation5 + $0xde0] sm:$0xff]
    %v586 = vld [vmem:[#allocation5 + $0xde8] sm:$0xff]
    %v587 = vld [vmem:[#allocation5 + $0xdf0] sm:$0xff]
    %v588 = vld [vmem:[#allocation5 + $0xdf8] sm:$0xff]
    %v589 = vld [vmem:[#allocation5 + $0xe00] sm:$0xff]
    %v590 = vld [vmem:[#allocation5 + $0xe08] sm:$0xff]
    %v591 = vld [vmem:[#allocation5 + $0xe10] sm:$0xff]
    %v592 = vld [vmem:[#allocation5 + $0xe18] sm:$0xff]
    %v593 = vld [vmem:[#allocation5 + $0xe20] sm:$0xff]
    %v594 = vld [vmem:[#allocation5 + $0xe28] sm:$0xff]
    %v595 = vld [vmem:[#allocation5 + $0xe30] sm:$0xff]
    %v596 = vld [vmem:[#allocation5 + $0xe38] sm:$0xff]
    %v597 = vld [vmem:[#allocation5 + $0xe40] sm:$0xff]
    %v598 = vld [vmem:[#allocation5 + $0xe48] sm:$0xff]
    %v599 = vld [vmem:[#allocation5 + $0xe50] sm:$0xff]
    %v600 = vld [vmem:[#allocation5 + $0xe58] sm:$0xff]
    %v601 = vld [vmem:[#allocation5 + $0xe60] sm:$0xff]
    %v602 = vld [vmem:[#allocation5 + $0xe68] sm:$0xff]
    %v603 = vld [vmem:[#allocation5 + $0xe70] sm:$0xff]
    %v604 = vld [vmem:[#allocation5 + $0xe78] sm:$0xff]
    %v605 = vld [vmem:[#allocation5 + $0xe80] sm:$0xff]
    %v606 = vld [vmem:[#allocation5 + $0xe88] sm:$0xff]
    %v607 = vld [vmem:[#allocation5 + $0xe90] sm:$0xff]
    %v608 = vld [vmem:[#allocation5 + $0xe98] sm:$0xff]
    %v609 = vld [vmem:[#allocation5 + $0xea0] sm:$0xff]
    %v610 = vld [vmem:[#allocation5 + $0xea8] sm:$0xff]
    %v611 = vld [vmem:[#allocation5 + $0xeb0] sm:$0xff]
    %v612 = vld [vmem:[#allocation5 + $0xeb8] sm:$0xff]
    %v613 = vld [vmem:[#allocation5 + $0xec0] sm:$0xff]
    %v614 = vld [vmem:[#allocation5 + $0xec8] sm:$0xff]
    %v615 = vld [vmem:[#allocation5 + $0xed0] sm:$0xff]
    %v616 = vld [vmem:[#allocation5 + $0xed8] sm:$0xff]
    %v617 = vld [vmem:[#allocation5 + $0xee0] sm:$0xff]
    %v618 = vld [vmem:[#allocation5 + $0xee8] sm:$0xff]
    %v619 = vld [vmem:[#allocation5 + $0xef0] sm:$0xff]
    %v620 = vld [vmem:[#allocation5 + $0xef8] sm:$0xff]
    %v621 = vld [vmem:[#allocation5 + $0xf00] sm:$0xff]
    %v622 = vld [vmem:[#allocation5 + $0xf08] sm:$0xff]
    %v623 = vld [vmem:[#allocation5 + $0xf10] sm:$0xff]
    %v624 = vld [vmem:[#allocation5 + $0xf18] sm:$0xff]
    %v625 = vld [vmem:[#allocation5 + $0xf20] sm:$0xff]
    %v626 = vld [vmem:[#allocation5 + $0xf28] sm:$0xff]
    %v627 = vld [vmem:[#allocation5 + $0xf30] sm:$0xff]
    %v628 = vld [vmem:[#allocation5 + $0xf38] sm:$0xff]
    %v629 = vld [vmem:[#allocation5 + $0xf40] sm:$0xff]
    %v630 = vld [vmem:[#allocation5 + $0xf48] sm:$0xff]
    %v631 = vld [vmem:[#allocation5 + $0xf50] sm:$0xff]
    %v632 = vld [vmem:[#allocation5 + $0xf58] sm:$0xff]
    %v633 = vld [vmem:[#allocation5 + $0xf60] sm:$0xff]
    %v634 = vld [vmem:[#allocation5 + $0xf68] sm:$0xff]
    %v635 = vld [vmem:[#allocation5 + $0xf70] sm:$0xff]
    %v636 = vld [vmem:[#allocation5 + $0xf78] sm:$0xff]
    %v637 = vld [vmem:[#allocation5 + $0xf80] sm:$0xff]
    %v638 = vld [vmem:[#allocation5 + $0xf88] sm:$0xff]
    %v639 = vld [vmem:[#allocation5 + $0xf90] sm:$0xff]
    %v640 = vld [vmem:[#allocation5 + $0xf98] sm:$0xff]
    %v641 = vld [vmem:[#allocation5 + $0xfa0] sm:$0xff]
    %v642 = vld [vmem:[#allocation5 + $0xfa8] sm:$0xff]
    %v643 = vld [vmem:[#allocation5 + $0xfb0] sm:$0xff]
    %v644 = vld [vmem:[#allocation5 + $0xfb8] sm:$0xff]
    %v645 = vld [vmem:[#allocation5 + $0xfc0] sm:$0xff]
    %v646 = vld [vmem:[#allocation5 + $0xfc8] sm:$0xff]
    %v647 = vld [vmem:[#allocation5 + $0xfd0] sm:$0xff]
    %v648 = vld [vmem:[#allocation5 + $0xfd8] sm:$0xff]
    %v649 = vld [vmem:[#allocation5 + $0xfe0] sm:$0xff]
    %v650 = vld [vmem:[#allocation5 + $0xfe8] sm:$0xff]
    %v651 = vld [vmem:[#allocation5 + $0xff0] sm:$0xff]
    %v652 = vld [vmem:[#allocation5 + $0xff8] sm:$0xff]
    %v653 = vld [vmem:[#allocation5 + $0x1000] sm:$0xff]
    %v654 = vld [vmem:[#allocation5 + $0x1008] sm:$0xff]
    %v655 = vld [vmem:[#allocation5 + $0x1010] sm:$0xff]
    %v656 = vld [vmem:[#allocation5 + $0x1018] sm:$0xff]
    %v657 = vld [vmem:[#allocation5 + $0x1020] sm:$0xff]
    %v658 = vld [vmem:[#allocation5 + $0x1028] sm:$0xff]
    %v659 = vld [vmem:[#allocation5 + $0x1030] sm:$0xff]
    %v660 = vld [vmem:[#allocation5 + $0x1038] sm:$0xff]
    %v661 = vld [vmem:[#allocation5 + $0x1040] sm:$0xff]
    %v662 = vld [vmem:[#allocation5 + $0x1048] sm:$0xff]
    %v663 = vld [vmem:[#allocation5 + $0x1050] sm:$0xff]
    %v664 = vld [vmem:[#allocation5 + $0x1058] sm:$0xff]
    %v665 = vld [vmem:[#allocation5 + $0x1060] sm:$0xff]
    %v666 = vld [vmem:[#allocation5 + $0x1068] sm:$0xff]
    %v667 = vld [vmem:[#allocation5 + $0x1070] sm:$0xff]
    %v668 = vld [vmem:[#allocation5 + $0x1078] sm:$0xff]
    %v669 = vld [vmem:[#allocation5 + $0x1080] sm:$0xff]
    %v670 = vld [vmem:[#allocation5 + $0x1088] sm:$0xff]
    %v671 = vld [vmem:[#allocation5 + $0x1090] sm:$0xff]
    %v672 = vld [vmem:[#allocation5 + $0x1098] sm:$0xff]
    %v673 = vld [vmem:[#allocation5 + $0x10a0] sm:$0xff]
    %v674 = vld [vmem:[#allocation5 + $0x10a8] sm:$0xff]
    %v675 = vld [vmem:[#allocation5 + $0x10b0] sm:$0xff]
    %v676 = vld [vmem:[#allocation5 + $0x10b8] sm:$0xff]
    %v677 = vld [vmem:[#allocation5 + $0x10c0] sm:$0xff]
    %v678 = vld [vmem:[#allocation5 + $0x10c8] sm:$0xff]
    %v679 = vld [vmem:[#allocation5 + $0x10d0] sm:$0xff]
    %v680 = vld [vmem:[#allocation5 + $0x10d8] sm:$0xff]
    %v681 = vld [vmem:[#allocation5 + $0x10e0] sm:$0xff]
    %v682 = vld [vmem:[#allocation5 + $0x10e8] sm:$0xff]
    %v683 = vld [vmem:[#allocation5 + $0x10f0] sm:$0xff]
    %v684 = vld [vmem:[#allocation5 + $0x10f8] sm:$0xff]
    %v685 = vld [vmem:[#allocation5 + $0x1100] sm:$0xff]
    %v686 = vld [vmem:[#allocation5 + $0x1108] sm:$0xff]
    %v687 = vld [vmem:[#allocation5 + $0x1110] sm:$0xff]
    %v688 = vld [vmem:[#allocation5 + $0x1118] sm:$0xff]
    %v689 = vld [vmem:[#allocation5 + $0x1120] sm:$0xff]
    %v690 = vld [vmem:[#allocation5 + $0x1128] sm:$0xff]
    %v691 = vld [vmem:[#allocation5 + $0x1130] sm:$0xff]
    %v692 = vld [vmem:[#allocation5 + $0x1138] sm:$0xff]
    %v693 = vld [vmem:[#allocation5 + $0x1140] sm:$0xff]
    %v694 = vld [vmem:[#allocation5 + $0x1148] sm:$0xff]
    %v695 = vld [vmem:[#allocation5 + $0x1150] sm:$0xff]
    %v696 = vld [vmem:[#allocation5 + $0x1158] sm:$0xff]
    %v697 = vld [vmem:[#allocation5 + $0x1160] sm:$0xff]
    %v698 = vld [vmem:[#allocation5 + $0x1168] sm:$0xff]
    %v699 = vld [vmem:[#allocation5 + $0x1170] sm:$0xff]
    %v700 = vld [vmem:[#allocation5 + $0x1178] sm:$0xff]
    %v701 = vld [vmem:[#allocation5 + $0x1180] sm:$0xff]
    %v702 = vld [vmem:[#allocation5 + $0x1188] sm:$0xff]
    %v703 = vld [vmem:[#allocation5 + $0x1190] sm:$0xff]
    %v704 = vld [vmem:[#allocation5 + $0x1198] sm:$0xff]
    %v705 = vld [vmem:[#allocation5 + $0x11a0] sm:$0xff]
    %v706 = vld [vmem:[#allocation5 + $0x11a8] sm:$0xff]
    %v707 = vld [vmem:[#allocation5 + $0x11b0] sm:$0xff]
    %v708 = vld [vmem:[#allocation5 + $0x11b8] sm:$0xff]
    %v709 = vld [vmem:[#allocation5 + $0x11c0] sm:$0xff]
    %v710 = vld [vmem:[#allocation5 + $0x11c8] sm:$0xff]
    %v711 = vld [vmem:[#allocation5 + $0x11d0] sm:$0xff]
    %v712 = vld [vmem:[#allocation5 + $0x11d8] sm:$0xff]
    %v713 = vld [vmem:[#allocation5 + $0x11e0] sm:$0xff]
    %v714 = vld [vmem:[#allocation5 + $0x11e8] sm:$0xff]
    %v715 = vld [vmem:[#allocation5 + $0x11f0] sm:$0xff]
    %v716 = vld [vmem:[#allocation5 + $0x11f8] sm:$0xff]
    %v717 = vld [vmem:[#allocation5 + $0x1200] sm:$0xff]
    %v718 = vld [vmem:[#allocation5 + $0x1208] sm:$0xff]
    %v719 = vld [vmem:[#allocation5 + $0x1210] sm:$0xff]
    %v720 = vld [vmem:[#allocation5 + $0x1218] sm:$0xff]
    %v721 = vld [vmem:[#allocation5 + $0x1220] sm:$0xff]
    %v722 = vld [vmem:[#allocation5 + $0x1228] sm:$0xff]
    %v723 = vld [vmem:[#allocation5 + $0x1230] sm:$0xff]
    %v724 = vld [vmem:[#allocation5 + $0x1238] sm:$0xff]
    %v725 = vld [vmem:[#allocation5 + $0x1240] sm:$0xff]
    %v726 = vld [vmem:[#allocation5 + $0x1248] sm:$0xff]
    %v727 = vld [vmem:[#allocation5 + $0x1250] sm:$0xff]
    %v728 = vld [vmem:[#allocation5 + $0x1258] sm:$0xff]
    %v729 = vld [vmem:[#allocation5 + $0x1260] sm:$0xff]
    %v730 = vld [vmem:[#allocation5 + $0x1268] sm:$0xff]
    %v731 = vld [vmem:[#allocation5 + $0x1270] sm:$0xff]
    %v732 = vld [vmem:[#allocation5 + $0x1278] sm:$0xff]
    %v733 = vld [vmem:[#allocation5 + $0x1280] sm:$0xff]
    %v734 = vld [vmem:[#allocation5 + $0x1288] sm:$0xff]
    %v735 = vld [vmem:[#allocation5 + $0x1290] sm:$0xff]
    %v736 = vld [vmem:[#allocation5 + $0x1298] sm:$0xff]
    %v737 = vld [vmem:[#allocation5 + $0x12a0] sm:$0xff]
    %v738 = vld [vmem:[#allocation5 + $0x12a8] sm:$0xff]
    %v739 = vld [vmem:[#allocation5 + $0x12b0] sm:$0xff]
    %v740 = vld [vmem:[#allocation5 + $0x12b8] sm:$0xff]
    %v741 = vld [vmem:[#allocation5 + $0x12c0] sm:$0xff]
    %v742 = vld [vmem:[#allocation5 + $0x12c8] sm:$0xff]
    %v743 = vld [vmem:[#allocation5 + $0x12d0] sm:$0xff]
    %v744 = vld [vmem:[#allocation5 + $0x12d8] sm:$0xff]
    %v745 = vld [vmem:[#allocation5 + $0x12e0] sm:$0xff]
    %v746 = vld [vmem:[#allocation5 + $0x12e8] sm:$0xff]
    %v747 = vld [vmem:[#allocation5 + $0x12f0] sm:$0xff]
    %v748 = vld [vmem:[#allocation5 + $0x12f8] sm:$0xff]
    %v749 = vld [vmem:[#allocation5 + $0x1300] sm:$0xff]
    %v750 = vld [vmem:[#allocation5 + $0x1308] sm:$0xff]
    %v751 = vld [vmem:[#allocation5 + $0x1310] sm:$0xff]
    %v752 = vld [vmem:[#allocation5 + $0x1318] sm:$0xff]
    %v753 = vld [vmem:[#allocation5 + $0x1320] sm:$0xff]
    %v754 = vld [vmem:[#allocation5 + $0x1328] sm:$0xff]
    %v755 = vld [vmem:[#allocation5 + $0x1330] sm:$0xff]
    %v756 = vld [vmem:[#allocation5 + $0x1338] sm:$0xff]
    %v757 = vld [vmem:[#allocation5 + $0x1340] sm:$0xff]
    %v758 = vld [vmem:[#allocation5 + $0x1348] sm:$0xff]
    %v759 = vld [vmem:[#allocation5 + $0x1350] sm:$0xff]
    %v760 = vld [vmem:[#allocation5 + $0x1358] sm:$0xff]
    %v761 = vld [vmem:[#allocation5 + $0x1360] sm:$0xff]
    %v762 = vld [vmem:[#allocation5 + $0x1368] sm:$0xff]
    %v763 = vld [vmem:[#allocation5 + $0x1370] sm:$0xff]
    %v764 = vld [vmem:[#allocation5 + $0x1378] sm:$0xff]
    %v765 = vld [vmem:[#allocation5 + $0x1380] sm:$0xff]
    %v766 = vld [vmem:[#allocation5 + $0x1388] sm:$0xff]
    %v767 = vld [vmem:[#allocation5 + $0x1390] sm:$0xff]
    %v768 = vld [vmem:[#allocation5 + $0x1398] sm:$0xff]
    %v769 = vld [vmem:[#allocation5 + $0x13a0] sm:$0xff]
    %v770 = vld [vmem:[#allocation5 + $0x13a8] sm:$0xff]
    %v771 = vld [vmem:[#allocation5 + $0x13b0] sm:$0xff]
    %v772 = vld [vmem:[#allocation5 + $0x13b8] sm:$0xff]
    %v773 = vld [vmem:[#allocation5 + $0x13c0] sm:$0xff]
    %v774 = vld [vmem:[#allocation5 + $0x13c8] sm:$0xff]
    %v775 = vld [vmem:[#allocation5 + $0x13d0] sm:$0xff]
    %v776 = vld [vmem:[#allocation5 + $0x13d8] sm:$0xff]
    %v777 = vld [vmem:[#allocation5 + $0x13e0] sm:$0xff]
    %v778 = vld [vmem:[#allocation5 + $0x13e8] sm:$0xff]
    %v779 = vld [vmem:[#allocation5 + $0x13f0] sm:$0xff]
    %v780 = vld [vmem:[#allocation5 + $0x13f8] sm:$0xff]
    %v781 = vld [vmem:[#allocation5 + $0x1400] sm:$0xff]
    %v782 = vld [vmem:[#allocation5 + $0x1408] sm:$0xff]
    %v783 = vld [vmem:[#allocation5 + $0x1410] sm:$0xff]
    %v784 = vld [vmem:[#allocation5 + $0x1418] sm:$0xff]
    %v785 = vld [vmem:[#allocation5 + $0x1420] sm:$0xff]
    %v786 = vld [vmem:[#allocation5 + $0x1428] sm:$0xff]
    %v787 = vld [vmem:[#allocation5 + $0x1430] sm:$0xff]
    %v788 = vld [vmem:[#allocation5 + $0x1438] sm:$0xff]
    %v789 = vld [vmem:[#allocation5 + $0x1440] sm:$0xff]
    %v790 = vld [vmem:[#allocation5 + $0x1448] sm:$0xff]
    %v791 = vld [vmem:[#allocation5 + $0x1450] sm:$0xff]
    %v792 = vld [vmem:[#allocation5 + $0x1458] sm:$0xff]
    %v793 = vld [vmem:[#allocation5 + $0x1460] sm:$0xff]
    %v794 = vld [vmem:[#allocation5 + $0x1468] sm:$0xff]
    %v795 = vld [vmem:[#allocation5 + $0x1470] sm:$0xff]
    %v796 = vld [vmem:[#allocation5 + $0x1478] sm:$0xff]
    %v797 = vld [vmem:[#allocation5 + $0x1480] sm:$0xff]
    %v798 = vld [vmem:[#allocation5 + $0x1488] sm:$0xff]
    %v799 = vld [vmem:[#allocation5 + $0x1490] sm:$0xff]
    %v800 = vld [vmem:[#allocation5 + $0x1498] sm:$0xff]
    %v801 = vld [vmem:[#allocation5 + $0x14a0] sm:$0xff]
    %v802 = vld [vmem:[#allocation5 + $0x14a8] sm:$0xff]
    %v803 = vld [vmem:[#allocation5 + $0x14b0] sm:$0xff]
    %v804 = vld [vmem:[#allocation5 + $0x14b8] sm:$0xff]
    %v805 = vld [vmem:[#allocation5 + $0x14c0] sm:$0xff]
    %v806 = vld [vmem:[#allocation5 + $0x14c8] sm:$0xff]
    %v807 = vld [vmem:[#allocation5 + $0x14d0] sm:$0xff]
    %v808 = vld [vmem:[#allocation5 + $0x14d8] sm:$0xff]
    %v809 = vld [vmem:[#allocation5 + $0x14e0] sm:$0xff]
    %v810 = vld [vmem:[#allocation5 + $0x14e8] sm:$0xff]
    %v811 = vld [vmem:[#allocation5 + $0x14f0] sm:$0xff]
    %v812 = vld [vmem:[#allocation5 + $0x14f8] sm:$0xff]
    %v813 = vld [vmem:[#allocation5 + $0x1500] sm:$0xff]
    %v814 = vld [vmem:[#allocation5 + $0x1508] sm:$0xff]
    %v815 = vld [vmem:[#allocation5 + $0x1510] sm:$0xff]
    %v816 = vld [vmem:[#allocation5 + $0x1518] sm:$0xff]
    %v817 = vld [vmem:[#allocation5 + $0x1520] sm:$0xff]
    %v818 = vld [vmem:[#allocation5 + $0x1528] sm:$0xff]
    %v819 = vld [vmem:[#allocation5 + $0x1530] sm:$0xff]
    %v820 = vld [vmem:[#allocation5 + $0x1538] sm:$0xff]
    %v821 = vld [vmem:[#allocation5 + $0x1540] sm:$0xff]
    %v822 = vld [vmem:[#allocation5 + $0x1548] sm:$0xff]
    %v823 = vld [vmem:[#allocation5 + $0x1550] sm:$0xff]
    %v824 = vld [vmem:[#allocation5 + $0x1558] sm:$0xff]
    %v825 = vld [vmem:[#allocation5 + $0x1560] sm:$0xff]
    %v826 = vld [vmem:[#allocation5 + $0x1568] sm:$0xff]
    %v827 = vld [vmem:[#allocation5 + $0x1570] sm:$0xff]
    %v828 = vld [vmem:[#allocation5 + $0x1578] sm:$0xff]
    %v829 = vld [vmem:[#allocation5 + $0x1580] sm:$0xff]
    %v830 = vld [vmem:[#allocation5 + $0x1588] sm:$0xff]
    %v831 = vld [vmem:[#allocation5 + $0x1590] sm:$0xff]
    %v832 = vld [vmem:[#allocation5 + $0x1598] sm:$0xff]
    %v833 = vld [vmem:[#allocation5 + $0x15a0] sm:$0xff]
    %v834 = vld [vmem:[#allocation5 + $0x15a8] sm:$0xff]
    %v835 = vld [vmem:[#allocation5 + $0x15b0] sm:$0xff]
    %v836 = vld [vmem:[#allocation5 + $0x15b8] sm:$0xff]
    %v837 = vld [vmem:[#allocation5 + $0x15c0] sm:$0xff]
    %v838 = vld [vmem:[#allocation5 + $0x15c8] sm:$0xff]
    %v839 = vld [vmem:[#allocation5 + $0x15d0] sm:$0xff]
    %v840 = vld [vmem:[#allocation5 + $0x15d8] sm:$0xff]
    %v841 = vld [vmem:[#allocation5 + $0x15e0] sm:$0xff]
    %v842 = vld [vmem:[#allocation5 + $0x15e8] sm:$0xff]
    %v843 = vld [vmem:[#allocation5 + $0x15f0] sm:$0xff]
    %v844 = vld [vmem:[#allocation5 + $0x15f8] sm:$0xff]
    %v845 = vld [vmem:[#allocation5 + $0x1600] sm:$0xff]
    %v846 = vld [vmem:[#allocation5 + $0x1608] sm:$0xff]
    %v847 = vld [vmem:[#allocation5 + $0x1610] sm:$0xff]
    %v848 = vld [vmem:[#allocation5 + $0x1618] sm:$0xff]
    %v849 = vld [vmem:[#allocation5 + $0x1620] sm:$0xff]
    %v850 = vld [vmem:[#allocation5 + $0x1628] sm:$0xff]
    %v851 = vld [vmem:[#allocation5 + $0x1630] sm:$0xff]
    %v852 = vld [vmem:[#allocation5 + $0x1638] sm:$0xff]
    %v853 = vld [vmem:[#allocation5 + $0x1640] sm:$0xff]
    %v854 = vld [vmem:[#allocation5 + $0x1648] sm:$0xff]
    %v855 = vld [vmem:[#allocation5 + $0x1650] sm:$0xff]
    %v856 = vld [vmem:[#allocation5 + $0x1658] sm:$0xff]
    %v857 = vld [vmem:[#allocation5 + $0x1660] sm:$0xff]
    %v858 = vld [vmem:[#allocation5 + $0x1668] sm:$0xff]
    %v859 = vld [vmem:[#allocation5 + $0x1670] sm:$0xff]
    %v860 = vld [vmem:[#allocation5 + $0x1678] sm:$0xff]
    %v861 = vld [vmem:[#allocation5 + $0x1680] sm:$0xff]
    %v862 = vld [vmem:[#allocation5 + $0x1688] sm:$0xff]
    %v863 = vld [vmem:[#allocation5 + $0x1690] sm:$0xff]
    %v864 = vld [vmem:[#allocation5 + $0x1698] sm:$0xff]
    %v865 = vld [vmem:[#allocation5 + $0x16a0] sm:$0xff]
    %v866 = vld [vmem:[#allocation5 + $0x16a8] sm:$0xff]
    %v867 = vld [vmem:[#allocation5 + $0x16b0] sm:$0xff]
    %v868 = vld [vmem:[#allocation5 + $0x16b8] sm:$0xff]
    %v869 = vld [vmem:[#allocation5 + $0x16c0] sm:$0xff]
    %v870 = vld [vmem:[#allocation5 + $0x16c8] sm:$0xff]
    %v871 = vld [vmem:[#allocation5 + $0x16d0] sm:$0xff]
    %v872 = vld [vmem:[#allocation5 + $0x16d8] sm:$0xff]
    %v873 = vld [vmem:[#allocation5 + $0x16e0] sm:$0xff]
    %v874 = vld [vmem:[#allocation5 + $0x16e8] sm:$0xff]
    %v875 = vld [vmem:[#allocation5 + $0x16f0] sm:$0xff]
    %v876 = vld [vmem:[#allocation5 + $0x16f8] sm:$0xff]
    %v877 = vld [vmem:[#allocation5 + $0x1700] sm:$0xff]
    %v878 = vld [vmem:[#allocation5 + $0x1708] sm:$0xff]
    %v879 = vld [vmem:[#allocation5 + $0x1710] sm:$0xff]
    %v880 = vld [vmem:[#allocation5 + $0x1718] sm:$0xff]
    %v881 = vld [vmem:[#allocation5 + $0x1720] sm:$0xff]
    %v882 = vld [vmem:[#allocation5 + $0x1728] sm:$0xff]
    %v883 = vld [vmem:[#allocation5 + $0x1730] sm:$0xff]
    %v884 = vld [vmem:[#allocation5 + $0x1738] sm:$0xff]
    %v885 = vld [vmem:[#allocation5 + $0x1740] sm:$0xff]
    %v886 = vld [vmem:[#allocation5 + $0x1748] sm:$0xff]
    %v887 = vld [vmem:[#allocation5 + $0x1750] sm:$0xff]
    %v888 = vld [vmem:[#allocation5 + $0x1758] sm:$0xff]
    %v889 = vld [vmem:[#allocation5 + $0x1760] sm:$0xff]
    %v890 = vld [vmem:[#allocation5 + $0x1768] sm:$0xff]
    %v891 = vld [vmem:[#allocation5 + $0x1770] sm:$0xff]
    %v892 = vld [vmem:[#allocation5 + $0x1778] sm:$0xff]
    %v893 = vld [vmem:[#allocation5 + $0x1780] sm:$0xff]
    %v894 = vld [vmem:[#allocation5 + $0x1788] sm:$0xff]
    %v895 = vld [vmem:[#allocation5 + $0x1790] sm:$0xff]
    %v896 = vld [vmem:[#allocation5 + $0x1798] sm:$0xff]
    %v897 = vld [vmem:[#allocation5 + $0x17a0] sm:$0xff]
    %v898 = vld [vmem:[#allocation5 + $0x17a8] sm:$0xff]
    %v899 = vld [vmem:[#allocation5 + $0x17b0] sm:$0xff]
    %v900 = vld [vmem:[#allocation5 + $0x17b8] sm:$0xff]
    %v901 = vld [vmem:[#allocation5 + $0x17c0] sm:$0xff]
    %v902 = vld [vmem:[#allocation5 + $0x17c8] sm:$0xff]
    %v903 = vld [vmem:[#allocation5 + $0x17d0] sm:$0xff]
    %v904 = vld [vmem:[#allocation5 + $0x17d8] sm:$0xff]
    %v905 = vld [vmem:[#allocation5 + $0x17e0] sm:$0xff]
    %v906 = vld [vmem:[#allocation5 + $0x17e8] sm:$0xff]
    %v907 = vld [vmem:[#allocation5 + $0x17f0] sm:$0xff]
    %v908 = vld [vmem:[#allocation5 + $0x17f8] sm:$0xff]
    %v909 = vld [vmem:[#allocation5 + $0x1800] sm:$0xff]
    %v910 = vld [vmem:[#allocation5 + $0x1808] sm:$0xff]
    %v911 = vld [vmem:[#allocation5 + $0x1810] sm:$0xff]
    %v912 = vld [vmem:[#allocation5 + $0x1818] sm:$0xff]
    %v913 = vld [vmem:[#allocation5 + $0x1820] sm:$0xff]
    %v914 = vld [vmem:[#allocation5 + $0x1828] sm:$0xff]
    %v915 = vld [vmem:[#allocation5 + $0x1830] sm:$0xff]
    %v916 = vld [vmem:[#allocation5 + $0x1838] sm:$0xff]
    %v917 = vld [vmem:[#allocation5 + $0x1840] sm:$0xff]
    %v918 = vld [vmem:[#allocation5 + $0x1848] sm:$0xff]
    %v919 = vld [vmem:[#allocation5 + $0x1850] sm:$0xff]
    %v920 = vld [vmem:[#allocation5 + $0x1858] sm:$0xff]
    %v921 = vld [vmem:[#allocation5 + $0x1860] sm:$0xff]
    %v922 = vld [vmem:[#allocation5 + $0x1868] sm:$0xff]
    %v923 = vld [vmem:[#allocation5 + $0x1870] sm:$0xff]
    %v924 = vld [vmem:[#allocation5 + $0x1878] sm:$0xff]
    %v925 = vld [vmem:[#allocation5 + $0x1880] sm:$0xff]
    %v926 = vld [vmem:[#allocation5 + $0x1888] sm:$0xff]
    %v927 = vld [vmem:[#allocation5 + $0x1890] sm:$0xff]
    %v928 = vld [vmem:[#allocation5 + $0x1898] sm:$0xff]
    %v929 = vld [vmem:[#allocation5 + $0x18a0] sm:$0xff]
    %v930 = vld [vmem:[#allocation5 + $0x18a8] sm:$0xff]
    %v931 = vld [vmem:[#allocation5 + $0x18b0] sm:$0xff]
    %v932 = vld [vmem:[#allocation5 + $0x18b8] sm:$0xff]
    %v933 = vld [vmem:[#allocation5 + $0x18c0] sm:$0xff]
    %v934 = vld [vmem:[#allocation5 + $0x18c8] sm:$0xff]
    %v935 = vld [vmem:[#allocation5 + $0x18d0] sm:$0xff]
    %v936 = vld [vmem:[#allocation5 + $0x18d8] sm:$0xff]
    %v937 = vld [vmem:[#allocation5 + $0x18e0] sm:$0xff]
    %v938 = vld [vmem:[#allocation5 + $0x18e8] sm:$0xff]
    %v939 = vld [vmem:[#allocation5 + $0x18f0] sm:$0xff]
    %v940 = vld [vmem:[#allocation5 + $0x18f8] sm:$0xff]
    %v941 = vld [vmem:[#allocation5 + $0x1900] sm:$0xff]
    %v942 = vld [vmem:[#allocation5 + $0x1908] sm:$0xff]
    %v943 = vld [vmem:[#allocation5 + $0x1910] sm:$0xff]
    %v944 = vld [vmem:[#allocation5 + $0x1918] sm:$0xff]
    %v945 = vld [vmem:[#allocation5 + $0x1920] sm:$0xff]
    %v946 = vld [vmem:[#allocation5 + $0x1928] sm:$0xff]
    %v947 = vld [vmem:[#allocation5 + $0x1930] sm:$0xff]
    %v948 = vld [vmem:[#allocation5 + $0x1938] sm:$0xff]
    %v949 = vld [vmem:[#allocation5 + $0x1940] sm:$0xff]
    %v950 = vld [vmem:[#allocation5 + $0x1948] sm:$0xff]
    %v951 = vld [vmem:[#allocation5 + $0x1950] sm:$0xff]
    %v952 = vld [vmem:[#allocation5 + $0x1958] sm:$0xff]
    %v953 = vld [vmem:[#allocation5 + $0x1960] sm:$0xff]
    %v954 = vld [vmem:[#allocation5 + $0x1968] sm:$0xff]
    %v955 = vld [vmem:[#allocation5 + $0x1970] sm:$0xff]
    %v956 = vld [vmem:[#allocation5 + $0x1978] sm:$0xff]
    %v957 = vld [vmem:[#allocation5 + $0x1980] sm:$0xff]
    %v958 = vld [vmem:[#allocation5 + $0x1988] sm:$0xff]
    %v959 = vld [vmem:[#allocation5 + $0x1990] sm:$0xff]
    %v960 = vld [vmem:[#allocation5 + $0x1998] sm:$0xff]
    %v961 = vld [vmem:[#allocation5 + $0x19a0] sm:$0xff]
    %v962 = vld [vmem:[#allocation5 + $0x19a8] sm:$0xff]
    %v963 = vld [vmem:[#allocation5 + $0x19b0] sm:$0xff]
    %v964 = vld [vmem:[#allocation5 + $0x19b8] sm:$0xff]
    %v965 = vld [vmem:[#allocation5 + $0x19c0] sm:$0xff]
    %v966 = vld [vmem:[#allocation5 + $0x19c8] sm:$0xff]
    %v967 = vld [vmem:[#allocation5 + $0x19d0] sm:$0xff]
    %v968 = vld [vmem:[#allocation5 + $0x19d8] sm:$0xff]
    %v969 = vld [vmem:[#allocation5 + $0x19e0] sm:$0xff]
    %v970 = vld [vmem:[#allocation5 + $0x19e8] sm:$0xff]
    %v971 = vld [vmem:[#allocation5 + $0x19f0] sm:$0xff]
    %v972 = vld [vmem:[#allocation5 + $0x19f8] sm:$0xff]
    %v973 = vld [vmem:[#allocation5 + $0x1a00] sm:$0xff]
    %v974 = vld [vmem:[#allocation5 + $0x1a08] sm:$0xff]
    %v975 = vld [vmem:[#allocation5 + $0x1a10] sm:$0xff]
    %v976 = vld [vmem:[#allocation5 + $0x1a18] sm:$0xff]
    %v977 = vld [vmem:[#allocation5 + $0x1a20] sm:$0xff]
    %v978 = vld [vmem:[#allocation5 + $0x1a28] sm:$0xff]
    %v979 = vld [vmem:[#allocation5 + $0x1a30] sm:$0xff]
    %v980 = vld [vmem:[#allocation5 + $0x1a38] sm:$0xff]
    %v981 = vld [vmem:[#allocation5 + $0x1a40] sm:$0xff]
    %v982 = vld [vmem:[#allocation5 + $0x1a48] sm:$0xff]
    %v983 = vld [vmem:[#allocation5 + $0x1a50] sm:$0xff]
    %v984 = vld [vmem:[#allocation5 + $0x1a58] sm:$0xff]
    %v985 = vld [vmem:[#allocation5 + $0x1a60] sm:$0xff]
    %v986 = vld [vmem:[#allocation5 + $0x1a68] sm:$0xff]
    %v987 = vld [vmem:[#allocation5 + $0x1a70] sm:$0xff]
    %v988 = vld [vmem:[#allocation5 + $0x1a78] sm:$0xff]
    %v989 = vld [vmem:[#allocation5 + $0x1a80] sm:$0xff]
    %v990 = vld [vmem:[#allocation5 + $0x1a88] sm:$0xff]
    %v991 = vld [vmem:[#allocation5 + $0x1a90] sm:$0xff]
    %v992 = vld [vmem:[#allocation5 + $0x1a98] sm:$0xff]
    %v993 = vld [vmem:[#allocation5 + $0x1aa0] sm:$0xff]
    %v994 = vld [vmem:[#allocation5 + $0x1aa8] sm:$0xff]
    %v995 = vld [vmem:[#allocation5 + $0x1ab0] sm:$0xff]
    %v996 = vld [vmem:[#allocation5 + $0x1ab8] sm:$0xff]
    %v997 = vld [vmem:[#allocation5 + $0x1ac0] sm:$0xff]
    %v998 = vld [vmem:[#allocation5 + $0x1ac8] sm:$0xff]
    %v999 = vld [vmem:[#allocation5 + $0x1ad0] sm:$0xff]
    %v1000 = vld [vmem:[#allocation5 + $0x1ad8] sm:$0xff]
    %v1001 = vld [vmem:[#allocation5 + $0x1ae0] sm:$0xff]
    %v1002 = vld [vmem:[#allocation5 + $0x1ae8] sm:$0xff]
    %v1003 = vld [vmem:[#allocation5 + $0x1af0] sm:$0xff]
    %v1004 = vld [vmem:[#allocation5 + $0x1af8] sm:$0xff]
    %v1005 = vld [vmem:[#allocation5 + $0x1b00] sm:$0xff]
    %v1006 = vld [vmem:[#allocation5 + $0x1b08] sm:$0xff]
    %v1007 = vld [vmem:[#allocation5 + $0x1b10] sm:$0xff]
    %v1008 = vld [vmem:[#allocation5 + $0x1b18] sm:$0xff]
    %v1009 = vld [vmem:[#allocation5 + $0x1b20] sm:$0xff]
    %v1010 = vld [vmem:[#allocation5 + $0x1b28] sm:$0xff]
    %v1011 = vld [vmem:[#allocation5 + $0x1b30] sm:$0xff]
    %v1012 = vld [vmem:[#allocation5 + $0x1b38] sm:$0xff]
    %v1013 = vld [vmem:[#allocation5 + $0x1b40] sm:$0xff]
    %v1014 = vld [vmem:[#allocation5 + $0x1b48] sm:$0xff]
    %v1015 = vld [vmem:[#allocation5 + $0x1b50] sm:$0xff]
    %v1016 = vld [vmem:[#allocation5 + $0x1b58] sm:$0xff]
    %v1017 = vld [vmem:[#allocation5 + $0x1b60] sm:$0xff]
    %v1018 = vld [vmem:[#allocation5 + $0x1b68] sm:$0xff]
    %v1019 = vld [vmem:[#allocation5 + $0x1b70] sm:$0xff]
    %v1020 = vld [vmem:[#allocation5 + $0x1b78] sm:$0xff]
    %v1021 = vld [vmem:[#allocation5 + $0x1b80] sm:$0xff]
    %v1022 = vld [vmem:[#allocation5 + $0x1b88] sm:$0xff]
    %v1023 = vld [vmem:[#allocation5 + $0x1b90] sm:$0xff]
    %v1024 = vld [vmem:[#allocation5 + $0x1b98] sm:$0xff]
    %v1025 = vld [vmem:[#allocation5 + $0x1ba0] sm:$0xff]
    %v1026 = vld [vmem:[#allocation5 + $0x1ba8] sm:$0xff]
    %v1027 = vld [vmem:[#allocation5 + $0x1bb0] sm:$0xff]
    %v1028 = vld [vmem:[#allocation5 + $0x1bb8] sm:$0xff]
    %v1029 = vld [vmem:[#allocation5 + $0x1bc0] sm:$0xff]
    %v1030 = vld [vmem:[#allocation5 + $0x1bc8] sm:$0xff]
    %v1031 = vld [vmem:[#allocation5 + $0x1bd0] sm:$0xff]
    %v1032 = vld [vmem:[#allocation5 + $0x1bd8] sm:$0xff]
    %v1033 = vld [vmem:[#allocation5 + $0x1be0] sm:$0xff]
    %v1034 = vld [vmem:[#allocation5 + $0x1be8] sm:$0xff]
    %v1035 = vld [vmem:[#allocation5 + $0x1bf0] sm:$0xff]
    %v1036 = vld [vmem:[#allocation5 + $0x1bf8] sm:$0xff]
    %v1037 = vld [vmem:[#allocation5 + $0x1c00] sm:$0xff]
    %v1038 = vld [vmem:[#allocation5 + $0x1c08] sm:$0xff]
    %v1039 = vld [vmem:[#allocation5 + $0x1c10] sm:$0xff]
    %v1040 = vld [vmem:[#allocation5 + $0x1c18] sm:$0xff]
    %v1041 = vld [vmem:[#allocation5 + $0x1c20] sm:$0xff]
    %v1042 = vld [vmem:[#allocation5 + $0x1c28] sm:$0xff]
    %v1043 = vld [vmem:[#allocation5 + $0x1c30] sm:$0xff]
    %v1044 = vld [vmem:[#allocation5 + $0x1c38] sm:$0xff]
    %v1045 = vld [vmem:[#allocation5 + $0x1c40] sm:$0xff]
    %v1046 = vld [vmem:[#allocation5 + $0x1c48] sm:$0xff]
    %v1047 = vld [vmem:[#allocation5 + $0x1c50] sm:$0xff]
    %v1048 = vld [vmem:[#allocation5 + $0x1c58] sm:$0xff]
    %v1049 = vld [vmem:[#allocation5 + $0x1c60] sm:$0xff]
    %v1050 = vld [vmem:[#allocation5 + $0x1c68] sm:$0xff]
    %v1051 = vld [vmem:[#allocation5 + $0x1c70] sm:$0xff]
    %v1052 = vld [vmem:[#allocation5 + $0x1c78] sm:$0xff]
    %v1053 = vld [vmem:[#allocation5 + $0x1c80] sm:$0xff]
    %v1054 = vld [vmem:[#allocation5 + $0x1c88] sm:$0xff]
    %v1055 = vld [vmem:[#allocation5 + $0x1c90] sm:$0xff]
    %v1056 = vld [vmem:[#allocation5 + $0x1c98] sm:$0xff]
    %v1057 = vld [vmem:[#allocation5 + $0x1ca0] sm:$0xff]
    %v1058 = vld [vmem:[#allocation5 + $0x1ca8] sm:$0xff]
    %v1059 = vld [vmem:[#allocation5 + $0x1cb0] sm:$0xff]
    %v1060 = vld [vmem:[#allocation5 + $0x1cb8] sm:$0xff]
    %v1061 = vld [vmem:[#allocation5 + $0x1cc0] sm:$0xff]
    %v1062 = vld [vmem:[#allocation5 + $0x1cc8] sm:$0xff]
    %v1063 = vld [vmem:[#allocation5 + $0x1cd0] sm:$0xff]
    %v1064 = vld [vmem:[#allocation5 + $0x1cd8] sm:$0xff]
    %v1065 = vld [vmem:[#allocation5 + $0x1ce0] sm:$0xff]
    %v1066 = vld [vmem:[#allocation5 + $0x1ce8] sm:$0xff]
    %v1067 = vld [vmem:[#allocation5 + $0x1cf0] sm:$0xff]
    %v1068 = vld [vmem:[#allocation5 + $0x1cf8] sm:$0xff]
    %v1069 = vld [vmem:[#allocation5 + $0x1d00] sm:$0xff]
    %v1070 = vld [vmem:[#allocation5 + $0x1d08] sm:$0xff]
    %v1071 = vld [vmem:[#allocation5 + $0x1d10] sm:$0xff]
    %v1072 = vld [vmem:[#allocation5 + $0x1d18] sm:$0xff]
    %v1073 = vld [vmem:[#allocation5 + $0x1d20] sm:$0xff]
    %v1074 = vld [vmem:[#allocation5 + $0x1d28] sm:$0xff]
    %v1075 = vld [vmem:[#allocation5 + $0x1d30] sm:$0xff]
    %v1076 = vld [vmem:[#allocation5 + $0x1d38] sm:$0xff]
    %v1077 = vld [vmem:[#allocation5 + $0x1d40] sm:$0xff]
    %v1078 = vld [vmem:[#allocation5 + $0x1d48] sm:$0xff]
    %v1079 = vld [vmem:[#allocation5 + $0x1d50] sm:$0xff]
    %v1080 = vld [vmem:[#allocation5 + $0x1d58] sm:$0xff]
    %v1081 = vld [vmem:[#allocation5 + $0x1d60] sm:$0xff]
    %v1082 = vld [vmem:[#allocation5 + $0x1d68] sm:$0xff]
    %v1083 = vld [vmem:[#allocation5 + $0x1d70] sm:$0xff]
    %v1084 = vld [vmem:[#allocation5 + $0x1d78] sm:$0xff]
    %v1085 = vld [vmem:[#allocation5 + $0x1d80] sm:$0xff]
    %v1086 = vld [vmem:[#allocation5 + $0x1d88] sm:$0xff]
    %v1087 = vld [vmem:[#allocation5 + $0x1d90] sm:$0xff]
    %v1088 = vld [vmem:[#allocation5 + $0x1d98] sm:$0xff]
    %v1089 = vld [vmem:[#allocation5 + $0x1da0] sm:$0xff]
    %v1090 = vld [vmem:[#allocation5 + $0x1da8] sm:$0xff]
    %v1091 = vld [vmem:[#allocation5 + $0x1db0] sm:$0xff]
    %v1092 = vld [vmem:[#allocation5 + $0x1db8] sm:$0xff]
    %v1093 = vld [vmem:[#allocation5 + $0x1dc0] sm:$0xff]
    %v1094 = vld [vmem:[#allocation5 + $0x1dc8] sm:$0xff]
    %v1095 = vld [vmem:[#allocation5 + $0x1dd0] sm:$0xff]
    %v1096 = vld [vmem:[#allocation5 + $0x1dd8] sm:$0xff]
    %v1097 = vld [vmem:[#allocation5 + $0x1de0] sm:$0xff]
    %v1098 = vld [vmem:[#allocation5 + $0x1de8] sm:$0xff]
    %v1099 = vld [vmem:[#allocation5 + $0x1df0] sm:$0xff]
    %v1100 = vld [vmem:[#allocation5 + $0x1df8] sm:$0xff]
    %v1101 = vld [vmem:[#allocation5 + $0x1e00] sm:$0xff]
    %v1102 = vld [vmem:[#allocation5 + $0x1e08] sm:$0xff]
    %v1103 = vld [vmem:[#allocation5 + $0x1e10] sm:$0xff]
    %v1104 = vld [vmem:[#allocation5 + $0x1e18] sm:$0xff]
    %v1105 = vld [vmem:[#allocation5 + $0x1e20] sm:$0xff]
    %v1106 = vld [vmem:[#allocation5 + $0x1e28] sm:$0xff]
    %v1107 = vld [vmem:[#allocation5 + $0x1e30] sm:$0xff]
    %v1108 = vld [vmem:[#allocation5 + $0x1e38] sm:$0xff]
    %v1109 = vld [vmem:[#allocation5 + $0x1e40] sm:$0xff]
    %v1110 = vld [vmem:[#allocation5 + $0x1e48] sm:$0xff]
    %v1111 = vld [vmem:[#allocation5 + $0x1e50] sm:$0xff]
    %v1112 = vld [vmem:[#allocation5 + $0x1e58] sm:$0xff]
    %v1113 = vld [vmem:[#allocation5 + $0x1e60] sm:$0xff]
    %v1114 = vld [vmem:[#allocation5 + $0x1e68] sm:$0xff]
    %v1115 = vld [vmem:[#allocation5 + $0x1e70] sm:$0xff]
    %v1116 = vld [vmem:[#allocation5 + $0x1e78] sm:$0xff]
    %v1117 = vld [vmem:[#allocation5 + $0x1e80] sm:$0xff]
    %v1118 = vld [vmem:[#allocation5 + $0x1e88] sm:$0xff]
    %v1119 = vld [vmem:[#allocation5 + $0x1e90] sm:$0xff]
    %v1120 = vld [vmem:[#allocation5 + $0x1e98] sm:$0xff]
    %v1121 = vld [vmem:[#allocation5 + $0x1ea0] sm:$0xff]
    %v1122 = vld [vmem:[#allocation5 + $0x1ea8] sm:$0xff]
    %v1123 = vld [vmem:[#allocation5 + $0x1eb0] sm:$0xff]
    %v1124 = vld [vmem:[#allocation5 + $0x1eb8] sm:$0xff]
    %v1125 = vld [vmem:[#allocation5 + $0x1ec0] sm:$0xff]
    %v1126 = vld [vmem:[#allocation5 + $0x1ec8] sm:$0xff]
    %v1127 = vld [vmem:[#allocation5 + $0x1ed0] sm:$0xff]
    %v1128 = vld [vmem:[#allocation5 + $0x1ed8] sm:$0xff]
    %v1129 = vld [vmem:[#allocation5 + $0x1ee0] sm:$0xff]
    %v1130 = vld [vmem:[#allocation5 + $0x1ee8] sm:$0xff]
    %v1131 = vld [vmem:[#allocation5 + $0x1ef0] sm:$0xff]
    %v1132 = vld [vmem:[#allocation5 + $0x1ef8] sm:$0xff]
    %v1133 = vld [vmem:[#allocation5 + $0x1f00] sm:$0xff]
    %v1134 = vld [vmem:[#allocation5 + $0x1f08] sm:$0xff]
    %v1135 = vld [vmem:[#allocation5 + $0x1f10] sm:$0xff]
    %v1136 = vld [vmem:[#allocation5 + $0x1f18] sm:$0xff]
    %v1137 = vld [vmem:[#allocation5 + $0x1f20] sm:$0xff]
    %v1138 = vld [vmem:[#allocation5 + $0x1f28] sm:$0xff]
    %v1139 = vld [vmem:[#allocation5 + $0x1f30] sm:$0xff]
    %v1140 = vld [vmem:[#allocation5 + $0x1f38] sm:$0xff]
    %v1141 = vld [vmem:[#allocation5 + $0x1f40] sm:$0xff]
    %v1142 = vld [vmem:[#allocation5 + $0x1f48] sm:$0xff]
    %v1143 = vld [vmem:[#allocation5 + $0x1f50] sm:$0xff]
    %v1144 = vld [vmem:[#allocation5 + $0x1f58] sm:$0xff]
    %v1145 = vld [vmem:[#allocation5 + $0x1f60] sm:$0xff]
    %v1146 = vld [vmem:[#allocation5 + $0x1f68] sm:$0xff]
    %v1147 = vld [vmem:[#allocation5 + $0x1f70] sm:$0xff]
    %v1148 = vld [vmem:[#allocation5 + $0x1f78] sm:$0xff]
    %v1149 = vld [vmem:[#allocation5 + $0x1f80] sm:$0xff]
    %v1150 = vld [vmem:[#allocation5 + $0x1f88] sm:$0xff]
    %v1151 = vld [vmem:[#allocation5 + $0x1f90] sm:$0xff]
    %v1152 = vld [vmem:[#allocation5 + $0x1f98] sm:$0xff]
    %v1153 = vld [vmem:[#allocation5 + $0x1fa0] sm:$0xff]
    %v1154 = vld [vmem:[#allocation5 + $0x1fa8] sm:$0xff]
    %v1155 = vld [vmem:[#allocation5 + $0x1fb0] sm:$0xff]
    %v1156 = vld [vmem:[#allocation5 + $0x1fb8] sm:$0xff]
    %v1157 = vld [vmem:[#allocation5 + $0x1fc0] sm:$0xff]
    %v1158 = vld [vmem:[#allocation5 + $0x1fc8] sm:$0xff]
    %v1159 = vld [vmem:[#allocation5 + $0x1fd0] sm:$0xff]
    %v1160 = vld [vmem:[#allocation5 + $0x1fd8] sm:$0xff]
    %v1161 = vld [vmem:[#allocation5 + $0x1fe0] sm:$0xff]
    %v1162 = vld [vmem:[#allocation5 + $0x1fe8] sm:$0xff]
    %v1163 = vld [vmem:[#allocation5 + $0x1ff0] sm:$0xff]
    %v1164 = vld [vmem:[#allocation5 + $0x1ff8] sm:$0xff]
    %v1165 = vld [vmem:[#allocation7] sm:$0xff]
    %v1166 = vld [vmem:[#allocation7 + $0x8] sm:$0xff]
    %v1169 = vlaneseq
    %v1170 = vshrl.u32 %v1169, 7
    %v1171 = vsub.s32 0, %v1170
    %v1172 = vrot.slane %v1165, %v1171
    %v1173 = vlaneseq
    %v1174 = vshrl.u32 %v1173, 7
    %v1175 = vsub.s32 1, %v1174
    %v1176 = vrot.slane %v1165, %v1175
    %v1177 = vlaneseq
    %v1178 = vshrl.u32 %v1177, 7
    %v1179 = vsub.s32 2, %v1178
    %v1180 = vrot.slane %v1165, %v1179
    %v1181 = vlaneseq
    %v1182 = vshrl.u32 %v1181, 7
    %v1183 = vsub.s32 3, %v1182
    %v1184 = vrot.slane %v1165, %v1183
    %v1185 = vlaneseq
    %v1186 = vshrl.u32 %v1185, 7
    %v1187 = vsub.s32 4, %v1186
    %v1188 = vrot.slane %v1165, %v1187
    %v1189 = vlaneseq
    %v1190 = vshrl.u32 %v1189, 7
    %v1191 = vsub.s32 5, %v1190
    %v1192 = vrot.slane %v1165, %v1191
    %v1193 = vlaneseq
    %v1194 = vshrl.u32 %v1193, 7
    %v1195 = vsub.s32 6, %v1194
    %v1196 = vrot.slane %v1165, %v1195
    %v1197 = vlaneseq
    %v1198 = vshrl.u32 %v1197, 7
    %v1199 = vsub.s32 7, %v1198
    %v1200 = vrot.slane %v1165, %v1199
    %v1201 = vlaneseq
    %v1202 = vshrl.u32 %v1201, 7
    %v1203 = vsub.s32 0, %v1202
    %v1204 = vrot.slane %v1166, %v1203
    %v1205 = vlaneseq
    %v1206 = vshrl.u32 %v1205, 7
    %v1207 = vsub.s32 1, %v1206
    %v1208 = vrot.slane %v1166, %v1207
    %v1209 = vlaneseq
    %v1210 = vshrl.u32 %v1209, 7
    %v1211 = vsub.s32 2, %v1210
    %v1212 = vrot.slane %v1166, %v1211
    %v1213 = vlaneseq
    %v1214 = vshrl.u32 %v1213, 7
    %v1215 = vsub.s32 3, %v1214
    %v1216 = vrot.slane %v1166, %v1215
    %v1217 = vlaneseq
    %v1218 = vshrl.u32 %v1217, 7
    %v1219 = vsub.s32 4, %v1218
    %v1220 = vrot.slane %v1166, %v1219
    %v1221 = vlaneseq
    %v1222 = vshrl.u32 %v1221, 7
    %v1223 = vsub.s32 5, %v1222
    %v1224 = vrot.slane %v1166, %v1223
    %v1225 = vlaneseq
    %v1226 = vshrl.u32 %v1225, 7
    %v1227 = vsub.s32 6, %v1226
    %v1228 = vrot.slane %v1166, %v1227
    %v1229 = vlaneseq
    %v1230 = vshrl.u32 %v1229, 7
    %v1231 = vsub.s32 7, %v1230
    %v1232 = vrot.slane %v1166, %v1231
    %v1257 = vunpack.c.l.b16 %v133
    %v1258 = vunpack.c.h.b16 %v133
    %v1259 = vunpack.c.l.b16 %v134
    %v1260 = vunpack.c.h.b16 %v134
    %v1261 = vunpack.c.l.b16 %v135
    %v1262 = vunpack.c.h.b16 %v135
    %v1263 = vunpack.c.l.b16 %v136
    %v1264 = vunpack.c.h.b16 %v136
    %v1265 = vunpack.c.l.b16 %v137
    %v1266 = vunpack.c.h.b16 %v137
    %v1267 = vunpack.c.l.b16 %v138
    %v1268 = vunpack.c.h.b16 %v138
    %v1269 = vunpack.c.l.b16 %v139
    %v1270 = vunpack.c.h.b16 %v139
    %v1271 = vunpack.c.l.b16 %v140
    %v1272 = vunpack.c.h.b16 %v140
    %v1273 = vpack.c.b16 %v1265, %v1257
    %v1274 = vpack.c.b16 %v1266, %v1258
    %v1275 = vpack.c.b16 %v1267, %v1259
    %v1276 = vpack.c.b16 %v1268, %v1260
    %v1277 = vpack.c.b16 %v1269, %v1261
    %v1278 = vpack.c.b16 %v1270, %v1262
    %v1279 = vpack.c.b16 %v1271, %v1263
    %v1280 = vpack.c.b16 %v1272, %v1264
    %v2313 = vunpack.c.l.b16 %v141
    %v2314 = vunpack.c.h.b16 %v141
    %v2315 = vunpack.c.l.b16 %v142
    %v2316 = vunpack.c.h.b16 %v142
    %v2317 = vunpack.c.l.b16 %v143
    %v2318 = vunpack.c.h.b16 %v143
    %v2319 = vunpack.c.l.b16 %v144
    %v2320 = vunpack.c.h.b16 %v144
    %v2321 = vunpack.c.l.b16 %v145
    %v2322 = vunpack.c.h.b16 %v145
    %v2323 = vunpack.c.l.b16 %v146
    %v2324 = vunpack.c.h.b16 %v146
    %v2325 = vunpack.c.l.b16 %v147
    %v2326 = vunpack.c.h.b16 %v147
    %v2327 = vunpack.c.l.b16 %v148
    %v2328 = vunpack.c.h.b16 %v148
    %v2329 = vunpack.c.l.b16 %v149
    %v2330 = vunpack.c.h.b16 %v149
    %v2331 = vunpack.c.l.b16 %v150
    %v2332 = vunpack.c.h.b16 %v150
    %v2333 = vunpack.c.l.b16 %v151
    %v2334 = vunpack.c.h.b16 %v151
    %v2335 = vunpack.c.l.b16 %v152
    %v2336 = vunpack.c.h.b16 %v152
    %v2337 = vunpack.c.l.b16 %v153
    %v2338 = vunpack.c.h.b16 %v153
    %v2339 = vunpack.c.l.b16 %v154
    %v2340 = vunpack.c.h.b16 %v154
    %v2341 = vunpack.c.l.b16 %v155
    %v2342 = vunpack.c.h.b16 %v155
    %v2343 = vunpack.c.l.b16 %v156
    %v2344 = vunpack.c.h.b16 %v156
    %v2345 = vunpack.c.l.b16 %v157
    %v2346 = vunpack.c.h.b16 %v157
    %v2347 = vunpack.c.l.b16 %v158
    %v2348 = vunpack.c.h.b16 %v158
    %v2349 = vunpack.c.l.b16 %v159
    %v2350 = vunpack.c.h.b16 %v159
    %v2351 = vunpack.c.l.b16 %v160
    %v2352 = vunpack.c.h.b16 %v160
    %v2353 = vunpack.c.l.b16 %v161
    %v2354 = vunpack.c.h.b16 %v161
    %v2355 = vunpack.c.l.b16 %v162
    %v2356 = vunpack.c.h.b16 %v162
    %v2357 = vunpack.c.l.b16 %v163
    %v2358 = vunpack.c.h.b16 %v163
    %v2359 = vunpack.c.l.b16 %v164
    %v2360 = vunpack.c.h.b16 %v164
    %v2361 = vunpack.c.l.b16 %v165
    %v2362 = vunpack.c.h.b16 %v165
    %v2363 = vunpack.c.l.b16 %v166
    %v2364 = vunpack.c.h.b16 %v166
    %v2365 = vunpack.c.l.b16 %v167
    %v2366 = vunpack.c.h.b16 %v167
    %v2367 = vunpack.c.l.b16 %v168
    %v2368 = vunpack.c.h.b16 %v168
    %v2369 = vunpack.c.l.b16 %v169
    %v2370 = vunpack.c.h.b16 %v169
    %v2371 = vunpack.c.l.b16 %v170
    %v2372 = vunpack.c.h.b16 %v170
    %v2373 = vunpack.c.l.b16 %v171
    %v2374 = vunpack.c.h.b16 %v171
    %v2375 = vunpack.c.l.b16 %v172
    %v2376 = vunpack.c.h.b16 %v172
    %v2377 = vunpack.c.l.b16 %v173
    %v2378 = vunpack.c.h.b16 %v173
    %v2379 = vunpack.c.l.b16 %v174
    %v2380 = vunpack.c.h.b16 %v174
    %v2381 = vunpack.c.l.b16 %v175
    %v2382 = vunpack.c.h.b16 %v175
    %v2383 = vunpack.c.l.b16 %v176
    %v2384 = vunpack.c.h.b16 %v176
    %v2385 = vunpack.c.l.b16 %v177
    %v2386 = vunpack.c.h.b16 %v177
    %v2387 = vunpack.c.l.b16 %v178
    %v2388 = vunpack.c.h.b16 %v178
    %v2389 = vunpack.c.l.b16 %v179
    %v2390 = vunpack.c.h.b16 %v179
    %v2391 = vunpack.c.l.b16 %v180
    %v2392 = vunpack.c.h.b16 %v180
    %v2393 = vunpack.c.l.b16 %v181
    %v2394 = vunpack.c.h.b16 %v181
    %v2395 = vunpack.c.l.b16 %v182
    %v2396 = vunpack.c.h.b16 %v182
    %v2397 = vunpack.c.l.b16 %v183
    %v2398 = vunpack.c.h.b16 %v183
    %v2399 = vunpack.c.l.b16 %v184
    %v2400 = vunpack.c.h.b16 %v184
    %v2401 = vunpack.c.l.b16 %v185
    %v2402 = vunpack.c.h.b16 %v185
    %v2403 = vunpack.c.l.b16 %v186
    %v2404 = vunpack.c.h.b16 %v186
    %v2405 = vunpack.c.l.b16 %v187
    %v2406 = vunpack.c.h.b16 %v187
    %v2407 = vunpack.c.l.b16 %v188
    %v2408 = vunpack.c.h.b16 %v188
    %v2409 = vunpack.c.l.b16 %v189
    %v2410 = vunpack.c.h.b16 %v189
    %v2411 = vunpack.c.l.b16 %v190
    %v2412 = vunpack.c.h.b16 %v190
    %v2413 = vunpack.c.l.b16 %v191
    %v2414 = vunpack.c.h.b16 %v191
    %v2415 = vunpack.c.l.b16 %v192
    %v2416 = vunpack.c.h.b16 %v192
    %v2417 = vunpack.c.l.b16 %v193
    %v2418 = vunpack.c.h.b16 %v193
    %v2419 = vunpack.c.l.b16 %v194
    %v2420 = vunpack.c.h.b16 %v194
    %v2421 = vunpack.c.l.b16 %v195
    %v2422 = vunpack.c.h.b16 %v195
    %v2423 = vunpack.c.l.b16 %v196
    %v2424 = vunpack.c.h.b16 %v196
    %v2425 = vunpack.c.l.b16 %v197
    %v2426 = vunpack.c.h.b16 %v197
    %v2427 = vunpack.c.l.b16 %v198
    %v2428 = vunpack.c.h.b16 %v198
    %v2429 = vunpack.c.l.b16 %v199
    %v2430 = vunpack.c.h.b16 %v199
    %v2431 = vunpack.c.l.b16 %v200
    %v2432 = vunpack.c.h.b16 %v200
    %v2433 = vunpack.c.l.b16 %v201
    %v2434 = vunpack.c.h.b16 %v201
    %v2435 = vunpack.c.l.b16 %v202
    %v2436 = vunpack.c.h.b16 %v202
    %v2437 = vunpack.c.l.b16 %v203
    %v2438 = vunpack.c.h.b16 %v203
    %v2439 = vunpack.c.l.b16 %v204
    %v2440 = vunpack.c.h.b16 %v204
    %v2441 = vunpack.c.l.b16 %v205
    %v2442 = vunpack.c.h.b16 %v205
    %v2443 = vunpack.c.l.b16 %v206
    %v2444 = vunpack.c.h.b16 %v206
    %v2445 = vunpack.c.l.b16 %v207
    %v2446 = vunpack.c.h.b16 %v207
    %v2447 = vunpack.c.l.b16 %v208
    %v2448 = vunpack.c.h.b16 %v208
    %v2449 = vunpack.c.l.b16 %v209
    %v2450 = vunpack.c.h.b16 %v209
    %v2451 = vunpack.c.l.b16 %v210
    %v2452 = vunpack.c.h.b16 %v210
    %v2453 = vunpack.c.l.b16 %v211
    %v2454 = vunpack.c.h.b16 %v211
    %v2455 = vunpack.c.l.b16 %v212
    %v2456 = vunpack.c.h.b16 %v212
    %v2457 = vunpack.c.l.b16 %v213
    %v2458 = vunpack.c.h.b16 %v213
    %v2459 = vunpack.c.l.b16 %v214
    %v2460 = vunpack.c.h.b16 %v214
    %v2461 = vunpack.c.l.b16 %v215
    %v2462 = vunpack.c.h.b16 %v215
    %v2463 = vunpack.c.l.b16 %v216
    %v2464 = vunpack.c.h.b16 %v216
    %v2465 = vunpack.c.l.b16 %v217
    %v2466 = vunpack.c.h.b16 %v217
    %v2467 = vunpack.c.l.b16 %v218
    %v2468 = vunpack.c.h.b16 %v218
    %v2469 = vunpack.c.l.b16 %v219
    %v2470 = vunpack.c.h.b16 %v219
    %v2471 = vunpack.c.l.b16 %v220
    %v2472 = vunpack.c.h.b16 %v220
    %v2473 = vunpack.c.l.b16 %v221
    %v2474 = vunpack.c.h.b16 %v221
    %v2475 = vunpack.c.l.b16 %v222
    %v2476 = vunpack.c.h.b16 %v222
    %v2477 = vunpack.c.l.b16 %v223
    %v2478 = vunpack.c.h.b16 %v223
    %v2479 = vunpack.c.l.b16 %v224
    %v2480 = vunpack.c.h.b16 %v224
    %v2481 = vunpack.c.l.b16 %v225
    %v2482 = vunpack.c.h.b16 %v225
    %v2483 = vunpack.c.l.b16 %v226
    %v2484 = vunpack.c.h.b16 %v226
    %v2485 = vunpack.c.l.b16 %v227
    %v2486 = vunpack.c.h.b16 %v227
    %v2487 = vunpack.c.l.b16 %v228
    %v2488 = vunpack.c.h.b16 %v228
    %v2489 = vunpack.c.l.b16 %v229
    %v2490 = vunpack.c.h.b16 %v229
    %v2491 = vunpack.c.l.b16 %v230
    %v2492 = vunpack.c.h.b16 %v230
    %v2493 = vunpack.c.l.b16 %v231
    %v2494 = vunpack.c.h.b16 %v231
    %v2495 = vunpack.c.l.b16 %v232
    %v2496 = vunpack.c.h.b16 %v232
    %v2497 = vunpack.c.l.b16 %v233
    %v2498 = vunpack.c.h.b16 %v233
    %v2499 = vunpack.c.l.b16 %v234
    %v2500 = vunpack.c.h.b16 %v234
    %v2501 = vunpack.c.l.b16 %v235
    %v2502 = vunpack.c.h.b16 %v235
    %v2503 = vunpack.c.l.b16 %v236
    %v2504 = vunpack.c.h.b16 %v236
    %v2505 = vunpack.c.l.b16 %v237
    %v2506 = vunpack.c.h.b16 %v237
    %v2507 = vunpack.c.l.b16 %v238
    %v2508 = vunpack.c.h.b16 %v238
    %v2509 = vunpack.c.l.b16 %v239
    %v2510 = vunpack.c.h.b16 %v239
    %v2511 = vunpack.c.l.b16 %v240
    %v2512 = vunpack.c.h.b16 %v240
    %v2513 = vunpack.c.l.b16 %v241
    %v2514 = vunpack.c.h.b16 %v241
    %v2515 = vunpack.c.l.b16 %v242
    %v2516 = vunpack.c.h.b16 %v242
    %v2517 = vunpack.c.l.b16 %v243
    %v2518 = vunpack.c.h.b16 %v243
    %v2519 = vunpack.c.l.b16 %v244
    %v2520 = vunpack.c.h.b16 %v244
    %v2521 = vunpack.c.l.b16 %v245
    %v2522 = vunpack.c.h.b16 %v245
    %v2523 = vunpack.c.l.b16 %v246
    %v2524 = vunpack.c.h.b16 %v246
    %v2525 = vunpack.c.l.b16 %v247
    %v2526 = vunpack.c.h.b16 %v247
    %v2527 = vunpack.c.l.b16 %v248
    %v2528 = vunpack.c.h.b16 %v248
    %v2529 = vunpack.c.l.b16 %v249
    %v2530 = vunpack.c.h.b16 %v249
    %v2531 = vunpack.c.l.b16 %v250
    %v2532 = vunpack.c.h.b16 %v250
    %v2533 = vunpack.c.l.b16 %v251
    %v2534 = vunpack.c.h.b16 %v251
    %v2535 = vunpack.c.l.b16 %v252
    %v2536 = vunpack.c.h.b16 %v252
    %v2537 = vunpack.c.l.b16 %v253
    %v2538 = vunpack.c.h.b16 %v253
    %v2539 = vunpack.c.l.b16 %v254
    %v2540 = vunpack.c.h.b16 %v254
    %v2541 = vunpack.c.l.b16 %v255
    %v2542 = vunpack.c.h.b16 %v255
    %v2543 = vunpack.c.l.b16 %v256
    %v2544 = vunpack.c.h.b16 %v256
    %v2545 = vunpack.c.l.b16 %v257
    %v2546 = vunpack.c.h.b16 %v257
    %v2547 = vunpack.c.l.b16 %v258
    %v2548 = vunpack.c.h.b16 %v258
    %v2549 = vunpack.c.l.b16 %v259
    %v2550 = vunpack.c.h.b16 %v259
    %v2551 = vunpack.c.l.b16 %v260
    %v2552 = vunpack.c.h.b16 %v260
    %v2553 = vunpack.c.l.b16 %v261
    %v2554 = vunpack.c.h.b16 %v261
    %v2555 = vunpack.c.l.b16 %v262
    %v2556 = vunpack.c.h.b16 %v262
    %v2557 = vunpack.c.l.b16 %v263
    %v2558 = vunpack.c.h.b16 %v263
    %v2559 = vunpack.c.l.b16 %v264
    %v2560 = vunpack.c.h.b16 %v264
    %v2561 = vunpack.c.l.b16 %v265
    %v2562 = vunpack.c.h.b16 %v265
    %v2563 = vunpack.c.l.b16 %v266
    %v2564 = vunpack.c.h.b16 %v266
    %v2565 = vunpack.c.l.b16 %v267
    %v2566 = vunpack.c.h.b16 %v267
    %v2567 = vunpack.c.l.b16 %v268
    %v2568 = vunpack.c.h.b16 %v268
    %v2569 = vunpack.c.l.b16 %v269
    %v2570 = vunpack.c.h.b16 %v269
    %v2571 = vunpack.c.l.b16 %v270
    %v2572 = vunpack.c.h.b16 %v270
    %v2573 = vunpack.c.l.b16 %v271
    %v2574 = vunpack.c.h.b16 %v271
    %v2575 = vunpack.c.l.b16 %v272
    %v2576 = vunpack.c.h.b16 %v272
    %v2577 = vunpack.c.l.b16 %v273
    %v2578 = vunpack.c.h.b16 %v273
    %v2579 = vunpack.c.l.b16 %v274
    %v2580 = vunpack.c.h.b16 %v274
    %v2581 = vunpack.c.l.b16 %v275
    %v2582 = vunpack.c.h.b16 %v275
    %v2583 = vunpack.c.l.b16 %v276
    %v2584 = vunpack.c.h.b16 %v276
    %v2585 = vunpack.c.l.b16 %v277
    %v2586 = vunpack.c.h.b16 %v277
    %v2587 = vunpack.c.l.b16 %v278
    %v2588 = vunpack.c.h.b16 %v278
    %v2589 = vunpack.c.l.b16 %v279
    %v2590 = vunpack.c.h.b16 %v279
    %v2591 = vunpack.c.l.b16 %v280
    %v2592 = vunpack.c.h.b16 %v280
    %v2593 = vunpack.c.l.b16 %v281
    %v2594 = vunpack.c.h.b16 %v281
    %v2595 = vunpack.c.l.b16 %v282
    %v2596 = vunpack.c.h.b16 %v282
    %v2597 = vunpack.c.l.b16 %v283
    %v2598 = vunpack.c.h.b16 %v283
    %v2599 = vunpack.c.l.b16 %v284
    %v2600 = vunpack.c.h.b16 %v284
    %v2601 = vunpack.c.l.b16 %v285
    %v2602 = vunpack.c.h.b16 %v285
    %v2603 = vunpack.c.l.b16 %v286
    %v2604 = vunpack.c.h.b16 %v286
    %v2605 = vunpack.c.l.b16 %v287
    %v2606 = vunpack.c.h.b16 %v287
    %v2607 = vunpack.c.l.b16 %v288
    %v2608 = vunpack.c.h.b16 %v288
    %v2609 = vunpack.c.l.b16 %v289
    %v2610 = vunpack.c.h.b16 %v289
    %v2611 = vunpack.c.l.b16 %v290
    %v2612 = vunpack.c.h.b16 %v290
    %v2613 = vunpack.c.l.b16 %v291
    %v2614 = vunpack.c.h.b16 %v291
    %v2615 = vunpack.c.l.b16 %v292
    %v2616 = vunpack.c.h.b16 %v292
    %v2617 = vunpack.c.l.b16 %v293
    %v2618 = vunpack.c.h.b16 %v293
    %v2619 = vunpack.c.l.b16 %v294
    %v2620 = vunpack.c.h.b16 %v294
    %v2621 = vunpack.c.l.b16 %v295
    %v2622 = vunpack.c.h.b16 %v295
    %v2623 = vunpack.c.l.b16 %v296
    %v2624 = vunpack.c.h.b16 %v296
    %v2625 = vunpack.c.l.b16 %v297
    %v2626 = vunpack.c.h.b16 %v297
    %v2627 = vunpack.c.l.b16 %v298
    %v2628 = vunpack.c.h.b16 %v298
    %v2629 = vunpack.c.l.b16 %v299
    %v2630 = vunpack.c.h.b16 %v299
    %v2631 = vunpack.c.l.b16 %v300
    %v2632 = vunpack.c.h.b16 %v300
    %v2633 = vunpack.c.l.b16 %v301
    %v2634 = vunpack.c.h.b16 %v301
    %v2635 = vunpack.c.l.b16 %v302
    %v2636 = vunpack.c.h.b16 %v302
    %v2637 = vunpack.c.l.b16 %v303
    %v2638 = vunpack.c.h.b16 %v303
    %v2639 = vunpack.c.l.b16 %v304
    %v2640 = vunpack.c.h.b16 %v304
    %v2641 = vunpack.c.l.b16 %v305
    %v2642 = vunpack.c.h.b16 %v305
    %v2643 = vunpack.c.l.b16 %v306
    %v2644 = vunpack.c.h.b16 %v306
    %v2645 = vunpack.c.l.b16 %v307
    %v2646 = vunpack.c.h.b16 %v307
    %v2647 = vunpack.c.l.b16 %v308
    %v2648 = vunpack.c.h.b16 %v308
    %v2649 = vunpack.c.l.b16 %v309
    %v2650 = vunpack.c.h.b16 %v309
    %v2651 = vunpack.c.l.b16 %v310
    %v2652 = vunpack.c.h.b16 %v310
    %v2653 = vunpack.c.l.b16 %v311
    %v2654 = vunpack.c.h.b16 %v311
    %v2655 = vunpack.c.l.b16 %v312
    %v2656 = vunpack.c.h.b16 %v312
    %v2657 = vunpack.c.l.b16 %v313
    %v2658 = vunpack.c.h.b16 %v313
    %v2659 = vunpack.c.l.b16 %v314
    %v2660 = vunpack.c.h.b16 %v314
    %v2661 = vunpack.c.l.b16 %v315
    %v2662 = vunpack.c.h.b16 %v315
    %v2663 = vunpack.c.l.b16 %v316
    %v2664 = vunpack.c.h.b16 %v316
    %v2665 = vunpack.c.l.b16 %v317
    %v2666 = vunpack.c.h.b16 %v317
    %v2667 = vunpack.c.l.b16 %v318
    %v2668 = vunpack.c.h.b16 %v318
    %v2669 = vunpack.c.l.b16 %v319
    %v2670 = vunpack.c.h.b16 %v319
    %v2671 = vunpack.c.l.b16 %v320
    %v2672 = vunpack.c.h.b16 %v320
    %v2673 = vunpack.c.l.b16 %v321
    %v2674 = vunpack.c.h.b16 %v321
    %v2675 = vunpack.c.l.b16 %v322
    %v2676 = vunpack.c.h.b16 %v322
    %v2677 = vunpack.c.l.b16 %v323
    %v2678 = vunpack.c.h.b16 %v323
    %v2679 = vunpack.c.l.b16 %v324
    %v2680 = vunpack.c.h.b16 %v324
    %v2681 = vunpack.c.l.b16 %v325
    %v2682 = vunpack.c.h.b16 %v325
    %v2683 = vunpack.c.l.b16 %v326
    %v2684 = vunpack.c.h.b16 %v326
    %v2685 = vunpack.c.l.b16 %v327
    %v2686 = vunpack.c.h.b16 %v327
    %v2687 = vunpack.c.l.b16 %v328
    %v2688 = vunpack.c.h.b16 %v328
    %v2689 = vunpack.c.l.b16 %v329
    %v2690 = vunpack.c.h.b16 %v329
    %v2691 = vunpack.c.l.b16 %v330
    %v2692 = vunpack.c.h.b16 %v330
    %v2693 = vunpack.c.l.b16 %v331
    %v2694 = vunpack.c.h.b16 %v331
    %v2695 = vunpack.c.l.b16 %v332
    %v2696 = vunpack.c.h.b16 %v332
    %v2697 = vunpack.c.l.b16 %v333
    %v2698 = vunpack.c.h.b16 %v333
    %v2699 = vunpack.c.l.b16 %v334
    %v2700 = vunpack.c.h.b16 %v334
    %v2701 = vunpack.c.l.b16 %v335
    %v2702 = vunpack.c.h.b16 %v335
    %v2703 = vunpack.c.l.b16 %v336
    %v2704 = vunpack.c.h.b16 %v336
    %v2705 = vunpack.c.l.b16 %v337
    %v2706 = vunpack.c.h.b16 %v337
    %v2707 = vunpack.c.l.b16 %v338
    %v2708 = vunpack.c.h.b16 %v338
    %v2709 = vunpack.c.l.b16 %v339
    %v2710 = vunpack.c.h.b16 %v339
    %v2711 = vunpack.c.l.b16 %v340
    %v2712 = vunpack.c.h.b16 %v340
    %v2713 = vunpack.c.l.b16 %v341
    %v2714 = vunpack.c.h.b16 %v341
    %v2715 = vunpack.c.l.b16 %v342
    %v2716 = vunpack.c.h.b16 %v342
    %v2717 = vunpack.c.l.b16 %v343
    %v2718 = vunpack.c.h.b16 %v343
    %v2719 = vunpack.c.l.b16 %v344
    %v2720 = vunpack.c.h.b16 %v344
    %v2721 = vunpack.c.l.b16 %v345
    %v2722 = vunpack.c.h.b16 %v345
    %v2723 = vunpack.c.l.b16 %v346
    %v2724 = vunpack.c.h.b16 %v346
    %v2725 = vunpack.c.l.b16 %v347
    %v2726 = vunpack.c.h.b16 %v347
    %v2727 = vunpack.c.l.b16 %v348
    %v2728 = vunpack.c.h.b16 %v348
    %v2729 = vunpack.c.l.b16 %v349
    %v2730 = vunpack.c.h.b16 %v349
    %v2731 = vunpack.c.l.b16 %v350
    %v2732 = vunpack.c.h.b16 %v350
    %v2733 = vunpack.c.l.b16 %v351
    %v2734 = vunpack.c.h.b16 %v351
    %v2735 = vunpack.c.l.b16 %v352
    %v2736 = vunpack.c.h.b16 %v352
    %v2737 = vunpack.c.l.b16 %v353
    %v2738 = vunpack.c.h.b16 %v353
    %v2739 = vunpack.c.l.b16 %v354
    %v2740 = vunpack.c.h.b16 %v354
    %v2741 = vunpack.c.l.b16 %v355
    %v2742 = vunpack.c.h.b16 %v355
    %v2743 = vunpack.c.l.b16 %v356
    %v2744 = vunpack.c.h.b16 %v356
    %v2745 = vunpack.c.l.b16 %v357
    %v2746 = vunpack.c.h.b16 %v357
    %v2747 = vunpack.c.l.b16 %v358
    %v2748 = vunpack.c.h.b16 %v358
    %v2749 = vunpack.c.l.b16 %v359
    %v2750 = vunpack.c.h.b16 %v359
    %v2751 = vunpack.c.l.b16 %v360
    %v2752 = vunpack.c.h.b16 %v360
    %v2753 = vunpack.c.l.b16 %v361
    %v2754 = vunpack.c.h.b16 %v361
    %v2755 = vunpack.c.l.b16 %v362
    %v2756 = vunpack.c.h.b16 %v362
    %v2757 = vunpack.c.l.b16 %v363
    %v2758 = vunpack.c.h.b16 %v363
    %v2759 = vunpack.c.l.b16 %v364
    %v2760 = vunpack.c.h.b16 %v364
    %v2761 = vunpack.c.l.b16 %v365
    %v2762 = vunpack.c.h.b16 %v365
    %v2763 = vunpack.c.l.b16 %v366
    %v2764 = vunpack.c.h.b16 %v366
    %v2765 = vunpack.c.l.b16 %v367
    %v2766 = vunpack.c.h.b16 %v367
    %v2767 = vunpack.c.l.b16 %v368
    %v2768 = vunpack.c.h.b16 %v368
    %v2769 = vunpack.c.l.b16 %v369
    %v2770 = vunpack.c.h.b16 %v369
    %v2771 = vunpack.c.l.b16 %v370
    %v2772 = vunpack.c.h.b16 %v370
    %v2773 = vunpack.c.l.b16 %v371
    %v2774 = vunpack.c.h.b16 %v371
    %v2775 = vunpack.c.l.b16 %v372
    %v2776 = vunpack.c.h.b16 %v372
    %v2777 = vunpack.c.l.b16 %v373
    %v2778 = vunpack.c.h.b16 %v373
    %v2779 = vunpack.c.l.b16 %v374
    %v2780 = vunpack.c.h.b16 %v374
    %v2781 = vunpack.c.l.b16 %v375
    %v2782 = vunpack.c.h.b16 %v375
    %v2783 = vunpack.c.l.b16 %v376
    %v2784 = vunpack.c.h.b16 %v376
    %v2785 = vunpack.c.l.b16 %v377
    %v2786 = vunpack.c.h.b16 %v377
    %v2787 = vunpack.c.l.b16 %v378
    %v2788 = vunpack.c.h.b16 %v378
    %v2789 = vunpack.c.l.b16 %v379
    %v2790 = vunpack.c.h.b16 %v379
    %v2791 = vunpack.c.l.b16 %v380
    %v2792 = vunpack.c.h.b16 %v380
    %v2793 = vunpack.c.l.b16 %v381
    %v2794 = vunpack.c.h.b16 %v381
    %v2795 = vunpack.c.l.b16 %v382
    %v2796 = vunpack.c.h.b16 %v382
    %v2797 = vunpack.c.l.b16 %v383
    %v2798 = vunpack.c.h.b16 %v383
    %v2799 = vunpack.c.l.b16 %v384
    %v2800 = vunpack.c.h.b16 %v384
    %v2801 = vunpack.c.l.b16 %v385
    %v2802 = vunpack.c.h.b16 %v385
    %v2803 = vunpack.c.l.b16 %v386
    %v2804 = vunpack.c.h.b16 %v386
    %v2805 = vunpack.c.l.b16 %v387
    %v2806 = vunpack.c.h.b16 %v387
    %v2807 = vunpack.c.l.b16 %v388
    %v2808 = vunpack.c.h.b16 %v388
    %v2809 = vunpack.c.l.b16 %v389
    %v2810 = vunpack.c.h.b16 %v389
    %v2811 = vunpack.c.l.b16 %v390
    %v2812 = vunpack.c.h.b16 %v390
    %v2813 = vunpack.c.l.b16 %v391
    %v2814 = vunpack.c.h.b16 %v391
    %v2815 = vunpack.c.l.b16 %v392
    %v2816 = vunpack.c.h.b16 %v392
    %v2817 = vunpack.c.l.b16 %v393
    %v2818 = vunpack.c.h.b16 %v393
    %v2819 = vunpack.c.l.b16 %v394
    %v2820 = vunpack.c.h.b16 %v394
    %v2821 = vunpack.c.l.b16 %v395
    %v2822 = vunpack.c.h.b16 %v395
    %v2823 = vunpack.c.l.b16 %v396
    %v2824 = vunpack.c.h.b16 %v396
    %v2825 = vunpack.c.l.b16 %v397
    %v2826 = vunpack.c.h.b16 %v397
    %v2827 = vunpack.c.l.b16 %v398
    %v2828 = vunpack.c.h.b16 %v398
    %v2829 = vunpack.c.l.b16 %v399
    %v2830 = vunpack.c.h.b16 %v399
    %v2831 = vunpack.c.l.b16 %v400
    %v2832 = vunpack.c.h.b16 %v400
    %v2833 = vunpack.c.l.b16 %v401
    %v2834 = vunpack.c.h.b16 %v401
    %v2835 = vunpack.c.l.b16 %v402
    %v2836 = vunpack.c.h.b16 %v402
    %v2837 = vunpack.c.l.b16 %v403
    %v2838 = vunpack.c.h.b16 %v403
    %v2839 = vunpack.c.l.b16 %v404
    %v2840 = vunpack.c.h.b16 %v404
    %v2841 = vunpack.c.l.b16 %v405
    %v2842 = vunpack.c.h.b16 %v405
    %v2843 = vunpack.c.l.b16 %v406
    %v2844 = vunpack.c.h.b16 %v406
    %v2845 = vunpack.c.l.b16 %v407
    %v2846 = vunpack.c.h.b16 %v407
    %v2847 = vunpack.c.l.b16 %v408
    %v2848 = vunpack.c.h.b16 %v408
    %v2849 = vunpack.c.l.b16 %v409
    %v2850 = vunpack.c.h.b16 %v409
    %v2851 = vunpack.c.l.b16 %v410
    %v2852 = vunpack.c.h.b16 %v410
    %v2853 = vunpack.c.l.b16 %v411
    %v2854 = vunpack.c.h.b16 %v411
    %v2855 = vunpack.c.l.b16 %v412
    %v2856 = vunpack.c.h.b16 %v412
    %v2857 = vunpack.c.l.b16 %v413
    %v2858 = vunpack.c.h.b16 %v413
    %v2859 = vunpack.c.l.b16 %v414
    %v2860 = vunpack.c.h.b16 %v414
    %v2861 = vunpack.c.l.b16 %v415
    %v2862 = vunpack.c.h.b16 %v415
    %v2863 = vunpack.c.l.b16 %v416
    %v2864 = vunpack.c.h.b16 %v416
    %v2865 = vunpack.c.l.b16 %v417
    %v2866 = vunpack.c.h.b16 %v417
    %v2867 = vunpack.c.l.b16 %v418
    %v2868 = vunpack.c.h.b16 %v418
    %v2869 = vunpack.c.l.b16 %v419
    %v2870 = vunpack.c.h.b16 %v419
    %v2871 = vunpack.c.l.b16 %v420
    %v2872 = vunpack.c.h.b16 %v420
    %v2873 = vunpack.c.l.b16 %v421
    %v2874 = vunpack.c.h.b16 %v421
    %v2875 = vunpack.c.l.b16 %v422
    %v2876 = vunpack.c.h.b16 %v422
    %v2877 = vunpack.c.l.b16 %v423
    %v2878 = vunpack.c.h.b16 %v423
    %v2879 = vunpack.c.l.b16 %v424
    %v2880 = vunpack.c.h.b16 %v424
    %v2881 = vunpack.c.l.b16 %v425
    %v2882 = vunpack.c.h.b16 %v425
    %v2883 = vunpack.c.l.b16 %v426
    %v2884 = vunpack.c.h.b16 %v426
    %v2885 = vunpack.c.l.b16 %v427
    %v2886 = vunpack.c.h.b16 %v427
    %v2887 = vunpack.c.l.b16 %v428
    %v2888 = vunpack.c.h.b16 %v428
    %v2889 = vunpack.c.l.b16 %v429
    %v2890 = vunpack.c.h.b16 %v429
    %v2891 = vunpack.c.l.b16 %v430
    %v2892 = vunpack.c.h.b16 %v430
    %v2893 = vunpack.c.l.b16 %v431
    %v2894 = vunpack.c.h.b16 %v431
    %v2895 = vunpack.c.l.b16 %v432
    %v2896 = vunpack.c.h.b16 %v432
    %v2897 = vunpack.c.l.b16 %v433
    %v2898 = vunpack.c.h.b16 %v433
    %v2899 = vunpack.c.l.b16 %v434
    %v2900 = vunpack.c.h.b16 %v434
    %v2901 = vunpack.c.l.b16 %v435
    %v2902 = vunpack.c.h.b16 %v435
    %v2903 = vunpack.c.l.b16 %v436
    %v2904 = vunpack.c.h.b16 %v436
    %v2905 = vunpack.c.l.b16 %v437
    %v2906 = vunpack.c.h.b16 %v437
    %v2907 = vunpack.c.l.b16 %v438
    %v2908 = vunpack.c.h.b16 %v438
    %v2909 = vunpack.c.l.b16 %v439
    %v2910 = vunpack.c.h.b16 %v439
    %v2911 = vunpack.c.l.b16 %v440
    %v2912 = vunpack.c.h.b16 %v440
    %v2913 = vunpack.c.l.b16 %v441
    %v2914 = vunpack.c.h.b16 %v441
    %v2915 = vunpack.c.l.b16 %v442
    %v2916 = vunpack.c.h.b16 %v442
    %v2917 = vunpack.c.l.b16 %v443
    %v2918 = vunpack.c.h.b16 %v443
    %v2919 = vunpack.c.l.b16 %v444
    %v2920 = vunpack.c.h.b16 %v444
    %v2921 = vunpack.c.l.b16 %v445
    %v2922 = vunpack.c.h.b16 %v445
    %v2923 = vunpack.c.l.b16 %v446
    %v2924 = vunpack.c.h.b16 %v446
    %v2925 = vunpack.c.l.b16 %v447
    %v2926 = vunpack.c.h.b16 %v447
    %v2927 = vunpack.c.l.b16 %v448
    %v2928 = vunpack.c.h.b16 %v448
    %v2929 = vunpack.c.l.b16 %v449
    %v2930 = vunpack.c.h.b16 %v449
    %v2931 = vunpack.c.l.b16 %v450
    %v2932 = vunpack.c.h.b16 %v450
    %v2933 = vunpack.c.l.b16 %v451
    %v2934 = vunpack.c.h.b16 %v451
    %v2935 = vunpack.c.l.b16 %v452
    %v2936 = vunpack.c.h.b16 %v452
    %v2937 = vunpack.c.l.b16 %v453
    %v2938 = vunpack.c.h.b16 %v453
    %v2939 = vunpack.c.l.b16 %v454
    %v2940 = vunpack.c.h.b16 %v454
    %v2941 = vunpack.c.l.b16 %v455
    %v2942 = vunpack.c.h.b16 %v455
    %v2943 = vunpack.c.l.b16 %v456
    %v2944 = vunpack.c.h.b16 %v456
    %v2945 = vunpack.c.l.b16 %v457
    %v2946 = vunpack.c.h.b16 %v457
    %v2947 = vunpack.c.l.b16 %v458
    %v2948 = vunpack.c.h.b16 %v458
    %v2949 = vunpack.c.l.b16 %v459
    %v2950 = vunpack.c.h.b16 %v459
    %v2951 = vunpack.c.l.b16 %v460
    %v2952 = vunpack.c.h.b16 %v460
    %v2953 = vunpack.c.l.b16 %v461
    %v2954 = vunpack.c.h.b16 %v461
    %v2955 = vunpack.c.l.b16 %v462
    %v2956 = vunpack.c.h.b16 %v462
    %v2957 = vunpack.c.l.b16 %v463
    %v2958 = vunpack.c.h.b16 %v463
    %v2959 = vunpack.c.l.b16 %v464
    %v2960 = vunpack.c.h.b16 %v464
    %v2961 = vunpack.c.l.b16 %v465
    %v2962 = vunpack.c.h.b16 %v465
    %v2963 = vunpack.c.l.b16 %v466
    %v2964 = vunpack.c.h.b16 %v466
    %v2965 = vunpack.c.l.b16 %v467
    %v2966 = vunpack.c.h.b16 %v467
    %v2967 = vunpack.c.l.b16 %v468
    %v2968 = vunpack.c.h.b16 %v468
    %v2969 = vunpack.c.l.b16 %v469
    %v2970 = vunpack.c.h.b16 %v469
    %v2971 = vunpack.c.l.b16 %v470
    %v2972 = vunpack.c.h.b16 %v470
    %v2973 = vunpack.c.l.b16 %v471
    %v2974 = vunpack.c.h.b16 %v471
    %v2975 = vunpack.c.l.b16 %v472
    %v2976 = vunpack.c.h.b16 %v472
    %v2977 = vunpack.c.l.b16 %v473
    %v2978 = vunpack.c.h.b16 %v473
    %v2979 = vunpack.c.l.b16 %v474
    %v2980 = vunpack.c.h.b16 %v474
    %v2981 = vunpack.c.l.b16 %v475
    %v2982 = vunpack.c.h.b16 %v475
    %v2983 = vunpack.c.l.b16 %v476
    %v2984 = vunpack.c.h.b16 %v476
    %v2985 = vunpack.c.l.b16 %v477
    %v2986 = vunpack.c.h.b16 %v477
    %v2987 = vunpack.c.l.b16 %v478
    %v2988 = vunpack.c.h.b16 %v478
    %v2989 = vunpack.c.l.b16 %v479
    %v2990 = vunpack.c.h.b16 %v479
    %v2991 = vunpack.c.l.b16 %v480
    %v2992 = vunpack.c.h.b16 %v480
    %v2993 = vunpack.c.l.b16 %v481
    %v2994 = vunpack.c.h.b16 %v481
    %v2995 = vunpack.c.l.b16 %v482
    %v2996 = vunpack.c.h.b16 %v482
    %v2997 = vunpack.c.l.b16 %v483
    %v2998 = vunpack.c.h.b16 %v483
    %v2999 = vunpack.c.l.b16 %v484
    %v3000 = vunpack.c.h.b16 %v484
    %v3001 = vunpack.c.l.b16 %v485
    %v3002 = vunpack.c.h.b16 %v485
    %v3003 = vunpack.c.l.b16 %v486
    %v3004 = vunpack.c.h.b16 %v486
    %v3005 = vunpack.c.l.b16 %v487
    %v3006 = vunpack.c.h.b16 %v487
    %v3007 = vunpack.c.l.b16 %v488
    %v3008 = vunpack.c.h.b16 %v488
    %v3009 = vunpack.c.l.b16 %v489
    %v3010 = vunpack.c.h.b16 %v489
    %v3011 = vunpack.c.l.b16 %v490
    %v3012 = vunpack.c.h.b16 %v490
    %v3013 = vunpack.c.l.b16 %v491
    %v3014 = vunpack.c.h.b16 %v491
    %v3015 = vunpack.c.l.b16 %v492
    %v3016 = vunpack.c.h.b16 %v492
    %v3017 = vunpack.c.l.b16 %v493
    %v3018 = vunpack.c.h.b16 %v493
    %v3019 = vunpack.c.l.b16 %v494
    %v3020 = vunpack.c.h.b16 %v494
    %v3021 = vunpack.c.l.b16 %v495
    %v3022 = vunpack.c.h.b16 %v495
    %v3023 = vunpack.c.l.b16 %v496
    %v3024 = vunpack.c.h.b16 %v496
    %v3025 = vunpack.c.l.b16 %v497
    %v3026 = vunpack.c.h.b16 %v497
    %v3027 = vunpack.c.l.b16 %v498
    %v3028 = vunpack.c.h.b16 %v498
    %v3029 = vunpack.c.l.b16 %v499
    %v3030 = vunpack.c.h.b16 %v499
    %v3031 = vunpack.c.l.b16 %v500
    %v3032 = vunpack.c.h.b16 %v500
    %v3033 = vunpack.c.l.b16 %v501
    %v3034 = vunpack.c.h.b16 %v501
    %v3035 = vunpack.c.l.b16 %v502
    %v3036 = vunpack.c.h.b16 %v502
    %v3037 = vunpack.c.l.b16 %v503
    %v3038 = vunpack.c.h.b16 %v503
    %v3039 = vunpack.c.l.b16 %v504
    %v3040 = vunpack.c.h.b16 %v504
    %v3041 = vunpack.c.l.b16 %v505
    %v3042 = vunpack.c.h.b16 %v505
    %v3043 = vunpack.c.l.b16 %v506
    %v3044 = vunpack.c.h.b16 %v506
    %v3045 = vunpack.c.l.b16 %v507
    %v3046 = vunpack.c.h.b16 %v507
    %v3047 = vunpack.c.l.b16 %v508
    %v3048 = vunpack.c.h.b16 %v508
    %v3049 = vunpack.c.l.b16 %v509
    %v3050 = vunpack.c.h.b16 %v509
    %v3051 = vunpack.c.l.b16 %v510
    %v3052 = vunpack.c.h.b16 %v510
    %v3053 = vunpack.c.l.b16 %v511
    %v3054 = vunpack.c.h.b16 %v511
    %v3055 = vunpack.c.l.b16 %v512
    %v3056 = vunpack.c.h.b16 %v512
    %v3057 = vunpack.c.l.b16 %v513
    %v3058 = vunpack.c.h.b16 %v513
    %v3059 = vunpack.c.l.b16 %v514
    %v3060 = vunpack.c.h.b16 %v514
    %v3061 = vunpack.c.l.b16 %v515
    %v3062 = vunpack.c.h.b16 %v515
    %v3063 = vunpack.c.l.b16 %v516
    %v3064 = vunpack.c.h.b16 %v516
    %v3065 = vunpack.c.l.b16 %v517
    %v3066 = vunpack.c.h.b16 %v517
    %v3067 = vunpack.c.l.b16 %v518
    %v3068 = vunpack.c.h.b16 %v518
    %v3069 = vunpack.c.l.b16 %v519
    %v3070 = vunpack.c.h.b16 %v519
    %v3071 = vunpack.c.l.b16 %v520
    %v3072 = vunpack.c.h.b16 %v520
    %v3073 = vunpack.c.l.b16 %v521
    %v3074 = vunpack.c.h.b16 %v521
    %v3075 = vunpack.c.l.b16 %v522
    %v3076 = vunpack.c.h.b16 %v522
    %v3077 = vunpack.c.l.b16 %v523
    %v3078 = vunpack.c.h.b16 %v523
    %v3079 = vunpack.c.l.b16 %v524
    %v3080 = vunpack.c.h.b16 %v524
    %v3081 = vunpack.c.l.b16 %v525
    %v3082 = vunpack.c.h.b16 %v525
    %v3083 = vunpack.c.l.b16 %v526
    %v3084 = vunpack.c.h.b16 %v526
    %v3085 = vunpack.c.l.b16 %v527
    %v3086 = vunpack.c.h.b16 %v527
    %v3087 = vunpack.c.l.b16 %v528
    %v3088 = vunpack.c.h.b16 %v528
    %v3089 = vunpack.c.l.b16 %v529
    %v3090 = vunpack.c.h.b16 %v529
    %v3091 = vunpack.c.l.b16 %v530
    %v3092 = vunpack.c.h.b16 %v530
    %v3093 = vunpack.c.l.b16 %v531
    %v3094 = vunpack.c.h.b16 %v531
    %v3095 = vunpack.c.l.b16 %v532
    %v3096 = vunpack.c.h.b16 %v532
    %v3097 = vunpack.c.l.b16 %v533
    %v3098 = vunpack.c.h.b16 %v533
    %v3099 = vunpack.c.l.b16 %v534
    %v3100 = vunpack.c.h.b16 %v534
    %v3101 = vunpack.c.l.b16 %v535
    %v3102 = vunpack.c.h.b16 %v535
    %v3103 = vunpack.c.l.b16 %v536
    %v3104 = vunpack.c.h.b16 %v536
    %v3105 = vunpack.c.l.b16 %v537
    %v3106 = vunpack.c.h.b16 %v537
    %v3107 = vunpack.c.l.b16 %v538
    %v3108 = vunpack.c.h.b16 %v538
    %v3109 = vunpack.c.l.b16 %v539
    %v3110 = vunpack.c.h.b16 %v539
    %v3111 = vunpack.c.l.b16 %v540
    %v3112 = vunpack.c.h.b16 %v540
    %v3113 = vunpack.c.l.b16 %v541
    %v3114 = vunpack.c.h.b16 %v541
    %v3115 = vunpack.c.l.b16 %v542
    %v3116 = vunpack.c.h.b16 %v542
    %v3117 = vunpack.c.l.b16 %v543
    %v3118 = vunpack.c.h.b16 %v543
    %v3119 = vunpack.c.l.b16 %v544
    %v3120 = vunpack.c.h.b16 %v544
    %v3121 = vunpack.c.l.b16 %v545
    %v3122 = vunpack.c.h.b16 %v545
    %v3123 = vunpack.c.l.b16 %v546
    %v3124 = vunpack.c.h.b16 %v546
    %v3125 = vunpack.c.l.b16 %v547
    %v3126 = vunpack.c.h.b16 %v547
    %v3127 = vunpack.c.l.b16 %v548
    %v3128 = vunpack.c.h.b16 %v548
    %v3129 = vunpack.c.l.b16 %v549
    %v3130 = vunpack.c.h.b16 %v549
    %v3131 = vunpack.c.l.b16 %v550
    %v3132 = vunpack.c.h.b16 %v550
    %v3133 = vunpack.c.l.b16 %v551
    %v3134 = vunpack.c.h.b16 %v551
    %v3135 = vunpack.c.l.b16 %v552
    %v3136 = vunpack.c.h.b16 %v552
    %v3137 = vunpack.c.l.b16 %v553
    %v3138 = vunpack.c.h.b16 %v553
    %v3139 = vunpack.c.l.b16 %v554
    %v3140 = vunpack.c.h.b16 %v554
    %v3141 = vunpack.c.l.b16 %v555
    %v3142 = vunpack.c.h.b16 %v555
    %v3143 = vunpack.c.l.b16 %v556
    %v3144 = vunpack.c.h.b16 %v556
    %v3145 = vunpack.c.l.b16 %v557
    %v3146 = vunpack.c.h.b16 %v557
    %v3147 = vunpack.c.l.b16 %v558
    %v3148 = vunpack.c.h.b16 %v558
    %v3149 = vunpack.c.l.b16 %v559
    %v3150 = vunpack.c.h.b16 %v559
    %v3151 = vunpack.c.l.b16 %v560
    %v3152 = vunpack.c.h.b16 %v560
    %v3153 = vunpack.c.l.b16 %v561
    %v3154 = vunpack.c.h.b16 %v561
    %v3155 = vunpack.c.l.b16 %v562
    %v3156 = vunpack.c.h.b16 %v562
    %v3157 = vunpack.c.l.b16 %v563
    %v3158 = vunpack.c.h.b16 %v563
    %v3159 = vunpack.c.l.b16 %v564
    %v3160 = vunpack.c.h.b16 %v564
    %v3161 = vunpack.c.l.b16 %v565
    %v3162 = vunpack.c.h.b16 %v565
    %v3163 = vunpack.c.l.b16 %v566
    %v3164 = vunpack.c.h.b16 %v566
    %v3165 = vunpack.c.l.b16 %v567
    %v3166 = vunpack.c.h.b16 %v567
    %v3167 = vunpack.c.l.b16 %v568
    %v3168 = vunpack.c.h.b16 %v568
    %v3169 = vunpack.c.l.b16 %v569
    %v3170 = vunpack.c.h.b16 %v569
    %v3171 = vunpack.c.l.b16 %v570
    %v3172 = vunpack.c.h.b16 %v570
    %v3173 = vunpack.c.l.b16 %v571
    %v3174 = vunpack.c.h.b16 %v571
    %v3175 = vunpack.c.l.b16 %v572
    %v3176 = vunpack.c.h.b16 %v572
    %v3177 = vunpack.c.l.b16 %v573
    %v3178 = vunpack.c.h.b16 %v573
    %v3179 = vunpack.c.l.b16 %v574
    %v3180 = vunpack.c.h.b16 %v574
    %v3181 = vunpack.c.l.b16 %v575
    %v3182 = vunpack.c.h.b16 %v575
    %v3183 = vunpack.c.l.b16 %v576
    %v3184 = vunpack.c.h.b16 %v576
    %v3185 = vunpack.c.l.b16 %v577
    %v3186 = vunpack.c.h.b16 %v577
    %v3187 = vunpack.c.l.b16 %v578
    %v3188 = vunpack.c.h.b16 %v578
    %v3189 = vunpack.c.l.b16 %v579
    %v3190 = vunpack.c.h.b16 %v579
    %v3191 = vunpack.c.l.b16 %v580
    %v3192 = vunpack.c.h.b16 %v580
    %v3193 = vunpack.c.l.b16 %v581
    %v3194 = vunpack.c.h.b16 %v581
    %v3195 = vunpack.c.l.b16 %v582
    %v3196 = vunpack.c.h.b16 %v582
    %v3197 = vunpack.c.l.b16 %v583
    %v3198 = vunpack.c.h.b16 %v583
    %v3199 = vunpack.c.l.b16 %v584
    %v3200 = vunpack.c.h.b16 %v584
    %v3201 = vunpack.c.l.b16 %v585
    %v3202 = vunpack.c.h.b16 %v585
    %v3203 = vunpack.c.l.b16 %v586
    %v3204 = vunpack.c.h.b16 %v586
    %v3205 = vunpack.c.l.b16 %v587
    %v3206 = vunpack.c.h.b16 %v587
    %v3207 = vunpack.c.l.b16 %v588
    %v3208 = vunpack.c.h.b16 %v588
    %v3209 = vunpack.c.l.b16 %v589
    %v3210 = vunpack.c.h.b16 %v589
    %v3211 = vunpack.c.l.b16 %v590
    %v3212 = vunpack.c.h.b16 %v590
    %v3213 = vunpack.c.l.b16 %v591
    %v3214 = vunpack.c.h.b16 %v591
    %v3215 = vunpack.c.l.b16 %v592
    %v3216 = vunpack.c.h.b16 %v592
    %v3217 = vunpack.c.l.b16 %v593
    %v3218 = vunpack.c.h.b16 %v593
    %v3219 = vunpack.c.l.b16 %v594
    %v3220 = vunpack.c.h.b16 %v594
    %v3221 = vunpack.c.l.b16 %v595
    %v3222 = vunpack.c.h.b16 %v595
    %v3223 = vunpack.c.l.b16 %v596
    %v3224 = vunpack.c.h.b16 %v596
    %v3225 = vunpack.c.l.b16 %v597
    %v3226 = vunpack.c.h.b16 %v597
    %v3227 = vunpack.c.l.b16 %v598
    %v3228 = vunpack.c.h.b16 %v598
    %v3229 = vunpack.c.l.b16 %v599
    %v3230 = vunpack.c.h.b16 %v599
    %v3231 = vunpack.c.l.b16 %v600
    %v3232 = vunpack.c.h.b16 %v600
    %v3233 = vunpack.c.l.b16 %v601
    %v3234 = vunpack.c.h.b16 %v601
    %v3235 = vunpack.c.l.b16 %v602
    %v3236 = vunpack.c.h.b16 %v602
    %v3237 = vunpack.c.l.b16 %v603
    %v3238 = vunpack.c.h.b16 %v603
    %v3239 = vunpack.c.l.b16 %v604
    %v3240 = vunpack.c.h.b16 %v604
    %v3241 = vunpack.c.l.b16 %v605
    %v3242 = vunpack.c.h.b16 %v605
    %v3243 = vunpack.c.l.b16 %v606
    %v3244 = vunpack.c.h.b16 %v606
    %v3245 = vunpack.c.l.b16 %v607
    %v3246 = vunpack.c.h.b16 %v607
    %v3247 = vunpack.c.l.b16 %v608
    %v3248 = vunpack.c.h.b16 %v608
    %v3249 = vunpack.c.l.b16 %v609
    %v3250 = vunpack.c.h.b16 %v609
    %v3251 = vunpack.c.l.b16 %v610
    %v3252 = vunpack.c.h.b16 %v610
    %v3253 = vunpack.c.l.b16 %v611
    %v3254 = vunpack.c.h.b16 %v611
    %v3255 = vunpack.c.l.b16 %v612
    %v3256 = vunpack.c.h.b16 %v612
    %v3257 = vunpack.c.l.b16 %v613
    %v3258 = vunpack.c.h.b16 %v613
    %v3259 = vunpack.c.l.b16 %v614
    %v3260 = vunpack.c.h.b16 %v614
    %v3261 = vunpack.c.l.b16 %v615
    %v3262 = vunpack.c.h.b16 %v615
    %v3263 = vunpack.c.l.b16 %v616
    %v3264 = vunpack.c.h.b16 %v616
    %v3265 = vunpack.c.l.b16 %v617
    %v3266 = vunpack.c.h.b16 %v617
    %v3267 = vunpack.c.l.b16 %v618
    %v3268 = vunpack.c.h.b16 %v618
    %v3269 = vunpack.c.l.b16 %v619
    %v3270 = vunpack.c.h.b16 %v619
    %v3271 = vunpack.c.l.b16 %v620
    %v3272 = vunpack.c.h.b16 %v620
    %v3273 = vunpack.c.l.b16 %v621
    %v3274 = vunpack.c.h.b16 %v621
    %v3275 = vunpack.c.l.b16 %v622
    %v3276 = vunpack.c.h.b16 %v622
    %v3277 = vunpack.c.l.b16 %v623
    %v3278 = vunpack.c.h.b16 %v623
    %v3279 = vunpack.c.l.b16 %v624
    %v3280 = vunpack.c.h.b16 %v624
    %v3281 = vunpack.c.l.b16 %v625
    %v3282 = vunpack.c.h.b16 %v625
    %v3283 = vunpack.c.l.b16 %v626
    %v3284 = vunpack.c.h.b16 %v626
    %v3285 = vunpack.c.l.b16 %v627
    %v3286 = vunpack.c.h.b16 %v627
    %v3287 = vunpack.c.l.b16 %v628
    %v3288 = vunpack.c.h.b16 %v628
    %v3289 = vunpack.c.l.b16 %v629
    %v3290 = vunpack.c.h.b16 %v629
    %v3291 = vunpack.c.l.b16 %v630
    %v3292 = vunpack.c.h.b16 %v630
    %v3293 = vunpack.c.l.b16 %v631
    %v3294 = vunpack.c.h.b16 %v631
    %v3295 = vunpack.c.l.b16 %v632
    %v3296 = vunpack.c.h.b16 %v632
    %v3297 = vunpack.c.l.b16 %v633
    %v3298 = vunpack.c.h.b16 %v633
    %v3299 = vunpack.c.l.b16 %v634
    %v3300 = vunpack.c.h.b16 %v634
    %v3301 = vunpack.c.l.b16 %v635
    %v3302 = vunpack.c.h.b16 %v635
    %v3303 = vunpack.c.l.b16 %v636
    %v3304 = vunpack.c.h.b16 %v636
    %v3305 = vunpack.c.l.b16 %v637
    %v3306 = vunpack.c.h.b16 %v637
    %v3307 = vunpack.c.l.b16 %v638
    %v3308 = vunpack.c.h.b16 %v638
    %v3309 = vunpack.c.l.b16 %v639
    %v3310 = vunpack.c.h.b16 %v639
    %v3311 = vunpack.c.l.b16 %v640
    %v3312 = vunpack.c.h.b16 %v640
    %v3313 = vunpack.c.l.b16 %v641
    %v3314 = vunpack.c.h.b16 %v641
    %v3315 = vunpack.c.l.b16 %v642
    %v3316 = vunpack.c.h.b16 %v642
    %v3317 = vunpack.c.l.b16 %v643
    %v3318 = vunpack.c.h.b16 %v643
    %v3319 = vunpack.c.l.b16 %v644
    %v3320 = vunpack.c.h.b16 %v644
    %v3321 = vunpack.c.l.b16 %v645
    %v3322 = vunpack.c.h.b16 %v645
    %v3323 = vunpack.c.l.b16 %v646
    %v3324 = vunpack.c.h.b16 %v646
    %v3325 = vunpack.c.l.b16 %v647
    %v3326 = vunpack.c.h.b16 %v647
    %v3327 = vunpack.c.l.b16 %v648
    %v3328 = vunpack.c.h.b16 %v648
    %v3329 = vunpack.c.l.b16 %v649
    %v3330 = vunpack.c.h.b16 %v649
    %v3331 = vunpack.c.l.b16 %v650
    %v3332 = vunpack.c.h.b16 %v650
    %v3333 = vunpack.c.l.b16 %v651
    %v3334 = vunpack.c.h.b16 %v651
    %v3335 = vunpack.c.l.b16 %v652
    %v3336 = vunpack.c.h.b16 %v652
    %v3337 = vunpack.c.l.b16 %v653
    %v3338 = vunpack.c.h.b16 %v653
    %v3339 = vunpack.c.l.b16 %v654
    %v3340 = vunpack.c.h.b16 %v654
    %v3341 = vunpack.c.l.b16 %v655
    %v3342 = vunpack.c.h.b16 %v655
    %v3343 = vunpack.c.l.b16 %v656
    %v3344 = vunpack.c.h.b16 %v656
    %v3345 = vunpack.c.l.b16 %v657
    %v3346 = vunpack.c.h.b16 %v657
    %v3347 = vunpack.c.l.b16 %v658
    %v3348 = vunpack.c.h.b16 %v658
    %v3349 = vunpack.c.l.b16 %v659
    %v3350 = vunpack.c.h.b16 %v659
    %v3351 = vunpack.c.l.b16 %v660
    %v3352 = vunpack.c.h.b16 %v660
    %v3353 = vunpack.c.l.b16 %v661
    %v3354 = vunpack.c.h.b16 %v661
    %v3355 = vunpack.c.l.b16 %v662
    %v3356 = vunpack.c.h.b16 %v662
    %v3357 = vunpack.c.l.b16 %v663
    %v3358 = vunpack.c.h.b16 %v663
    %v3359 = vunpack.c.l.b16 %v664
    %v3360 = vunpack.c.h.b16 %v664
    %v3361 = vunpack.c.l.b16 %v665
    %v3362 = vunpack.c.h.b16 %v665
    %v3363 = vunpack.c.l.b16 %v666
    %v3364 = vunpack.c.h.b16 %v666
    %v3365 = vunpack.c.l.b16 %v667
    %v3366 = vunpack.c.h.b16 %v667
    %v3367 = vunpack.c.l.b16 %v668
    %v3368 = vunpack.c.h.b16 %v668
    %v3369 = vunpack.c.l.b16 %v669
    %v3370 = vunpack.c.h.b16 %v669
    %v3371 = vunpack.c.l.b16 %v670
    %v3372 = vunpack.c.h.b16 %v670
    %v3373 = vunpack.c.l.b16 %v671
    %v3374 = vunpack.c.h.b16 %v671
    %v3375 = vunpack.c.l.b16 %v672
    %v3376 = vunpack.c.h.b16 %v672
    %v3377 = vunpack.c.l.b16 %v673
    %v3378 = vunpack.c.h.b16 %v673
    %v3379 = vunpack.c.l.b16 %v674
    %v3380 = vunpack.c.h.b16 %v674
    %v3381 = vunpack.c.l.b16 %v675
    %v3382 = vunpack.c.h.b16 %v675
    %v3383 = vunpack.c.l.b16 %v676
    %v3384 = vunpack.c.h.b16 %v676
    %v3385 = vunpack.c.l.b16 %v677
    %v3386 = vunpack.c.h.b16 %v677
    %v3387 = vunpack.c.l.b16 %v678
    %v3388 = vunpack.c.h.b16 %v678
    %v3389 = vunpack.c.l.b16 %v679
    %v3390 = vunpack.c.h.b16 %v679
    %v3391 = vunpack.c.l.b16 %v680
    %v3392 = vunpack.c.h.b16 %v680
    %v3393 = vunpack.c.l.b16 %v681
    %v3394 = vunpack.c.h.b16 %v681
    %v3395 = vunpack.c.l.b16 %v682
    %v3396 = vunpack.c.h.b16 %v682
    %v3397 = vunpack.c.l.b16 %v683
    %v3398 = vunpack.c.h.b16 %v683
    %v3399 = vunpack.c.l.b16 %v684
    %v3400 = vunpack.c.h.b16 %v684
    %v3401 = vunpack.c.l.b16 %v685
    %v3402 = vunpack.c.h.b16 %v685
    %v3403 = vunpack.c.l.b16 %v686
    %v3404 = vunpack.c.h.b16 %v686
    %v3405 = vunpack.c.l.b16 %v687
    %v3406 = vunpack.c.h.b16 %v687
    %v3407 = vunpack.c.l.b16 %v688
    %v3408 = vunpack.c.h.b16 %v688
    %v3409 = vunpack.c.l.b16 %v689
    %v3410 = vunpack.c.h.b16 %v689
    %v3411 = vunpack.c.l.b16 %v690
    %v3412 = vunpack.c.h.b16 %v690
    %v3413 = vunpack.c.l.b16 %v691
    %v3414 = vunpack.c.h.b16 %v691
    %v3415 = vunpack.c.l.b16 %v692
    %v3416 = vunpack.c.h.b16 %v692
    %v3417 = vunpack.c.l.b16 %v693
    %v3418 = vunpack.c.h.b16 %v693
    %v3419 = vunpack.c.l.b16 %v694
    %v3420 = vunpack.c.h.b16 %v694
    %v3421 = vunpack.c.l.b16 %v695
    %v3422 = vunpack.c.h.b16 %v695
    %v3423 = vunpack.c.l.b16 %v696
    %v3424 = vunpack.c.h.b16 %v696
    %v3425 = vunpack.c.l.b16 %v697
    %v3426 = vunpack.c.h.b16 %v697
    %v3427 = vunpack.c.l.b16 %v698
    %v3428 = vunpack.c.h.b16 %v698
    %v3429 = vunpack.c.l.b16 %v699
    %v3430 = vunpack.c.h.b16 %v699
    %v3431 = vunpack.c.l.b16 %v700
    %v3432 = vunpack.c.h.b16 %v700
    %v3433 = vunpack.c.l.b16 %v701
    %v3434 = vunpack.c.h.b16 %v701
    %v3435 = vunpack.c.l.b16 %v702
    %v3436 = vunpack.c.h.b16 %v702
    %v3437 = vunpack.c.l.b16 %v703
    %v3438 = vunpack.c.h.b16 %v703
    %v3439 = vunpack.c.l.b16 %v704
    %v3440 = vunpack.c.h.b16 %v704
    %v3441 = vunpack.c.l.b16 %v705
    %v3442 = vunpack.c.h.b16 %v705
    %v3443 = vunpack.c.l.b16 %v706
    %v3444 = vunpack.c.h.b16 %v706
    %v3445 = vunpack.c.l.b16 %v707
    %v3446 = vunpack.c.h.b16 %v707
    %v3447 = vunpack.c.l.b16 %v708
    %v3448 = vunpack.c.h.b16 %v708
    %v3449 = vunpack.c.l.b16 %v709
    %v3450 = vunpack.c.h.b16 %v709
    %v3451 = vunpack.c.l.b16 %v710
    %v3452 = vunpack.c.h.b16 %v710
    %v3453 = vunpack.c.l.b16 %v711
    %v3454 = vunpack.c.h.b16 %v711
    %v3455 = vunpack.c.l.b16 %v712
    %v3456 = vunpack.c.h.b16 %v712
    %v3457 = vunpack.c.l.b16 %v713
    %v3458 = vunpack.c.h.b16 %v713
    %v3459 = vunpack.c.l.b16 %v714
    %v3460 = vunpack.c.h.b16 %v714
    %v3461 = vunpack.c.l.b16 %v715
    %v3462 = vunpack.c.h.b16 %v715
    %v3463 = vunpack.c.l.b16 %v716
    %v3464 = vunpack.c.h.b16 %v716
    %v3465 = vunpack.c.l.b16 %v717
    %v3466 = vunpack.c.h.b16 %v717
    %v3467 = vunpack.c.l.b16 %v718
    %v3468 = vunpack.c.h.b16 %v718
    %v3469 = vunpack.c.l.b16 %v719
    %v3470 = vunpack.c.h.b16 %v719
    %v3471 = vunpack.c.l.b16 %v720
    %v3472 = vunpack.c.h.b16 %v720
    %v3473 = vunpack.c.l.b16 %v721
    %v3474 = vunpack.c.h.b16 %v721
    %v3475 = vunpack.c.l.b16 %v722
    %v3476 = vunpack.c.h.b16 %v722
    %v3477 = vunpack.c.l.b16 %v723
    %v3478 = vunpack.c.h.b16 %v723
    %v3479 = vunpack.c.l.b16 %v724
    %v3480 = vunpack.c.h.b16 %v724
    %v3481 = vunpack.c.l.b16 %v725
    %v3482 = vunpack.c.h.b16 %v725
    %v3483 = vunpack.c.l.b16 %v726
    %v3484 = vunpack.c.h.b16 %v726
    %v3485 = vunpack.c.l.b16 %v727
    %v3486 = vunpack.c.h.b16 %v727
    %v3487 = vunpack.c.l.b16 %v728
    %v3488 = vunpack.c.h.b16 %v728
    %v3489 = vunpack.c.l.b16 %v729
    %v3490 = vunpack.c.h.b16 %v729
    %v3491 = vunpack.c.l.b16 %v730
    %v3492 = vunpack.c.h.b16 %v730
    %v3493 = vunpack.c.l.b16 %v731
    %v3494 = vunpack.c.h.b16 %v731
    %v3495 = vunpack.c.l.b16 %v732
    %v3496 = vunpack.c.h.b16 %v732
    %v3497 = vunpack.c.l.b16 %v733
    %v3498 = vunpack.c.h.b16 %v733
    %v3499 = vunpack.c.l.b16 %v734
    %v3500 = vunpack.c.h.b16 %v734
    %v3501 = vunpack.c.l.b16 %v735
    %v3502 = vunpack.c.h.b16 %v735
    %v3503 = vunpack.c.l.b16 %v736
    %v3504 = vunpack.c.h.b16 %v736
    %v3505 = vunpack.c.l.b16 %v737
    %v3506 = vunpack.c.h.b16 %v737
    %v3507 = vunpack.c.l.b16 %v738
    %v3508 = vunpack.c.h.b16 %v738
    %v3509 = vunpack.c.l.b16 %v739
    %v3510 = vunpack.c.h.b16 %v739
    %v3511 = vunpack.c.l.b16 %v740
    %v3512 = vunpack.c.h.b16 %v740
    %v3513 = vunpack.c.l.b16 %v741
    %v3514 = vunpack.c.h.b16 %v741
    %v3515 = vunpack.c.l.b16 %v742
    %v3516 = vunpack.c.h.b16 %v742
    %v3517 = vunpack.c.l.b16 %v743
    %v3518 = vunpack.c.h.b16 %v743
    %v3519 = vunpack.c.l.b16 %v744
    %v3520 = vunpack.c.h.b16 %v744
    %v3521 = vunpack.c.l.b16 %v745
    %v3522 = vunpack.c.h.b16 %v745
    %v3523 = vunpack.c.l.b16 %v746
    %v3524 = vunpack.c.h.b16 %v746
    %v3525 = vunpack.c.l.b16 %v747
    %v3526 = vunpack.c.h.b16 %v747
    %v3527 = vunpack.c.l.b16 %v748
    %v3528 = vunpack.c.h.b16 %v748
    %v3529 = vunpack.c.l.b16 %v749
    %v3530 = vunpack.c.h.b16 %v749
    %v3531 = vunpack.c.l.b16 %v750
    %v3532 = vunpack.c.h.b16 %v750
    %v3533 = vunpack.c.l.b16 %v751
    %v3534 = vunpack.c.h.b16 %v751
    %v3535 = vunpack.c.l.b16 %v752
    %v3536 = vunpack.c.h.b16 %v752
    %v3537 = vunpack.c.l.b16 %v753
    %v3538 = vunpack.c.h.b16 %v753
    %v3539 = vunpack.c.l.b16 %v754
    %v3540 = vunpack.c.h.b16 %v754
    %v3541 = vunpack.c.l.b16 %v755
    %v3542 = vunpack.c.h.b16 %v755
    %v3543 = vunpack.c.l.b16 %v756
    %v3544 = vunpack.c.h.b16 %v756
    %v3545 = vunpack.c.l.b16 %v757
    %v3546 = vunpack.c.h.b16 %v757
    %v3547 = vunpack.c.l.b16 %v758
    %v3548 = vunpack.c.h.b16 %v758
    %v3549 = vunpack.c.l.b16 %v759
    %v3550 = vunpack.c.h.b16 %v759
    %v3551 = vunpack.c.l.b16 %v760
    %v3552 = vunpack.c.h.b16 %v760
    %v3553 = vunpack.c.l.b16 %v761
    %v3554 = vunpack.c.h.b16 %v761
    %v3555 = vunpack.c.l.b16 %v762
    %v3556 = vunpack.c.h.b16 %v762
    %v3557 = vunpack.c.l.b16 %v763
    %v3558 = vunpack.c.h.b16 %v763
    %v3559 = vunpack.c.l.b16 %v764
    %v3560 = vunpack.c.h.b16 %v764
    %v3561 = vunpack.c.l.b16 %v765
    %v3562 = vunpack.c.h.b16 %v765
    %v3563 = vunpack.c.l.b16 %v766
    %v3564 = vunpack.c.h.b16 %v766
    %v3565 = vunpack.c.l.b16 %v767
    %v3566 = vunpack.c.h.b16 %v767
    %v3567 = vunpack.c.l.b16 %v768
    %v3568 = vunpack.c.h.b16 %v768
    %v3569 = vunpack.c.l.b16 %v769
    %v3570 = vunpack.c.h.b16 %v769
    %v3571 = vunpack.c.l.b16 %v770
    %v3572 = vunpack.c.h.b16 %v770
    %v3573 = vunpack.c.l.b16 %v771
    %v3574 = vunpack.c.h.b16 %v771
    %v3575 = vunpack.c.l.b16 %v772
    %v3576 = vunpack.c.h.b16 %v772
    %v3577 = vunpack.c.l.b16 %v773
    %v3578 = vunpack.c.h.b16 %v773
    %v3579 = vunpack.c.l.b16 %v774
    %v3580 = vunpack.c.h.b16 %v774
    %v3581 = vunpack.c.l.b16 %v775
    %v3582 = vunpack.c.h.b16 %v775
    %v3583 = vunpack.c.l.b16 %v776
    %v3584 = vunpack.c.h.b16 %v776
    %v3585 = vunpack.c.l.b16 %v777
    %v3586 = vunpack.c.h.b16 %v777
    %v3587 = vunpack.c.l.b16 %v778
    %v3588 = vunpack.c.h.b16 %v778
    %v3589 = vunpack.c.l.b16 %v779
    %v3590 = vunpack.c.h.b16 %v779
    %v3591 = vunpack.c.l.b16 %v780
    %v3592 = vunpack.c.h.b16 %v780
    %v3593 = vunpack.c.l.b16 %v781
    %v3594 = vunpack.c.h.b16 %v781
    %v3595 = vunpack.c.l.b16 %v782
    %v3596 = vunpack.c.h.b16 %v782
    %v3597 = vunpack.c.l.b16 %v783
    %v3598 = vunpack.c.h.b16 %v783
    %v3599 = vunpack.c.l.b16 %v784
    %v3600 = vunpack.c.h.b16 %v784
    %v3601 = vunpack.c.l.b16 %v785
    %v3602 = vunpack.c.h.b16 %v785
    %v3603 = vunpack.c.l.b16 %v786
    %v3604 = vunpack.c.h.b16 %v786
    %v3605 = vunpack.c.l.b16 %v787
    %v3606 = vunpack.c.h.b16 %v787
    %v3607 = vunpack.c.l.b16 %v788
    %v3608 = vunpack.c.h.b16 %v788
    %v3609 = vunpack.c.l.b16 %v789
    %v3610 = vunpack.c.h.b16 %v789
    %v3611 = vunpack.c.l.b16 %v790
    %v3612 = vunpack.c.h.b16 %v790
    %v3613 = vunpack.c.l.b16 %v791
    %v3614 = vunpack.c.h.b16 %v791
    %v3615 = vunpack.c.l.b16 %v792
    %v3616 = vunpack.c.h.b16 %v792
    %v3617 = vunpack.c.l.b16 %v793
    %v3618 = vunpack.c.h.b16 %v793
    %v3619 = vunpack.c.l.b16 %v794
    %v3620 = vunpack.c.h.b16 %v794
    %v3621 = vunpack.c.l.b16 %v795
    %v3622 = vunpack.c.h.b16 %v795
    %v3623 = vunpack.c.l.b16 %v796
    %v3624 = vunpack.c.h.b16 %v796
    %v3625 = vunpack.c.l.b16 %v797
    %v3626 = vunpack.c.h.b16 %v797
    %v3627 = vunpack.c.l.b16 %v798
    %v3628 = vunpack.c.h.b16 %v798
    %v3629 = vunpack.c.l.b16 %v799
    %v3630 = vunpack.c.h.b16 %v799
    %v3631 = vunpack.c.l.b16 %v800
    %v3632 = vunpack.c.h.b16 %v800
    %v3633 = vunpack.c.l.b16 %v801
    %v3634 = vunpack.c.h.b16 %v801
    %v3635 = vunpack.c.l.b16 %v802
    %v3636 = vunpack.c.h.b16 %v802
    %v3637 = vunpack.c.l.b16 %v803
    %v3638 = vunpack.c.h.b16 %v803
    %v3639 = vunpack.c.l.b16 %v804
    %v3640 = vunpack.c.h.b16 %v804
    %v3641 = vunpack.c.l.b16 %v805
    %v3642 = vunpack.c.h.b16 %v805
    %v3643 = vunpack.c.l.b16 %v806
    %v3644 = vunpack.c.h.b16 %v806
    %v3645 = vunpack.c.l.b16 %v807
    %v3646 = vunpack.c.h.b16 %v807
    %v3647 = vunpack.c.l.b16 %v808
    %v3648 = vunpack.c.h.b16 %v808
    %v3649 = vunpack.c.l.b16 %v809
    %v3650 = vunpack.c.h.b16 %v809
    %v3651 = vunpack.c.l.b16 %v810
    %v3652 = vunpack.c.h.b16 %v810
    %v3653 = vunpack.c.l.b16 %v811
    %v3654 = vunpack.c.h.b16 %v811
    %v3655 = vunpack.c.l.b16 %v812
    %v3656 = vunpack.c.h.b16 %v812
    %v3657 = vunpack.c.l.b16 %v813
    %v3658 = vunpack.c.h.b16 %v813
    %v3659 = vunpack.c.l.b16 %v814
    %v3660 = vunpack.c.h.b16 %v814
    %v3661 = vunpack.c.l.b16 %v815
    %v3662 = vunpack.c.h.b16 %v815
    %v3663 = vunpack.c.l.b16 %v816
    %v3664 = vunpack.c.h.b16 %v816
    %v3665 = vunpack.c.l.b16 %v817
    %v3666 = vunpack.c.h.b16 %v817
    %v3667 = vunpack.c.l.b16 %v818
    %v3668 = vunpack.c.h.b16 %v818
    %v3669 = vunpack.c.l.b16 %v819
    %v3670 = vunpack.c.h.b16 %v819
    %v3671 = vunpack.c.l.b16 %v820
    %v3672 = vunpack.c.h.b16 %v820
    %v3673 = vunpack.c.l.b16 %v821
    %v3674 = vunpack.c.h.b16 %v821
    %v3675 = vunpack.c.l.b16 %v822
    %v3676 = vunpack.c.h.b16 %v822
    %v3677 = vunpack.c.l.b16 %v823
    %v3678 = vunpack.c.h.b16 %v823
    %v3679 = vunpack.c.l.b16 %v824
    %v3680 = vunpack.c.h.b16 %v824
    %v3681 = vunpack.c.l.b16 %v825
    %v3682 = vunpack.c.h.b16 %v825
    %v3683 = vunpack.c.l.b16 %v826
    %v3684 = vunpack.c.h.b16 %v826
    %v3685 = vunpack.c.l.b16 %v827
    %v3686 = vunpack.c.h.b16 %v827
    %v3687 = vunpack.c.l.b16 %v828
    %v3688 = vunpack.c.h.b16 %v828
    %v3689 = vunpack.c.l.b16 %v829
    %v3690 = vunpack.c.h.b16 %v829
    %v3691 = vunpack.c.l.b16 %v830
    %v3692 = vunpack.c.h.b16 %v830
    %v3693 = vunpack.c.l.b16 %v831
    %v3694 = vunpack.c.h.b16 %v831
    %v3695 = vunpack.c.l.b16 %v832
    %v3696 = vunpack.c.h.b16 %v832
    %v3697 = vunpack.c.l.b16 %v833
    %v3698 = vunpack.c.h.b16 %v833
    %v3699 = vunpack.c.l.b16 %v834
    %v3700 = vunpack.c.h.b16 %v834
    %v3701 = vunpack.c.l.b16 %v835
    %v3702 = vunpack.c.h.b16 %v835
    %v3703 = vunpack.c.l.b16 %v836
    %v3704 = vunpack.c.h.b16 %v836
    %v3705 = vunpack.c.l.b16 %v837
    %v3706 = vunpack.c.h.b16 %v837
    %v3707 = vunpack.c.l.b16 %v838
    %v3708 = vunpack.c.h.b16 %v838
    %v3709 = vunpack.c.l.b16 %v839
    %v3710 = vunpack.c.h.b16 %v839
    %v3711 = vunpack.c.l.b16 %v840
    %v3712 = vunpack.c.h.b16 %v840
    %v3713 = vunpack.c.l.b16 %v841
    %v3714 = vunpack.c.h.b16 %v841
    %v3715 = vunpack.c.l.b16 %v842
    %v3716 = vunpack.c.h.b16 %v842
    %v3717 = vunpack.c.l.b16 %v843
    %v3718 = vunpack.c.h.b16 %v843
    %v3719 = vunpack.c.l.b16 %v844
    %v3720 = vunpack.c.h.b16 %v844
    %v3721 = vunpack.c.l.b16 %v845
    %v3722 = vunpack.c.h.b16 %v845
    %v3723 = vunpack.c.l.b16 %v846
    %v3724 = vunpack.c.h.b16 %v846
    %v3725 = vunpack.c.l.b16 %v847
    %v3726 = vunpack.c.h.b16 %v847
    %v3727 = vunpack.c.l.b16 %v848
    %v3728 = vunpack.c.h.b16 %v848
    %v3729 = vunpack.c.l.b16 %v849
    %v3730 = vunpack.c.h.b16 %v849
    %v3731 = vunpack.c.l.b16 %v850
    %v3732 = vunpack.c.h.b16 %v850
    %v3733 = vunpack.c.l.b16 %v851
    %v3734 = vunpack.c.h.b16 %v851
    %v3735 = vunpack.c.l.b16 %v852
    %v3736 = vunpack.c.h.b16 %v852
    %v3737 = vunpack.c.l.b16 %v853
    %v3738 = vunpack.c.h.b16 %v853
    %v3739 = vunpack.c.l.b16 %v854
    %v3740 = vunpack.c.h.b16 %v854
    %v3741 = vunpack.c.l.b16 %v855
    %v3742 = vunpack.c.h.b16 %v855
    %v3743 = vunpack.c.l.b16 %v856
    %v3744 = vunpack.c.h.b16 %v856
    %v3745 = vunpack.c.l.b16 %v857
    %v3746 = vunpack.c.h.b16 %v857
    %v3747 = vunpack.c.l.b16 %v858
    %v3748 = vunpack.c.h.b16 %v858
    %v3749 = vunpack.c.l.b16 %v859
    %v3750 = vunpack.c.h.b16 %v859
    %v3751 = vunpack.c.l.b16 %v860
    %v3752 = vunpack.c.h.b16 %v860
    %v3753 = vunpack.c.l.b16 %v861
    %v3754 = vunpack.c.h.b16 %v861
    %v3755 = vunpack.c.l.b16 %v862
    %v3756 = vunpack.c.h.b16 %v862
    %v3757 = vunpack.c.l.b16 %v863
    %v3758 = vunpack.c.h.b16 %v863
    %v3759 = vunpack.c.l.b16 %v864
    %v3760 = vunpack.c.h.b16 %v864
    %v3761 = vunpack.c.l.b16 %v865
    %v3762 = vunpack.c.h.b16 %v865
    %v3763 = vunpack.c.l.b16 %v866
    %v3764 = vunpack.c.h.b16 %v866
    %v3765 = vunpack.c.l.b16 %v867
    %v3766 = vunpack.c.h.b16 %v867
    %v3767 = vunpack.c.l.b16 %v868
    %v3768 = vunpack.c.h.b16 %v868
    %v3769 = vunpack.c.l.b16 %v869
    %v3770 = vunpack.c.h.b16 %v869
    %v3771 = vunpack.c.l.b16 %v870
    %v3772 = vunpack.c.h.b16 %v870
    %v3773 = vunpack.c.l.b16 %v871
    %v3774 = vunpack.c.h.b16 %v871
    %v3775 = vunpack.c.l.b16 %v872
    %v3776 = vunpack.c.h.b16 %v872
    %v3777 = vunpack.c.l.b16 %v873
    %v3778 = vunpack.c.h.b16 %v873
    %v3779 = vunpack.c.l.b16 %v874
    %v3780 = vunpack.c.h.b16 %v874
    %v3781 = vunpack.c.l.b16 %v875
    %v3782 = vunpack.c.h.b16 %v875
    %v3783 = vunpack.c.l.b16 %v876
    %v3784 = vunpack.c.h.b16 %v876
    %v3785 = vunpack.c.l.b16 %v877
    %v3786 = vunpack.c.h.b16 %v877
    %v3787 = vunpack.c.l.b16 %v878
    %v3788 = vunpack.c.h.b16 %v878
    %v3789 = vunpack.c.l.b16 %v879
    %v3790 = vunpack.c.h.b16 %v879
    %v3791 = vunpack.c.l.b16 %v880
    %v3792 = vunpack.c.h.b16 %v880
    %v3793 = vunpack.c.l.b16 %v881
    %v3794 = vunpack.c.h.b16 %v881
    %v3795 = vunpack.c.l.b16 %v882
    %v3796 = vunpack.c.h.b16 %v882
    %v3797 = vunpack.c.l.b16 %v883
    %v3798 = vunpack.c.h.b16 %v883
    %v3799 = vunpack.c.l.b16 %v884
    %v3800 = vunpack.c.h.b16 %v884
    %v3801 = vunpack.c.l.b16 %v885
    %v3802 = vunpack.c.h.b16 %v885
    %v3803 = vunpack.c.l.b16 %v886
    %v3804 = vunpack.c.h.b16 %v886
    %v3805 = vunpack.c.l.b16 %v887
    %v3806 = vunpack.c.h.b16 %v887
    %v3807 = vunpack.c.l.b16 %v888
    %v3808 = vunpack.c.h.b16 %v888
    %v3809 = vunpack.c.l.b16 %v889
    %v3810 = vunpack.c.h.b16 %v889
    %v3811 = vunpack.c.l.b16 %v890
    %v3812 = vunpack.c.h.b16 %v890
    %v3813 = vunpack.c.l.b16 %v891
    %v3814 = vunpack.c.h.b16 %v891
    %v3815 = vunpack.c.l.b16 %v892
    %v3816 = vunpack.c.h.b16 %v892
    %v3817 = vunpack.c.l.b16 %v893
    %v3818 = vunpack.c.h.b16 %v893
    %v3819 = vunpack.c.l.b16 %v894
    %v3820 = vunpack.c.h.b16 %v894
    %v3821 = vunpack.c.l.b16 %v895
    %v3822 = vunpack.c.h.b16 %v895
    %v3823 = vunpack.c.l.b16 %v896
    %v3824 = vunpack.c.h.b16 %v896
    %v3825 = vunpack.c.l.b16 %v897
    %v3826 = vunpack.c.h.b16 %v897
    %v3827 = vunpack.c.l.b16 %v898
    %v3828 = vunpack.c.h.b16 %v898
    %v3829 = vunpack.c.l.b16 %v899
    %v3830 = vunpack.c.h.b16 %v899
    %v3831 = vunpack.c.l.b16 %v900
    %v3832 = vunpack.c.h.b16 %v900
    %v3833 = vunpack.c.l.b16 %v901
    %v3834 = vunpack.c.h.b16 %v901
    %v3835 = vunpack.c.l.b16 %v902
    %v3836 = vunpack.c.h.b16 %v902
    %v3837 = vunpack.c.l.b16 %v903
    %v3838 = vunpack.c.h.b16 %v903
    %v3839 = vunpack.c.l.b16 %v904
    %v3840 = vunpack.c.h.b16 %v904
    %v3841 = vunpack.c.l.b16 %v905
    %v3842 = vunpack.c.h.b16 %v905
    %v3843 = vunpack.c.l.b16 %v906
    %v3844 = vunpack.c.h.b16 %v906
    %v3845 = vunpack.c.l.b16 %v907
    %v3846 = vunpack.c.h.b16 %v907
    %v3847 = vunpack.c.l.b16 %v908
    %v3848 = vunpack.c.h.b16 %v908
    %v3849 = vunpack.c.l.b16 %v909
    %v3850 = vunpack.c.h.b16 %v909
    %v3851 = vunpack.c.l.b16 %v910
    %v3852 = vunpack.c.h.b16 %v910
    %v3853 = vunpack.c.l.b16 %v911
    %v3854 = vunpack.c.h.b16 %v911
    %v3855 = vunpack.c.l.b16 %v912
    %v3856 = vunpack.c.h.b16 %v912
    %v3857 = vunpack.c.l.b16 %v913
    %v3858 = vunpack.c.h.b16 %v913
    %v3859 = vunpack.c.l.b16 %v914
    %v3860 = vunpack.c.h.b16 %v914
    %v3861 = vunpack.c.l.b16 %v915
    %v3862 = vunpack.c.h.b16 %v915
    %v3863 = vunpack.c.l.b16 %v916
    %v3864 = vunpack.c.h.b16 %v916
    %v3865 = vunpack.c.l.b16 %v917
    %v3866 = vunpack.c.h.b16 %v917
    %v3867 = vunpack.c.l.b16 %v918
    %v3868 = vunpack.c.h.b16 %v918
    %v3869 = vunpack.c.l.b16 %v919
    %v3870 = vunpack.c.h.b16 %v919
    %v3871 = vunpack.c.l.b16 %v920
    %v3872 = vunpack.c.h.b16 %v920
    %v3873 = vunpack.c.l.b16 %v921
    %v3874 = vunpack.c.h.b16 %v921
    %v3875 = vunpack.c.l.b16 %v922
    %v3876 = vunpack.c.h.b16 %v922
    %v3877 = vunpack.c.l.b16 %v923
    %v3878 = vunpack.c.h.b16 %v923
    %v3879 = vunpack.c.l.b16 %v924
    %v3880 = vunpack.c.h.b16 %v924
    %v3881 = vunpack.c.l.b16 %v925
    %v3882 = vunpack.c.h.b16 %v925
    %v3883 = vunpack.c.l.b16 %v926
    %v3884 = vunpack.c.h.b16 %v926
    %v3885 = vunpack.c.l.b16 %v927
    %v3886 = vunpack.c.h.b16 %v927
    %v3887 = vunpack.c.l.b16 %v928
    %v3888 = vunpack.c.h.b16 %v928
    %v3889 = vunpack.c.l.b16 %v929
    %v3890 = vunpack.c.h.b16 %v929
    %v3891 = vunpack.c.l.b16 %v930
    %v3892 = vunpack.c.h.b16 %v930
    %v3893 = vunpack.c.l.b16 %v931
    %v3894 = vunpack.c.h.b16 %v931
    %v3895 = vunpack.c.l.b16 %v932
    %v3896 = vunpack.c.h.b16 %v932
    %v3897 = vunpack.c.l.b16 %v933
    %v3898 = vunpack.c.h.b16 %v933
    %v3899 = vunpack.c.l.b16 %v934
    %v3900 = vunpack.c.h.b16 %v934
    %v3901 = vunpack.c.l.b16 %v935
    %v3902 = vunpack.c.h.b16 %v935
    %v3903 = vunpack.c.l.b16 %v936
    %v3904 = vunpack.c.h.b16 %v936
    %v3905 = vunpack.c.l.b16 %v937
    %v3906 = vunpack.c.h.b16 %v937
    %v3907 = vunpack.c.l.b16 %v938
    %v3908 = vunpack.c.h.b16 %v938
    %v3909 = vunpack.c.l.b16 %v939
    %v3910 = vunpack.c.h.b16 %v939
    %v3911 = vunpack.c.l.b16 %v940
    %v3912 = vunpack.c.h.b16 %v940
    %v3913 = vunpack.c.l.b16 %v941
    %v3914 = vunpack.c.h.b16 %v941
    %v3915 = vunpack.c.l.b16 %v942
    %v3916 = vunpack.c.h.b16 %v942
    %v3917 = vunpack.c.l.b16 %v943
    %v3918 = vunpack.c.h.b16 %v943
    %v3919 = vunpack.c.l.b16 %v944
    %v3920 = vunpack.c.h.b16 %v944
    %v3921 = vunpack.c.l.b16 %v945
    %v3922 = vunpack.c.h.b16 %v945
    %v3923 = vunpack.c.l.b16 %v946
    %v3924 = vunpack.c.h.b16 %v946
    %v3925 = vunpack.c.l.b16 %v947
    %v3926 = vunpack.c.h.b16 %v947
    %v3927 = vunpack.c.l.b16 %v948
    %v3928 = vunpack.c.h.b16 %v948
    %v3929 = vunpack.c.l.b16 %v949
    %v3930 = vunpack.c.h.b16 %v949
    %v3931 = vunpack.c.l.b16 %v950
    %v3932 = vunpack.c.h.b16 %v950
    %v3933 = vunpack.c.l.b16 %v951
    %v3934 = vunpack.c.h.b16 %v951
    %v3935 = vunpack.c.l.b16 %v952
    %v3936 = vunpack.c.h.b16 %v952
    %v3937 = vunpack.c.l.b16 %v953
    %v3938 = vunpack.c.h.b16 %v953
    %v3939 = vunpack.c.l.b16 %v954
    %v3940 = vunpack.c.h.b16 %v954
    %v3941 = vunpack.c.l.b16 %v955
    %v3942 = vunpack.c.h.b16 %v955
    %v3943 = vunpack.c.l.b16 %v956
    %v3944 = vunpack.c.h.b16 %v956
    %v3945 = vunpack.c.l.b16 %v957
    %v3946 = vunpack.c.h.b16 %v957
    %v3947 = vunpack.c.l.b16 %v958
    %v3948 = vunpack.c.h.b16 %v958
    %v3949 = vunpack.c.l.b16 %v959
    %v3950 = vunpack.c.h.b16 %v959
    %v3951 = vunpack.c.l.b16 %v960
    %v3952 = vunpack.c.h.b16 %v960
    %v3953 = vunpack.c.l.b16 %v961
    %v3954 = vunpack.c.h.b16 %v961
    %v3955 = vunpack.c.l.b16 %v962
    %v3956 = vunpack.c.h.b16 %v962
    %v3957 = vunpack.c.l.b16 %v963
    %v3958 = vunpack.c.h.b16 %v963
    %v3959 = vunpack.c.l.b16 %v964
    %v3960 = vunpack.c.h.b16 %v964
    %v3961 = vunpack.c.l.b16 %v965
    %v3962 = vunpack.c.h.b16 %v965
    %v3963 = vunpack.c.l.b16 %v966
    %v3964 = vunpack.c.h.b16 %v966
    %v3965 = vunpack.c.l.b16 %v967
    %v3966 = vunpack.c.h.b16 %v967
    %v3967 = vunpack.c.l.b16 %v968
    %v3968 = vunpack.c.h.b16 %v968
    %v3969 = vunpack.c.l.b16 %v969
    %v3970 = vunpack.c.h.b16 %v969
    %v3971 = vunpack.c.l.b16 %v970
    %v3972 = vunpack.c.h.b16 %v970
    %v3973 = vunpack.c.l.b16 %v971
    %v3974 = vunpack.c.h.b16 %v971
    %v3975 = vunpack.c.l.b16 %v972
    %v3976 = vunpack.c.h.b16 %v972
    %v3977 = vunpack.c.l.b16 %v973
    %v3978 = vunpack.c.h.b16 %v973
    %v3979 = vunpack.c.l.b16 %v974
    %v3980 = vunpack.c.h.b16 %v974
    %v3981 = vunpack.c.l.b16 %v975
    %v3982 = vunpack.c.h.b16 %v975
    %v3983 = vunpack.c.l.b16 %v976
    %v3984 = vunpack.c.h.b16 %v976
    %v3985 = vunpack.c.l.b16 %v977
    %v3986 = vunpack.c.h.b16 %v977
    %v3987 = vunpack.c.l.b16 %v978
    %v3988 = vunpack.c.h.b16 %v978
    %v3989 = vunpack.c.l.b16 %v979
    %v3990 = vunpack.c.h.b16 %v979
    %v3991 = vunpack.c.l.b16 %v980
    %v3992 = vunpack.c.h.b16 %v980
    %v3993 = vunpack.c.l.b16 %v981
    %v3994 = vunpack.c.h.b16 %v981
    %v3995 = vunpack.c.l.b16 %v982
    %v3996 = vunpack.c.h.b16 %v982
    %v3997 = vunpack.c.l.b16 %v983
    %v3998 = vunpack.c.h.b16 %v983
    %v3999 = vunpack.c.l.b16 %v984
    %v4000 = vunpack.c.h.b16 %v984
    %v4001 = vunpack.c.l.b16 %v985
    %v4002 = vunpack.c.h.b16 %v985
    %v4003 = vunpack.c.l.b16 %v986
    %v4004 = vunpack.c.h.b16 %v986
    %v4005 = vunpack.c.l.b16 %v987
    %v4006 = vunpack.c.h.b16 %v987
    %v4007 = vunpack.c.l.b16 %v988
    %v4008 = vunpack.c.h.b16 %v988
    %v4009 = vunpack.c.l.b16 %v989
    %v4010 = vunpack.c.h.b16 %v989
    %v4011 = vunpack.c.l.b16 %v990
    %v4012 = vunpack.c.h.b16 %v990
    %v4013 = vunpack.c.l.b16 %v991
    %v4014 = vunpack.c.h.b16 %v991
    %v4015 = vunpack.c.l.b16 %v992
    %v4016 = vunpack.c.h.b16 %v992
    %v4017 = vunpack.c.l.b16 %v993
    %v4018 = vunpack.c.h.b16 %v993
    %v4019 = vunpack.c.l.b16 %v994
    %v4020 = vunpack.c.h.b16 %v994
    %v4021 = vunpack.c.l.b16 %v995
    %v4022 = vunpack.c.h.b16 %v995
    %v4023 = vunpack.c.l.b16 %v996
    %v4024 = vunpack.c.h.b16 %v996
    %v4025 = vunpack.c.l.b16 %v997
    %v4026 = vunpack.c.h.b16 %v997
    %v4027 = vunpack.c.l.b16 %v998
    %v4028 = vunpack.c.h.b16 %v998
    %v4029 = vunpack.c.l.b16 %v999
    %v4030 = vunpack.c.h.b16 %v999
    %v4031 = vunpack.c.l.b16 %v1000
    %v4032 = vunpack.c.h.b16 %v1000
    %v4033 = vunpack.c.l.b16 %v1001
    %v4034 = vunpack.c.h.b16 %v1001
    %v4035 = vunpack.c.l.b16 %v1002
    %v4036 = vunpack.c.h.b16 %v1002
    %v4037 = vunpack.c.l.b16 %v1003
    %v4038 = vunpack.c.h.b16 %v1003
    %v4039 = vunpack.c.l.b16 %v1004
    %v4040 = vunpack.c.h.b16 %v1004
    %v4041 = vunpack.c.l.b16 %v1005
    %v4042 = vunpack.c.h.b16 %v1005
    %v4043 = vunpack.c.l.b16 %v1006
    %v4044 = vunpack.c.h.b16 %v1006
    %v4045 = vunpack.c.l.b16 %v1007
    %v4046 = vunpack.c.h.b16 %v1007
    %v4047 = vunpack.c.l.b16 %v1008
    %v4048 = vunpack.c.h.b16 %v1008
    %v4049 = vunpack.c.l.b16 %v1009
    %v4050 = vunpack.c.h.b16 %v1009
    %v4051 = vunpack.c.l.b16 %v1010
    %v4052 = vunpack.c.h.b16 %v1010
    %v4053 = vunpack.c.l.b16 %v1011
    %v4054 = vunpack.c.h.b16 %v1011
    %v4055 = vunpack.c.l.b16 %v1012
    %v4056 = vunpack.c.h.b16 %v1012
    %v4057 = vunpack.c.l.b16 %v1013
    %v4058 = vunpack.c.h.b16 %v1013
    %v4059 = vunpack.c.l.b16 %v1014
    %v4060 = vunpack.c.h.b16 %v1014
    %v4061 = vunpack.c.l.b16 %v1015
    %v4062 = vunpack.c.h.b16 %v1015
    %v4063 = vunpack.c.l.b16 %v1016
    %v4064 = vunpack.c.h.b16 %v1016
    %v4065 = vunpack.c.l.b16 %v1017
    %v4066 = vunpack.c.h.b16 %v1017
    %v4067 = vunpack.c.l.b16 %v1018
    %v4068 = vunpack.c.h.b16 %v1018
    %v4069 = vunpack.c.l.b16 %v1019
    %v4070 = vunpack.c.h.b16 %v1019
    %v4071 = vunpack.c.l.b16 %v1020
    %v4072 = vunpack.c.h.b16 %v1020
    %v4073 = vunpack.c.l.b16 %v1021
    %v4074 = vunpack.c.h.b16 %v1021
    %v4075 = vunpack.c.l.b16 %v1022
    %v4076 = vunpack.c.h.b16 %v1022
    %v4077 = vunpack.c.l.b16 %v1023
    %v4078 = vunpack.c.h.b16 %v1023
    %v4079 = vunpack.c.l.b16 %v1024
    %v4080 = vunpack.c.h.b16 %v1024
    %v4081 = vunpack.c.l.b16 %v1025
    %v4082 = vunpack.c.h.b16 %v1025
    %v4083 = vunpack.c.l.b16 %v1026
    %v4084 = vunpack.c.h.b16 %v1026
    %v4085 = vunpack.c.l.b16 %v1027
    %v4086 = vunpack.c.h.b16 %v1027
    %v4087 = vunpack.c.l.b16 %v1028
    %v4088 = vunpack.c.h.b16 %v1028
    %v4089 = vunpack.c.l.b16 %v1029
    %v4090 = vunpack.c.h.b16 %v1029
    %v4091 = vunpack.c.l.b16 %v1030
    %v4092 = vunpack.c.h.b16 %v1030
    %v4093 = vunpack.c.l.b16 %v1031
    %v4094 = vunpack.c.h.b16 %v1031
    %v4095 = vunpack.c.l.b16 %v1032
    %v4096 = vunpack.c.h.b16 %v1032
    %v4097 = vunpack.c.l.b16 %v1033
    %v4098 = vunpack.c.h.b16 %v1033
    %v4099 = vunpack.c.l.b16 %v1034
    %v4100 = vunpack.c.h.b16 %v1034
    %v4101 = vunpack.c.l.b16 %v1035
    %v4102 = vunpack.c.h.b16 %v1035
    %v4103 = vunpack.c.l.b16 %v1036
    %v4104 = vunpack.c.h.b16 %v1036
    %v4105 = vunpack.c.l.b16 %v1037
    %v4106 = vunpack.c.h.b16 %v1037
    %v4107 = vunpack.c.l.b16 %v1038
    %v4108 = vunpack.c.h.b16 %v1038
    %v4109 = vunpack.c.l.b16 %v1039
    %v4110 = vunpack.c.h.b16 %v1039
    %v4111 = vunpack.c.l.b16 %v1040
    %v4112 = vunpack.c.h.b16 %v1040
    %v4113 = vunpack.c.l.b16 %v1041
    %v4114 = vunpack.c.h.b16 %v1041
    %v4115 = vunpack.c.l.b16 %v1042
    %v4116 = vunpack.c.h.b16 %v1042
    %v4117 = vunpack.c.l.b16 %v1043
    %v4118 = vunpack.c.h.b16 %v1043
    %v4119 = vunpack.c.l.b16 %v1044
    %v4120 = vunpack.c.h.b16 %v1044
    %v4121 = vunpack.c.l.b16 %v1045
    %v4122 = vunpack.c.h.b16 %v1045
    %v4123 = vunpack.c.l.b16 %v1046
    %v4124 = vunpack.c.h.b16 %v1046
    %v4125 = vunpack.c.l.b16 %v1047
    %v4126 = vunpack.c.h.b16 %v1047
    %v4127 = vunpack.c.l.b16 %v1048
    %v4128 = vunpack.c.h.b16 %v1048
    %v4129 = vunpack.c.l.b16 %v1049
    %v4130 = vunpack.c.h.b16 %v1049
    %v4131 = vunpack.c.l.b16 %v1050
    %v4132 = vunpack.c.h.b16 %v1050
    %v4133 = vunpack.c.l.b16 %v1051
    %v4134 = vunpack.c.h.b16 %v1051
    %v4135 = vunpack.c.l.b16 %v1052
    %v4136 = vunpack.c.h.b16 %v1052
    %v4137 = vunpack.c.l.b16 %v1053
    %v4138 = vunpack.c.h.b16 %v1053
    %v4139 = vunpack.c.l.b16 %v1054
    %v4140 = vunpack.c.h.b16 %v1054
    %v4141 = vunpack.c.l.b16 %v1055
    %v4142 = vunpack.c.h.b16 %v1055
    %v4143 = vunpack.c.l.b16 %v1056
    %v4144 = vunpack.c.h.b16 %v1056
    %v4145 = vunpack.c.l.b16 %v1057
    %v4146 = vunpack.c.h.b16 %v1057
    %v4147 = vunpack.c.l.b16 %v1058
    %v4148 = vunpack.c.h.b16 %v1058
    %v4149 = vunpack.c.l.b16 %v1059
    %v4150 = vunpack.c.h.b16 %v1059
    %v4151 = vunpack.c.l.b16 %v1060
    %v4152 = vunpack.c.h.b16 %v1060
    %v4153 = vunpack.c.l.b16 %v1061
    %v4154 = vunpack.c.h.b16 %v1061
    %v4155 = vunpack.c.l.b16 %v1062
    %v4156 = vunpack.c.h.b16 %v1062
    %v4157 = vunpack.c.l.b16 %v1063
    %v4158 = vunpack.c.h.b16 %v1063
    %v4159 = vunpack.c.l.b16 %v1064
    %v4160 = vunpack.c.h.b16 %v1064
    %v4161 = vunpack.c.l.b16 %v1065
    %v4162 = vunpack.c.h.b16 %v1065
    %v4163 = vunpack.c.l.b16 %v1066
    %v4164 = vunpack.c.h.b16 %v1066
    %v4165 = vunpack.c.l.b16 %v1067
    %v4166 = vunpack.c.h.b16 %v1067
    %v4167 = vunpack.c.l.b16 %v1068
    %v4168 = vunpack.c.h.b16 %v1068
    %v4169 = vunpack.c.l.b16 %v1069
    %v4170 = vunpack.c.h.b16 %v1069
    %v4171 = vunpack.c.l.b16 %v1070
    %v4172 = vunpack.c.h.b16 %v1070
    %v4173 = vunpack.c.l.b16 %v1071
    %v4174 = vunpack.c.h.b16 %v1071
    %v4175 = vunpack.c.l.b16 %v1072
    %v4176 = vunpack.c.h.b16 %v1072
    %v4177 = vunpack.c.l.b16 %v1073
    %v4178 = vunpack.c.h.b16 %v1073
    %v4179 = vunpack.c.l.b16 %v1074
    %v4180 = vunpack.c.h.b16 %v1074
    %v4181 = vunpack.c.l.b16 %v1075
    %v4182 = vunpack.c.h.b16 %v1075
    %v4183 = vunpack.c.l.b16 %v1076
    %v4184 = vunpack.c.h.b16 %v1076
    %v4185 = vunpack.c.l.b16 %v1077
    %v4186 = vunpack.c.h.b16 %v1077
    %v4187 = vunpack.c.l.b16 %v1078
    %v4188 = vunpack.c.h.b16 %v1078
    %v4189 = vunpack.c.l.b16 %v1079
    %v4190 = vunpack.c.h.b16 %v1079
    %v4191 = vunpack.c.l.b16 %v1080
    %v4192 = vunpack.c.h.b16 %v1080
    %v4193 = vunpack.c.l.b16 %v1081
    %v4194 = vunpack.c.h.b16 %v1081
    %v4195 = vunpack.c.l.b16 %v1082
    %v4196 = vunpack.c.h.b16 %v1082
    %v4197 = vunpack.c.l.b16 %v1083
    %v4198 = vunpack.c.h.b16 %v1083
    %v4199 = vunpack.c.l.b16 %v1084
    %v4200 = vunpack.c.h.b16 %v1084
    %v4201 = vunpack.c.l.b16 %v1085
    %v4202 = vunpack.c.h.b16 %v1085
    %v4203 = vunpack.c.l.b16 %v1086
    %v4204 = vunpack.c.h.b16 %v1086
    %v4205 = vunpack.c.l.b16 %v1087
    %v4206 = vunpack.c.h.b16 %v1087
    %v4207 = vunpack.c.l.b16 %v1088
    %v4208 = vunpack.c.h.b16 %v1088
    %v4209 = vunpack.c.l.b16 %v1089
    %v4210 = vunpack.c.h.b16 %v1089
    %v4211 = vunpack.c.l.b16 %v1090
    %v4212 = vunpack.c.h.b16 %v1090
    %v4213 = vunpack.c.l.b16 %v1091
    %v4214 = vunpack.c.h.b16 %v1091
    %v4215 = vunpack.c.l.b16 %v1092
    %v4216 = vunpack.c.h.b16 %v1092
    %v4217 = vunpack.c.l.b16 %v1093
    %v4218 = vunpack.c.h.b16 %v1093
    %v4219 = vunpack.c.l.b16 %v1094
    %v4220 = vunpack.c.h.b16 %v1094
    %v4221 = vunpack.c.l.b16 %v1095
    %v4222 = vunpack.c.h.b16 %v1095
    %v4223 = vunpack.c.l.b16 %v1096
    %v4224 = vunpack.c.h.b16 %v1096
    %v4225 = vunpack.c.l.b16 %v1097
    %v4226 = vunpack.c.h.b16 %v1097
    %v4227 = vunpack.c.l.b16 %v1098
    %v4228 = vunpack.c.h.b16 %v1098
    %v4229 = vunpack.c.l.b16 %v1099
    %v4230 = vunpack.c.h.b16 %v1099
    %v4231 = vunpack.c.l.b16 %v1100
    %v4232 = vunpack.c.h.b16 %v1100
    %v4233 = vunpack.c.l.b16 %v1101
    %v4234 = vunpack.c.h.b16 %v1101
    %v4235 = vunpack.c.l.b16 %v1102
    %v4236 = vunpack.c.h.b16 %v1102
    %v4237 = vunpack.c.l.b16 %v1103
    %v4238 = vunpack.c.h.b16 %v1103
    %v4239 = vunpack.c.l.b16 %v1104
    %v4240 = vunpack.c.h.b16 %v1104
    %v4241 = vunpack.c.l.b16 %v1105
    %v4242 = vunpack.c.h.b16 %v1105
    %v4243 = vunpack.c.l.b16 %v1106
    %v4244 = vunpack.c.h.b16 %v1106
    %v4245 = vunpack.c.l.b16 %v1107
    %v4246 = vunpack.c.h.b16 %v1107
    %v4247 = vunpack.c.l.b16 %v1108
    %v4248 = vunpack.c.h.b16 %v1108
    %v4249 = vunpack.c.l.b16 %v1109
    %v4250 = vunpack.c.h.b16 %v1109
    %v4251 = vunpack.c.l.b16 %v1110
    %v4252 = vunpack.c.h.b16 %v1110
    %v4253 = vunpack.c.l.b16 %v1111
    %v4254 = vunpack.c.h.b16 %v1111
    %v4255 = vunpack.c.l.b16 %v1112
    %v4256 = vunpack.c.h.b16 %v1112
    %v4257 = vunpack.c.l.b16 %v1113
    %v4258 = vunpack.c.h.b16 %v1113
    %v4259 = vunpack.c.l.b16 %v1114
    %v4260 = vunpack.c.h.b16 %v1114
    %v4261 = vunpack.c.l.b16 %v1115
    %v4262 = vunpack.c.h.b16 %v1115
    %v4263 = vunpack.c.l.b16 %v1116
    %v4264 = vunpack.c.h.b16 %v1116
    %v4265 = vunpack.c.l.b16 %v1117
    %v4266 = vunpack.c.h.b16 %v1117
    %v4267 = vunpack.c.l.b16 %v1118
    %v4268 = vunpack.c.h.b16 %v1118
    %v4269 = vunpack.c.l.b16 %v1119
    %v4270 = vunpack.c.h.b16 %v1119
    %v4271 = vunpack.c.l.b16 %v1120
    %v4272 = vunpack.c.h.b16 %v1120
    %v4273 = vunpack.c.l.b16 %v1121
    %v4274 = vunpack.c.h.b16 %v1121
    %v4275 = vunpack.c.l.b16 %v1122
    %v4276 = vunpack.c.h.b16 %v1122
    %v4277 = vunpack.c.l.b16 %v1123
    %v4278 = vunpack.c.h.b16 %v1123
    %v4279 = vunpack.c.l.b16 %v1124
    %v4280 = vunpack.c.h.b16 %v1124
    %v4281 = vunpack.c.l.b16 %v1125
    %v4282 = vunpack.c.h.b16 %v1125
    %v4283 = vunpack.c.l.b16 %v1126
    %v4284 = vunpack.c.h.b16 %v1126
    %v4285 = vunpack.c.l.b16 %v1127
    %v4286 = vunpack.c.h.b16 %v1127
    %v4287 = vunpack.c.l.b16 %v1128
    %v4288 = vunpack.c.h.b16 %v1128
    %v4289 = vunpack.c.l.b16 %v1129
    %v4290 = vunpack.c.h.b16 %v1129
    %v4291 = vunpack.c.l.b16 %v1130
    %v4292 = vunpack.c.h.b16 %v1130
    %v4293 = vunpack.c.l.b16 %v1131
    %v4294 = vunpack.c.h.b16 %v1131
    %v4295 = vunpack.c.l.b16 %v1132
    %v4296 = vunpack.c.h.b16 %v1132
    %v4297 = vunpack.c.l.b16 %v1133
    %v4298 = vunpack.c.h.b16 %v1133
    %v4299 = vunpack.c.l.b16 %v1134
    %v4300 = vunpack.c.h.b16 %v1134
    %v4301 = vunpack.c.l.b16 %v1135
    %v4302 = vunpack.c.h.b16 %v1135
    %v4303 = vunpack.c.l.b16 %v1136
    %v4304 = vunpack.c.h.b16 %v1136
    %v4305 = vunpack.c.l.b16 %v1137
    %v4306 = vunpack.c.h.b16 %v1137
    %v4307 = vunpack.c.l.b16 %v1138
    %v4308 = vunpack.c.h.b16 %v1138
    %v4309 = vunpack.c.l.b16 %v1139
    %v4310 = vunpack.c.h.b16 %v1139
    %v4311 = vunpack.c.l.b16 %v1140
    %v4312 = vunpack.c.h.b16 %v1140
    %v4313 = vunpack.c.l.b16 %v1141
    %v4314 = vunpack.c.h.b16 %v1141
    %v4315 = vunpack.c.l.b16 %v1142
    %v4316 = vunpack.c.h.b16 %v1142
    %v4317 = vunpack.c.l.b16 %v1143
    %v4318 = vunpack.c.h.b16 %v1143
    %v4319 = vunpack.c.l.b16 %v1144
    %v4320 = vunpack.c.h.b16 %v1144
    %v4321 = vunpack.c.l.b16 %v1145
    %v4322 = vunpack.c.h.b16 %v1145
    %v4323 = vunpack.c.l.b16 %v1146
    %v4324 = vunpack.c.h.b16 %v1146
    %v4325 = vunpack.c.l.b16 %v1147
    %v4326 = vunpack.c.h.b16 %v1147
    %v4327 = vunpack.c.l.b16 %v1148
    %v4328 = vunpack.c.h.b16 %v1148
    %v4329 = vunpack.c.l.b16 %v1149
    %v4330 = vunpack.c.h.b16 %v1149
    %v4331 = vunpack.c.l.b16 %v1150
    %v4332 = vunpack.c.h.b16 %v1150
    %v4333 = vunpack.c.l.b16 %v1151
    %v4334 = vunpack.c.h.b16 %v1151
    %v4335 = vunpack.c.l.b16 %v1152
    %v4336 = vunpack.c.h.b16 %v1152
    %v4337 = vunpack.c.l.b16 %v1153
    %v4338 = vunpack.c.h.b16 %v1153
    %v4339 = vunpack.c.l.b16 %v1154
    %v4340 = vunpack.c.h.b16 %v1154
    %v4341 = vunpack.c.l.b16 %v1155
    %v4342 = vunpack.c.h.b16 %v1155
    %v4343 = vunpack.c.l.b16 %v1156
    %v4344 = vunpack.c.h.b16 %v1156
    %v4345 = vunpack.c.l.b16 %v1157
    %v4346 = vunpack.c.h.b16 %v1157
    %v4347 = vunpack.c.l.b16 %v1158
    %v4348 = vunpack.c.h.b16 %v1158
    %v4349 = vunpack.c.l.b16 %v1159
    %v4350 = vunpack.c.h.b16 %v1159
    %v4351 = vunpack.c.l.b16 %v1160
    %v4352 = vunpack.c.h.b16 %v1160
    %v4353 = vunpack.c.l.b16 %v1161
    %v4354 = vunpack.c.h.b16 %v1161
    %v4355 = vunpack.c.l.b16 %v1162
    %v4356 = vunpack.c.h.b16 %v1162
    %v4357 = vunpack.c.l.b16 %v1163
    %v4358 = vunpack.c.h.b16 %v1163
    %v4359 = vunpack.c.l.b16 %v1164
    %v4360 = vunpack.c.h.b16 %v1164
    %v4361 = vpack.c.b16 %v2329, %v2313
    %v4362 = vpack.c.b16 %v2330, %v2314
    %v4363 = vpack.c.b16 %v2331, %v2315
    %v4364 = vpack.c.b16 %v2332, %v2316
    %v4365 = vpack.c.b16 %v2333, %v2317
    %v4366 = vpack.c.b16 %v2334, %v2318
    %v4367 = vpack.c.b16 %v2335, %v2319
    %v4368 = vpack.c.b16 %v2336, %v2320
    %v4369 = vpack.c.b16 %v2337, %v2321
    %v4370 = vpack.c.b16 %v2338, %v2322
    %v4371 = vpack.c.b16 %v2339, %v2323
    %v4372 = vpack.c.b16 %v2340, %v2324
    %v4373 = vpack.c.b16 %v2341, %v2325
    %v4374 = vpack.c.b16 %v2342, %v2326
    %v4375 = vpack.c.b16 %v2343, %v2327
    %v4376 = vpack.c.b16 %v2344, %v2328
    %v4377 = vpack.c.b16 %v2361, %v2345
    %v4378 = vpack.c.b16 %v2362, %v2346
    %v4379 = vpack.c.b16 %v2363, %v2347
    %v4380 = vpack.c.b16 %v2364, %v2348
    %v4381 = vpack.c.b16 %v2365, %v2349
    %v4382 = vpack.c.b16 %v2366, %v2350
    %v4383 = vpack.c.b16 %v2367, %v2351
    %v4384 = vpack.c.b16 %v2368, %v2352
    %v4385 = vpack.c.b16 %v2369, %v2353
    %v4386 = vpack.c.b16 %v2370, %v2354
    %v4387 = vpack.c.b16 %v2371, %v2355
    %v4388 = vpack.c.b16 %v2372, %v2356
    %v4389 = vpack.c.b16 %v2373, %v2357
    %v4390 = vpack.c.b16 %v2374, %v2358
    %v4391 = vpack.c.b16 %v2375, %v2359
    %v4392 = vpack.c.b16 %v2376, %v2360
    %v4393 = vpack.c.b16 %v2393, %v2377
    %v4394 = vpack.c.b16 %v2394, %v2378
    %v4395 = vpack.c.b16 %v2395, %v2379
    %v4396 = vpack.c.b16 %v2396, %v2380
    %v4397 = vpack.c.b16 %v2397, %v2381
    %v4398 = vpack.c.b16 %v2398, %v2382
    %v4399 = vpack.c.b16 %v2399, %v2383
    %v4400 = vpack.c.b16 %v2400, %v2384
    %v4401 = vpack.c.b16 %v2401, %v2385
    %v4402 = vpack.c.b16 %v2402, %v2386
    %v4403 = vpack.c.b16 %v2403, %v2387
    %v4404 = vpack.c.b16 %v2404, %v2388
    %v4405 = vpack.c.b16 %v2405, %v2389
    %v4406 = vpack.c.b16 %v2406, %v2390
    %v4407 = vpack.c.b16 %v2407, %v2391
    %v4408 = vpack.c.b16 %v2408, %v2392
    %v4409 = vpack.c.b16 %v2425, %v2409
    %v4410 = vpack.c.b16 %v2426, %v2410
    %v4411 = vpack.c.b16 %v2427, %v2411
    %v4412 = vpack.c.b16 %v2428, %v2412
    %v4413 = vpack.c.b16 %v2429, %v2413
    %v4414 = vpack.c.b16 %v2430, %v2414
    %v4415 = vpack.c.b16 %v2431, %v2415
    %v4416 = vpack.c.b16 %v2432, %v2416
    %v4417 = vpack.c.b16 %v2433, %v2417
    %v4418 = vpack.c.b16 %v2434, %v2418
    %v4419 = vpack.c.b16 %v2435, %v2419
    %v4420 = vpack.c.b16 %v2436, %v2420
    %v4421 = vpack.c.b16 %v2437, %v2421
    %v4422 = vpack.c.b16 %v2438, %v2422
    %v4423 = vpack.c.b16 %v2439, %v2423
    %v4424 = vpack.c.b16 %v2440, %v2424
    %v4425 = vpack.c.b16 %v2457, %v2441
    %v4426 = vpack.c.b16 %v2458, %v2442
    %v4427 = vpack.c.b16 %v2459, %v2443
    %v4428 = vpack.c.b16 %v2460, %v2444
    %v4429 = vpack.c.b16 %v2461, %v2445
    %v4430 = vpack.c.b16 %v2462, %v2446
    %v4431 = vpack.c.b16 %v2463, %v2447
    %v4432 = vpack.c.b16 %v2464, %v2448
    %v4433 = vpack.c.b16 %v2465, %v2449
    %v4434 = vpack.c.b16 %v2466, %v2450
    %v4435 = vpack.c.b16 %v2467, %v2451
    %v4436 = vpack.c.b16 %v2468, %v2452
    %v4437 = vpack.c.b16 %v2469, %v2453
    %v4438 = vpack.c.b16 %v2470, %v2454
    %v4439 = vpack.c.b16 %v2471, %v2455
    %v4440 = vpack.c.b16 %v2472, %v2456
    %v4441 = vpack.c.b16 %v2489, %v2473
    %v4442 = vpack.c.b16 %v2490, %v2474
    %v4443 = vpack.c.b16 %v2491, %v2475
    %v4444 = vpack.c.b16 %v2492, %v2476
    %v4445 = vpack.c.b16 %v2493, %v2477
    %v4446 = vpack.c.b16 %v2494, %v2478
    %v4447 = vpack.c.b16 %v2495, %v2479
    %v4448 = vpack.c.b16 %v2496, %v2480
    %v4449 = vpack.c.b16 %v2497, %v2481
    %v4450 = vpack.c.b16 %v2498, %v2482
    %v4451 = vpack.c.b16 %v2499, %v2483
    %v4452 = vpack.c.b16 %v2500, %v2484
    %v4453 = vpack.c.b16 %v2501, %v2485
    %v4454 = vpack.c.b16 %v2502, %v2486
    %v4455 = vpack.c.b16 %v2503, %v2487
    %v4456 = vpack.c.b16 %v2504, %v2488
    %v4457 = vpack.c.b16 %v2521, %v2505
    %v4458 = vpack.c.b16 %v2522, %v2506
    %v4459 = vpack.c.b16 %v2523, %v2507
    %v4460 = vpack.c.b16 %v2524, %v2508
    %v4461 = vpack.c.b16 %v2525, %v2509
    %v4462 = vpack.c.b16 %v2526, %v2510
    %v4463 = vpack.c.b16 %v2527, %v2511
    %v4464 = vpack.c.b16 %v2528, %v2512
    %v4465 = vpack.c.b16 %v2529, %v2513
    %v4466 = vpack.c.b16 %v2530, %v2514
    %v4467 = vpack.c.b16 %v2531, %v2515
    %v4468 = vpack.c.b16 %v2532, %v2516
    %v4469 = vpack.c.b16 %v2533, %v2517
    %v4470 = vpack.c.b16 %v2534, %v2518
    %v4471 = vpack.c.b16 %v2535, %v2519
    %v4472 = vpack.c.b16 %v2536, %v2520
    %v4473 = vpack.c.b16 %v2553, %v2537
    %v4474 = vpack.c.b16 %v2554, %v2538
    %v4475 = vpack.c.b16 %v2555, %v2539
    %v4476 = vpack.c.b16 %v2556, %v2540
    %v4477 = vpack.c.b16 %v2557, %v2541
    %v4478 = vpack.c.b16 %v2558, %v2542
    %v4479 = vpack.c.b16 %v2559, %v2543
    %v4480 = vpack.c.b16 %v2560, %v2544
    %v4481 = vpack.c.b16 %v2561, %v2545
    %v4482 = vpack.c.b16 %v2562, %v2546
    %v4483 = vpack.c.b16 %v2563, %v2547
    %v4484 = vpack.c.b16 %v2564, %v2548
    %v4485 = vpack.c.b16 %v2565, %v2549
    %v4486 = vpack.c.b16 %v2566, %v2550
    %v4487 = vpack.c.b16 %v2567, %v2551
    %v4488 = vpack.c.b16 %v2568, %v2552
    %v4489 = vpack.c.b16 %v2585, %v2569
    %v4490 = vpack.c.b16 %v2586, %v2570
    %v4491 = vpack.c.b16 %v2587, %v2571
    %v4492 = vpack.c.b16 %v2588, %v2572
    %v4493 = vpack.c.b16 %v2589, %v2573
    %v4494 = vpack.c.b16 %v2590, %v2574
    %v4495 = vpack.c.b16 %v2591, %v2575
    %v4496 = vpack.c.b16 %v2592, %v2576
    %v4497 = vpack.c.b16 %v2593, %v2577
    %v4498 = vpack.c.b16 %v2594, %v2578
    %v4499 = vpack.c.b16 %v2595, %v2579
    %v4500 = vpack.c.b16 %v2596, %v2580
    %v4501 = vpack.c.b16 %v2597, %v2581
    %v4502 = vpack.c.b16 %v2598, %v2582
    %v4503 = vpack.c.b16 %v2599, %v2583
    %v4504 = vpack.c.b16 %v2600, %v2584
    %v4505 = vpack.c.b16 %v2617, %v2601
    %v4506 = vpack.c.b16 %v2618, %v2602
    %v4507 = vpack.c.b16 %v2619, %v2603
    %v4508 = vpack.c.b16 %v2620, %v2604
    %v4509 = vpack.c.b16 %v2621, %v2605
    %v4510 = vpack.c.b16 %v2622, %v2606
    %v4511 = vpack.c.b16 %v2623, %v2607
    %v4512 = vpack.c.b16 %v2624, %v2608
    %v4513 = vpack.c.b16 %v2625, %v2609
    %v4514 = vpack.c.b16 %v2626, %v2610
    %v4515 = vpack.c.b16 %v2627, %v2611
    %v4516 = vpack.c.b16 %v2628, %v2612
    %v4517 = vpack.c.b16 %v2629, %v2613
    %v4518 = vpack.c.b16 %v2630, %v2614
    %v4519 = vpack.c.b16 %v2631, %v2615
    %v4520 = vpack.c.b16 %v2632, %v2616
    %v4521 = vpack.c.b16 %v2649, %v2633
    %v4522 = vpack.c.b16 %v2650, %v2634
    %v4523 = vpack.c.b16 %v2651, %v2635
    %v4524 = vpack.c.b16 %v2652, %v2636
    %v4525 = vpack.c.b16 %v2653, %v2637
    %v4526 = vpack.c.b16 %v2654, %v2638
    %v4527 = vpack.c.b16 %v2655, %v2639
    %v4528 = vpack.c.b16 %v2656, %v2640
    %v4529 = vpack.c.b16 %v2657, %v2641
    %v4530 = vpack.c.b16 %v2658, %v2642
    %v4531 = vpack.c.b16 %v2659, %v2643
    %v4532 = vpack.c.b16 %v2660, %v2644
    %v4533 = vpack.c.b16 %v2661, %v2645
    %v4534 = vpack.c.b16 %v2662, %v2646
    %v4535 = vpack.c.b16 %v2663, %v2647
    %v4536 = vpack.c.b16 %v2664, %v2648
    %v4537 = vpack.c.b16 %v2681, %v2665
    %v4538 = vpack.c.b16 %v2682, %v2666
    %v4539 = vpack.c.b16 %v2683, %v2667
    %v4540 = vpack.c.b16 %v2684, %v2668
    %v4541 = vpack.c.b16 %v2685, %v2669
    %v4542 = vpack.c.b16 %v2686, %v2670
    %v4543 = vpack.c.b16 %v2687, %v2671
    %v4544 = vpack.c.b16 %v2688, %v2672
    %v4545 = vpack.c.b16 %v2689, %v2673
    %v4546 = vpack.c.b16 %v2690, %v2674
    %v4547 = vpack.c.b16 %v2691, %v2675
    %v4548 = vpack.c.b16 %v2692, %v2676
    %v4549 = vpack.c.b16 %v2693, %v2677
    %v4550 = vpack.c.b16 %v2694, %v2678
    %v4551 = vpack.c.b16 %v2695, %v2679
    %v4552 = vpack.c.b16 %v2696, %v2680
    %v4553 = vpack.c.b16 %v2713, %v2697
    %v4554 = vpack.c.b16 %v2714, %v2698
    %v4555 = vpack.c.b16 %v2715, %v2699
    %v4556 = vpack.c.b16 %v2716, %v2700
    %v4557 = vpack.c.b16 %v2717, %v2701
    %v4558 = vpack.c.b16 %v2718, %v2702
    %v4559 = vpack.c.b16 %v2719, %v2703
    %v4560 = vpack.c.b16 %v2720, %v2704
    %v4561 = vpack.c.b16 %v2721, %v2705
    %v4562 = vpack.c.b16 %v2722, %v2706
    %v4563 = vpack.c.b16 %v2723, %v2707
    %v4564 = vpack.c.b16 %v2724, %v2708
    %v4565 = vpack.c.b16 %v2725, %v2709
    %v4566 = vpack.c.b16 %v2726, %v2710
    %v4567 = vpack.c.b16 %v2727, %v2711
    %v4568 = vpack.c.b16 %v2728, %v2712
    %v4569 = vpack.c.b16 %v2745, %v2729
    %v4570 = vpack.c.b16 %v2746, %v2730
    %v4571 = vpack.c.b16 %v2747, %v2731
    %v4572 = vpack.c.b16 %v2748, %v2732
    %v4573 = vpack.c.b16 %v2749, %v2733
    %v4574 = vpack.c.b16 %v2750, %v2734
    %v4575 = vpack.c.b16 %v2751, %v2735
    %v4576 = vpack.c.b16 %v2752, %v2736
    %v4577 = vpack.c.b16 %v2753, %v2737
    %v4578 = vpack.c.b16 %v2754, %v2738
    %v4579 = vpack.c.b16 %v2755, %v2739
    %v4580 = vpack.c.b16 %v2756, %v2740
    %v4581 = vpack.c.b16 %v2757, %v2741
    %v4582 = vpack.c.b16 %v2758, %v2742
    %v4583 = vpack.c.b16 %v2759, %v2743
    %v4584 = vpack.c.b16 %v2760, %v2744
    %v4585 = vpack.c.b16 %v2777, %v2761
    %v4586 = vpack.c.b16 %v2778, %v2762
    %v4587 = vpack.c.b16 %v2779, %v2763
    %v4588 = vpack.c.b16 %v2780, %v2764
    %v4589 = vpack.c.b16 %v2781, %v2765
    %v4590 = vpack.c.b16 %v2782, %v2766
    %v4591 = vpack.c.b16 %v2783, %v2767
    %v4592 = vpack.c.b16 %v2784, %v2768
    %v4593 = vpack.c.b16 %v2785, %v2769
    %v4594 = vpack.c.b16 %v2786, %v2770
    %v4595 = vpack.c.b16 %v2787, %v2771
    %v4596 = vpack.c.b16 %v2788, %v2772
    %v4597 = vpack.c.b16 %v2789, %v2773
    %v4598 = vpack.c.b16 %v2790, %v2774
    %v4599 = vpack.c.b16 %v2791, %v2775
    %v4600 = vpack.c.b16 %v2792, %v2776
    %v4601 = vpack.c.b16 %v2809, %v2793
    %v4602 = vpack.c.b16 %v2810, %v2794
    %v4603 = vpack.c.b16 %v2811, %v2795
    %v4604 = vpack.c.b16 %v2812, %v2796
    %v4605 = vpack.c.b16 %v2813, %v2797
    %v4606 = vpack.c.b16 %v2814, %v2798
    %v4607 = vpack.c.b16 %v2815, %v2799
    %v4608 = vpack.c.b16 %v2816, %v2800
    %v4609 = vpack.c.b16 %v2817, %v2801
    %v4610 = vpack.c.b16 %v2818, %v2802
    %v4611 = vpack.c.b16 %v2819, %v2803
    %v4612 = vpack.c.b16 %v2820, %v2804
    %v4613 = vpack.c.b16 %v2821, %v2805
    %v4614 = vpack.c.b16 %v2822, %v2806
    %v4615 = vpack.c.b16 %v2823, %v2807
    %v4616 = vpack.c.b16 %v2824, %v2808
    %v4617 = vpack.c.b16 %v2841, %v2825
    %v4618 = vpack.c.b16 %v2842, %v2826
    %v4619 = vpack.c.b16 %v2843, %v2827
    %v4620 = vpack.c.b16 %v2844, %v2828
    %v4621 = vpack.c.b16 %v2845, %v2829
    %v4622 = vpack.c.b16 %v2846, %v2830
    %v4623 = vpack.c.b16 %v2847, %v2831
    %v4624 = vpack.c.b16 %v2848, %v2832
    %v4625 = vpack.c.b16 %v2849, %v2833
    %v4626 = vpack.c.b16 %v2850, %v2834
    %v4627 = vpack.c.b16 %v2851, %v2835
    %v4628 = vpack.c.b16 %v2852, %v2836
    %v4629 = vpack.c.b16 %v2853, %v2837
    %v4630 = vpack.c.b16 %v2854, %v2838
    %v4631 = vpack.c.b16 %v2855, %v2839
    %v4632 = vpack.c.b16 %v2856, %v2840
    %v4633 = vpack.c.b16 %v2873, %v2857
    %v4634 = vpack.c.b16 %v2874, %v2858
    %v4635 = vpack.c.b16 %v2875, %v2859
    %v4636 = vpack.c.b16 %v2876, %v2860
    %v4637 = vpack.c.b16 %v2877, %v2861
    %v4638 = vpack.c.b16 %v2878, %v2862
    %v4639 = vpack.c.b16 %v2879, %v2863
    %v4640 = vpack.c.b16 %v2880, %v2864
    %v4641 = vpack.c.b16 %v2881, %v2865
    %v4642 = vpack.c.b16 %v2882, %v2866
    %v4643 = vpack.c.b16 %v2883, %v2867
    %v4644 = vpack.c.b16 %v2884, %v2868
    %v4645 = vpack.c.b16 %v2885, %v2869
    %v4646 = vpack.c.b16 %v2886, %v2870
    %v4647 = vpack.c.b16 %v2887, %v2871
    %v4648 = vpack.c.b16 %v2888, %v2872
    %v4649 = vpack.c.b16 %v2905, %v2889
    %v4650 = vpack.c.b16 %v2906, %v2890
    %v4651 = vpack.c.b16 %v2907, %v2891
    %v4652 = vpack.c.b16 %v2908, %v2892
    %v4653 = vpack.c.b16 %v2909, %v2893
    %v4654 = vpack.c.b16 %v2910, %v2894
    %v4655 = vpack.c.b16 %v2911, %v2895
    %v4656 = vpack.c.b16 %v2912, %v2896
    %v4657 = vpack.c.b16 %v2913, %v2897
    %v4658 = vpack.c.b16 %v2914, %v2898
    %v4659 = vpack.c.b16 %v2915, %v2899
    %v4660 = vpack.c.b16 %v2916, %v2900
    %v4661 = vpack.c.b16 %v2917, %v2901
    %v4662 = vpack.c.b16 %v2918, %v2902
    %v4663 = vpack.c.b16 %v2919, %v2903
    %v4664 = vpack.c.b16 %v2920, %v2904
    %v4665 = vpack.c.b16 %v2937, %v2921
    %v4666 = vpack.c.b16 %v2938, %v2922
    %v4667 = vpack.c.b16 %v2939, %v2923
    %v4668 = vpack.c.b16 %v2940, %v2924
    %v4669 = vpack.c.b16 %v2941, %v2925
    %v4670 = vpack.c.b16 %v2942, %v2926
    %v4671 = vpack.c.b16 %v2943, %v2927
    %v4672 = vpack.c.b16 %v2944, %v2928
    %v4673 = vpack.c.b16 %v2945, %v2929
    %v4674 = vpack.c.b16 %v2946, %v2930
    %v4675 = vpack.c.b16 %v2947, %v2931
    %v4676 = vpack.c.b16 %v2948, %v2932
    %v4677 = vpack.c.b16 %v2949, %v2933
    %v4678 = vpack.c.b16 %v2950, %v2934
    %v4679 = vpack.c.b16 %v2951, %v2935
    %v4680 = vpack.c.b16 %v2952, %v2936
    %v4681 = vpack.c.b16 %v2969, %v2953
    %v4682 = vpack.c.b16 %v2970, %v2954
    %v4683 = vpack.c.b16 %v2971, %v2955
    %v4684 = vpack.c.b16 %v2972, %v2956
    %v4685 = vpack.c.b16 %v2973, %v2957
    %v4686 = vpack.c.b16 %v2974, %v2958
    %v4687 = vpack.c.b16 %v2975, %v2959
    %v4688 = vpack.c.b16 %v2976, %v2960
    %v4689 = vpack.c.b16 %v2977, %v2961
    %v4690 = vpack.c.b16 %v2978, %v2962
    %v4691 = vpack.c.b16 %v2979, %v2963
    %v4692 = vpack.c.b16 %v2980, %v2964
    %v4693 = vpack.c.b16 %v2981, %v2965
    %v4694 = vpack.c.b16 %v2982, %v2966
    %v4695 = vpack.c.b16 %v2983, %v2967
    %v4696 = vpack.c.b16 %v2984, %v2968
    %v4697 = vpack.c.b16 %v3001, %v2985
    %v4698 = vpack.c.b16 %v3002, %v2986
    %v4699 = vpack.c.b16 %v3003, %v2987
    %v4700 = vpack.c.b16 %v3004, %v2988
    %v4701 = vpack.c.b16 %v3005, %v2989
    %v4702 = vpack.c.b16 %v3006, %v2990
    %v4703 = vpack.c.b16 %v3007, %v2991
    %v4704 = vpack.c.b16 %v3008, %v2992
    %v4705 = vpack.c.b16 %v3009, %v2993
    %v4706 = vpack.c.b16 %v3010, %v2994
    %v4707 = vpack.c.b16 %v3011, %v2995
    %v4708 = vpack.c.b16 %v3012, %v2996
    %v4709 = vpack.c.b16 %v3013, %v2997
    %v4710 = vpack.c.b16 %v3014, %v2998
    %v4711 = vpack.c.b16 %v3015, %v2999
    %v4712 = vpack.c.b16 %v3016, %v3000
    %v4713 = vpack.c.b16 %v3033, %v3017
    %v4714 = vpack.c.b16 %v3034, %v3018
    %v4715 = vpack.c.b16 %v3035, %v3019
    %v4716 = vpack.c.b16 %v3036, %v3020
    %v4717 = vpack.c.b16 %v3037, %v3021
    %v4718 = vpack.c.b16 %v3038, %v3022
    %v4719 = vpack.c.b16 %v3039, %v3023
    %v4720 = vpack.c.b16 %v3040, %v3024
    %v4721 = vpack.c.b16 %v3041, %v3025
    %v4722 = vpack.c.b16 %v3042, %v3026
    %v4723 = vpack.c.b16 %v3043, %v3027
    %v4724 = vpack.c.b16 %v3044, %v3028
    %v4725 = vpack.c.b16 %v3045, %v3029
    %v4726 = vpack.c.b16 %v3046, %v3030
    %v4727 = vpack.c.b16 %v3047, %v3031
    %v4728 = vpack.c.b16 %v3048, %v3032
    %v4729 = vpack.c.b16 %v3065, %v3049
    %v4730 = vpack.c.b16 %v3066, %v3050
    %v4731 = vpack.c.b16 %v3067, %v3051
    %v4732 = vpack.c.b16 %v3068, %v3052
    %v4733 = vpack.c.b16 %v3069, %v3053
    %v4734 = vpack.c.b16 %v3070, %v3054
    %v4735 = vpack.c.b16 %v3071, %v3055
    %v4736 = vpack.c.b16 %v3072, %v3056
    %v4737 = vpack.c.b16 %v3073, %v3057
    %v4738 = vpack.c.b16 %v3074, %v3058
    %v4739 = vpack.c.b16 %v3075, %v3059
    %v4740 = vpack.c.b16 %v3076, %v3060
    %v4741 = vpack.c.b16 %v3077, %v3061
    %v4742 = vpack.c.b16 %v3078, %v3062
    %v4743 = vpack.c.b16 %v3079, %v3063
    %v4744 = vpack.c.b16 %v3080, %v3064
    %v4745 = vpack.c.b16 %v3097, %v3081
    %v4746 = vpack.c.b16 %v3098, %v3082
    %v4747 = vpack.c.b16 %v3099, %v3083
    %v4748 = vpack.c.b16 %v3100, %v3084
    %v4749 = vpack.c.b16 %v3101, %v3085
    %v4750 = vpack.c.b16 %v3102, %v3086
    %v4751 = vpack.c.b16 %v3103, %v3087
    %v4752 = vpack.c.b16 %v3104, %v3088
    %v4753 = vpack.c.b16 %v3105, %v3089
    %v4754 = vpack.c.b16 %v3106, %v3090
    %v4755 = vpack.c.b16 %v3107, %v3091
    %v4756 = vpack.c.b16 %v3108, %v3092
    %v4757 = vpack.c.b16 %v3109, %v3093
    %v4758 = vpack.c.b16 %v3110, %v3094
    %v4759 = vpack.c.b16 %v3111, %v3095
    %v4760 = vpack.c.b16 %v3112, %v3096
    %v4761 = vpack.c.b16 %v3129, %v3113
    %v4762 = vpack.c.b16 %v3130, %v3114
    %v4763 = vpack.c.b16 %v3131, %v3115
    %v4764 = vpack.c.b16 %v3132, %v3116
    %v4765 = vpack.c.b16 %v3133, %v3117
    %v4766 = vpack.c.b16 %v3134, %v3118
    %v4767 = vpack.c.b16 %v3135, %v3119
    %v4768 = vpack.c.b16 %v3136, %v3120
    %v4769 = vpack.c.b16 %v3137, %v3121
    %v4770 = vpack.c.b16 %v3138, %v3122
    %v4771 = vpack.c.b16 %v3139, %v3123
    %v4772 = vpack.c.b16 %v3140, %v3124
    %v4773 = vpack.c.b16 %v3141, %v3125
    %v4774 = vpack.c.b16 %v3142, %v3126
    %v4775 = vpack.c.b16 %v3143, %v3127
    %v4776 = vpack.c.b16 %v3144, %v3128
    %v4777 = vpack.c.b16 %v3161, %v3145
    %v4778 = vpack.c.b16 %v3162, %v3146
    %v4779 = vpack.c.b16 %v3163, %v3147
    %v4780 = vpack.c.b16 %v3164, %v3148
    %v4781 = vpack.c.b16 %v3165, %v3149
    %v4782 = vpack.c.b16 %v3166, %v3150
    %v4783 = vpack.c.b16 %v3167, %v3151
    %v4784 = vpack.c.b16 %v3168, %v3152
    %v4785 = vpack.c.b16 %v3169, %v3153
    %v4786 = vpack.c.b16 %v3170, %v3154
    %v4787 = vpack.c.b16 %v3171, %v3155
    %v4788 = vpack.c.b16 %v3172, %v3156
    %v4789 = vpack.c.b16 %v3173, %v3157
    %v4790 = vpack.c.b16 %v3174, %v3158
    %v4791 = vpack.c.b16 %v3175, %v3159
    %v4792 = vpack.c.b16 %v3176, %v3160
    %v4793 = vpack.c.b16 %v3193, %v3177
    %v4794 = vpack.c.b16 %v3194, %v3178
    %v4795 = vpack.c.b16 %v3195, %v3179
    %v4796 = vpack.c.b16 %v3196, %v3180
    %v4797 = vpack.c.b16 %v3197, %v3181
    %v4798 = vpack.c.b16 %v3198, %v3182
    %v4799 = vpack.c.b16 %v3199, %v3183
    %v4800 = vpack.c.b16 %v3200, %v3184
    %v4801 = vpack.c.b16 %v3201, %v3185
    %v4802 = vpack.c.b16 %v3202, %v3186
    %v4803 = vpack.c.b16 %v3203, %v3187
    %v4804 = vpack.c.b16 %v3204, %v3188
    %v4805 = vpack.c.b16 %v3205, %v3189
    %v4806 = vpack.c.b16 %v3206, %v3190
    %v4807 = vpack.c.b16 %v3207, %v3191
    %v4808 = vpack.c.b16 %v3208, %v3192
    %v4809 = vpack.c.b16 %v3225, %v3209
    %v4810 = vpack.c.b16 %v3226, %v3210
    %v4811 = vpack.c.b16 %v3227, %v3211
    %v4812 = vpack.c.b16 %v3228, %v3212
    %v4813 = vpack.c.b16 %v3229, %v3213
    %v4814 = vpack.c.b16 %v3230, %v3214
    %v4815 = vpack.c.b16 %v3231, %v3215
    %v4816 = vpack.c.b16 %v3232, %v3216
    %v4817 = vpack.c.b16 %v3233, %v3217
    %v4818 = vpack.c.b16 %v3234, %v3218
    %v4819 = vpack.c.b16 %v3235, %v3219
    %v4820 = vpack.c.b16 %v3236, %v3220
    %v4821 = vpack.c.b16 %v3237, %v3221
    %v4822 = vpack.c.b16 %v3238, %v3222
    %v4823 = vpack.c.b16 %v3239, %v3223
    %v4824 = vpack.c.b16 %v3240, %v3224
    %v4825 = vpack.c.b16 %v3257, %v3241
    %v4826 = vpack.c.b16 %v3258, %v3242
    %v4827 = vpack.c.b16 %v3259, %v3243
    %v4828 = vpack.c.b16 %v3260, %v3244
    %v4829 = vpack.c.b16 %v3261, %v3245
    %v4830 = vpack.c.b16 %v3262, %v3246
    %v4831 = vpack.c.b16 %v3263, %v3247
    %v4832 = vpack.c.b16 %v3264, %v3248
    %v4833 = vpack.c.b16 %v3265, %v3249
    %v4834 = vpack.c.b16 %v3266, %v3250
    %v4835 = vpack.c.b16 %v3267, %v3251
    %v4836 = vpack.c.b16 %v3268, %v3252
    %v4837 = vpack.c.b16 %v3269, %v3253
    %v4838 = vpack.c.b16 %v3270, %v3254
    %v4839 = vpack.c.b16 %v3271, %v3255
    %v4840 = vpack.c.b16 %v3272, %v3256
    %v4841 = vpack.c.b16 %v3289, %v3273
    %v4842 = vpack.c.b16 %v3290, %v3274
    %v4843 = vpack.c.b16 %v3291, %v3275
    %v4844 = vpack.c.b16 %v3292, %v3276
    %v4845 = vpack.c.b16 %v3293, %v3277
    %v4846 = vpack.c.b16 %v3294, %v3278
    %v4847 = vpack.c.b16 %v3295, %v3279
    %v4848 = vpack.c.b16 %v3296, %v3280
    %v4849 = vpack.c.b16 %v3297, %v3281
    %v4850 = vpack.c.b16 %v3298, %v3282
    %v4851 = vpack.c.b16 %v3299, %v3283
    %v4852 = vpack.c.b16 %v3300, %v3284
    %v4853 = vpack.c.b16 %v3301, %v3285
    %v4854 = vpack.c.b16 %v3302, %v3286
    %v4855 = vpack.c.b16 %v3303, %v3287
    %v4856 = vpack.c.b16 %v3304, %v3288
    %v4857 = vpack.c.b16 %v3321, %v3305
    %v4858 = vpack.c.b16 %v3322, %v3306
    %v4859 = vpack.c.b16 %v3323, %v3307
    %v4860 = vpack.c.b16 %v3324, %v3308
    %v4861 = vpack.c.b16 %v3325, %v3309
    %v4862 = vpack.c.b16 %v3326, %v3310
    %v4863 = vpack.c.b16 %v3327, %v3311
    %v4864 = vpack.c.b16 %v3328, %v3312
    %v4865 = vpack.c.b16 %v3329, %v3313
    %v4866 = vpack.c.b16 %v3330, %v3314
    %v4867 = vpack.c.b16 %v3331, %v3315
    %v4868 = vpack.c.b16 %v3332, %v3316
    %v4869 = vpack.c.b16 %v3333, %v3317
    %v4870 = vpack.c.b16 %v3334, %v3318
    %v4871 = vpack.c.b16 %v3335, %v3319
    %v4872 = vpack.c.b16 %v3336, %v3320
    %v4873 = vpack.c.b16 %v3353, %v3337
    %v4874 = vpack.c.b16 %v3354, %v3338
    %v4875 = vpack.c.b16 %v3355, %v3339
    %v4876 = vpack.c.b16 %v3356, %v3340
    %v4877 = vpack.c.b16 %v3357, %v3341
    %v4878 = vpack.c.b16 %v3358, %v3342
    %v4879 = vpack.c.b16 %v3359, %v3343
    %v4880 = vpack.c.b16 %v3360, %v3344
    %v4881 = vpack.c.b16 %v3361, %v3345
    %v4882 = vpack.c.b16 %v3362, %v3346
    %v4883 = vpack.c.b16 %v3363, %v3347
    %v4884 = vpack.c.b16 %v3364, %v3348
    %v4885 = vpack.c.b16 %v3365, %v3349
    %v4886 = vpack.c.b16 %v3366, %v3350
    %v4887 = vpack.c.b16 %v3367, %v3351
    %v4888 = vpack.c.b16 %v3368, %v3352
    %v4889 = vpack.c.b16 %v3385, %v3369
    %v4890 = vpack.c.b16 %v3386, %v3370
    %v4891 = vpack.c.b16 %v3387, %v3371
    %v4892 = vpack.c.b16 %v3388, %v3372
    %v4893 = vpack.c.b16 %v3389, %v3373
    %v4894 = vpack.c.b16 %v3390, %v3374
    %v4895 = vpack.c.b16 %v3391, %v3375
    %v4896 = vpack.c.b16 %v3392, %v3376
    %v4897 = vpack.c.b16 %v3393, %v3377
    %v4898 = vpack.c.b16 %v3394, %v3378
    %v4899 = vpack.c.b16 %v3395, %v3379
    %v4900 = vpack.c.b16 %v3396, %v3380
    %v4901 = vpack.c.b16 %v3397, %v3381
    %v4902 = vpack.c.b16 %v3398, %v3382
    %v4903 = vpack.c.b16 %v3399, %v3383
    %v4904 = vpack.c.b16 %v3400, %v3384
    %v4905 = vpack.c.b16 %v3417, %v3401
    %v4906 = vpack.c.b16 %v3418, %v3402
    %v4907 = vpack.c.b16 %v3419, %v3403
    %v4908 = vpack.c.b16 %v3420, %v3404
    %v4909 = vpack.c.b16 %v3421, %v3405
    %v4910 = vpack.c.b16 %v3422, %v3406
    %v4911 = vpack.c.b16 %v3423, %v3407
    %v4912 = vpack.c.b16 %v3424, %v3408
    %v4913 = vpack.c.b16 %v3425, %v3409
    %v4914 = vpack.c.b16 %v3426, %v3410
    %v4915 = vpack.c.b16 %v3427, %v3411
    %v4916 = vpack.c.b16 %v3428, %v3412
    %v4917 = vpack.c.b16 %v3429, %v3413
    %v4918 = vpack.c.b16 %v3430, %v3414
    %v4919 = vpack.c.b16 %v3431, %v3415
    %v4920 = vpack.c.b16 %v3432, %v3416
    %v4921 = vpack.c.b16 %v3449, %v3433
    %v4922 = vpack.c.b16 %v3450, %v3434
    %v4923 = vpack.c.b16 %v3451, %v3435
    %v4924 = vpack.c.b16 %v3452, %v3436
    %v4925 = vpack.c.b16 %v3453, %v3437
    %v4926 = vpack.c.b16 %v3454, %v3438
    %v4927 = vpack.c.b16 %v3455, %v3439
    %v4928 = vpack.c.b16 %v3456, %v3440
    %v4929 = vpack.c.b16 %v3457, %v3441
    %v4930 = vpack.c.b16 %v3458, %v3442
    %v4931 = vpack.c.b16 %v3459, %v3443
    %v4932 = vpack.c.b16 %v3460, %v3444
    %v4933 = vpack.c.b16 %v3461, %v3445
    %v4934 = vpack.c.b16 %v3462, %v3446
    %v4935 = vpack.c.b16 %v3463, %v3447
    %v4936 = vpack.c.b16 %v3464, %v3448
    %v4937 = vpack.c.b16 %v3481, %v3465
    %v4938 = vpack.c.b16 %v3482, %v3466
    %v4939 = vpack.c.b16 %v3483, %v3467
    %v4940 = vpack.c.b16 %v3484, %v3468
    %v4941 = vpack.c.b16 %v3485, %v3469
    %v4942 = vpack.c.b16 %v3486, %v3470
    %v4943 = vpack.c.b16 %v3487, %v3471
    %v4944 = vpack.c.b16 %v3488, %v3472
    %v4945 = vpack.c.b16 %v3489, %v3473
    %v4946 = vpack.c.b16 %v3490, %v3474
    %v4947 = vpack.c.b16 %v3491, %v3475
    %v4948 = vpack.c.b16 %v3492, %v3476
    %v4949 = vpack.c.b16 %v3493, %v3477
    %v4950 = vpack.c.b16 %v3494, %v3478
    %v4951 = vpack.c.b16 %v3495, %v3479
    %v4952 = vpack.c.b16 %v3496, %v3480
    %v4953 = vpack.c.b16 %v3513, %v3497
    %v4954 = vpack.c.b16 %v3514, %v3498
    %v4955 = vpack.c.b16 %v3515, %v3499
    %v4956 = vpack.c.b16 %v3516, %v3500
    %v4957 = vpack.c.b16 %v3517, %v3501
    %v4958 = vpack.c.b16 %v3518, %v3502
    %v4959 = vpack.c.b16 %v3519, %v3503
    %v4960 = vpack.c.b16 %v3520, %v3504
    %v4961 = vpack.c.b16 %v3521, %v3505
    %v4962 = vpack.c.b16 %v3522, %v3506
    %v4963 = vpack.c.b16 %v3523, %v3507
    %v4964 = vpack.c.b16 %v3524, %v3508
    %v4965 = vpack.c.b16 %v3525, %v3509
    %v4966 = vpack.c.b16 %v3526, %v3510
    %v4967 = vpack.c.b16 %v3527, %v3511
    %v4968 = vpack.c.b16 %v3528, %v3512
    %v4969 = vpack.c.b16 %v3545, %v3529
    %v4970 = vpack.c.b16 %v3546, %v3530
    %v4971 = vpack.c.b16 %v3547, %v3531
    %v4972 = vpack.c.b16 %v3548, %v3532
    %v4973 = vpack.c.b16 %v3549, %v3533
    %v4974 = vpack.c.b16 %v3550, %v3534
    %v4975 = vpack.c.b16 %v3551, %v3535
    %v4976 = vpack.c.b16 %v3552, %v3536
    %v4977 = vpack.c.b16 %v3553, %v3537
    %v4978 = vpack.c.b16 %v3554, %v3538
    %v4979 = vpack.c.b16 %v3555, %v3539
    %v4980 = vpack.c.b16 %v3556, %v3540
    %v4981 = vpack.c.b16 %v3557, %v3541
    %v4982 = vpack.c.b16 %v3558, %v3542
    %v4983 = vpack.c.b16 %v3559, %v3543
    %v4984 = vpack.c.b16 %v3560, %v3544
    %v4985 = vpack.c.b16 %v3577, %v3561
    %v4986 = vpack.c.b16 %v3578, %v3562
    %v4987 = vpack.c.b16 %v3579, %v3563
    %v4988 = vpack.c.b16 %v3580, %v3564
    %v4989 = vpack.c.b16 %v3581, %v3565
    %v4990 = vpack.c.b16 %v3582, %v3566
    %v4991 = vpack.c.b16 %v3583, %v3567
    %v4992 = vpack.c.b16 %v3584, %v3568
    %v4993 = vpack.c.b16 %v3585, %v3569
    %v4994 = vpack.c.b16 %v3586, %v3570
    %v4995 = vpack.c.b16 %v3587, %v3571
    %v4996 = vpack.c.b16 %v3588, %v3572
    %v4997 = vpack.c.b16 %v3589, %v3573
    %v4998 = vpack.c.b16 %v3590, %v3574
    %v4999 = vpack.c.b16 %v3591, %v3575
    %v5000 = vpack.c.b16 %v3592, %v3576
    %v5001 = vpack.c.b16 %v3609, %v3593
    %v5002 = vpack.c.b16 %v3610, %v3594
    %v5003 = vpack.c.b16 %v3611, %v3595
    %v5004 = vpack.c.b16 %v3612, %v3596
    %v5005 = vpack.c.b16 %v3613, %v3597
    %v5006 = vpack.c.b16 %v3614, %v3598
    %v5007 = vpack.c.b16 %v3615, %v3599
    %v5008 = vpack.c.b16 %v3616, %v3600
    %v5009 = vpack.c.b16 %v3617, %v3601
    %v5010 = vpack.c.b16 %v3618, %v3602
    %v5011 = vpack.c.b16 %v3619, %v3603
    %v5012 = vpack.c.b16 %v3620, %v3604
    %v5013 = vpack.c.b16 %v3621, %v3605
    %v5014 = vpack.c.b16 %v3622, %v3606
    %v5015 = vpack.c.b16 %v3623, %v3607
    %v5016 = vpack.c.b16 %v3624, %v3608
    %v5017 = vpack.c.b16 %v3641, %v3625
    %v5018 = vpack.c.b16 %v3642, %v3626
    %v5019 = vpack.c.b16 %v3643, %v3627
    %v5020 = vpack.c.b16 %v3644, %v3628
    %v5021 = vpack.c.b16 %v3645, %v3629
    %v5022 = vpack.c.b16 %v3646, %v3630
    %v5023 = vpack.c.b16 %v3647, %v3631
    %v5024 = vpack.c.b16 %v3648, %v3632
    %v5025 = vpack.c.b16 %v3649, %v3633
    %v5026 = vpack.c.b16 %v3650, %v3634
    %v5027 = vpack.c.b16 %v3651, %v3635
    %v5028 = vpack.c.b16 %v3652, %v3636
    %v5029 = vpack.c.b16 %v3653, %v3637
    %v5030 = vpack.c.b16 %v3654, %v3638
    %v5031 = vpack.c.b16 %v3655, %v3639
    %v5032 = vpack.c.b16 %v3656, %v3640
    %v5033 = vpack.c.b16 %v3673, %v3657
    %v5034 = vpack.c.b16 %v3674, %v3658
    %v5035 = vpack.c.b16 %v3675, %v3659
    %v5036 = vpack.c.b16 %v3676, %v3660
    %v5037 = vpack.c.b16 %v3677, %v3661
    %v5038 = vpack.c.b16 %v3678, %v3662
    %v5039 = vpack.c.b16 %v3679, %v3663
    %v5040 = vpack.c.b16 %v3680, %v3664
    %v5041 = vpack.c.b16 %v3681, %v3665
    %v5042 = vpack.c.b16 %v3682, %v3666
    %v5043 = vpack.c.b16 %v3683, %v3667
    %v5044 = vpack.c.b16 %v3684, %v3668
    %v5045 = vpack.c.b16 %v3685, %v3669
    %v5046 = vpack.c.b16 %v3686, %v3670
    %v5047 = vpack.c.b16 %v3687, %v3671
    %v5048 = vpack.c.b16 %v3688, %v3672
    %v5049 = vpack.c.b16 %v3705, %v3689
    %v5050 = vpack.c.b16 %v3706, %v3690
    %v5051 = vpack.c.b16 %v3707, %v3691
    %v5052 = vpack.c.b16 %v3708, %v3692
    %v5053 = vpack.c.b16 %v3709, %v3693
    %v5054 = vpack.c.b16 %v3710, %v3694
    %v5055 = vpack.c.b16 %v3711, %v3695
    %v5056 = vpack.c.b16 %v3712, %v3696
    %v5057 = vpack.c.b16 %v3713, %v3697
    %v5058 = vpack.c.b16 %v3714, %v3698
    %v5059 = vpack.c.b16 %v3715, %v3699
    %v5060 = vpack.c.b16 %v3716, %v3700
    %v5061 = vpack.c.b16 %v3717, %v3701
    %v5062 = vpack.c.b16 %v3718, %v3702
    %v5063 = vpack.c.b16 %v3719, %v3703
    %v5064 = vpack.c.b16 %v3720, %v3704
    %v5065 = vpack.c.b16 %v3737, %v3721
    %v5066 = vpack.c.b16 %v3738, %v3722
    %v5067 = vpack.c.b16 %v3739, %v3723
    %v5068 = vpack.c.b16 %v3740, %v3724
    %v5069 = vpack.c.b16 %v3741, %v3725
    %v5070 = vpack.c.b16 %v3742, %v3726
    %v5071 = vpack.c.b16 %v3743, %v3727
    %v5072 = vpack.c.b16 %v3744, %v3728
    %v5073 = vpack.c.b16 %v3745, %v3729
    %v5074 = vpack.c.b16 %v3746, %v3730
    %v5075 = vpack.c.b16 %v3747, %v3731
    %v5076 = vpack.c.b16 %v3748, %v3732
    %v5077 = vpack.c.b16 %v3749, %v3733
    %v5078 = vpack.c.b16 %v3750, %v3734
    %v5079 = vpack.c.b16 %v3751, %v3735
    %v5080 = vpack.c.b16 %v3752, %v3736
    %v5081 = vpack.c.b16 %v3769, %v3753
    %v5082 = vpack.c.b16 %v3770, %v3754
    %v5083 = vpack.c.b16 %v3771, %v3755
    %v5084 = vpack.c.b16 %v3772, %v3756
    %v5085 = vpack.c.b16 %v3773, %v3757
    %v5086 = vpack.c.b16 %v3774, %v3758
    %v5087 = vpack.c.b16 %v3775, %v3759
    %v5088 = vpack.c.b16 %v3776, %v3760
    %v5089 = vpack.c.b16 %v3777, %v3761
    %v5090 = vpack.c.b16 %v3778, %v3762
    %v5091 = vpack.c.b16 %v3779, %v3763
    %v5092 = vpack.c.b16 %v3780, %v3764
    %v5093 = vpack.c.b16 %v3781, %v3765
    %v5094 = vpack.c.b16 %v3782, %v3766
    %v5095 = vpack.c.b16 %v3783, %v3767
    %v5096 = vpack.c.b16 %v3784, %v3768
    %v5097 = vpack.c.b16 %v3801, %v3785
    %v5098 = vpack.c.b16 %v3802, %v3786
    %v5099 = vpack.c.b16 %v3803, %v3787
    %v5100 = vpack.c.b16 %v3804, %v3788
    %v5101 = vpack.c.b16 %v3805, %v3789
    %v5102 = vpack.c.b16 %v3806, %v3790
    %v5103 = vpack.c.b16 %v3807, %v3791
    %v5104 = vpack.c.b16 %v3808, %v3792
    %v5105 = vpack.c.b16 %v3809, %v3793
    %v5106 = vpack.c.b16 %v3810, %v3794
    %v5107 = vpack.c.b16 %v3811, %v3795
    %v5108 = vpack.c.b16 %v3812, %v3796
    %v5109 = vpack.c.b16 %v3813, %v3797
    %v5110 = vpack.c.b16 %v3814, %v3798
    %v5111 = vpack.c.b16 %v3815, %v3799
    %v5112 = vpack.c.b16 %v3816, %v3800
    %v5113 = vpack.c.b16 %v3833, %v3817
    %v5114 = vpack.c.b16 %v3834, %v3818
    %v5115 = vpack.c.b16 %v3835, %v3819
    %v5116 = vpack.c.b16 %v3836, %v3820
    %v5117 = vpack.c.b16 %v3837, %v3821
    %v5118 = vpack.c.b16 %v3838, %v3822
    %v5119 = vpack.c.b16 %v3839, %v3823
    %v5120 = vpack.c.b16 %v3840, %v3824
    %v5121 = vpack.c.b16 %v3841, %v3825
    %v5122 = vpack.c.b16 %v3842, %v3826
    %v5123 = vpack.c.b16 %v3843, %v3827
    %v5124 = vpack.c.b16 %v3844, %v3828
    %v5125 = vpack.c.b16 %v3845, %v3829
    %v5126 = vpack.c.b16 %v3846, %v3830
    %v5127 = vpack.c.b16 %v3847, %v3831
    %v5128 = vpack.c.b16 %v3848, %v3832
    %v5129 = vpack.c.b16 %v3865, %v3849
    %v5130 = vpack.c.b16 %v3866, %v3850
    %v5131 = vpack.c.b16 %v3867, %v3851
    %v5132 = vpack.c.b16 %v3868, %v3852
    %v5133 = vpack.c.b16 %v3869, %v3853
    %v5134 = vpack.c.b16 %v3870, %v3854
    %v5135 = vpack.c.b16 %v3871, %v3855
    %v5136 = vpack.c.b16 %v3872, %v3856
    %v5137 = vpack.c.b16 %v3873, %v3857
    %v5138 = vpack.c.b16 %v3874, %v3858
    %v5139 = vpack.c.b16 %v3875, %v3859
    %v5140 = vpack.c.b16 %v3876, %v3860
    %v5141 = vpack.c.b16 %v3877, %v3861
    %v5142 = vpack.c.b16 %v3878, %v3862
    %v5143 = vpack.c.b16 %v3879, %v3863
    %v5144 = vpack.c.b16 %v3880, %v3864
    %v5145 = vpack.c.b16 %v3897, %v3881
    %v5146 = vpack.c.b16 %v3898, %v3882
    %v5147 = vpack.c.b16 %v3899, %v3883
    %v5148 = vpack.c.b16 %v3900, %v3884
    %v5149 = vpack.c.b16 %v3901, %v3885
    %v5150 = vpack.c.b16 %v3902, %v3886
    %v5151 = vpack.c.b16 %v3903, %v3887
    %v5152 = vpack.c.b16 %v3904, %v3888
    %v5153 = vpack.c.b16 %v3905, %v3889
    %v5154 = vpack.c.b16 %v3906, %v3890
    %v5155 = vpack.c.b16 %v3907, %v3891
    %v5156 = vpack.c.b16 %v3908, %v3892
    %v5157 = vpack.c.b16 %v3909, %v3893
    %v5158 = vpack.c.b16 %v3910, %v3894
    %v5159 = vpack.c.b16 %v3911, %v3895
    %v5160 = vpack.c.b16 %v3912, %v3896
    %v5161 = vpack.c.b16 %v3929, %v3913
    %v5162 = vpack.c.b16 %v3930, %v3914
    %v5163 = vpack.c.b16 %v3931, %v3915
    %v5164 = vpack.c.b16 %v3932, %v3916
    %v5165 = vpack.c.b16 %v3933, %v3917
    %v5166 = vpack.c.b16 %v3934, %v3918
    %v5167 = vpack.c.b16 %v3935, %v3919
    %v5168 = vpack.c.b16 %v3936, %v3920
    %v5169 = vpack.c.b16 %v3937, %v3921
    %v5170 = vpack.c.b16 %v3938, %v3922
    %v5171 = vpack.c.b16 %v3939, %v3923
    %v5172 = vpack.c.b16 %v3940, %v3924
    %v5173 = vpack.c.b16 %v3941, %v3925
    %v5174 = vpack.c.b16 %v3942, %v3926
    %v5175 = vpack.c.b16 %v3943, %v3927
    %v5176 = vpack.c.b16 %v3944, %v3928
    %v5177 = vpack.c.b16 %v3961, %v3945
    %v5178 = vpack.c.b16 %v3962, %v3946
    %v5179 = vpack.c.b16 %v3963, %v3947
    %v5180 = vpack.c.b16 %v3964, %v3948
    %v5181 = vpack.c.b16 %v3965, %v3949
    %v5182 = vpack.c.b16 %v3966, %v3950
    %v5183 = vpack.c.b16 %v3967, %v3951
    %v5184 = vpack.c.b16 %v3968, %v3952
    %v5185 = vpack.c.b16 %v3969, %v3953
    %v5186 = vpack.c.b16 %v3970, %v3954
    %v5187 = vpack.c.b16 %v3971, %v3955
    %v5188 = vpack.c.b16 %v3972, %v3956
    %v5189 = vpack.c.b16 %v3973, %v3957
    %v5190 = vpack.c.b16 %v3974, %v3958
    %v5191 = vpack.c.b16 %v3975, %v3959
    %v5192 = vpack.c.b16 %v3976, %v3960
    %v5193 = vpack.c.b16 %v3993, %v3977
    %v5194 = vpack.c.b16 %v3994, %v3978
    %v5195 = vpack.c.b16 %v3995, %v3979
    %v5196 = vpack.c.b16 %v3996, %v3980
    %v5197 = vpack.c.b16 %v3997, %v3981
    %v5198 = vpack.c.b16 %v3998, %v3982
    %v5199 = vpack.c.b16 %v3999, %v3983
    %v5200 = vpack.c.b16 %v4000, %v3984
    %v5201 = vpack.c.b16 %v4001, %v3985
    %v5202 = vpack.c.b16 %v4002, %v3986
    %v5203 = vpack.c.b16 %v4003, %v3987
    %v5204 = vpack.c.b16 %v4004, %v3988
    %v5205 = vpack.c.b16 %v4005, %v3989
    %v5206 = vpack.c.b16 %v4006, %v3990
    %v5207 = vpack.c.b16 %v4007, %v3991
    %v5208 = vpack.c.b16 %v4008, %v3992
    %v5209 = vpack.c.b16 %v4025, %v4009
    %v5210 = vpack.c.b16 %v4026, %v4010
    %v5211 = vpack.c.b16 %v4027, %v4011
    %v5212 = vpack.c.b16 %v4028, %v4012
    %v5213 = vpack.c.b16 %v4029, %v4013
    %v5214 = vpack.c.b16 %v4030, %v4014
    %v5215 = vpack.c.b16 %v4031, %v4015
    %v5216 = vpack.c.b16 %v4032, %v4016
    %v5217 = vpack.c.b16 %v4033, %v4017
    %v5218 = vpack.c.b16 %v4034, %v4018
    %v5219 = vpack.c.b16 %v4035, %v4019
    %v5220 = vpack.c.b16 %v4036, %v4020
    %v5221 = vpack.c.b16 %v4037, %v4021
    %v5222 = vpack.c.b16 %v4038, %v4022
    %v5223 = vpack.c.b16 %v4039, %v4023
    %v5224 = vpack.c.b16 %v4040, %v4024
    %v5225 = vpack.c.b16 %v4057, %v4041
    %v5226 = vpack.c.b16 %v4058, %v4042
    %v5227 = vpack.c.b16 %v4059, %v4043
    %v5228 = vpack.c.b16 %v4060, %v4044
    %v5229 = vpack.c.b16 %v4061, %v4045
    %v5230 = vpack.c.b16 %v4062, %v4046
    %v5231 = vpack.c.b16 %v4063, %v4047
    %v5232 = vpack.c.b16 %v4064, %v4048
    %v5233 = vpack.c.b16 %v4065, %v4049
    %v5234 = vpack.c.b16 %v4066, %v4050
    %v5235 = vpack.c.b16 %v4067, %v4051
    %v5236 = vpack.c.b16 %v4068, %v4052
    %v5237 = vpack.c.b16 %v4069, %v4053
    %v5238 = vpack.c.b16 %v4070, %v4054
    %v5239 = vpack.c.b16 %v4071, %v4055
    %v5240 = vpack.c.b16 %v4072, %v4056
    %v5241 = vpack.c.b16 %v4089, %v4073
    %v5242 = vpack.c.b16 %v4090, %v4074
    %v5243 = vpack.c.b16 %v4091, %v4075
    %v5244 = vpack.c.b16 %v4092, %v4076
    %v5245 = vpack.c.b16 %v4093, %v4077
    %v5246 = vpack.c.b16 %v4094, %v4078
    %v5247 = vpack.c.b16 %v4095, %v4079
    %v5248 = vpack.c.b16 %v4096, %v4080
    %v5249 = vpack.c.b16 %v4097, %v4081
    %v5250 = vpack.c.b16 %v4098, %v4082
    %v5251 = vpack.c.b16 %v4099, %v4083
    %v5252 = vpack.c.b16 %v4100, %v4084
    %v5253 = vpack.c.b16 %v4101, %v4085
    %v5254 = vpack.c.b16 %v4102, %v4086
    %v5255 = vpack.c.b16 %v4103, %v4087
    %v5256 = vpack.c.b16 %v4104, %v4088
    %v5257 = vpack.c.b16 %v4121, %v4105
    %v5258 = vpack.c.b16 %v4122, %v4106
    %v5259 = vpack.c.b16 %v4123, %v4107
    %v5260 = vpack.c.b16 %v4124, %v4108
    %v5261 = vpack.c.b16 %v4125, %v4109
    %v5262 = vpack.c.b16 %v4126, %v4110
    %v5263 = vpack.c.b16 %v4127, %v4111
    %v5264 = vpack.c.b16 %v4128, %v4112
    %v5265 = vpack.c.b16 %v4129, %v4113
    %v5266 = vpack.c.b16 %v4130, %v4114
    %v5267 = vpack.c.b16 %v4131, %v4115
    %v5268 = vpack.c.b16 %v4132, %v4116
    %v5269 = vpack.c.b16 %v4133, %v4117
    %v5270 = vpack.c.b16 %v4134, %v4118
    %v5271 = vpack.c.b16 %v4135, %v4119
    %v5272 = vpack.c.b16 %v4136, %v4120
    %v5273 = vpack.c.b16 %v4153, %v4137
    %v5274 = vpack.c.b16 %v4154, %v4138
    %v5275 = vpack.c.b16 %v4155, %v4139
    %v5276 = vpack.c.b16 %v4156, %v4140
    %v5277 = vpack.c.b16 %v4157, %v4141
    %v5278 = vpack.c.b16 %v4158, %v4142
    %v5279 = vpack.c.b16 %v4159, %v4143
    %v5280 = vpack.c.b16 %v4160, %v4144
    %v5281 = vpack.c.b16 %v4161, %v4145
    %v5282 = vpack.c.b16 %v4162, %v4146
    %v5283 = vpack.c.b16 %v4163, %v4147
    %v5284 = vpack.c.b16 %v4164, %v4148
    %v5285 = vpack.c.b16 %v4165, %v4149
    %v5286 = vpack.c.b16 %v4166, %v4150
    %v5287 = vpack.c.b16 %v4167, %v4151
    %v5288 = vpack.c.b16 %v4168, %v4152
    %v5289 = vpack.c.b16 %v4185, %v4169
    %v5290 = vpack.c.b16 %v4186, %v4170
    %v5291 = vpack.c.b16 %v4187, %v4171
    %v5292 = vpack.c.b16 %v4188, %v4172
    %v5293 = vpack.c.b16 %v4189, %v4173
    %v5294 = vpack.c.b16 %v4190, %v4174
    %v5295 = vpack.c.b16 %v4191, %v4175
    %v5296 = vpack.c.b16 %v4192, %v4176
    %v5297 = vpack.c.b16 %v4193, %v4177
    %v5298 = vpack.c.b16 %v4194, %v4178
    %v5299 = vpack.c.b16 %v4195, %v4179
    %v5300 = vpack.c.b16 %v4196, %v4180
    %v5301 = vpack.c.b16 %v4197, %v4181
    %v5302 = vpack.c.b16 %v4198, %v4182
    %v5303 = vpack.c.b16 %v4199, %v4183
    %v5304 = vpack.c.b16 %v4200, %v4184
    %v5305 = vpack.c.b16 %v4217, %v4201
    %v5306 = vpack.c.b16 %v4218, %v4202
    %v5307 = vpack.c.b16 %v4219, %v4203
    %v5308 = vpack.c.b16 %v4220, %v4204
    %v5309 = vpack.c.b16 %v4221, %v4205
    %v5310 = vpack.c.b16 %v4222, %v4206
    %v5311 = vpack.c.b16 %v4223, %v4207
    %v5312 = vpack.c.b16 %v4224, %v4208
    %v5313 = vpack.c.b16 %v4225, %v4209
    %v5314 = vpack.c.b16 %v4226, %v4210
    %v5315 = vpack.c.b16 %v4227, %v4211
    %v5316 = vpack.c.b16 %v4228, %v4212
    %v5317 = vpack.c.b16 %v4229, %v4213
    %v5318 = vpack.c.b16 %v4230, %v4214
    %v5319 = vpack.c.b16 %v4231, %v4215
    %v5320 = vpack.c.b16 %v4232, %v4216
    %v5321 = vpack.c.b16 %v4249, %v4233
    %v5322 = vpack.c.b16 %v4250, %v4234
    %v5323 = vpack.c.b16 %v4251, %v4235
    %v5324 = vpack.c.b16 %v4252, %v4236
    %v5325 = vpack.c.b16 %v4253, %v4237
    %v5326 = vpack.c.b16 %v4254, %v4238
    %v5327 = vpack.c.b16 %v4255, %v4239
    %v5328 = vpack.c.b16 %v4256, %v4240
    %v5329 = vpack.c.b16 %v4257, %v4241
    %v5330 = vpack.c.b16 %v4258, %v4242
    %v5331 = vpack.c.b16 %v4259, %v4243
    %v5332 = vpack.c.b16 %v4260, %v4244
    %v5333 = vpack.c.b16 %v4261, %v4245
    %v5334 = vpack.c.b16 %v4262, %v4246
    %v5335 = vpack.c.b16 %v4263, %v4247
    %v5336 = vpack.c.b16 %v4264, %v4248
    %v5337 = vpack.c.b16 %v4281, %v4265
    %v5338 = vpack.c.b16 %v4282, %v4266
    %v5339 = vpack.c.b16 %v4283, %v4267
    %v5340 = vpack.c.b16 %v4284, %v4268
    %v5341 = vpack.c.b16 %v4285, %v4269
    %v5342 = vpack.c.b16 %v4286, %v4270
    %v5343 = vpack.c.b16 %v4287, %v4271
    %v5344 = vpack.c.b16 %v4288, %v4272
    %v5345 = vpack.c.b16 %v4289, %v4273
    %v5346 = vpack.c.b16 %v4290, %v4274
    %v5347 = vpack.c.b16 %v4291, %v4275
    %v5348 = vpack.c.b16 %v4292, %v4276
    %v5349 = vpack.c.b16 %v4293, %v4277
    %v5350 = vpack.c.b16 %v4294, %v4278
    %v5351 = vpack.c.b16 %v4295, %v4279
    %v5352 = vpack.c.b16 %v4296, %v4280
    %v5353 = vpack.c.b16 %v4313, %v4297
    %v5354 = vpack.c.b16 %v4314, %v4298
    %v5355 = vpack.c.b16 %v4315, %v4299
    %v5356 = vpack.c.b16 %v4316, %v4300
    %v5357 = vpack.c.b16 %v4317, %v4301
    %v5358 = vpack.c.b16 %v4318, %v4302
    %v5359 = vpack.c.b16 %v4319, %v4303
    %v5360 = vpack.c.b16 %v4320, %v4304
    %v5361 = vpack.c.b16 %v4321, %v4305
    %v5362 = vpack.c.b16 %v4322, %v4306
    %v5363 = vpack.c.b16 %v4323, %v4307
    %v5364 = vpack.c.b16 %v4324, %v4308
    %v5365 = vpack.c.b16 %v4325, %v4309
    %v5366 = vpack.c.b16 %v4326, %v4310
    %v5367 = vpack.c.b16 %v4327, %v4311
    %v5368 = vpack.c.b16 %v4328, %v4312
    %v5369 = vpack.c.b16 %v4345, %v4329
    %v5370 = vpack.c.b16 %v4346, %v4330
    %v5371 = vpack.c.b16 %v4347, %v4331
    %v5372 = vpack.c.b16 %v4348, %v4332
    %v5373 = vpack.c.b16 %v4349, %v4333
    %v5374 = vpack.c.b16 %v4350, %v4334
    %v5375 = vpack.c.b16 %v4351, %v4335
    %v5376 = vpack.c.b16 %v4352, %v4336
    %v5377 = vpack.c.b16 %v4353, %v4337
    %v5378 = vpack.c.b16 %v4354, %v4338
    %v5379 = vpack.c.b16 %v4355, %v4339
    %v5380 = vpack.c.b16 %v4356, %v4340
    %v5381 = vpack.c.b16 %v4357, %v4341
    %v5382 = vpack.c.b16 %v4358, %v4342
    %v5383 = vpack.c.b16 %v4359, %v4343
    %v5384 = vpack.c.b16 %v4360, %v4344
    %6409 = vmatprep.subr.bf16.mxu0 %v4474
    %6410 = vmatpush1.bf16.msra.mxu0 %v4473
    %6411 = vmatprep.subr.bf16.mxu0 %v4458
    %6412 = vmatpush1.bf16.msra.mxu0 %v4457
    %6413 = vmatprep.subr.bf16.mxu0 %v4442
    %6414 = vmatpush1.bf16.msra.mxu0 %v4441
    %6415 = vmatprep.subr.bf16.mxu0 %v4426
    %6416 = vmatpush1.bf16.msra.mxu0 %v4425
    %6417 = vmatprep.subr.bf16.mxu0 %v4410
    %6418 = vmatpush1.bf16.msra.mxu0 %v4409
    %6419 = vmatprep.subr.bf16.mxu0 %v4394
    %6420 = vmatpush1.bf16.msra.mxu0 %v4393
    %6421 = vmatprep.subr.bf16.mxu0 %v4378
    %6422 = vmatpush1.bf16.msra.mxu0 %v4377
    %6423 = vmatprep.subr.bf16.mxu0 %v4362
    %6424 = vmatpush1.bf16.msra.mxu0 %v4361
    %6425 = vmatprep.subr.bf16.mxu0 %v4602
    %6426 = vmatpush2.bf16.msra.mxu0 %v4601
    %6427 = vmatprep.subr.bf16.mxu0 %v4586
    %6428 = vmatpush2.bf16.msra.mxu0 %v4585
    %6429 = vmatprep.subr.bf16.mxu0 %v4570
    %6430 = vmatpush2.bf16.msra.mxu0 %v4569
    %6431 = vmatprep.subr.bf16.mxu0 %v4554
    %6432 = vmatpush2.bf16.msra.mxu0 %v4553
    %6433 = vmatprep.subr.bf16.mxu0 %v4538
    %6434 = vmatpush2.bf16.msra.mxu0 %v4537
    %6435 = vmatprep.subr.bf16.mxu0 %v4522
    %6436 = vmatpush2.bf16.msra.mxu0 %v4521
    %6437 = vmatprep.subr.bf16.mxu0 %v4506
    %6438 = vmatpush2.bf16.msra.mxu0 %v4505
    %6439 = vmatprep.subr.bf16.mxu0 %v4490
    %6440 = vmatpush2.bf16.msra.mxu0 %v4489
    %6441 = vmatprep.mubr.bf16.mxu0 %v1274
    %6442 = vmatmul.mubr.bf16.gmra.mxu0 %v1273
    %v6443 = vpop.f32.mrf.mxu0
    %v6444 = vadd.f32 %v1172, %v6443
    %v6445 = vpop.f32.mrf.mxu0
    %v6446 = vadd.f32 %v1176, %v6445
    %v6447 = vpop.f32.mrf.mxu0
    %v6448 = vadd.f32 %v1172, %v6447
    %v6449 = vpop.f32.mrf.mxu0
    %v6450 = vadd.f32 %v1176, %v6449
    %6451 = vdwg.mxu0
    %6452 = vmatprep.subr.bf16.mxu0 %v4730
    %6453 = vmatpush1.bf16.msra.mxu0 %v4729
    %6454 = vmatprep.subr.bf16.mxu0 %v4714
    %6455 = vmatpush1.bf16.msra.mxu0 %v4713
    %6456 = vmatprep.subr.bf16.mxu0 %v4698
    %6457 = vmatpush1.bf16.msra.mxu0 %v4697
    %6458 = vmatprep.subr.bf16.mxu0 %v4682
    %6459 = vmatpush1.bf16.msra.mxu0 %v4681
    %6460 = vmatprep.subr.bf16.mxu0 %v4666
    %6461 = vmatpush1.bf16.msra.mxu0 %v4665
    %6462 = vmatprep.subr.bf16.mxu0 %v4650
    %6463 = vmatpush1.bf16.msra.mxu0 %v4649
    %6464 = vmatprep.subr.bf16.mxu0 %v4634
    %6465 = vmatpush1.bf16.msra.mxu0 %v4633
    %6466 = vmatprep.subr.bf16.mxu0 %v4618
    %6467 = vmatpush1.bf16.msra.mxu0 %v4617
    %6468 = vmatprep.subr.bf16.mxu0 %v4858
    %6469 = vmatpush2.bf16.msra.mxu0 %v4857
    %6470 = vmatprep.subr.bf16.mxu0 %v4842
    %6471 = vmatpush2.bf16.msra.mxu0 %v4841
    %6472 = vmatprep.subr.bf16.mxu0 %v4826
    %6473 = vmatpush2.bf16.msra.mxu0 %v4825
    %6474 = vmatprep.subr.bf16.mxu0 %v4810
    %6475 = vmatpush2.bf16.msra.mxu0 %v4809
    %6476 = vmatprep.subr.bf16.mxu0 %v4794
    %6477 = vmatpush2.bf16.msra.mxu0 %v4793
    %6478 = vmatprep.subr.bf16.mxu0 %v4778
    %6479 = vmatpush2.bf16.msra.mxu0 %v4777
    %6480 = vmatprep.subr.bf16.mxu0 %v4762
    %6481 = vmatpush2.bf16.msra.mxu0 %v4761
    %6482 = vmatprep.subr.bf16.mxu0 %v4746
    %6483 = vmatpush2.bf16.msra.mxu0 %v4745
    %6484 = vmatprep.mubr.bf16.mxu0 %v1276
    %6485 = vmatmul.mubr.bf16.gmra.mxu0 %v1275
    %v6486 = vpop.f32.mrf.mxu0
    %v6487 = vadd.f32 %v6444, %v6486
    %v6488 = vpop.f32.mrf.mxu0
    %v6489 = vadd.f32 %v6446, %v6488
    %v6490 = vpop.f32.mrf.mxu0
    %v6491 = vadd.f32 %v6448, %v6490
    %v6492 = vpop.f32.mrf.mxu0
    %v6493 = vadd.f32 %v6450, %v6492
    %6494 = vdwg.mxu0
    %6495 = vmatprep.subr.bf16.mxu0 %v4986
    %6496 = vmatpush1.bf16.msra.mxu0 %v4985
    %6497 = vmatprep.subr.bf16.mxu0 %v4970
    %6498 = vmatpush1.bf16.msra.mxu0 %v4969
    %6499 = vmatprep.subr.bf16.mxu0 %v4954
    %6500 = vmatpush1.bf16.msra.mxu0 %v4953
    %6501 = vmatprep.subr.bf16.mxu0 %v4938
    %6502 = vmatpush1.bf16.msra.mxu0 %v4937
    %6503 = vmatprep.subr.bf16.mxu0 %v4922
    %6504 = vmatpush1.bf16.msra.mxu0 %v4921
    %6505 = vmatprep.subr.bf16.mxu0 %v4906
    %6506 = vmatpush1.bf16.msra.mxu0 %v4905
    %6507 = vmatprep.subr.bf16.mxu0 %v4890
    %6508 = vmatpush1.bf16.msra.mxu0 %v4889
    %6509 = vmatprep.subr.bf16.mxu0 %v4874
    %6510 = vmatpush1.bf16.msra.mxu0 %v4873
    %6511 = vmatprep.subr.bf16.mxu0 %v5114
    %6512 = vmatpush2.bf16.msra.mxu0 %v5113
    %6513 = vmatprep.subr.bf16.mxu0 %v5098
    %6514 = vmatpush2.bf16.msra.mxu0 %v5097
    %6515 = vmatprep.subr.bf16.mxu0 %v5082
    %6516 = vmatpush2.bf16.msra.mxu0 %v5081
    %6517 = vmatprep.subr.bf16.mxu0 %v5066
    %6518 = vmatpush2.bf16.msra.mxu0 %v5065
    %6519 = vmatprep.subr.bf16.mxu0 %v5050
    %6520 = vmatpush2.bf16.msra.mxu0 %v5049
    %6521 = vmatprep.subr.bf16.mxu0 %v5034
    %6522 = vmatpush2.bf16.msra.mxu0 %v5033
    %6523 = vmatprep.subr.bf16.mxu0 %v5018
    %6524 = vmatpush2.bf16.msra.mxu0 %v5017
    %6525 = vmatprep.subr.bf16.mxu0 %v5002
    %6526 = vmatpush2.bf16.msra.mxu0 %v5001
    %6527 = vmatprep.mubr.bf16.mxu0 %v1278
    %6528 = vmatmul.mubr.bf16.gmra.mxu0 %v1277
    %v6529 = vpop.f32.mrf.mxu0
    %v6530 = vadd.f32 %v6487, %v6529
    %v6531 = vpop.f32.mrf.mxu0
    %v6532 = vadd.f32 %v6489, %v6531
    %v6533 = vpop.f32.mrf.mxu0
    %v6534 = vadd.f32 %v6491, %v6533
    %v6535 = vpop.f32.mrf.mxu0
    %v6536 = vadd.f32 %v6493, %v6535
    %6537 = vdwg.mxu0
    %6538 = vmatprep.subr.bf16.mxu0 %v5242
    %6539 = vmatpush1.bf16.msra.mxu0 %v5241
    %6540 = vmatprep.subr.bf16.mxu0 %v5226
    %6541 = vmatpush1.bf16.msra.mxu0 %v5225
    %6542 = vmatprep.subr.bf16.mxu0 %v5210
    %6543 = vmatpush1.bf16.msra.mxu0 %v5209
    %6544 = vmatprep.subr.bf16.mxu0 %v5194
    %6545 = vmatpush1.bf16.msra.mxu0 %v5193
    %6546 = vmatprep.subr.bf16.mxu0 %v5178
    %6547 = vmatpush1.bf16.msra.mxu0 %v5177
    %6548 = vmatprep.subr.bf16.mxu0 %v5162
    %6549 = vmatpush1.bf16.msra.mxu0 %v5161
    %6550 = vmatprep.subr.bf16.mxu0 %v5146
    %6551 = vmatpush1.bf16.msra.mxu0 %v5145
    %6552 = vmatprep.subr.bf16.mxu0 %v5130
    %6553 = vmatpush1.bf16.msra.mxu0 %v5129
    %6554 = vmatprep.subr.bf16.mxu0 %v5370
    %6555 = vmatpush2.bf16.msra.mxu0 %v5369
    %6556 = vmatprep.subr.bf16.mxu0 %v5354
    %6557 = vmatpush2.bf16.msra.mxu0 %v5353
    %6558 = vmatprep.subr.bf16.mxu0 %v5338
    %6559 = vmatpush2.bf16.msra.mxu0 %v5337
    %6560 = vmatprep.subr.bf16.mxu0 %v5322
    %6561 = vmatpush2.bf16.msra.mxu0 %v5321
    %6562 = vmatprep.subr.bf16.mxu0 %v5306
    %6563 = vmatpush2.bf16.msra.mxu0 %v5305
    %6564 = vmatprep.subr.bf16.mxu0 %v5290
    %6565 = vmatpush2.bf16.msra.mxu0 %v5289
    %6566 = vmatprep.subr.bf16.mxu0 %v5274
    %6567 = vmatpush2.bf16.msra.mxu0 %v5273
    %6568 = vmatprep.subr.bf16.mxu0 %v5258
    %6569 = vmatpush2.bf16.msra.mxu0 %v5257
    %6570 = vmatprep.mubr.bf16.mxu0 %v1280
    %6571 = vmatmul.mubr.bf16.gmra.mxu0 %v1279
    %v6572 = vpop.f32.mrf.mxu0
    %v6573 = vadd.f32 %v6530, %v6572
    %v6574 = vpop.f32.mrf.mxu0
    %v6575 = vadd.f32 %v6532, %v6574
    %v6576 = vpop.f32.mrf.mxu0
    %v6577 = vadd.f32 %v6534, %v6576
    %v6578 = vpop.f32.mrf.mxu0
    %v6579 = vadd.f32 %v6536, %v6578
    %6580 = vdwg.mxu0
    %6581 = vmatprep.subr.bf16.mxu0 %v4476
    %6582 = vmatpush1.bf16.msra.mxu0 %v4475
    %6583 = vmatprep.subr.bf16.mxu0 %v4460
    %6584 = vmatpush1.bf16.msra.mxu0 %v4459
    %6585 = vmatprep.subr.bf16.mxu0 %v4444
    %6586 = vmatpush1.bf16.msra.mxu0 %v4443
    %6587 = vmatprep.subr.bf16.mxu0 %v4428
    %6588 = vmatpush1.bf16.msra.mxu0 %v4427
    %6589 = vmatprep.subr.bf16.mxu0 %v4412
    %6590 = vmatpush1.bf16.msra.mxu0 %v4411
    %6591 = vmatprep.subr.bf16.mxu0 %v4396
    %6592 = vmatpush1.bf16.msra.mxu0 %v4395
    %6593 = vmatprep.subr.bf16.mxu0 %v4380
    %6594 = vmatpush1.bf16.msra.mxu0 %v4379
    %6595 = vmatprep.subr.bf16.mxu0 %v4364
    %6596 = vmatpush1.bf16.msra.mxu0 %v4363
    %6597 = vmatprep.subr.bf16.mxu0 %v4604
    %6598 = vmatpush2.bf16.msra.mxu0 %v4603
    %6599 = vmatprep.subr.bf16.mxu0 %v4588
    %6600 = vmatpush2.bf16.msra.mxu0 %v4587
    %6601 = vmatprep.subr.bf16.mxu0 %v4572
    %6602 = vmatpush2.bf16.msra.mxu0 %v4571
    %6603 = vmatprep.subr.bf16.mxu0 %v4556
    %6604 = vmatpush2.bf16.msra.mxu0 %v4555
    %6605 = vmatprep.subr.bf16.mxu0 %v4540
    %6606 = vmatpush2.bf16.msra.mxu0 %v4539
    %6607 = vmatprep.subr.bf16.mxu0 %v4524
    %6608 = vmatpush2.bf16.msra.mxu0 %v4523
    %6609 = vmatprep.subr.bf16.mxu0 %v4508
    %6610 = vmatpush2.bf16.msra.mxu0 %v4507
    %6611 = vmatprep.subr.bf16.mxu0 %v4492
    %6612 = vmatpush2.bf16.msra.mxu0 %v4491
    %6613 = vmatprep.mubr.bf16.mxu0 %v1274
    %6614 = vmatmul.mubr.bf16.gmra.mxu0 %v1273
    %v6615 = vpop.f32.mrf.mxu0
    %v6616 = vadd.f32 %v1180, %v6615
    %v6617 = vpop.f32.mrf.mxu0
    %v6618 = vadd.f32 %v1184, %v6617
    %v6619 = vpop.f32.mrf.mxu0
    %v6620 = vadd.f32 %v1180, %v6619
    %v6621 = vpop.f32.mrf.mxu0
    %v6622 = vadd.f32 %v1184, %v6621
    %6623 = vdwg.mxu0
    %6624 = vmatprep.subr.bf16.mxu0 %v4732
    %6625 = vmatpush1.bf16.msra.mxu0 %v4731
    %6626 = vmatprep.subr.bf16.mxu0 %v4716
    %6627 = vmatpush1.bf16.msra.mxu0 %v4715
    %6628 = vmatprep.subr.bf16.mxu0 %v4700
    %6629 = vmatpush1.bf16.msra.mxu0 %v4699
    %6630 = vmatprep.subr.bf16.mxu0 %v4684
    %6631 = vmatpush1.bf16.msra.mxu0 %v4683
    %6632 = vmatprep.subr.bf16.mxu0 %v4668
    %6633 = vmatpush1.bf16.msra.mxu0 %v4667
    %6634 = vmatprep.subr.bf16.mxu0 %v4652
    %6635 = vmatpush1.bf16.msra.mxu0 %v4651
    %6636 = vmatprep.subr.bf16.mxu0 %v4636
    %6637 = vmatpush1.bf16.msra.mxu0 %v4635
    %6638 = vmatprep.subr.bf16.mxu0 %v4620
    %6639 = vmatpush1.bf16.msra.mxu0 %v4619
    %6640 = vmatprep.subr.bf16.mxu0 %v4860
    %6641 = vmatpush2.bf16.msra.mxu0 %v4859
    %6642 = vmatprep.subr.bf16.mxu0 %v4844
    %6643 = vmatpush2.bf16.msra.mxu0 %v4843
    %6644 = vmatprep.subr.bf16.mxu0 %v4828
    %6645 = vmatpush2.bf16.msra.mxu0 %v4827
    %6646 = vmatprep.subr.bf16.mxu0 %v4812
    %6647 = vmatpush2.bf16.msra.mxu0 %v4811
    %6648 = vmatprep.subr.bf16.mxu0 %v4796
    %6649 = vmatpush2.bf16.msra.mxu0 %v4795
    %6650 = vmatprep.subr.bf16.mxu0 %v4780
    %6651 = vmatpush2.bf16.msra.mxu0 %v4779
    %6652 = vmatprep.subr.bf16.mxu0 %v4764
    %6653 = vmatpush2.bf16.msra.mxu0 %v4763
    %6654 = vmatprep.subr.bf16.mxu0 %v4748
    %6655 = vmatpush2.bf16.msra.mxu0 %v4747
    %6656 = vmatprep.mubr.bf16.mxu0 %v1276
    %6657 = vmatmul.mubr.bf16.gmra.mxu0 %v1275
    %v6658 = vpop.f32.mrf.mxu0
    %v6659 = vadd.f32 %v6616, %v6658
    %v6660 = vpop.f32.mrf.mxu0
    %v6661 = vadd.f32 %v6618, %v6660
    %v6662 = vpop.f32.mrf.mxu0
    %v6663 = vadd.f32 %v6620, %v6662
    %v6664 = vpop.f32.mrf.mxu0
    %v6665 = vadd.f32 %v6622, %v6664
    %6666 = vdwg.mxu0
    %6667 = vmatprep.subr.bf16.mxu0 %v4988
    %6668 = vmatpush1.bf16.msra.mxu0 %v4987
    %6669 = vmatprep.subr.bf16.mxu0 %v4972
    %6670 = vmatpush1.bf16.msra.mxu0 %v4971
    %6671 = vmatprep.subr.bf16.mxu0 %v4956
    %6672 = vmatpush1.bf16.msra.mxu0 %v4955
    %6673 = vmatprep.subr.bf16.mxu0 %v4940
    %6674 = vmatpush1.bf16.msra.mxu0 %v4939
    %6675 = vmatprep.subr.bf16.mxu0 %v4924
    %6676 = vmatpush1.bf16.msra.mxu0 %v4923
    %6677 = vmatprep.subr.bf16.mxu0 %v4908
    %6678 = vmatpush1.bf16.msra.mxu0 %v4907
    %6679 = vmatprep.subr.bf16.mxu0 %v4892
    %6680 = vmatpush1.bf16.msra.mxu0 %v4891
    %6681 = vmatprep.subr.bf16.mxu0 %v4876
    %6682 = vmatpush1.bf16.msra.mxu0 %v4875
    %6683 = vmatprep.subr.bf16.mxu0 %v5116
    %6684 = vmatpush2.bf16.msra.mxu0 %v5115
    %6685 = vmatprep.subr.bf16.mxu0 %v5100
    %6686 = vmatpush2.bf16.msra.mxu0 %v5099
    %6687 = vmatprep.subr.bf16.mxu0 %v5084
    %6688 = vmatpush2.bf16.msra.mxu0 %v5083
    %6689 = vmatprep.subr.bf16.mxu0 %v5068
    %6690 = vmatpush2.bf16.msra.mxu0 %v5067
    %6691 = vmatprep.subr.bf16.mxu0 %v5052
    %6692 = vmatpush2.bf16.msra.mxu0 %v5051
    %6693 = vmatprep.subr.bf16.mxu0 %v5036
    %6694 = vmatpush2.bf16.msra.mxu0 %v5035
    %6695 = vmatprep.subr.bf16.mxu0 %v5020
    %6696 = vmatpush2.bf16.msra.mxu0 %v5019
    %6697 = vmatprep.subr.bf16.mxu0 %v5004
    %6698 = vmatpush2.bf16.msra.mxu0 %v5003
    %6699 = vmatprep.mubr.bf16.mxu0 %v1278
    %6700 = vmatmul.mubr.bf16.gmra.mxu0 %v1277
    %v6701 = vpop.f32.mrf.mxu0
    %v6702 = vadd.f32 %v6659, %v6701
    %v6703 = vpop.f32.mrf.mxu0
    %v6704 = vadd.f32 %v6661, %v6703
    %v6705 = vpop.f32.mrf.mxu0
    %v6706 = vadd.f32 %v6663, %v6705
    %v6707 = vpop.f32.mrf.mxu0
    %v6708 = vadd.f32 %v6665, %v6707
    %6709 = vdwg.mxu0
    %6710 = vmatprep.subr.bf16.mxu0 %v5244
    %6711 = vmatpush1.bf16.msra.mxu0 %v5243
    %6712 = vmatprep.subr.bf16.mxu0 %v5228
    %6713 = vmatpush1.bf16.msra.mxu0 %v5227
    %6714 = vmatprep.subr.bf16.mxu0 %v5212
    %6715 = vmatpush1.bf16.msra.mxu0 %v5211
    %6716 = vmatprep.subr.bf16.mxu0 %v5196
    %6717 = vmatpush1.bf16.msra.mxu0 %v5195
    %6718 = vmatprep.subr.bf16.mxu0 %v5180
    %6719 = vmatpush1.bf16.msra.mxu0 %v5179
    %6720 = vmatprep.subr.bf16.mxu0 %v5164
    %6721 = vmatpush1.bf16.msra.mxu0 %v5163
    %6722 = vmatprep.subr.bf16.mxu0 %v5148
    %6723 = vmatpush1.bf16.msra.mxu0 %v5147
    %6724 = vmatprep.subr.bf16.mxu0 %v5132
    %6725 = vmatpush1.bf16.msra.mxu0 %v5131
    %6726 = vmatprep.subr.bf16.mxu0 %v5372
    %6727 = vmatpush2.bf16.msra.mxu0 %v5371
    %6728 = vmatprep.subr.bf16.mxu0 %v5356
    %6729 = vmatpush2.bf16.msra.mxu0 %v5355
    %6730 = vmatprep.subr.bf16.mxu0 %v5340
    %6731 = vmatpush2.bf16.msra.mxu0 %v5339
    %6732 = vmatprep.subr.bf16.mxu0 %v5324
    %6733 = vmatpush2.bf16.msra.mxu0 %v5323
    %6734 = vmatprep.subr.bf16.mxu0 %v5308
    %6735 = vmatpush2.bf16.msra.mxu0 %v5307
    %6736 = vmatprep.subr.bf16.mxu0 %v5292
    %6737 = vmatpush2.bf16.msra.mxu0 %v5291
    %6738 = vmatprep.subr.bf16.mxu0 %v5276
    %6739 = vmatpush2.bf16.msra.mxu0 %v5275
    %6740 = vmatprep.subr.bf16.mxu0 %v5260
    %6741 = vmatpush2.bf16.msra.mxu0 %v5259
    %6742 = vmatprep.mubr.bf16.mxu0 %v1280
    %6743 = vmatmul.mubr.bf16.gmra.mxu0 %v1279
    %v6744 = vpop.f32.mrf.mxu0
    %v6745 = vadd.f32 %v6702, %v6744
    %v6746 = vpop.f32.mrf.mxu0
    %v6747 = vadd.f32 %v6704, %v6746
    %v6748 = vpop.f32.mrf.mxu0
    %v6749 = vadd.f32 %v6706, %v6748
    %v6750 = vpop.f32.mrf.mxu0
    %v6751 = vadd.f32 %v6708, %v6750
    %6752 = vdwg.mxu0
    %6753 = vmatprep.subr.bf16.mxu0 %v4478
    %6754 = vmatpush1.bf16.msra.mxu0 %v4477
    %6755 = vmatprep.subr.bf16.mxu0 %v4462
    %6756 = vmatpush1.bf16.msra.mxu0 %v4461
    %6757 = vmatprep.subr.bf16.mxu0 %v4446
    %6758 = vmatpush1.bf16.msra.mxu0 %v4445
    %6759 = vmatprep.subr.bf16.mxu0 %v4430
    %6760 = vmatpush1.bf16.msra.mxu0 %v4429
    %6761 = vmatprep.subr.bf16.mxu0 %v4414
    %6762 = vmatpush1.bf16.msra.mxu0 %v4413
    %6763 = vmatprep.subr.bf16.mxu0 %v4398
    %6764 = vmatpush1.bf16.msra.mxu0 %v4397
    %6765 = vmatprep.subr.bf16.mxu0 %v4382
    %6766 = vmatpush1.bf16.msra.mxu0 %v4381
    %6767 = vmatprep.subr.bf16.mxu0 %v4366
    %6768 = vmatpush1.bf16.msra.mxu0 %v4365
    %6769 = vmatprep.subr.bf16.mxu0 %v4606
    %6770 = vmatpush2.bf16.msra.mxu0 %v4605
    %6771 = vmatprep.subr.bf16.mxu0 %v4590
    %6772 = vmatpush2.bf16.msra.mxu0 %v4589
    %6773 = vmatprep.subr.bf16.mxu0 %v4574
    %6774 = vmatpush2.bf16.msra.mxu0 %v4573
    %6775 = vmatprep.subr.bf16.mxu0 %v4558
    %6776 = vmatpush2.bf16.msra.mxu0 %v4557
    %6777 = vmatprep.subr.bf16.mxu0 %v4542
    %6778 = vmatpush2.bf16.msra.mxu0 %v4541
    %6779 = vmatprep.subr.bf16.mxu0 %v4526
    %6780 = vmatpush2.bf16.msra.mxu0 %v4525
    %6781 = vmatprep.subr.bf16.mxu0 %v4510
    %6782 = vmatpush2.bf16.msra.mxu0 %v4509
    %6783 = vmatprep.subr.bf16.mxu0 %v4494
    %6784 = vmatpush2.bf16.msra.mxu0 %v4493
    %6785 = vmatprep.mubr.bf16.mxu0 %v1274
    %6786 = vmatmul.mubr.bf16.gmra.mxu0 %v1273
    %v6787 = vpop.f32.mrf.mxu0
    %v6788 = vadd.f32 %v1188, %v6787
    %v6789 = vpop.f32.mrf.mxu0
    %v6790 = vadd.f32 %v1192, %v6789
    %v6791 = vpop.f32.mrf.mxu0
    %v6792 = vadd.f32 %v1188, %v6791
    %v6793 = vpop.f32.mrf.mxu0
    %v6794 = vadd.f32 %v1192, %v6793
    %6795 = vdwg.mxu0
    %6796 = vmatprep.subr.bf16.mxu0 %v4734
    %6797 = vmatpush1.bf16.msra.mxu0 %v4733
    %6798 = vmatprep.subr.bf16.mxu0 %v4718
    %6799 = vmatpush1.bf16.msra.mxu0 %v4717
    %6800 = vmatprep.subr.bf16.mxu0 %v4702
    %6801 = vmatpush1.bf16.msra.mxu0 %v4701
    %6802 = vmatprep.subr.bf16.mxu0 %v4686
    %6803 = vmatpush1.bf16.msra.mxu0 %v4685
    %6804 = vmatprep.subr.bf16.mxu0 %v4670
    %6805 = vmatpush1.bf16.msra.mxu0 %v4669
    %6806 = vmatprep.subr.bf16.mxu0 %v4654
    %6807 = vmatpush1.bf16.msra.mxu0 %v4653
    %6808 = vmatprep.subr.bf16.mxu0 %v4638
    %6809 = vmatpush1.bf16.msra.mxu0 %v4637
    %6810 = vmatprep.subr.bf16.mxu0 %v4622
    %6811 = vmatpush1.bf16.msra.mxu0 %v4621
    %6812 = vmatprep.subr.bf16.mxu0 %v4862
    %6813 = vmatpush2.bf16.msra.mxu0 %v4861
    %6814 = vmatprep.subr.bf16.mxu0 %v4846
    %6815 = vmatpush2.bf16.msra.mxu0 %v4845
    %6816 = vmatprep.subr.bf16.mxu0 %v4830
    %6817 = vmatpush2.bf16.msra.mxu0 %v4829
    %6818 = vmatprep.subr.bf16.mxu0 %v4814
    %6819 = vmatpush2.bf16.msra.mxu0 %v4813
    %6820 = vmatprep.subr.bf16.mxu0 %v4798
    %6821 = vmatpush2.bf16.msra.mxu0 %v4797
    %6822 = vmatprep.subr.bf16.mxu0 %v4782
    %6823 = vmatpush2.bf16.msra.mxu0 %v4781
    %6824 = vmatprep.subr.bf16.mxu0 %v4766
    %6825 = vmatpush2.bf16.msra.mxu0 %v4765
    %6826 = vmatprep.subr.bf16.mxu0 %v4750
    %6827 = vmatpush2.bf16.msra.mxu0 %v4749
    %6828 = vmatprep.mubr.bf16.mxu0 %v1276
    %6829 = vmatmul.mubr.bf16.gmra.mxu0 %v1275
    %v6830 = vpop.f32.mrf.mxu0
    %v6831 = vadd.f32 %v6788, %v6830
    %v6832 = vpop.f32.mrf.mxu0
    %v6833 = vadd.f32 %v6790, %v6832
    %v6834 = vpop.f32.mrf.mxu0
    %v6835 = vadd.f32 %v6792, %v6834
    %v6836 = vpop.f32.mrf.mxu0
    %v6837 = vadd.f32 %v6794, %v6836
    %6838 = vdwg.mxu0
    %6839 = vmatprep.subr.bf16.mxu0 %v4990
    %6840 = vmatpush1.bf16.msra.mxu0 %v4989
    %6841 = vmatprep.subr.bf16.mxu0 %v4974
    %6842 = vmatpush1.bf16.msra.mxu0 %v4973
    %6843 = vmatprep.subr.bf16.mxu0 %v4958
    %6844 = vmatpush1.bf16.msra.mxu0 %v4957
    %6845 = vmatprep.subr.bf16.mxu0 %v4942
    %6846 = vmatpush1.bf16.msra.mxu0 %v4941
    %6847 = vmatprep.subr.bf16.mxu0 %v4926
    %6848 = vmatpush1.bf16.msra.mxu0 %v4925
    %6849 = vmatprep.subr.bf16.mxu0 %v4910
    %6850 = vmatpush1.bf16.msra.mxu0 %v4909
    %6851 = vmatprep.subr.bf16.mxu0 %v4894
    %6852 = vmatpush1.bf16.msra.mxu0 %v4893
    %6853 = vmatprep.subr.bf16.mxu0 %v4878
    %6854 = vmatpush1.bf16.msra.mxu0 %v4877
    %6855 = vmatprep.subr.bf16.mxu0 %v5118
    %6856 = vmatpush2.bf16.msra.mxu0 %v5117
    %6857 = vmatprep.subr.bf16.mxu0 %v5102
    %6858 = vmatpush2.bf16.msra.mxu0 %v5101
    %6859 = vmatprep.subr.bf16.mxu0 %v5086
    %6860 = vmatpush2.bf16.msra.mxu0 %v5085
    %6861 = vmatprep.subr.bf16.mxu0 %v5070
    %6862 = vmatpush2.bf16.msra.mxu0 %v5069
    %6863 = vmatprep.subr.bf16.mxu0 %v5054
    %6864 = vmatpush2.bf16.msra.mxu0 %v5053
    %6865 = vmatprep.subr.bf16.mxu0 %v5038
    %6866 = vmatpush2.bf16.msra.mxu0 %v5037
    %6867 = vmatprep.subr.bf16.mxu0 %v5022
    %6868 = vmatpush2.bf16.msra.mxu0 %v5021
    %6869 = vmatprep.subr.bf16.mxu0 %v5006
    %6870 = vmatpush2.bf16.msra.mxu0 %v5005
    %6871 = vmatprep.mubr.bf16.mxu0 %v1278
    %6872 = vmatmul.mubr.bf16.gmra.mxu0 %v1277
    %v6873 = vpop.f32.mrf.mxu0
    %v6874 = vadd.f32 %v6831, %v6873
    %v6875 = vpop.f32.mrf.mxu0
    %v6876 = vadd.f32 %v6833, %v6875
    %v6877 = vpop.f32.mrf.mxu0
    %v6878 = vadd.f32 %v6835, %v6877
    %v6879 = vpop.f32.mrf.mxu0
    %v6880 = vadd.f32 %v6837, %v6879
    %6881 = vdwg.mxu0
    %6882 = vmatprep.subr.bf16.mxu0 %v5246
    %6883 = vmatpush1.bf16.msra.mxu0 %v5245
    %6884 = vmatprep.subr.bf16.mxu0 %v5230
    %6885 = vmatpush1.bf16.msra.mxu0 %v5229
    %6886 = vmatprep.subr.bf16.mxu0 %v5214
    %6887 = vmatpush1.bf16.msra.mxu0 %v5213
    %6888 = vmatprep.subr.bf16.mxu0 %v5198
    %6889 = vmatpush1.bf16.msra.mxu0 %v5197
    %6890 = vmatprep.subr.bf16.mxu0 %v5182
    %6891 = vmatpush1.bf16.msra.mxu0 %v5181
    %6892 = vmatprep.subr.bf16.mxu0 %v5166
    %6893 = vmatpush1.bf16.msra.mxu0 %v5165
    %6894 = vmatprep.subr.bf16.mxu0 %v5150
    %6895 = vmatpush1.bf16.msra.mxu0 %v5149
    %6896 = vmatprep.subr.bf16.mxu0 %v5134
    %6897 = vmatpush1.bf16.msra.mxu0 %v5133
    %6898 = vmatprep.subr.bf16.mxu0 %v5374
    %6899 = vmatpush2.bf16.msra.mxu0 %v5373
    %6900 = vmatprep.subr.bf16.mxu0 %v5358
    %6901 = vmatpush2.bf16.msra.mxu0 %v5357
    %6902 = vmatprep.subr.bf16.mxu0 %v5342
    %6903 = vmatpush2.bf16.msra.mxu0 %v5341
    %6904 = vmatprep.subr.bf16.mxu0 %v5326
    %6905 = vmatpush2.bf16.msra.mxu0 %v5325
    %6906 = vmatprep.subr.bf16.mxu0 %v5310
    %6907 = vmatpush2.bf16.msra.mxu0 %v5309
    %6908 = vmatprep.subr.bf16.mxu0 %v5294
    %6909 = vmatpush2.bf16.msra.mxu0 %v5293
    %6910 = vmatprep.subr.bf16.mxu0 %v5278
    %6911 = vmatpush2.bf16.msra.mxu0 %v5277
    %6912 = vmatprep.subr.bf16.mxu0 %v5262
    %6913 = vmatpush2.bf16.msra.mxu0 %v5261
    %6914 = vmatprep.mubr.bf16.mxu0 %v1280
    %6915 = vmatmul.mubr.bf16.gmra.mxu0 %v1279
    %v6916 = vpop.f32.mrf.mxu0
    %v6917 = vadd.f32 %v6874, %v6916
    %v6918 = vpop.f32.mrf.mxu0
    %v6919 = vadd.f32 %v6876, %v6918
    %v6920 = vpop.f32.mrf.mxu0
    %v6921 = vadd.f32 %v6878, %v6920
    %v6922 = vpop.f32.mrf.mxu0
    %v6923 = vadd.f32 %v6880, %v6922
    %6924 = vdwg.mxu0
    %6925 = vmatprep.subr.bf16.mxu0 %v4480
    %6926 = vmatpush1.bf16.msra.mxu0 %v4479
    %6927 = vmatprep.subr.bf16.mxu0 %v4464
    %6928 = vmatpush1.bf16.msra.mxu0 %v4463
    %6929 = vmatprep.subr.bf16.mxu0 %v4448
    %6930 = vmatpush1.bf16.msra.mxu0 %v4447
    %6931 = vmatprep.subr.bf16.mxu0 %v4432
    %6932 = vmatpush1.bf16.msra.mxu0 %v4431
    %6933 = vmatprep.subr.bf16.mxu0 %v4416
    %6934 = vmatpush1.bf16.msra.mxu0 %v4415
    %6935 = vmatprep.subr.bf16.mxu0 %v4400
    %6936 = vmatpush1.bf16.msra.mxu0 %v4399
    %6937 = vmatprep.subr.bf16.mxu0 %v4384
    %6938 = vmatpush1.bf16.msra.mxu0 %v4383
    %6939 = vmatprep.subr.bf16.mxu0 %v4368
    %6940 = vmatpush1.bf16.msra.mxu0 %v4367
    %6941 = vmatprep.subr.bf16.mxu0 %v4608
    %6942 = vmatpush2.bf16.msra.mxu0 %v4607
    %6943 = vmatprep.subr.bf16.mxu0 %v4592
    %6944 = vmatpush2.bf16.msra.mxu0 %v4591
    %6945 = vmatprep.subr.bf16.mxu0 %v4576
    %6946 = vmatpush2.bf16.msra.mxu0 %v4575
    %6947 = vmatprep.subr.bf16.mxu0 %v4560
    %6948 = vmatpush2.bf16.msra.mxu0 %v4559
    %6949 = vmatprep.subr.bf16.mxu0 %v4544
    %6950 = vmatpush2.bf16.msra.mxu0 %v4543
    %6951 = vmatprep.subr.bf16.mxu0 %v4528
    %6952 = vmatpush2.bf16.msra.mxu0 %v4527
    %6953 = vmatprep.subr.bf16.mxu0 %v4512
    %6954 = vmatpush2.bf16.msra.mxu0 %v4511
    %6955 = vmatprep.subr.bf16.mxu0 %v4496
    %6956 = vmatpush2.bf16.msra.mxu0 %v4495
    %6957 = vmatprep.mubr.bf16.mxu0 %v1274
    %6958 = vmatmul.mubr.bf16.gmra.mxu0 %v1273
    %v6959 = vpop.f32.mrf.mxu0
    %v6960 = vadd.f32 %v1196, %v6959
    %v6961 = vpop.f32.mrf.mxu0
    %v6962 = vadd.f32 %v1200, %v6961
    %v6963 = vpop.f32.mrf.mxu0
    %v6964 = vadd.f32 %v1196, %v6963
    %v6965 = vpop.f32.mrf.mxu0
    %v6966 = vadd.f32 %v1200, %v6965
    %6967 = vdwg.mxu0
    %6968 = vmatprep.subr.bf16.mxu0 %v4736
    %6969 = vmatpush1.bf16.msra.mxu0 %v4735
    %6970 = vmatprep.subr.bf16.mxu0 %v4720
    %6971 = vmatpush1.bf16.msra.mxu0 %v4719
    %6972 = vmatprep.subr.bf16.mxu0 %v4704
    %6973 = vmatpush1.bf16.msra.mxu0 %v4703
    %6974 = vmatprep.subr.bf16.mxu0 %v4688
    %6975 = vmatpush1.bf16.msra.mxu0 %v4687
    %6976 = vmatprep.subr.bf16.mxu0 %v4672
    %6977 = vmatpush1.bf16.msra.mxu0 %v4671
    %6978 = vmatprep.subr.bf16.mxu0 %v4656
    %6979 = vmatpush1.bf16.msra.mxu0 %v4655
    %6980 = vmatprep.subr.bf16.mxu0 %v4640
    %6981 = vmatpush1.bf16.msra.mxu0 %v4639
    %6982 = vmatprep.subr.bf16.mxu0 %v4624
    %6983 = vmatpush1.bf16.msra.mxu0 %v4623
    %6984 = vmatprep.subr.bf16.mxu0 %v4864
    %6985 = vmatpush2.bf16.msra.mxu0 %v4863
    %6986 = vmatprep.subr.bf16.mxu0 %v4848
    %6987 = vmatpush2.bf16.msra.mxu0 %v4847
    %6988 = vmatprep.subr.bf16.mxu0 %v4832
    %6989 = vmatpush2.bf16.msra.mxu0 %v4831
    %6990 = vmatprep.subr.bf16.mxu0 %v4816
    %6991 = vmatpush2.bf16.msra.mxu0 %v4815
    %6992 = vmatprep.subr.bf16.mxu0 %v4800
    %6993 = vmatpush2.bf16.msra.mxu0 %v4799
    %6994 = vmatprep.subr.bf16.mxu0 %v4784
    %6995 = vmatpush2.bf16.msra.mxu0 %v4783
    %6996 = vmatprep.subr.bf16.mxu0 %v4768
    %6997 = vmatpush2.bf16.msra.mxu0 %v4767
    %6998 = vmatprep.subr.bf16.mxu0 %v4752
    %6999 = vmatpush2.bf16.msra.mxu0 %v4751
    %7000 = vmatprep.mubr.bf16.mxu0 %v1276
    %7001 = vmatmul.mubr.bf16.gmra.mxu0 %v1275
    %v7002 = vpop.f32.mrf.mxu0
    %v7003 = vadd.f32 %v6960, %v7002
    %v7004 = vpop.f32.mrf.mxu0
    %v7005 = vadd.f32 %v6962, %v7004
    %v7006 = vpop.f32.mrf.mxu0
    %v7007 = vadd.f32 %v6964, %v7006
    %v7008 = vpop.f32.mrf.mxu0
    %v7009 = vadd.f32 %v6966, %v7008
    %7010 = vdwg.mxu0
    %7011 = vmatprep.subr.bf16.mxu0 %v4992
    %7012 = vmatpush1.bf16.msra.mxu0 %v4991
    %7013 = vmatprep.subr.bf16.mxu0 %v4976
    %7014 = vmatpush1.bf16.msra.mxu0 %v4975
    %7015 = vmatprep.subr.bf16.mxu0 %v4960
    %7016 = vmatpush1.bf16.msra.mxu0 %v4959
    %7017 = vmatprep.subr.bf16.mxu0 %v4944
    %7018 = vmatpush1.bf16.msra.mxu0 %v4943
    %7019 = vmatprep.subr.bf16.mxu0 %v4928
    %7020 = vmatpush1.bf16.msra.mxu0 %v4927
    %7021 = vmatprep.subr.bf16.mxu0 %v4912
    %7022 = vmatpush1.bf16.msra.mxu0 %v4911
    %7023 = vmatprep.subr.bf16.mxu0 %v4896
    %7024 = vmatpush1.bf16.msra.mxu0 %v4895
    %7025 = vmatprep.subr.bf16.mxu0 %v4880
    %7026 = vmatpush1.bf16.msra.mxu0 %v4879
    %7027 = vmatprep.subr.bf16.mxu0 %v5120
    %7028 = vmatpush2.bf16.msra.mxu0 %v5119
    %7029 = vmatprep.subr.bf16.mxu0 %v5104
    %7030 = vmatpush2.bf16.msra.mxu0 %v5103
    %7031 = vmatprep.subr.bf16.mxu0 %v5088
    %7032 = vmatpush2.bf16.msra.mxu0 %v5087
    %7033 = vmatprep.subr.bf16.mxu0 %v5072
    %7034 = vmatpush2.bf16.msra.mxu0 %v5071
    %7035 = vmatprep.subr.bf16.mxu0 %v5056
    %7036 = vmatpush2.bf16.msra.mxu0 %v5055
    %7037 = vmatprep.subr.bf16.mxu0 %v5040
    %7038 = vmatpush2.bf16.msra.mxu0 %v5039
    %7039 = vmatprep.subr.bf16.mxu0 %v5024
    %7040 = vmatpush2.bf16.msra.mxu0 %v5023
    %7041 = vmatprep.subr.bf16.mxu0 %v5008
    %7042 = vmatpush2.bf16.msra.mxu0 %v5007
    %7043 = vmatprep.mubr.bf16.mxu0 %v1278
    %7044 = vmatmul.mubr.bf16.gmra.mxu0 %v1277
    %v7045 = vpop.f32.mrf.mxu0
    %v7046 = vadd.f32 %v7003, %v7045
    %v7047 = vpop.f32.mrf.mxu0
    %v7048 = vadd.f32 %v7005, %v7047
    %v7049 = vpop.f32.mrf.mxu0
    %v7050 = vadd.f32 %v7007, %v7049
    %v7051 = vpop.f32.mrf.mxu0
    %v7052 = vadd.f32 %v7009, %v7051
    %7053 = vdwg.mxu0
    %7054 = vmatprep.subr.bf16.mxu0 %v5248
    %7055 = vmatpush1.bf16.msra.mxu0 %v5247
    %7056 = vmatprep.subr.bf16.mxu0 %v5232
    %7057 = vmatpush1.bf16.msra.mxu0 %v5231
    %7058 = vmatprep.subr.bf16.mxu0 %v5216
    %7059 = vmatpush1.bf16.msra.mxu0 %v5215
    %7060 = vmatprep.subr.bf16.mxu0 %v5200
    %7061 = vmatpush1.bf16.msra.mxu0 %v5199
    %7062 = vmatprep.subr.bf16.mxu0 %v5184
    %7063 = vmatpush1.bf16.msra.mxu0 %v5183
    %7064 = vmatprep.subr.bf16.mxu0 %v5168
    %7065 = vmatpush1.bf16.msra.mxu0 %v5167
    %7066 = vmatprep.subr.bf16.mxu0 %v5152
    %7067 = vmatpush1.bf16.msra.mxu0 %v5151
    %7068 = vmatprep.subr.bf16.mxu0 %v5136
    %7069 = vmatpush1.bf16.msra.mxu0 %v5135
    %7070 = vmatprep.subr.bf16.mxu0 %v5376
    %7071 = vmatpush2.bf16.msra.mxu0 %v5375
    %7072 = vmatprep.subr.bf16.mxu0 %v5360
    %7073 = vmatpush2.bf16.msra.mxu0 %v5359
    %7074 = vmatprep.subr.bf16.mxu0 %v5344
    %7075 = vmatpush2.bf16.msra.mxu0 %v5343
    %7076 = vmatprep.subr.bf16.mxu0 %v5328
    %7077 = vmatpush2.bf16.msra.mxu0 %v5327
    %7078 = vmatprep.subr.bf16.mxu0 %v5312
    %7079 = vmatpush2.bf16.msra.mxu0 %v5311
    %7080 = vmatprep.subr.bf16.mxu0 %v5296
    %7081 = vmatpush2.bf16.msra.mxu0 %v5295
    %7082 = vmatprep.subr.bf16.mxu0 %v5280
    %7083 = vmatpush2.bf16.msra.mxu0 %v5279
    %7084 = vmatprep.subr.bf16.mxu0 %v5264
    %7085 = vmatpush2.bf16.msra.mxu0 %v5263
    %7086 = vmatprep.mubr.bf16.mxu0 %v1280
    %7087 = vmatmul.mubr.bf16.gmra.mxu0 %v1279
    %v7088 = vpop.f32.mrf.mxu0
    %v7089 = vadd.f32 %v7046, %v7088
    %v7090 = vpop.f32.mrf.mxu0
    %v7091 = vadd.f32 %v7048, %v7090
    %v7092 = vpop.f32.mrf.mxu0
    %v7093 = vadd.f32 %v7050, %v7092
    %v7094 = vpop.f32.mrf.mxu0
    %v7095 = vadd.f32 %v7052, %v7094
    %7096 = vdwg.mxu0
    %7097 = vmatprep.subr.bf16.mxu0 %v4482
    %7098 = vmatpush1.bf16.msra.mxu0 %v4481
    %7099 = vmatprep.subr.bf16.mxu0 %v4466
    %7100 = vmatpush1.bf16.msra.mxu0 %v4465
    %7101 = vmatprep.subr.bf16.mxu0 %v4450
    %7102 = vmatpush1.bf16.msra.mxu0 %v4449
    %7103 = vmatprep.subr.bf16.mxu0 %v4434
    %7104 = vmatpush1.bf16.msra.mxu0 %v4433
    %7105 = vmatprep.subr.bf16.mxu0 %v4418
    %7106 = vmatpush1.bf16.msra.mxu0 %v4417
    %7107 = vmatprep.subr.bf16.mxu0 %v4402
    %7108 = vmatpush1.bf16.msra.mxu0 %v4401
    %7109 = vmatprep.subr.bf16.mxu0 %v4386
    %7110 = vmatpush1.bf16.msra.mxu0 %v4385
    %7111 = vmatprep.subr.bf16.mxu0 %v4370
    %7112 = vmatpush1.bf16.msra.mxu0 %v4369
    %7113 = vmatprep.subr.bf16.mxu0 %v4610
    %7114 = vmatpush2.bf16.msra.mxu0 %v4609
    %7115 = vmatprep.subr.bf16.mxu0 %v4594
    %7116 = vmatpush2.bf16.msra.mxu0 %v4593
    %7117 = vmatprep.subr.bf16.mxu0 %v4578
    %7118 = vmatpush2.bf16.msra.mxu0 %v4577
    %7119 = vmatprep.subr.bf16.mxu0 %v4562
    %7120 = vmatpush2.bf16.msra.mxu0 %v4561
    %7121 = vmatprep.subr.bf16.mxu0 %v4546
    %7122 = vmatpush2.bf16.msra.mxu0 %v4545
    %7123 = vmatprep.subr.bf16.mxu0 %v4530
    %7124 = vmatpush2.bf16.msra.mxu0 %v4529
    %7125 = vmatprep.subr.bf16.mxu0 %v4514
    %7126 = vmatpush2.bf16.msra.mxu0 %v4513
    %7127 = vmatprep.subr.bf16.mxu0 %v4498
    %7128 = vmatpush2.bf16.msra.mxu0 %v4497
    %7129 = vmatprep.mubr.bf16.mxu0 %v1274
    %7130 = vmatmul.mubr.bf16.gmra.mxu0 %v1273
    %v7131 = vpop.f32.mrf.mxu0
    %v7132 = vadd.f32 %v1204, %v7131
    %v7133 = vpop.f32.mrf.mxu0
    %v7134 = vadd.f32 %v1208, %v7133
    %v7135 = vpop.f32.mrf.mxu0
    %v7136 = vadd.f32 %v1204, %v7135
    %v7137 = vpop.f32.mrf.mxu0
    %v7138 = vadd.f32 %v1208, %v7137
    %7139 = vdwg.mxu0
    %7140 = vmatprep.subr.bf16.mxu0 %v4738
    %7141 = vmatpush1.bf16.msra.mxu0 %v4737
    %7142 = vmatprep.subr.bf16.mxu0 %v4722
    %7143 = vmatpush1.bf16.msra.mxu0 %v4721
    %7144 = vmatprep.subr.bf16.mxu0 %v4706
    %7145 = vmatpush1.bf16.msra.mxu0 %v4705
    %7146 = vmatprep.subr.bf16.mxu0 %v4690
    %7147 = vmatpush1.bf16.msra.mxu0 %v4689
    %7148 = vmatprep.subr.bf16.mxu0 %v4674
    %7149 = vmatpush1.bf16.msra.mxu0 %v4673
    %7150 = vmatprep.subr.bf16.mxu0 %v4658
    %7151 = vmatpush1.bf16.msra.mxu0 %v4657
    %7152 = vmatprep.subr.bf16.mxu0 %v4642
    %7153 = vmatpush1.bf16.msra.mxu0 %v4641
    %7154 = vmatprep.subr.bf16.mxu0 %v4626
    %7155 = vmatpush1.bf16.msra.mxu0 %v4625
    %7156 = vmatprep.subr.bf16.mxu0 %v4866
    %7157 = vmatpush2.bf16.msra.mxu0 %v4865
    %7158 = vmatprep.subr.bf16.mxu0 %v4850
    %7159 = vmatpush2.bf16.msra.mxu0 %v4849
    %7160 = vmatprep.subr.bf16.mxu0 %v4834
    %7161 = vmatpush2.bf16.msra.mxu0 %v4833
    %7162 = vmatprep.subr.bf16.mxu0 %v4818
    %7163 = vmatpush2.bf16.msra.mxu0 %v4817
    %7164 = vmatprep.subr.bf16.mxu0 %v4802
    %7165 = vmatpush2.bf16.msra.mxu0 %v4801
    %7166 = vmatprep.subr.bf16.mxu0 %v4786
    %7167 = vmatpush2.bf16.msra.mxu0 %v4785
    %7168 = vmatprep.subr.bf16.mxu0 %v4770
    %7169 = vmatpush2.bf16.msra.mxu0 %v4769
    %7170 = vmatprep.subr.bf16.mxu0 %v4754
    %7171 = vmatpush2.bf16.msra.mxu0 %v4753
    %7172 = vmatprep.mubr.bf16.mxu0 %v1276
    %7173 = vmatmul.mubr.bf16.gmra.mxu0 %v1275
    %v7174 = vpop.f32.mrf.mxu0
    %v7175 = vadd.f32 %v7132, %v7174
    %v7176 = vpop.f32.mrf.mxu0
    %v7177 = vadd.f32 %v7134, %v7176
    %v7178 = vpop.f32.mrf.mxu0
    %v7179 = vadd.f32 %v7136, %v7178
    %v7180 = vpop.f32.mrf.mxu0
    %v7181 = vadd.f32 %v7138, %v7180
    %7182 = vdwg.mxu0
    %7183 = vmatprep.subr.bf16.mxu0 %v4994
    %7184 = vmatpush1.bf16.msra.mxu0 %v4993
    %7185 = vmatprep.subr.bf16.mxu0 %v4978
    %7186 = vmatpush1.bf16.msra.mxu0 %v4977
    %7187 = vmatprep.subr.bf16.mxu0 %v4962
    %7188 = vmatpush1.bf16.msra.mxu0 %v4961
    %7189 = vmatprep.subr.bf16.mxu0 %v4946
    %7190 = vmatpush1.bf16.msra.mxu0 %v4945
    %7191 = vmatprep.subr.bf16.mxu0 %v4930
    %7192 = vmatpush1.bf16.msra.mxu0 %v4929
    %7193 = vmatprep.subr.bf16.mxu0 %v4914
    %7194 = vmatpush1.bf16.msra.mxu0 %v4913
    %7195 = vmatprep.subr.bf16.mxu0 %v4898
    %7196 = vmatpush1.bf16.msra.mxu0 %v4897
    %7197 = vmatprep.subr.bf16.mxu0 %v4882
    %7198 = vmatpush1.bf16.msra.mxu0 %v4881
    %7199 = vmatprep.subr.bf16.mxu0 %v5122
    %7200 = vmatpush2.bf16.msra.mxu0 %v5121
    %7201 = vmatprep.subr.bf16.mxu0 %v5106
    %7202 = vmatpush2.bf16.msra.mxu0 %v5105
    %7203 = vmatprep.subr.bf16.mxu0 %v5090
    %7204 = vmatpush2.bf16.msra.mxu0 %v5089
    %7205 = vmatprep.subr.bf16.mxu0 %v5074
    %7206 = vmatpush2.bf16.msra.mxu0 %v5073
    %7207 = vmatprep.subr.bf16.mxu0 %v5058
    %7208 = vmatpush2.bf16.msra.mxu0 %v5057
    %7209 = vmatprep.subr.bf16.mxu0 %v5042
    %7210 = vmatpush2.bf16.msra.mxu0 %v5041
    %7211 = vmatprep.subr.bf16.mxu0 %v5026
    %7212 = vmatpush2.bf16.msra.mxu0 %v5025
    %7213 = vmatprep.subr.bf16.mxu0 %v5010
    %7214 = vmatpush2.bf16.msra.mxu0 %v5009
    %7215 = vmatprep.mubr.bf16.mxu0 %v1278
    %7216 = vmatmul.mubr.bf16.gmra.mxu0 %v1277
    %v7217 = vpop.f32.mrf.mxu0
    %v7218 = vadd.f32 %v7175, %v7217
    %v7219 = vpop.f32.mrf.mxu0
    %v7220 = vadd.f32 %v7177, %v7219
    %v7221 = vpop.f32.mrf.mxu0
    %v7222 = vadd.f32 %v7179, %v7221
    %v7223 = vpop.f32.mrf.mxu0
    %v7224 = vadd.f32 %v7181, %v7223
    %7225 = vdwg.mxu0
    %7226 = vmatprep.subr.bf16.mxu0 %v5250
    %7227 = vmatpush1.bf16.msra.mxu0 %v5249
    %7228 = vmatprep.subr.bf16.mxu0 %v5234
    %7229 = vmatpush1.bf16.msra.mxu0 %v5233
    %7230 = vmatprep.subr.bf16.mxu0 %v5218
    %7231 = vmatpush1.bf16.msra.mxu0 %v5217
    %7232 = vmatprep.subr.bf16.mxu0 %v5202
    %7233 = vmatpush1.bf16.msra.mxu0 %v5201
    %7234 = vmatprep.subr.bf16.mxu0 %v5186
    %7235 = vmatpush1.bf16.msra.mxu0 %v5185
    %7236 = vmatprep.subr.bf16.mxu0 %v5170
    %7237 = vmatpush1.bf16.msra.mxu0 %v5169
    %7238 = vmatprep.subr.bf16.mxu0 %v5154
    %7239 = vmatpush1.bf16.msra.mxu0 %v5153
    %7240 = vmatprep.subr.bf16.mxu0 %v5138
    %7241 = vmatpush1.bf16.msra.mxu0 %v5137
    %7242 = vmatprep.subr.bf16.mxu0 %v5378
    %7243 = vmatpush2.bf16.msra.mxu0 %v5377
    %7244 = vmatprep.subr.bf16.mxu0 %v5362
    %7245 = vmatpush2.bf16.msra.mxu0 %v5361
    %7246 = vmatprep.subr.bf16.mxu0 %v5346
    %7247 = vmatpush2.bf16.msra.mxu0 %v5345
    %7248 = vmatprep.subr.bf16.mxu0 %v5330
    %7249 = vmatpush2.bf16.msra.mxu0 %v5329
    %7250 = vmatprep.subr.bf16.mxu0 %v5314
    %7251 = vmatpush2.bf16.msra.mxu0 %v5313
    %7252 = vmatprep.subr.bf16.mxu0 %v5298
    %7253 = vmatpush2.bf16.msra.mxu0 %v5297
    %7254 = vmatprep.subr.bf16.mxu0 %v5282
    %7255 = vmatpush2.bf16.msra.mxu0 %v5281
    %7256 = vmatprep.subr.bf16.mxu0 %v5266
    %7257 = vmatpush2.bf16.msra.mxu0 %v5265
    %7258 = vmatprep.mubr.bf16.mxu0 %v1280
    %7259 = vmatmul.mubr.bf16.gmra.mxu0 %v1279
    %v7260 = vpop.f32.mrf.mxu0
    %v7261 = vadd.f32 %v7218, %v7260
    %v7262 = vpop.f32.mrf.mxu0
    %v7263 = vadd.f32 %v7220, %v7262
    %v7264 = vpop.f32.mrf.mxu0
    %v7265 = vadd.f32 %v7222, %v7264
    %v7266 = vpop.f32.mrf.mxu0
    %v7267 = vadd.f32 %v7224, %v7266
    %7268 = vdwg.mxu0
    %7269 = vmatprep.subr.bf16.mxu0 %v4484
    %7270 = vmatpush1.bf16.msra.mxu0 %v4483
    %7271 = vmatprep.subr.bf16.mxu0 %v4468
    %7272 = vmatpush1.bf16.msra.mxu0 %v4467
    %7273 = vmatprep.subr.bf16.mxu0 %v4452
    %7274 = vmatpush1.bf16.msra.mxu0 %v4451
    %7275 = vmatprep.subr.bf16.mxu0 %v4436
    %7276 = vmatpush1.bf16.msra.mxu0 %v4435
    %7277 = vmatprep.subr.bf16.mxu0 %v4420
    %7278 = vmatpush1.bf16.msra.mxu0 %v4419
    %7279 = vmatprep.subr.bf16.mxu0 %v4404
    %7280 = vmatpush1.bf16.msra.mxu0 %v4403
    %7281 = vmatprep.subr.bf16.mxu0 %v4388
    %7282 = vmatpush1.bf16.msra.mxu0 %v4387
    %7283 = vmatprep.subr.bf16.mxu0 %v4372
    %7284 = vmatpush1.bf16.msra.mxu0 %v4371
    %7285 = vmatprep.subr.bf16.mxu0 %v4612
    %7286 = vmatpush2.bf16.msra.mxu0 %v4611
    %7287 = vmatprep.subr.bf16.mxu0 %v4596
    %7288 = vmatpush2.bf16.msra.mxu0 %v4595
    %7289 = vmatprep.subr.bf16.mxu0 %v4580
    %7290 = vmatpush2.bf16.msra.mxu0 %v4579
    %7291 = vmatprep.subr.bf16.mxu0 %v4564
    %7292 = vmatpush2.bf16.msra.mxu0 %v4563
    %7293 = vmatprep.subr.bf16.mxu0 %v4548
    %7294 = vmatpush2.bf16.msra.mxu0 %v4547
    %7295 = vmatprep.subr.bf16.mxu0 %v4532
    %7296 = vmatpush2.bf16.msra.mxu0 %v4531
    %7297 = vmatprep.subr.bf16.mxu0 %v4516
    %7298 = vmatpush2.bf16.msra.mxu0 %v4515
    %7299 = vmatprep.subr.bf16.mxu0 %v4500
    %7300 = vmatpush2.bf16.msra.mxu0 %v4499
    %7301 = vmatprep.mubr.bf16.mxu0 %v1274
    %7302 = vmatmul.mubr.bf16.gmra.mxu0 %v1273
    %v7303 = vpop.f32.mrf.mxu0
    %v7304 = vadd.f32 %v1212, %v7303
    %v7305 = vpop.f32.mrf.mxu0
    %v7306 = vadd.f32 %v1216, %v7305
    %v7307 = vpop.f32.mrf.mxu0
    %v7308 = vadd.f32 %v1212, %v7307
    %v7309 = vpop.f32.mrf.mxu0
    %v7310 = vadd.f32 %v1216, %v7309
    %7311 = vdwg.mxu0
    %7312 = vmatprep.subr.bf16.mxu0 %v4740
    %7313 = vmatpush1.bf16.msra.mxu0 %v4739
    %7314 = vmatprep.subr.bf16.mxu0 %v4724
    %7315 = vmatpush1.bf16.msra.mxu0 %v4723
    %7316 = vmatprep.subr.bf16.mxu0 %v4708
    %7317 = vmatpush1.bf16.msra.mxu0 %v4707
    %7318 = vmatprep.subr.bf16.mxu0 %v4692
    %7319 = vmatpush1.bf16.msra.mxu0 %v4691
    %7320 = vmatprep.subr.bf16.mxu0 %v4676
    %7321 = vmatpush1.bf16.msra.mxu0 %v4675
    %7322 = vmatprep.subr.bf16.mxu0 %v4660
    %7323 = vmatpush1.bf16.msra.mxu0 %v4659
    %7324 = vmatprep.subr.bf16.mxu0 %v4644
    %7325 = vmatpush1.bf16.msra.mxu0 %v4643
    %7326 = vmatprep.subr.bf16.mxu0 %v4628
    %7327 = vmatpush1.bf16.msra.mxu0 %v4627
    %7328 = vmatprep.subr.bf16.mxu0 %v4868
    %7329 = vmatpush2.bf16.msra.mxu0 %v4867
    %7330 = vmatprep.subr.bf16.mxu0 %v4852
    %7331 = vmatpush2.bf16.msra.mxu0 %v4851
    %7332 = vmatprep.subr.bf16.mxu0 %v4836
    %7333 = vmatpush2.bf16.msra.mxu0 %v4835
    %7334 = vmatprep.subr.bf16.mxu0 %v4820
    %7335 = vmatpush2.bf16.msra.mxu0 %v4819
    %7336 = vmatprep.subr.bf16.mxu0 %v4804
    %7337 = vmatpush2.bf16.msra.mxu0 %v4803
    %7338 = vmatprep.subr.bf16.mxu0 %v4788
    %7339 = vmatpush2.bf16.msra.mxu0 %v4787
    %7340 = vmatprep.subr.bf16.mxu0 %v4772
    %7341 = vmatpush2.bf16.msra.mxu0 %v4771
    %7342 = vmatprep.subr.bf16.mxu0 %v4756
    %7343 = vmatpush2.bf16.msra.mxu0 %v4755
    %7344 = vmatprep.mubr.bf16.mxu0 %v1276
    %7345 = vmatmul.mubr.bf16.gmra.mxu0 %v1275
    %v7346 = vpop.f32.mrf.mxu0
    %v7347 = vadd.f32 %v7304, %v7346
    %v7348 = vpop.f32.mrf.mxu0
    %v7349 = vadd.f32 %v7306, %v7348
    %v7350 = vpop.f32.mrf.mxu0
    %v7351 = vadd.f32 %v7308, %v7350
    %v7352 = vpop.f32.mrf.mxu0
    %v7353 = vadd.f32 %v7310, %v7352
    %7354 = vdwg.mxu0
    %7355 = vmatprep.subr.bf16.mxu0 %v4996
    %7356 = vmatpush1.bf16.msra.mxu0 %v4995
    %7357 = vmatprep.subr.bf16.mxu0 %v4980
    %7358 = vmatpush1.bf16.msra.mxu0 %v4979
    %7359 = vmatprep.subr.bf16.mxu0 %v4964
    %7360 = vmatpush1.bf16.msra.mxu0 %v4963
    %7361 = vmatprep.subr.bf16.mxu0 %v4948
    %7362 = vmatpush1.bf16.msra.mxu0 %v4947
    %7363 = vmatprep.subr.bf16.mxu0 %v4932
    %7364 = vmatpush1.bf16.msra.mxu0 %v4931
    %7365 = vmatprep.subr.bf16.mxu0 %v4916
    %7366 = vmatpush1.bf16.msra.mxu0 %v4915
    %7367 = vmatprep.subr.bf16.mxu0 %v4900
    %7368 = vmatpush1.bf16.msra.mxu0 %v4899
    %7369 = vmatprep.subr.bf16.mxu0 %v4884
    %7370 = vmatpush1.bf16.msra.mxu0 %v4883
    %7371 = vmatprep.subr.bf16.mxu0 %v5124
    %7372 = vmatpush2.bf16.msra.mxu0 %v5123
    %7373 = vmatprep.subr.bf16.mxu0 %v5108
    %7374 = vmatpush2.bf16.msra.mxu0 %v5107
    %7375 = vmatprep.subr.bf16.mxu0 %v5092
    %7376 = vmatpush2.bf16.msra.mxu0 %v5091
    %7377 = vmatprep.subr.bf16.mxu0 %v5076
    %7378 = vmatpush2.bf16.msra.mxu0 %v5075
    %7379 = vmatprep.subr.bf16.mxu0 %v5060
    %7380 = vmatpush2.bf16.msra.mxu0 %v5059
    %7381 = vmatprep.subr.bf16.mxu0 %v5044
    %7382 = vmatpush2.bf16.msra.mxu0 %v5043
    %7383 = vmatprep.subr.bf16.mxu0 %v5028
    %7384 = vmatpush2.bf16.msra.mxu0 %v5027
    %7385 = vmatprep.subr.bf16.mxu0 %v5012
    %7386 = vmatpush2.bf16.msra.mxu0 %v5011
    %7387 = vmatprep.mubr.bf16.mxu0 %v1278
    %7388 = vmatmul.mubr.bf16.gmra.mxu0 %v1277
    %v7389 = vpop.f32.mrf.mxu0
    %v7390 = vadd.f32 %v7347, %v7389
    %v7391 = vpop.f32.mrf.mxu0
    %v7392 = vadd.f32 %v7349, %v7391
    %v7393 = vpop.f32.mrf.mxu0
    %v7394 = vadd.f32 %v7351, %v7393
    %v7395 = vpop.f32.mrf.mxu0
    %v7396 = vadd.f32 %v7353, %v7395
    %7397 = vdwg.mxu0
    %7398 = vmatprep.subr.bf16.mxu0 %v5252
    %7399 = vmatpush1.bf16.msra.mxu0 %v5251
    %7400 = vmatprep.subr.bf16.mxu0 %v5236
    %7401 = vmatpush1.bf16.msra.mxu0 %v5235
    %7402 = vmatprep.subr.bf16.mxu0 %v5220
    %7403 = vmatpush1.bf16.msra.mxu0 %v5219
    %7404 = vmatprep.subr.bf16.mxu0 %v5204
    %7405 = vmatpush1.bf16.msra.mxu0 %v5203
    %7406 = vmatprep.subr.bf16.mxu0 %v5188
    %7407 = vmatpush1.bf16.msra.mxu0 %v5187
    %7408 = vmatprep.subr.bf16.mxu0 %v5172
    %7409 = vmatpush1.bf16.msra.mxu0 %v5171
    %7410 = vmatprep.subr.bf16.mxu0 %v5156
    %7411 = vmatpush1.bf16.msra.mxu0 %v5155
    %7412 = vmatprep.subr.bf16.mxu0 %v5140
    %7413 = vmatpush1.bf16.msra.mxu0 %v5139
    %7414 = vmatprep.subr.bf16.mxu0 %v5380
    %7415 = vmatpush2.bf16.msra.mxu0 %v5379
    %7416 = vmatprep.subr.bf16.mxu0 %v5364
    %7417 = vmatpush2.bf16.msra.mxu0 %v5363
    %7418 = vmatprep.subr.bf16.mxu0 %v5348
    %7419 = vmatpush2.bf16.msra.mxu0 %v5347
    %7420 = vmatprep.subr.bf16.mxu0 %v5332
    %7421 = vmatpush2.bf16.msra.mxu0 %v5331
    %7422 = vmatprep.subr.bf16.mxu0 %v5316
    %7423 = vmatpush2.bf16.msra.mxu0 %v5315
    %7424 = vmatprep.subr.bf16.mxu0 %v5300
    %7425 = vmatpush2.bf16.msra.mxu0 %v5299
    %7426 = vmatprep.subr.bf16.mxu0 %v5284
    %7427 = vmatpush2.bf16.msra.mxu0 %v5283
    %7428 = vmatprep.subr.bf16.mxu0 %v5268
    %7429 = vmatpush2.bf16.msra.mxu0 %v5267
    %7430 = vmatprep.mubr.bf16.mxu0 %v1280
    %7431 = vmatmul.mubr.bf16.gmra.mxu0 %v1279
    %v7432 = vpop.f32.mrf.mxu0
    %v7433 = vadd.f32 %v7390, %v7432
    %v7434 = vpop.f32.mrf.mxu0
    %v7435 = vadd.f32 %v7392, %v7434
    %v7436 = vpop.f32.mrf.mxu0
    %v7437 = vadd.f32 %v7394, %v7436
    %v7438 = vpop.f32.mrf.mxu0
    %v7439 = vadd.f32 %v7396, %v7438
    %7440 = vdwg.mxu0
    %7441 = vmatprep.subr.bf16.mxu0 %v4486
    %7442 = vmatpush1.bf16.msra.mxu0 %v4485
    %7443 = vmatprep.subr.bf16.mxu0 %v4470
    %7444 = vmatpush1.bf16.msra.mxu0 %v4469
    %7445 = vmatprep.subr.bf16.mxu0 %v4454
    %7446 = vmatpush1.bf16.msra.mxu0 %v4453
    %7447 = vmatprep.subr.bf16.mxu0 %v4438
    %7448 = vmatpush1.bf16.msra.mxu0 %v4437
    %7449 = vmatprep.subr.bf16.mxu0 %v4422
    %7450 = vmatpush1.bf16.msra.mxu0 %v4421
    %7451 = vmatprep.subr.bf16.mxu0 %v4406
    %7452 = vmatpush1.bf16.msra.mxu0 %v4405
    %7453 = vmatprep.subr.bf16.mxu0 %v4390
    %7454 = vmatpush1.bf16.msra.mxu0 %v4389
    %7455 = vmatprep.subr.bf16.mxu0 %v4374
    %7456 = vmatpush1.bf16.msra.mxu0 %v4373
    %7457 = vmatprep.subr.bf16.mxu0 %v4614
    %7458 = vmatpush2.bf16.msra.mxu0 %v4613
    %7459 = vmatprep.subr.bf16.mxu0 %v4598
    %7460 = vmatpush2.bf16.msra.mxu0 %v4597
    %7461 = vmatprep.subr.bf16.mxu0 %v4582
    %7462 = vmatpush2.bf16.msra.mxu0 %v4581
    %7463 = vmatprep.subr.bf16.mxu0 %v4566
    %7464 = vmatpush2.bf16.msra.mxu0 %v4565
    %7465 = vmatprep.subr.bf16.mxu0 %v4550
    %7466 = vmatpush2.bf16.msra.mxu0 %v4549
    %7467 = vmatprep.subr.bf16.mxu0 %v4534
    %7468 = vmatpush2.bf16.msra.mxu0 %v4533
    %7469 = vmatprep.subr.bf16.mxu0 %v4518
    %7470 = vmatpush2.bf16.msra.mxu0 %v4517
    %7471 = vmatprep.subr.bf16.mxu0 %v4502
    %7472 = vmatpush2.bf16.msra.mxu0 %v4501
    %7473 = vmatprep.mubr.bf16.mxu0 %v1274
    %7474 = vmatmul.mubr.bf16.gmra.mxu0 %v1273
    %v7475 = vpop.f32.mrf.mxu0
    %v7476 = vadd.f32 %v1220, %v7475
    %v7477 = vpop.f32.mrf.mxu0
    %v7478 = vadd.f32 %v1224, %v7477
    %v7479 = vpop.f32.mrf.mxu0
    %v7480 = vadd.f32 %v1220, %v7479
    %v7481 = vpop.f32.mrf.mxu0
    %v7482 = vadd.f32 %v1224, %v7481
    %7483 = vdwg.mxu0
    %7484 = vmatprep.subr.bf16.mxu0 %v4742
    %7485 = vmatpush1.bf16.msra.mxu0 %v4741
    %7486 = vmatprep.subr.bf16.mxu0 %v4726
    %7487 = vmatpush1.bf16.msra.mxu0 %v4725
    %7488 = vmatprep.subr.bf16.mxu0 %v4710
    %7489 = vmatpush1.bf16.msra.mxu0 %v4709
    %7490 = vmatprep.subr.bf16.mxu0 %v4694
    %7491 = vmatpush1.bf16.msra.mxu0 %v4693
    %7492 = vmatprep.subr.bf16.mxu0 %v4678
    %7493 = vmatpush1.bf16.msra.mxu0 %v4677
    %7494 = vmatprep.subr.bf16.mxu0 %v4662
    %7495 = vmatpush1.bf16.msra.mxu0 %v4661
    %7496 = vmatprep.subr.bf16.mxu0 %v4646
    %7497 = vmatpush1.bf16.msra.mxu0 %v4645
    %7498 = vmatprep.subr.bf16.mxu0 %v4630
    %7499 = vmatpush1.bf16.msra.mxu0 %v4629
    %7500 = vmatprep.subr.bf16.mxu0 %v4870
    %7501 = vmatpush2.bf16.msra.mxu0 %v4869
    %7502 = vmatprep.subr.bf16.mxu0 %v4854
    %7503 = vmatpush2.bf16.msra.mxu0 %v4853
    %7504 = vmatprep.subr.bf16.mxu0 %v4838
    %7505 = vmatpush2.bf16.msra.mxu0 %v4837
    %7506 = vmatprep.subr.bf16.mxu0 %v4822
    %7507 = vmatpush2.bf16.msra.mxu0 %v4821
    %7508 = vmatprep.subr.bf16.mxu0 %v4806
    %7509 = vmatpush2.bf16.msra.mxu0 %v4805
    %7510 = vmatprep.subr.bf16.mxu0 %v4790
    %7511 = vmatpush2.bf16.msra.mxu0 %v4789
    %7512 = vmatprep.subr.bf16.mxu0 %v4774
    %7513 = vmatpush2.bf16.msra.mxu0 %v4773
    %7514 = vmatprep.subr.bf16.mxu0 %v4758
    %7515 = vmatpush2.bf16.msra.mxu0 %v4757
    %7516 = vmatprep.mubr.bf16.mxu0 %v1276
    %7517 = vmatmul.mubr.bf16.gmra.mxu0 %v1275
    %v7518 = vpop.f32.mrf.mxu0
    %v7519 = vadd.f32 %v7476, %v7518
    %v7520 = vpop.f32.mrf.mxu0
    %v7521 = vadd.f32 %v7478, %v7520
    %v7522 = vpop.f32.mrf.mxu0
    %v7523 = vadd.f32 %v7480, %v7522
    %v7524 = vpop.f32.mrf.mxu0
    %v7525 = vadd.f32 %v7482, %v7524
    %7526 = vdwg.mxu0
    %7527 = vmatprep.subr.bf16.mxu0 %v4998
    %7528 = vmatpush1.bf16.msra.mxu0 %v4997
    %7529 = vmatprep.subr.bf16.mxu0 %v4982
    %7530 = vmatpush1.bf16.msra.mxu0 %v4981
    %7531 = vmatprep.subr.bf16.mxu0 %v4966
    %7532 = vmatpush1.bf16.msra.mxu0 %v4965
    %7533 = vmatprep.subr.bf16.mxu0 %v4950
    %7534 = vmatpush1.bf16.msra.mxu0 %v4949
    %7535 = vmatprep.subr.bf16.mxu0 %v4934
    %7536 = vmatpush1.bf16.msra.mxu0 %v4933
    %7537 = vmatprep.subr.bf16.mxu0 %v4918
    %7538 = vmatpush1.bf16.msra.mxu0 %v4917
    %7539 = vmatprep.subr.bf16.mxu0 %v4902
    %7540 = vmatpush1.bf16.msra.mxu0 %v4901
    %7541 = vmatprep.subr.bf16.mxu0 %v4886
    %7542 = vmatpush1.bf16.msra.mxu0 %v4885
    %7543 = vmatprep.subr.bf16.mxu0 %v5126
    %7544 = vmatpush2.bf16.msra.mxu0 %v5125
    %7545 = vmatprep.subr.bf16.mxu0 %v5110
    %7546 = vmatpush2.bf16.msra.mxu0 %v5109
    %7547 = vmatprep.subr.bf16.mxu0 %v5094
    %7548 = vmatpush2.bf16.msra.mxu0 %v5093
    %7549 = vmatprep.subr.bf16.mxu0 %v5078
    %7550 = vmatpush2.bf16.msra.mxu0 %v5077
    %7551 = vmatprep.subr.bf16.mxu0 %v5062
    %7552 = vmatpush2.bf16.msra.mxu0 %v5061
    %7553 = vmatprep.subr.bf16.mxu0 %v5046
    %7554 = vmatpush2.bf16.msra.mxu0 %v5045
    %7555 = vmatprep.subr.bf16.mxu0 %v5030
    %7556 = vmatpush2.bf16.msra.mxu0 %v5029
    %7557 = vmatprep.subr.bf16.mxu0 %v5014
    %7558 = vmatpush2.bf16.msra.mxu0 %v5013
    %7559 = vmatprep.mubr.bf16.mxu0 %v1278
    %7560 = vmatmul.mubr.bf16.gmra.mxu0 %v1277
    %v7561 = vpop.f32.mrf.mxu0
    %v7562 = vadd.f32 %v7519, %v7561
    %v7563 = vpop.f32.mrf.mxu0
    %v7564 = vadd.f32 %v7521, %v7563
    %v7565 = vpop.f32.mrf.mxu0
    %v7566 = vadd.f32 %v7523, %v7565
    %v7567 = vpop.f32.mrf.mxu0
    %v7568 = vadd.f32 %v7525, %v7567
    %7569 = vdwg.mxu0
    %7570 = vmatprep.subr.bf16.mxu0 %v5254
    %7571 = vmatpush1.bf16.msra.mxu0 %v5253
    %7572 = vmatprep.subr.bf16.mxu0 %v5238
    %7573 = vmatpush1.bf16.msra.mxu0 %v5237
    %7574 = vmatprep.subr.bf16.mxu0 %v5222
    %7575 = vmatpush1.bf16.msra.mxu0 %v5221
    %7576 = vmatprep.subr.bf16.mxu0 %v5206
    %7577 = vmatpush1.bf16.msra.mxu0 %v5205
    %7578 = vmatprep.subr.bf16.mxu0 %v5190
    %7579 = vmatpush1.bf16.msra.mxu0 %v5189
    %7580 = vmatprep.subr.bf16.mxu0 %v5174
    %7581 = vmatpush1.bf16.msra.mxu0 %v5173
    %7582 = vmatprep.subr.bf16.mxu0 %v5158
    %7583 = vmatpush1.bf16.msra.mxu0 %v5157
    %7584 = vmatprep.subr.bf16.mxu0 %v5142
    %7585 = vmatpush1.bf16.msra.mxu0 %v5141
    %7586 = vmatprep.subr.bf16.mxu0 %v5382
    %7587 = vmatpush2.bf16.msra.mxu0 %v5381
    %7588 = vmatprep.subr.bf16.mxu0 %v5366
    %7589 = vmatpush2.bf16.msra.mxu0 %v5365
    %7590 = vmatprep.subr.bf16.mxu0 %v5350
    %7591 = vmatpush2.bf16.msra.mxu0 %v5349
    %7592 = vmatprep.subr.bf16.mxu0 %v5334
    %7593 = vmatpush2.bf16.msra.mxu0 %v5333
    %7594 = vmatprep.subr.bf16.mxu0 %v5318
    %7595 = vmatpush2.bf16.msra.mxu0 %v5317
    %7596 = vmatprep.subr.bf16.mxu0 %v5302
    %7597 = vmatpush2.bf16.msra.mxu0 %v5301
    %7598 = vmatprep.subr.bf16.mxu0 %v5286
    %7599 = vmatpush2.bf16.msra.mxu0 %v5285
    %7600 = vmatprep.subr.bf16.mxu0 %v5270
    %7601 = vmatpush2.bf16.msra.mxu0 %v5269
    %7602 = vmatprep.mubr.bf16.mxu0 %v1280
    %7603 = vmatmul.mubr.bf16.gmra.mxu0 %v1279
    %v7604 = vpop.f32.mrf.mxu0
    %v7605 = vadd.f32 %v7562, %v7604
    %v7606 = vpop.f32.mrf.mxu0
    %v7607 = vadd.f32 %v7564, %v7606
    %v7608 = vpop.f32.mrf.mxu0
    %v7609 = vadd.f32 %v7566, %v7608
    %v7610 = vpop.f32.mrf.mxu0
    %v7611 = vadd.f32 %v7568, %v7610
    %7612 = vdwg.mxu0
    %7613 = vmatprep.subr.bf16.mxu0 %v4488
    %7614 = vmatpush1.bf16.msra.mxu0 %v4487
    %7615 = vmatprep.subr.bf16.mxu0 %v4472
    %7616 = vmatpush1.bf16.msra.mxu0 %v4471
    %7617 = vmatprep.subr.bf16.mxu0 %v4456
    %7618 = vmatpush1.bf16.msra.mxu0 %v4455
    %7619 = vmatprep.subr.bf16.mxu0 %v4440
    %7620 = vmatpush1.bf16.msra.mxu0 %v4439
    %7621 = vmatprep.subr.bf16.mxu0 %v4424
    %7622 = vmatpush1.bf16.msra.mxu0 %v4423
    %7623 = vmatprep.subr.bf16.mxu0 %v4408
    %7624 = vmatpush1.bf16.msra.mxu0 %v4407
    %7625 = vmatprep.subr.bf16.mxu0 %v4392
    %7626 = vmatpush1.bf16.msra.mxu0 %v4391
    %7627 = vmatprep.subr.bf16.mxu0 %v4376
    %7628 = vmatpush1.bf16.msra.mxu0 %v4375
    %7629 = vmatprep.subr.bf16.mxu0 %v4616
    %7630 = vmatpush2.bf16.msra.mxu0 %v4615
    %7631 = vmatprep.subr.bf16.mxu0 %v4600
    %7632 = vmatpush2.bf16.msra.mxu0 %v4599
    %7633 = vmatprep.subr.bf16.mxu0 %v4584
    %7634 = vmatpush2.bf16.msra.mxu0 %v4583
    %7635 = vmatprep.subr.bf16.mxu0 %v4568
    %7636 = vmatpush2.bf16.msra.mxu0 %v4567
    %7637 = vmatprep.subr.bf16.mxu0 %v4552
    %7638 = vmatpush2.bf16.msra.mxu0 %v4551
    %7639 = vmatprep.subr.bf16.mxu0 %v4536
    %7640 = vmatpush2.bf16.msra.mxu0 %v4535
    %7641 = vmatprep.subr.bf16.mxu0 %v4520
    %7642 = vmatpush2.bf16.msra.mxu0 %v4519
    %7643 = vmatprep.subr.bf16.mxu0 %v4504
    %7644 = vmatpush2.bf16.msra.mxu0 %v4503
    %7645 = vmatprep.mubr.bf16.mxu0 %v1274
    %7646 = vmatmul.mubr.bf16.gmra.mxu0 %v1273
    %v7647 = vpop.f32.mrf.mxu0
    %v7648 = vadd.f32 %v1228, %v7647
    %v7649 = vpop.f32.mrf.mxu0
    %v7650 = vadd.f32 %v1232, %v7649
    %v7651 = vpop.f32.mrf.mxu0
    %v7652 = vadd.f32 %v1228, %v7651
    %v7653 = vpop.f32.mrf.mxu0
    %v7654 = vadd.f32 %v1232, %v7653
    %7655 = vdwg.mxu0
    %7656 = vmatprep.subr.bf16.mxu0 %v4744
    %7657 = vmatpush1.bf16.msra.mxu0 %v4743
    %7658 = vmatprep.subr.bf16.mxu0 %v4728
    %7659 = vmatpush1.bf16.msra.mxu0 %v4727
    %7660 = vmatprep.subr.bf16.mxu0 %v4712
    %7661 = vmatpush1.bf16.msra.mxu0 %v4711
    %7662 = vmatprep.subr.bf16.mxu0 %v4696
    %7663 = vmatpush1.bf16.msra.mxu0 %v4695
    %7664 = vmatprep.subr.bf16.mxu0 %v4680
    %7665 = vmatpush1.bf16.msra.mxu0 %v4679
    %7666 = vmatprep.subr.bf16.mxu0 %v4664
    %7667 = vmatpush1.bf16.msra.mxu0 %v4663
    %7668 = vmatprep.subr.bf16.mxu0 %v4648
    %7669 = vmatpush1.bf16.msra.mxu0 %v4647
    %7670 = vmatprep.subr.bf16.mxu0 %v4632
    %7671 = vmatpush1.bf16.msra.mxu0 %v4631
    %7672 = vmatprep.subr.bf16.mxu0 %v4872
    %7673 = vmatpush2.bf16.msra.mxu0 %v4871
    %7674 = vmatprep.subr.bf16.mxu0 %v4856
    %7675 = vmatpush2.bf16.msra.mxu0 %v4855
    %7676 = vmatprep.subr.bf16.mxu0 %v4840
    %7677 = vmatpush2.bf16.msra.mxu0 %v4839
    %7678 = vmatprep.subr.bf16.mxu0 %v4824
    %7679 = vmatpush2.bf16.msra.mxu0 %v4823
    %7680 = vmatprep.subr.bf16.mxu0 %v4808
    %7681 = vmatpush2.bf16.msra.mxu0 %v4807
    %7682 = vmatprep.subr.bf16.mxu0 %v4792
    %7683 = vmatpush2.bf16.msra.mxu0 %v4791
    %7684 = vmatprep.subr.bf16.mxu0 %v4776
    %7685 = vmatpush2.bf16.msra.mxu0 %v4775
    %7686 = vmatprep.subr.bf16.mxu0 %v4760
    %7687 = vmatpush2.bf16.msra.mxu0 %v4759
    %7688 = vmatprep.mubr.bf16.mxu0 %v1276
    %7689 = vmatmul.mubr.bf16.gmra.mxu0 %v1275
    %v7690 = vpop.f32.mrf.mxu0
    %v7691 = vadd.f32 %v7648, %v7690
    %v7692 = vpop.f32.mrf.mxu0
    %v7693 = vadd.f32 %v7650, %v7692
    %v7694 = vpop.f32.mrf.mxu0
    %v7695 = vadd.f32 %v7652, %v7694
    %v7696 = vpop.f32.mrf.mxu0
    %v7697 = vadd.f32 %v7654, %v7696
    %7698 = vdwg.mxu0
    %7699 = vmatprep.subr.bf16.mxu0 %v5000
    %7700 = vmatpush1.bf16.msra.mxu0 %v4999
    %7701 = vmatprep.subr.bf16.mxu0 %v4984
    %7702 = vmatpush1.bf16.msra.mxu0 %v4983
    %7703 = vmatprep.subr.bf16.mxu0 %v4968
    %7704 = vmatpush1.bf16.msra.mxu0 %v4967
    %7705 = vmatprep.subr.bf16.mxu0 %v4952
    %7706 = vmatpush1.bf16.msra.mxu0 %v4951
    %7707 = vmatprep.subr.bf16.mxu0 %v4936
    %7708 = vmatpush1.bf16.msra.mxu0 %v4935
    %7709 = vmatprep.subr.bf16.mxu0 %v4920
    %7710 = vmatpush1.bf16.msra.mxu0 %v4919
    %7711 = vmatprep.subr.bf16.mxu0 %v4904
    %7712 = vmatpush1.bf16.msra.mxu0 %v4903
    %7713 = vmatprep.subr.bf16.mxu0 %v4888
    %7714 = vmatpush1.bf16.msra.mxu0 %v4887
    %7715 = vmatprep.subr.bf16.mxu0 %v5128
    %7716 = vmatpush2.bf16.msra.mxu0 %v5127
    %7717 = vmatprep.subr.bf16.mxu0 %v5112
    %7718 = vmatpush2.bf16.msra.mxu0 %v5111
    %7719 = vmatprep.subr.bf16.mxu0 %v5096
    %7720 = vmatpush2.bf16.msra.mxu0 %v5095
    %7721 = vmatprep.subr.bf16.mxu0 %v5080
    %7722 = vmatpush2.bf16.msra.mxu0 %v5079
    %7723 = vmatprep.subr.bf16.mxu0 %v5064
    %7724 = vmatpush2.bf16.msra.mxu0 %v5063
    %7725 = vmatprep.subr.bf16.mxu0 %v5048
    %7726 = vmatpush2.bf16.msra.mxu0 %v5047
    %7727 = vmatprep.subr.bf16.mxu0 %v5032
    %7728 = vmatpush2.bf16.msra.mxu0 %v5031
    %7729 = vmatprep.subr.bf16.mxu0 %v5016
    %7730 = vmatpush2.bf16.msra.mxu0 %v5015
    %7731 = vmatprep.mubr.bf16.mxu0 %v1278
    %7732 = vmatmul.mubr.bf16.gmra.mxu0 %v1277
    %v7733 = vpop.f32.mrf.mxu0
    %v7734 = vadd.f32 %v7691, %v7733
    %v7735 = vpop.f32.mrf.mxu0
    %v7736 = vadd.f32 %v7693, %v7735
    %v7737 = vpop.f32.mrf.mxu0
    %v7738 = vadd.f32 %v7695, %v7737
    %v7739 = vpop.f32.mrf.mxu0
    %v7740 = vadd.f32 %v7697, %v7739
    %7741 = vdwg.mxu0
    %7742 = vmatprep.subr.bf16.mxu0 %v5256
    %7743 = vmatpush1.bf16.msra.mxu0 %v5255
    %7744 = vmatprep.subr.bf16.mxu0 %v5240
    %7745 = vmatpush1.bf16.msra.mxu0 %v5239
    %7746 = vmatprep.subr.bf16.mxu0 %v5224
    %7747 = vmatpush1.bf16.msra.mxu0 %v5223
    %7748 = vmatprep.subr.bf16.mxu0 %v5208
    %7749 = vmatpush1.bf16.msra.mxu0 %v5207
    %7750 = vmatprep.subr.bf16.mxu0 %v5192
    %7751 = vmatpush1.bf16.msra.mxu0 %v5191
    %7752 = vmatprep.subr.bf16.mxu0 %v5176
    %7753 = vmatpush1.bf16.msra.mxu0 %v5175
    %7754 = vmatprep.subr.bf16.mxu0 %v5160
    %7755 = vmatpush1.bf16.msra.mxu0 %v5159
    %7756 = vmatprep.subr.bf16.mxu0 %v5144
    %7757 = vmatpush1.bf16.msra.mxu0 %v5143
    %7758 = vmatprep.subr.bf16.mxu0 %v5384
    %7759 = vmatpush2.bf16.msra.mxu0 %v5383
    %7760 = vmatprep.subr.bf16.mxu0 %v5368
    %7761 = vmatpush2.bf16.msra.mxu0 %v5367
    %7762 = vmatprep.subr.bf16.mxu0 %v5352
    %7763 = vmatpush2.bf16.msra.mxu0 %v5351
    %7764 = vmatprep.subr.bf16.mxu0 %v5336
    %7765 = vmatpush2.bf16.msra.mxu0 %v5335
    %7766 = vmatprep.subr.bf16.mxu0 %v5320
    %7767 = vmatpush2.bf16.msra.mxu0 %v5319
    %7768 = vmatprep.subr.bf16.mxu0 %v5304
    %7769 = vmatpush2.bf16.msra.mxu0 %v5303
    %7770 = vmatprep.subr.bf16.mxu0 %v5288
    %7771 = vmatpush2.bf16.msra.mxu0 %v5287
    %7772 = vmatprep.subr.bf16.mxu0 %v5272
    %7773 = vmatpush2.bf16.msra.mxu0 %v5271
    %7774 = vmatprep.mubr.bf16.mxu0 %v1280
    %7775 = vmatmul.mubr.bf16.gmra.mxu0 %v1279
    %v7776 = vpop.f32.mrf.mxu0
    %v7777 = vadd.f32 %v7734, %v7776
    %v7778 = vpop.f32.mrf.mxu0
    %v7779 = vadd.f32 %v7736, %v7778
    %v7780 = vpop.f32.mrf.mxu0
    %v7781 = vadd.f32 %v7738, %v7780
    %v7782 = vpop.f32.mrf.mxu0
    %v7783 = vadd.f32 %v7740, %v7782
    %7784 = vdwg.mxu0
    %v7785 = vld [vmem:[#allocation8] sm:$0xff]
    %v7786 = vld [vmem:[#allocation8 + $0x8] sm:$0xff]
    %v7787 = vld [vmem:[#allocation8 + $0x10] sm:$0xff]
    %v7788 = vld [vmem:[#allocation8 + $0x18] sm:$0xff]
    %v7789 = vld [vmem:[#allocation8 + $0x20] sm:$0xff]
    %v7790 = vld [vmem:[#allocation8 + $0x28] sm:$0xff]
    %v7791 = vld [vmem:[#allocation8 + $0x30] sm:$0xff]
    %v7792 = vld [vmem:[#allocation8 + $0x38] sm:$0xff]
    %v7793 = vld [vmem:[#allocation8 + $0x40] sm:$0xff]
    %v7794 = vld [vmem:[#allocation8 + $0x48] sm:$0xff]
    %v7795 = vld [vmem:[#allocation8 + $0x50] sm:$0xff]
    %v7796 = vld [vmem:[#allocation8 + $0x58] sm:$0xff]
    %v7797 = vld [vmem:[#allocation8 + $0x60] sm:$0xff]
    %v7798 = vld [vmem:[#allocation8 + $0x68] sm:$0xff]
    %v7799 = vld [vmem:[#allocation8 + $0x70] sm:$0xff]
    %v7800 = vld [vmem:[#allocation8 + $0x78] sm:$0xff]
    %v7801 = vld [vmem:[#allocation8 + $0x80] sm:$0xff]
    %v7802 = vld [vmem:[#allocation8 + $0x88] sm:$0xff]
    %v7803 = vld [vmem:[#allocation8 + $0x90] sm:$0xff]
    %v7804 = vld [vmem:[#allocation8 + $0x98] sm:$0xff]
    %v7805 = vld [vmem:[#allocation8 + $0xa0] sm:$0xff]
    %v7806 = vld [vmem:[#allocation8 + $0xa8] sm:$0xff]
    %v7807 = vld [vmem:[#allocation8 + $0xb0] sm:$0xff]
    %v7808 = vld [vmem:[#allocation8 + $0xb8] sm:$0xff]
    %v7809 = vld [vmem:[#allocation8 + $0xc0] sm:$0xff]
    %v7810 = vld [vmem:[#allocation8 + $0xc8] sm:$0xff]
    %v7811 = vld [vmem:[#allocation8 + $0xd0] sm:$0xff]
    %v7812 = vld [vmem:[#allocation8 + $0xd8] sm:$0xff]
    %v7813 = vld [vmem:[#allocation8 + $0xe0] sm:$0xff]
    %v7814 = vld [vmem:[#allocation8 + $0xe8] sm:$0xff]
    %v7815 = vld [vmem:[#allocation8 + $0xf0] sm:$0xff]
    %v7816 = vld [vmem:[#allocation8 + $0xf8] sm:$0xff]
    %v7817 = vld [vmem:[#allocation8 + $0x100] sm:$0xff]
    %v7818 = vld [vmem:[#allocation8 + $0x108] sm:$0xff]
    %v7819 = vld [vmem:[#allocation8 + $0x110] sm:$0xff]
    %v7820 = vld [vmem:[#allocation8 + $0x118] sm:$0xff]
    %v7821 = vld [vmem:[#allocation8 + $0x120] sm:$0xff]
    %v7822 = vld [vmem:[#allocation8 + $0x128] sm:$0xff]
    %v7823 = vld [vmem:[#allocation8 + $0x130] sm:$0xff]
    %v7824 = vld [vmem:[#allocation8 + $0x138] sm:$0xff]
    %v7825 = vld [vmem:[#allocation8 + $0x140] sm:$0xff]
    %v7826 = vld [vmem:[#allocation8 + $0x148] sm:$0xff]
    %v7827 = vld [vmem:[#allocation8 + $0x150] sm:$0xff]
    %v7828 = vld [vmem:[#allocation8 + $0x158] sm:$0xff]
    %v7829 = vld [vmem:[#allocation8 + $0x160] sm:$0xff]
    %v7830 = vld [vmem:[#allocation8 + $0x168] sm:$0xff]
    %v7831 = vld [vmem:[#allocation8 + $0x170] sm:$0xff]
    %v7832 = vld [vmem:[#allocation8 + $0x178] sm:$0xff]
    %v7833 = vld [vmem:[#allocation8 + $0x180] sm:$0xff]
    %v7834 = vld [vmem:[#allocation8 + $0x188] sm:$0xff]
    %v7835 = vld [vmem:[#allocation8 + $0x190] sm:$0xff]
    %v7836 = vld [vmem:[#allocation8 + $0x198] sm:$0xff]
    %v7837 = vld [vmem:[#allocation8 + $0x1a0] sm:$0xff]
    %v7838 = vld [vmem:[#allocation8 + $0x1a8] sm:$0xff]
    %v7839 = vld [vmem:[#allocation8 + $0x1b0] sm:$0xff]
    %v7840 = vld [vmem:[#allocation8 + $0x1b8] sm:$0xff]
    %v7841 = vld [vmem:[#allocation8 + $0x1c0] sm:$0xff]
    %v7842 = vld [vmem:[#allocation8 + $0x1c8] sm:$0xff]
    %v7843 = vld [vmem:[#allocation8 + $0x1d0] sm:$0xff]
    %v7844 = vld [vmem:[#allocation8 + $0x1d8] sm:$0xff]
    %v7845 = vld [vmem:[#allocation8 + $0x1e0] sm:$0xff]
    %v7846 = vld [vmem:[#allocation8 + $0x1e8] sm:$0xff]
    %v7847 = vld [vmem:[#allocation8 + $0x1f0] sm:$0xff]
    %v7848 = vld [vmem:[#allocation8 + $0x1f8] sm:$0xff]
    %v7849 = vld [vmem:[#allocation8 + $0x200] sm:$0xff]
    %v7850 = vld [vmem:[#allocation8 + $0x208] sm:$0xff]
    %v7851 = vld [vmem:[#allocation8 + $0x210] sm:$0xff]
    %v7852 = vld [vmem:[#allocation8 + $0x218] sm:$0xff]
    %v7853 = vld [vmem:[#allocation8 + $0x220] sm:$0xff]
    %v7854 = vld [vmem:[#allocation8 + $0x228] sm:$0xff]
    %v7855 = vld [vmem:[#allocation8 + $0x230] sm:$0xff]
    %v7856 = vld [vmem:[#allocation8 + $0x238] sm:$0xff]
    %v7857 = vld [vmem:[#allocation8 + $0x240] sm:$0xff]
    %v7858 = vld [vmem:[#allocation8 + $0x248] sm:$0xff]
    %v7859 = vld [vmem:[#allocation8 + $0x250] sm:$0xff]
    %v7860 = vld [vmem:[#allocation8 + $0x258] sm:$0xff]
    %v7861 = vld [vmem:[#allocation8 + $0x260] sm:$0xff]
    %v7862 = vld [vmem:[#allocation8 + $0x268] sm:$0xff]
    %v7863 = vld [vmem:[#allocation8 + $0x270] sm:$0xff]
    %v7864 = vld [vmem:[#allocation8 + $0x278] sm:$0xff]
    %v7865 = vld [vmem:[#allocation8 + $0x280] sm:$0xff]
    %v7866 = vld [vmem:[#allocation8 + $0x288] sm:$0xff]
    %v7867 = vld [vmem:[#allocation8 + $0x290] sm:$0xff]
    %v7868 = vld [vmem:[#allocation8 + $0x298] sm:$0xff]
    %v7869 = vld [vmem:[#allocation8 + $0x2a0] sm:$0xff]
    %v7870 = vld [vmem:[#allocation8 + $0x2a8] sm:$0xff]
    %v7871 = vld [vmem:[#allocation8 + $0x2b0] sm:$0xff]
    %v7872 = vld [vmem:[#allocation8 + $0x2b8] sm:$0xff]
    %v7873 = vld [vmem:[#allocation8 + $0x2c0] sm:$0xff]
    %v7874 = vld [vmem:[#allocation8 + $0x2c8] sm:$0xff]
    %v7875 = vld [vmem:[#allocation8 + $0x2d0] sm:$0xff]
    %v7876 = vld [vmem:[#allocation8 + $0x2d8] sm:$0xff]
    %v7877 = vld [vmem:[#allocation8 + $0x2e0] sm:$0xff]
    %v7878 = vld [vmem:[#allocation8 + $0x2e8] sm:$0xff]
    %v7879 = vld [vmem:[#allocation8 + $0x2f0] sm:$0xff]
    %v7880 = vld [vmem:[#allocation8 + $0x2f8] sm:$0xff]
    %v7881 = vld [vmem:[#allocation8 + $0x300] sm:$0xff]
    %v7882 = vld [vmem:[#allocation8 + $0x308] sm:$0xff]
    %v7883 = vld [vmem:[#allocation8 + $0x310] sm:$0xff]
    %v7884 = vld [vmem:[#allocation8 + $0x318] sm:$0xff]
    %v7885 = vld [vmem:[#allocation8 + $0x320] sm:$0xff]
    %v7886 = vld [vmem:[#allocation8 + $0x328] sm:$0xff]
    %v7887 = vld [vmem:[#allocation8 + $0x330] sm:$0xff]
    %v7888 = vld [vmem:[#allocation8 + $0x338] sm:$0xff]
    %v7889 = vld [vmem:[#allocation8 + $0x340] sm:$0xff]
    %v7890 = vld [vmem:[#allocation8 + $0x348] sm:$0xff]
    %v7891 = vld [vmem:[#allocation8 + $0x350] sm:$0xff]
    %v7892 = vld [vmem:[#allocation8 + $0x358] sm:$0xff]
    %v7893 = vld [vmem:[#allocation8 + $0x360] sm:$0xff]
    %v7894 = vld [vmem:[#allocation8 + $0x368] sm:$0xff]
    %v7895 = vld [vmem:[#allocation8 + $0x370] sm:$0xff]
    %v7896 = vld [vmem:[#allocation8 + $0x378] sm:$0xff]
    %v7897 = vld [vmem:[#allocation8 + $0x380] sm:$0xff]
    %v7898 = vld [vmem:[#allocation8 + $0x388] sm:$0xff]
    %v7899 = vld [vmem:[#allocation8 + $0x390] sm:$0xff]
    %v7900 = vld [vmem:[#allocation8 + $0x398] sm:$0xff]
    %v7901 = vld [vmem:[#allocation8 + $0x3a0] sm:$0xff]
    %v7902 = vld [vmem:[#allocation8 + $0x3a8] sm:$0xff]
    %v7903 = vld [vmem:[#allocation8 + $0x3b0] sm:$0xff]
    %v7904 = vld [vmem:[#allocation8 + $0x3b8] sm:$0xff]
    %v7905 = vld [vmem:[#allocation8 + $0x3c0] sm:$0xff]
    %v7906 = vld [vmem:[#allocation8 + $0x3c8] sm:$0xff]
    %v7907 = vld [vmem:[#allocation8 + $0x3d0] sm:$0xff]
    %v7908 = vld [vmem:[#allocation8 + $0x3d8] sm:$0xff]
    %v7909 = vld [vmem:[#allocation8 + $0x3e0] sm:$0xff]
    %v7910 = vld [vmem:[#allocation8 + $0x3e8] sm:$0xff]
    %v7911 = vld [vmem:[#allocation8 + $0x3f0] sm:$0xff]
    %v7912 = vld [vmem:[#allocation8 + $0x3f8] sm:$0xff]
    %v7913 = vld [vmem:[#allocation8 + $0x400] sm:$0xff]
    %v7914 = vld [vmem:[#allocation8 + $0x408] sm:$0xff]
    %v7915 = vld [vmem:[#allocation8 + $0x410] sm:$0xff]
    %v7916 = vld [vmem:[#allocation8 + $0x418] sm:$0xff]
    %v7917 = vld [vmem:[#allocation8 + $0x420] sm:$0xff]
    %v7918 = vld [vmem:[#allocation8 + $0x428] sm:$0xff]
    %v7919 = vld [vmem:[#allocation8 + $0x430] sm:$0xff]
    %v7920 = vld [vmem:[#allocation8 + $0x438] sm:$0xff]
    %v7921 = vld [vmem:[#allocation8 + $0x440] sm:$0xff]
    %v7922 = vld [vmem:[#allocation8 + $0x448] sm:$0xff]
    %v7923 = vld [vmem:[#allocation8 + $0x450] sm:$0xff]
    %v7924 = vld [vmem:[#allocation8 + $0x458] sm:$0xff]
    %v7925 = vld [vmem:[#allocation8 + $0x460] sm:$0xff]
    %v7926 = vld [vmem:[#allocation8 + $0x468] sm:$0xff]
    %v7927 = vld [vmem:[#allocation8 + $0x470] sm:$0xff]
    %v7928 = vld [vmem:[#allocation8 + $0x478] sm:$0xff]
    %v7929 = vld [vmem:[#allocation8 + $0x480] sm:$0xff]
    %v7930 = vld [vmem:[#allocation8 + $0x488] sm:$0xff]
    %v7931 = vld [vmem:[#allocation8 + $0x490] sm:$0xff]
    %v7932 = vld [vmem:[#allocation8 + $0x498] sm:$0xff]
    %v7933 = vld [vmem:[#allocation8 + $0x4a0] sm:$0xff]
    %v7934 = vld [vmem:[#allocation8 + $0x4a8] sm:$0xff]
    %v7935 = vld [vmem:[#allocation8 + $0x4b0] sm:$0xff]
    %v7936 = vld [vmem:[#allocation8 + $0x4b8] sm:$0xff]
    %v7937 = vld [vmem:[#allocation8 + $0x4c0] sm:$0xff]
    %v7938 = vld [vmem:[#allocation8 + $0x4c8] sm:$0xff]
    %v7939 = vld [vmem:[#allocation8 + $0x4d0] sm:$0xff]
    %v7940 = vld [vmem:[#allocation8 + $0x4d8] sm:$0xff]
    %v7941 = vld [vmem:[#allocation8 + $0x4e0] sm:$0xff]
    %v7942 = vld [vmem:[#allocation8 + $0x4e8] sm:$0xff]
    %v7943 = vld [vmem:[#allocation8 + $0x4f0] sm:$0xff]
    %v7944 = vld [vmem:[#allocation8 + $0x4f8] sm:$0xff]
    %v7945 = vld [vmem:[#allocation8 + $0x500] sm:$0xff]
    %v7946 = vld [vmem:[#allocation8 + $0x508] sm:$0xff]
    %v7947 = vld [vmem:[#allocation8 + $0x510] sm:$0xff]
    %v7948 = vld [vmem:[#allocation8 + $0x518] sm:$0xff]
    %v7949 = vld [vmem:[#allocation8 + $0x520] sm:$0xff]
    %v7950 = vld [vmem:[#allocation8 + $0x528] sm:$0xff]
    %v7951 = vld [vmem:[#allocation8 + $0x530] sm:$0xff]
    %v7952 = vld [vmem:[#allocation8 + $0x538] sm:$0xff]
    %v7953 = vld [vmem:[#allocation8 + $0x540] sm:$0xff]
    %v7954 = vld [vmem:[#allocation8 + $0x548] sm:$0xff]
    %v7955 = vld [vmem:[#allocation8 + $0x550] sm:$0xff]
    %v7956 = vld [vmem:[#allocation8 + $0x558] sm:$0xff]
    %v7957 = vld [vmem:[#allocation8 + $0x560] sm:$0xff]
    %v7958 = vld [vmem:[#allocation8 + $0x568] sm:$0xff]
    %v7959 = vld [vmem:[#allocation8 + $0x570] sm:$0xff]
    %v7960 = vld [vmem:[#allocation8 + $0x578] sm:$0xff]
    %v7961 = vld [vmem:[#allocation8 + $0x580] sm:$0xff]
    %v7962 = vld [vmem:[#allocation8 + $0x588] sm:$0xff]
    %v7963 = vld [vmem:[#allocation8 + $0x590] sm:$0xff]
    %v7964 = vld [vmem:[#allocation8 + $0x598] sm:$0xff]
    %v7965 = vld [vmem:[#allocation8 + $0x5a0] sm:$0xff]
    %v7966 = vld [vmem:[#allocation8 + $0x5a8] sm:$0xff]
    %v7967 = vld [vmem:[#allocation8 + $0x5b0] sm:$0xff]
    %v7968 = vld [vmem:[#allocation8 + $0x5b8] sm:$0xff]
    %v7969 = vld [vmem:[#allocation8 + $0x5c0] sm:$0xff]
    %v7970 = vld [vmem:[#allocation8 + $0x5c8] sm:$0xff]
    %v7971 = vld [vmem:[#allocation8 + $0x5d0] sm:$0xff]
    %v7972 = vld [vmem:[#allocation8 + $0x5d8] sm:$0xff]
    %v7973 = vld [vmem:[#allocation8 + $0x5e0] sm:$0xff]
    %v7974 = vld [vmem:[#allocation8 + $0x5e8] sm:$0xff]
    %v7975 = vld [vmem:[#allocation8 + $0x5f0] sm:$0xff]
    %v7976 = vld [vmem:[#allocation8 + $0x5f8] sm:$0xff]
    %v7977 = vld [vmem:[#allocation8 + $0x600] sm:$0xff]
    %v7978 = vld [vmem:[#allocation8 + $0x608] sm:$0xff]
    %v7979 = vld [vmem:[#allocation8 + $0x610] sm:$0xff]
    %v7980 = vld [vmem:[#allocation8 + $0x618] sm:$0xff]
    %v7981 = vld [vmem:[#allocation8 + $0x620] sm:$0xff]
    %v7982 = vld [vmem:[#allocation8 + $0x628] sm:$0xff]
    %v7983 = vld [vmem:[#allocation8 + $0x630] sm:$0xff]
    %v7984 = vld [vmem:[#allocation8 + $0x638] sm:$0xff]
    %v7985 = vld [vmem:[#allocation8 + $0x640] sm:$0xff]
    %v7986 = vld [vmem:[#allocation8 + $0x648] sm:$0xff]
    %v7987 = vld [vmem:[#allocation8 + $0x650] sm:$0xff]
    %v7988 = vld [vmem:[#allocation8 + $0x658] sm:$0xff]
    %v7989 = vld [vmem:[#allocation8 + $0x660] sm:$0xff]
    %v7990 = vld [vmem:[#allocation8 + $0x668] sm:$0xff]
    %v7991 = vld [vmem:[#allocation8 + $0x670] sm:$0xff]
    %v7992 = vld [vmem:[#allocation8 + $0x678] sm:$0xff]
    %v7993 = vld [vmem:[#allocation8 + $0x680] sm:$0xff]
    %v7994 = vld [vmem:[#allocation8 + $0x688] sm:$0xff]
    %v7995 = vld [vmem:[#allocation8 + $0x690] sm:$0xff]
    %v7996 = vld [vmem:[#allocation8 + $0x698] sm:$0xff]
    %v7997 = vld [vmem:[#allocation8 + $0x6a0] sm:$0xff]
    %v7998 = vld [vmem:[#allocation8 + $0x6a8] sm:$0xff]
    %v7999 = vld [vmem:[#allocation8 + $0x6b0] sm:$0xff]
    %v8000 = vld [vmem:[#allocation8 + $0x6b8] sm:$0xff]
    %v8001 = vld [vmem:[#allocation8 + $0x6c0] sm:$0xff]
    %v8002 = vld [vmem:[#allocation8 + $0x6c8] sm:$0xff]
    %v8003 = vld [vmem:[#allocation8 + $0x6d0] sm:$0xff]
    %v8004 = vld [vmem:[#allocation8 + $0x6d8] sm:$0xff]
    %v8005 = vld [vmem:[#allocation8 + $0x6e0] sm:$0xff]
    %v8006 = vld [vmem:[#allocation8 + $0x6e8] sm:$0xff]
    %v8007 = vld [vmem:[#allocation8 + $0x6f0] sm:$0xff]
    %v8008 = vld [vmem:[#allocation8 + $0x6f8] sm:$0xff]
    %v8009 = vld [vmem:[#allocation8 + $0x700] sm:$0xff]
    %v8010 = vld [vmem:[#allocation8 + $0x708] sm:$0xff]
    %v8011 = vld [vmem:[#allocation8 + $0x710] sm:$0xff]
    %v8012 = vld [vmem:[#allocation8 + $0x718] sm:$0xff]
    %v8013 = vld [vmem:[#allocation8 + $0x720] sm:$0xff]
    %v8014 = vld [vmem:[#allocation8 + $0x728] sm:$0xff]
    %v8015 = vld [vmem:[#allocation8 + $0x730] sm:$0xff]
    %v8016 = vld [vmem:[#allocation8 + $0x738] sm:$0xff]
    %v8017 = vld [vmem:[#allocation8 + $0x740] sm:$0xff]
    %v8018 = vld [vmem:[#allocation8 + $0x748] sm:$0xff]
    %v8019 = vld [vmem:[#allocation8 + $0x750] sm:$0xff]
    %v8020 = vld [vmem:[#allocation8 + $0x758] sm:$0xff]
    %v8021 = vld [vmem:[#allocation8 + $0x760] sm:$0xff]
    %v8022 = vld [vmem:[#allocation8 + $0x768] sm:$0xff]
    %v8023 = vld [vmem:[#allocation8 + $0x770] sm:$0xff]
    %v8024 = vld [vmem:[#allocation8 + $0x778] sm:$0xff]
    %v8025 = vld [vmem:[#allocation8 + $0x780] sm:$0xff]
    %v8026 = vld [vmem:[#allocation8 + $0x788] sm:$0xff]
    %v8027 = vld [vmem:[#allocation8 + $0x790] sm:$0xff]
    %v8028 = vld [vmem:[#allocation8 + $0x798] sm:$0xff]
    %v8029 = vld [vmem:[#allocation8 + $0x7a0] sm:$0xff]
    %v8030 = vld [vmem:[#allocation8 + $0x7a8] sm:$0xff]
    %v8031 = vld [vmem:[#allocation8 + $0x7b0] sm:$0xff]
    %v8032 = vld [vmem:[#allocation8 + $0x7b8] sm:$0xff]
    %v8033 = vld [vmem:[#allocation8 + $0x7c0] sm:$0xff]
    %v8034 = vld [vmem:[#allocation8 + $0x7c8] sm:$0xff]
    %v8035 = vld [vmem:[#allocation8 + $0x7d0] sm:$0xff]
    %v8036 = vld [vmem:[#allocation8 + $0x7d8] sm:$0xff]
    %v8037 = vld [vmem:[#allocation8 + $0x7e0] sm:$0xff]
    %v8038 = vld [vmem:[#allocation8 + $0x7e8] sm:$0xff]
    %v8039 = vld [vmem:[#allocation8 + $0x7f0] sm:$0xff]
    %v8040 = vld [vmem:[#allocation8 + $0x7f8] sm:$0xff]
    %v8041 = vld [vmem:[#allocation10] sm:$0x1]
    %v8043 = vlaneseq
    %v8044 = vshrl.u32 %v8043, 7
    %v8045 = vsub.s32 0, %v8044
    %v8046 = vrot.slane %v8041, %v8045
    %8048 = vmatprep.subr.mxu0 0.0
    %8049 = vmatpush1.msra.mxu0 %v7800
    %8050 = vmatprep.subr.mxu0 0.0
    %8051 = vmatpush1.msra.mxu0 %v7799
    %8052 = vmatprep.subr.mxu0 0.0
    %8053 = vmatpush1.msra.mxu0 %v7798
    %8054 = vmatprep.subr.mxu0 0.0
    %8055 = vmatpush1.msra.mxu0 %v7797
    %8056 = vmatprep.subr.mxu0 0.0
    %8057 = vmatpush1.msra.mxu0 %v7796
    %8058 = vmatprep.subr.mxu0 0.0
    %8059 = vmatpush1.msra.mxu0 %v7795
    %8060 = vmatprep.subr.mxu0 0.0
    %8061 = vmatpush1.msra.mxu0 %v7794
    %8062 = vmatprep.subr.mxu0 0.0
    %8063 = vmatpush1.msra.mxu0 %v7793
    %8064 = vmatprep.subr.mxu0 0.0
    %8065 = vmatpush1.msra.mxu0 %v7792
    %8066 = vmatprep.subr.mxu0 0.0
    %8067 = vmatpush1.msra.mxu0 %v7791
    %8068 = vmatprep.subr.mxu0 0.0
    %8069 = vmatpush1.msra.mxu0 %v7790
    %8070 = vmatprep.subr.mxu0 0.0
    %8071 = vmatpush1.msra.mxu0 %v7789
    %8072 = vmatprep.subr.mxu0 0.0
    %8073 = vmatpush1.msra.mxu0 %v7788
    %8074 = vmatprep.subr.mxu0 0.0
    %8075 = vmatpush1.msra.mxu0 %v7787
    %8076 = vmatprep.subr.mxu0 0.0
    %8077 = vmatpush1.msra.mxu0 %v7786
    %8078 = vmatprep.subr.mxu0 0.0
    %8079 = vmatpush1.msra.mxu0 %v7785
    %8080 = vmatprep.subr.mxu0 0.0
    %8081 = vmatpush2.msra.mxu0 %v7816
    %8082 = vmatprep.subr.mxu0 0.0
    %8083 = vmatpush2.msra.mxu0 %v7815
    %8084 = vmatprep.subr.mxu0 0.0
    %8085 = vmatpush2.msra.mxu0 %v7814
    %8086 = vmatprep.subr.mxu0 0.0
    %8087 = vmatpush2.msra.mxu0 %v7813
    %8088 = vmatprep.subr.mxu0 0.0
    %8089 = vmatpush2.msra.mxu0 %v7812
    %8090 = vmatprep.subr.mxu0 0.0
    %8091 = vmatpush2.msra.mxu0 %v7811
    %8092 = vmatprep.subr.mxu0 0.0
    %8093 = vmatpush2.msra.mxu0 %v7810
    %8094 = vmatprep.subr.mxu0 0.0
    %8095 = vmatpush2.msra.mxu0 %v7809
    %8096 = vmatprep.subr.mxu0 0.0
    %8097 = vmatpush2.msra.mxu0 %v7808
    %8098 = vmatprep.subr.mxu0 0.0
    %8099 = vmatpush2.msra.mxu0 %v7807
    %8100 = vmatprep.subr.mxu0 0.0
    %8101 = vmatpush2.msra.mxu0 %v7806
    %8102 = vmatprep.subr.mxu0 0.0
    %8103 = vmatpush2.msra.mxu0 %v7805
    %8104 = vmatprep.subr.mxu0 0.0
    %8105 = vmatpush2.msra.mxu0 %v7804
    %8106 = vmatprep.subr.mxu0 0.0
    %8107 = vmatpush2.msra.mxu0 %v7803
    %8108 = vmatprep.subr.mxu0 0.0
    %8109 = vmatpush2.msra.mxu0 %v7802
    %8110 = vmatprep.subr.mxu0 0.0
    %8111 = vmatpush2.msra.mxu0 %v7801
    %8112 = vmatprep.mubr.f32.mxu0 %v6575
    %8113 = vmatmul.mubr.f32.gmra.mxu0 %v6573
    %v8114 = vpop.f32.mrf.mxu0
    %v8115 = vadd.f32 %v8046, %v8114
    %v8116 = vpop.f32.mrf.mxu0
    %8117 = vmatprep.mubr.f32.mxu0 %v6579
    %8118 = vmatmul.mubr.f32.gmra.mxu0 %v6577
    %v8119 = vpop.f32.mrf.mxu0
    %v8120 = vadd.f32 %v8046, %v8119
    %v8121 = vpop.f32.mrf.mxu0
    %8122 = vdwg.mxu0
    %8123 = vmatprep.subr.mxu0 0.0
    %8124 = vmatpush1.msra.mxu0 %v7832
    %8125 = vmatprep.subr.mxu0 0.0
    %8126 = vmatpush1.msra.mxu0 %v7831
    %8127 = vmatprep.subr.mxu0 0.0
    %8128 = vmatpush1.msra.mxu0 %v7830
    %8129 = vmatprep.subr.mxu0 0.0
    %8130 = vmatpush1.msra.mxu0 %v7829
    %8131 = vmatprep.subr.mxu0 0.0
    %8132 = vmatpush1.msra.mxu0 %v7828
    %8133 = vmatprep.subr.mxu0 0.0
    %8134 = vmatpush1.msra.mxu0 %v7827
    %8135 = vmatprep.subr.mxu0 0.0
    %8136 = vmatpush1.msra.mxu0 %v7826
    %8137 = vmatprep.subr.mxu0 0.0
    %8138 = vmatpush1.msra.mxu0 %v7825
    %8139 = vmatprep.subr.mxu0 0.0
    %8140 = vmatpush1.msra.mxu0 %v7824
    %8141 = vmatprep.subr.mxu0 0.0
    %8142 = vmatpush1.msra.mxu0 %v7823
    %8143 = vmatprep.subr.mxu0 0.0
    %8144 = vmatpush1.msra.mxu0 %v7822
    %8145 = vmatprep.subr.mxu0 0.0
    %8146 = vmatpush1.msra.mxu0 %v7821
    %8147 = vmatprep.subr.mxu0 0.0
    %8148 = vmatpush1.msra.mxu0 %v7820
    %8149 = vmatprep.subr.mxu0 0.0
    %8150 = vmatpush1.msra.mxu0 %v7819
    %8151 = vmatprep.subr.mxu0 0.0
    %8152 = vmatpush1.msra.mxu0 %v7818
    %8153 = vmatprep.subr.mxu0 0.0
    %8154 = vmatpush1.msra.mxu0 %v7817
    %8155 = vmatprep.subr.mxu0 0.0
    %8156 = vmatpush2.msra.mxu0 %v7848
    %8157 = vmatprep.subr.mxu0 0.0
    %8158 = vmatpush2.msra.mxu0 %v7847
    %8159 = vmatprep.subr.mxu0 0.0
    %8160 = vmatpush2.msra.mxu0 %v7846
    %8161 = vmatprep.subr.mxu0 0.0
    %8162 = vmatpush2.msra.mxu0 %v7845
    %8163 = vmatprep.subr.mxu0 0.0
    %8164 = vmatpush2.msra.mxu0 %v7844
    %8165 = vmatprep.subr.mxu0 0.0
    %8166 = vmatpush2.msra.mxu0 %v7843
    %8167 = vmatprep.subr.mxu0 0.0
    %8168 = vmatpush2.msra.mxu0 %v7842
    %8169 = vmatprep.subr.mxu0 0.0
    %8170 = vmatpush2.msra.mxu0 %v7841
    %8171 = vmatprep.subr.mxu0 0.0
    %8172 = vmatpush2.msra.mxu0 %v7840
    %8173 = vmatprep.subr.mxu0 0.0
    %8174 = vmatpush2.msra.mxu0 %v7839
    %8175 = vmatprep.subr.mxu0 0.0
    %8176 = vmatpush2.msra.mxu0 %v7838
    %8177 = vmatprep.subr.mxu0 0.0
    %8178 = vmatpush2.msra.mxu0 %v7837
    %8179 = vmatprep.subr.mxu0 0.0
    %8180 = vmatpush2.msra.mxu0 %v7836
    %8181 = vmatprep.subr.mxu0 0.0
    %8182 = vmatpush2.msra.mxu0 %v7835
    %8183 = vmatprep.subr.mxu0 0.0
    %8184 = vmatpush2.msra.mxu0 %v7834
    %8185 = vmatprep.subr.mxu0 0.0
    %8186 = vmatpush2.msra.mxu0 %v7833
    %8187 = vmatprep.mubr.f32.mxu0 %v6747
    %8188 = vmatmul.mubr.f32.gmra.mxu0 %v6745
    %v8189 = vpop.f32.mrf.mxu0
    %v8190 = vadd.f32 %v8115, %v8189
    %v8191 = vpop.f32.mrf.mxu0
    %8192 = vmatprep.mubr.f32.mxu0 %v6751
    %8193 = vmatmul.mubr.f32.gmra.mxu0 %v6749
    %v8194 = vpop.f32.mrf.mxu0
    %v8195 = vadd.f32 %v8120, %v8194
    %v8196 = vpop.f32.mrf.mxu0
    %8197 = vdwg.mxu0
    %8198 = vmatprep.subr.mxu0 0.0
    %8199 = vmatpush1.msra.mxu0 %v7864
    %8200 = vmatprep.subr.mxu0 0.0
    %8201 = vmatpush1.msra.mxu0 %v7863
    %8202 = vmatprep.subr.mxu0 0.0
    %8203 = vmatpush1.msra.mxu0 %v7862
    %8204 = vmatprep.subr.mxu0 0.0
    %8205 = vmatpush1.msra.mxu0 %v7861
    %8206 = vmatprep.subr.mxu0 0.0
    %8207 = vmatpush1.msra.mxu0 %v7860
    %8208 = vmatprep.subr.mxu0 0.0
    %8209 = vmatpush1.msra.mxu0 %v7859
    %8210 = vmatprep.subr.mxu0 0.0
    %8211 = vmatpush1.msra.mxu0 %v7858
    %8212 = vmatprep.subr.mxu0 0.0
    %8213 = vmatpush1.msra.mxu0 %v7857
    %8214 = vmatprep.subr.mxu0 0.0
    %8215 = vmatpush1.msra.mxu0 %v7856
    %8216 = vmatprep.subr.mxu0 0.0
    %8217 = vmatpush1.msra.mxu0 %v7855
    %8218 = vmatprep.subr.mxu0 0.0
    %8219 = vmatpush1.msra.mxu0 %v7854
    %8220 = vmatprep.subr.mxu0 0.0
    %8221 = vmatpush1.msra.mxu0 %v7853
    %8222 = vmatprep.subr.mxu0 0.0
    %8223 = vmatpush1.msra.mxu0 %v7852
    %8224 = vmatprep.subr.mxu0 0.0
    %8225 = vmatpush1.msra.mxu0 %v7851
    %8226 = vmatprep.subr.mxu0 0.0
    %8227 = vmatpush1.msra.mxu0 %v7850
    %8228 = vmatprep.subr.mxu0 0.0
    %8229 = vmatpush1.msra.mxu0 %v7849
    %8230 = vmatprep.subr.mxu0 0.0
    %8231 = vmatpush2.msra.mxu0 %v7880
    %8232 = vmatprep.subr.mxu0 0.0
    %8233 = vmatpush2.msra.mxu0 %v7879
    %8234 = vmatprep.subr.mxu0 0.0
    %8235 = vmatpush2.msra.mxu0 %v7878
    %8236 = vmatprep.subr.mxu0 0.0
    %8237 = vmatpush2.msra.mxu0 %v7877
    %8238 = vmatprep.subr.mxu0 0.0
    %8239 = vmatpush2.msra.mxu0 %v7876
    %8240 = vmatprep.subr.mxu0 0.0
    %8241 = vmatpush2.msra.mxu0 %v7875
    %8242 = vmatprep.subr.mxu0 0.0
    %8243 = vmatpush2.msra.mxu0 %v7874
    %8244 = vmatprep.subr.mxu0 0.0
    %8245 = vmatpush2.msra.mxu0 %v7873
    %8246 = vmatprep.subr.mxu0 0.0
    %8247 = vmatpush2.msra.mxu0 %v7872
    %8248 = vmatprep.subr.mxu0 0.0
    %8249 = vmatpush2.msra.mxu0 %v7871
    %8250 = vmatprep.subr.mxu0 0.0
    %8251 = vmatpush2.msra.mxu0 %v7870
    %8252 = vmatprep.subr.mxu0 0.0
    %8253 = vmatpush2.msra.mxu0 %v7869
    %8254 = vmatprep.subr.mxu0 0.0
    %8255 = vmatpush2.msra.mxu0 %v7868
    %8256 = vmatprep.subr.mxu0 0.0
    %8257 = vmatpush2.msra.mxu0 %v7867
    %8258 = vmatprep.subr.mxu0 0.0
    %8259 = vmatpush2.msra.mxu0 %v7866
    %8260 = vmatprep.subr.mxu0 0.0
    %8261 = vmatpush2.msra.mxu0 %v7865
    %8262 = vmatprep.mubr.f32.mxu0 %v6919
    %8263 = vmatmul.mubr.f32.gmra.mxu0 %v6917
    %v8264 = vpop.f32.mrf.mxu0
    %v8265 = vadd.f32 %v8190, %v8264
    %v8266 = vpop.f32.mrf.mxu0
    %8267 = vmatprep.mubr.f32.mxu0 %v6923
    %8268 = vmatmul.mubr.f32.gmra.mxu0 %v6921
    %v8269 = vpop.f32.mrf.mxu0
    %v8270 = vadd.f32 %v8195, %v8269
    %v8271 = vpop.f32.mrf.mxu0
    %8272 = vdwg.mxu0
    %8273 = vmatprep.subr.mxu0 0.0
    %8274 = vmatpush1.msra.mxu0 %v7896
    %8275 = vmatprep.subr.mxu0 0.0
    %8276 = vmatpush1.msra.mxu0 %v7895
    %8277 = vmatprep.subr.mxu0 0.0
    %8278 = vmatpush1.msra.mxu0 %v7894
    %8279 = vmatprep.subr.mxu0 0.0
    %8280 = vmatpush1.msra.mxu0 %v7893
    %8281 = vmatprep.subr.mxu0 0.0
    %8282 = vmatpush1.msra.mxu0 %v7892
    %8283 = vmatprep.subr.mxu0 0.0
    %8284 = vmatpush1.msra.mxu0 %v7891
    %8285 = vmatprep.subr.mxu0 0.0
    %8286 = vmatpush1.msra.mxu0 %v7890
    %8287 = vmatprep.subr.mxu0 0.0
    %8288 = vmatpush1.msra.mxu0 %v7889
    %8289 = vmatprep.subr.mxu0 0.0
    %8290 = vmatpush1.msra.mxu0 %v7888
    %8291 = vmatprep.subr.mxu0 0.0
    %8292 = vmatpush1.msra.mxu0 %v7887
    %8293 = vmatprep.subr.mxu0 0.0
    %8294 = vmatpush1.msra.mxu0 %v7886
    %8295 = vmatprep.subr.mxu0 0.0
    %8296 = vmatpush1.msra.mxu0 %v7885
    %8297 = vmatprep.subr.mxu0 0.0
    %8298 = vmatpush1.msra.mxu0 %v7884
    %8299 = vmatprep.subr.mxu0 0.0
    %8300 = vmatpush1.msra.mxu0 %v7883
    %8301 = vmatprep.subr.mxu0 0.0
    %8302 = vmatpush1.msra.mxu0 %v7882
    %8303 = vmatprep.subr.mxu0 0.0
    %8304 = vmatpush1.msra.mxu0 %v7881
    %8305 = vmatprep.subr.mxu0 0.0
    %8306 = vmatpush2.msra.mxu0 %v7912
    %8307 = vmatprep.subr.mxu0 0.0
    %8308 = vmatpush2.msra.mxu0 %v7911
    %8309 = vmatprep.subr.mxu0 0.0
    %8310 = vmatpush2.msra.mxu0 %v7910
    %8311 = vmatprep.subr.mxu0 0.0
    %8312 = vmatpush2.msra.mxu0 %v7909
    %8313 = vmatprep.subr.mxu0 0.0
    %8314 = vmatpush2.msra.mxu0 %v7908
    %8315 = vmatprep.subr.mxu0 0.0
    %8316 = vmatpush2.msra.mxu0 %v7907
    %8317 = vmatprep.subr.mxu0 0.0
    %8318 = vmatpush2.msra.mxu0 %v7906
    %8319 = vmatprep.subr.mxu0 0.0
    %8320 = vmatpush2.msra.mxu0 %v7905
    %8321 = vmatprep.subr.mxu0 0.0
    %8322 = vmatpush2.msra.mxu0 %v7904
    %8323 = vmatprep.subr.mxu0 0.0
    %8324 = vmatpush2.msra.mxu0 %v7903
    %8325 = vmatprep.subr.mxu0 0.0
    %8326 = vmatpush2.msra.mxu0 %v7902
    %8327 = vmatprep.subr.mxu0 0.0
    %8328 = vmatpush2.msra.mxu0 %v7901
    %8329 = vmatprep.subr.mxu0 0.0
    %8330 = vmatpush2.msra.mxu0 %v7900
    %8331 = vmatprep.subr.mxu0 0.0
    %8332 = vmatpush2.msra.mxu0 %v7899
    %8333 = vmatprep.subr.mxu0 0.0
    %8334 = vmatpush2.msra.mxu0 %v7898
    %8335 = vmatprep.subr.mxu0 0.0
    %8336 = vmatpush2.msra.mxu0 %v7897
    %8337 = vmatprep.mubr.f32.mxu0 %v7091
    %8338 = vmatmul.mubr.f32.gmra.mxu0 %v7089
    %v8339 = vpop.f32.mrf.mxu0
    %v8340 = vadd.f32 %v8265, %v8339
    %v8341 = vpop.f32.mrf.mxu0
    %8342 = vmatprep.mubr.f32.mxu0 %v7095
    %8343 = vmatmul.mubr.f32.gmra.mxu0 %v7093
    %v8344 = vpop.f32.mrf.mxu0
    %v8345 = vadd.f32 %v8270, %v8344
    %v8346 = vpop.f32.mrf.mxu0
    %8347 = vdwg.mxu0
    %8348 = vmatprep.subr.mxu0 0.0
    %8349 = vmatpush1.msra.mxu0 %v7928
    %8350 = vmatprep.subr.mxu0 0.0
    %8351 = vmatpush1.msra.mxu0 %v7927
    %8352 = vmatprep.subr.mxu0 0.0
    %8353 = vmatpush1.msra.mxu0 %v7926
    %8354 = vmatprep.subr.mxu0 0.0
    %8355 = vmatpush1.msra.mxu0 %v7925
    %8356 = vmatprep.subr.mxu0 0.0
    %8357 = vmatpush1.msra.mxu0 %v7924
    %8358 = vmatprep.subr.mxu0 0.0
    %8359 = vmatpush1.msra.mxu0 %v7923
    %8360 = vmatprep.subr.mxu0 0.0
    %8361 = vmatpush1.msra.mxu0 %v7922
    %8362 = vmatprep.subr.mxu0 0.0
    %8363 = vmatpush1.msra.mxu0 %v7921
    %8364 = vmatprep.subr.mxu0 0.0
    %8365 = vmatpush1.msra.mxu0 %v7920
    %8366 = vmatprep.subr.mxu0 0.0
    %8367 = vmatpush1.msra.mxu0 %v7919
    %8368 = vmatprep.subr.mxu0 0.0
    %8369 = vmatpush1.msra.mxu0 %v7918
    %8370 = vmatprep.subr.mxu0 0.0
    %8371 = vmatpush1.msra.mxu0 %v7917
    %8372 = vmatprep.subr.mxu0 0.0
    %8373 = vmatpush1.msra.mxu0 %v7916
    %8374 = vmatprep.subr.mxu0 0.0
    %8375 = vmatpush1.msra.mxu0 %v7915
    %8376 = vmatprep.subr.mxu0 0.0
    %8377 = vmatpush1.msra.mxu0 %v7914
    %8378 = vmatprep.subr.mxu0 0.0
    %8379 = vmatpush1.msra.mxu0 %v7913
    %8380 = vmatprep.subr.mxu0 0.0
    %8381 = vmatpush2.msra.mxu0 %v7944
    %8382 = vmatprep.subr.mxu0 0.0
    %8383 = vmatpush2.msra.mxu0 %v7943
    %8384 = vmatprep.subr.mxu0 0.0
    %8385 = vmatpush2.msra.mxu0 %v7942
    %8386 = vmatprep.subr.mxu0 0.0
    %8387 = vmatpush2.msra.mxu0 %v7941
    %8388 = vmatprep.subr.mxu0 0.0
    %8389 = vmatpush2.msra.mxu0 %v7940
    %8390 = vmatprep.subr.mxu0 0.0
    %8391 = vmatpush2.msra.mxu0 %v7939
    %8392 = vmatprep.subr.mxu0 0.0
    %8393 = vmatpush2.msra.mxu0 %v7938
    %8394 = vmatprep.subr.mxu0 0.0
    %8395 = vmatpush2.msra.mxu0 %v7937
    %8396 = vmatprep.subr.mxu0 0.0
    %8397 = vmatpush2.msra.mxu0 %v7936
    %8398 = vmatprep.subr.mxu0 0.0
    %8399 = vmatpush2.msra.mxu0 %v7935
    %8400 = vmatprep.subr.mxu0 0.0
    %8401 = vmatpush2.msra.mxu0 %v7934
    %8402 = vmatprep.subr.mxu0 0.0
    %8403 = vmatpush2.msra.mxu0 %v7933
    %8404 = vmatprep.subr.mxu0 0.0
    %8405 = vmatpush2.msra.mxu0 %v7932
    %8406 = vmatprep.subr.mxu0 0.0
    %8407 = vmatpush2.msra.mxu0 %v7931
    %8408 = vmatprep.subr.mxu0 0.0
    %8409 = vmatpush2.msra.mxu0 %v7930
    %8410 = vmatprep.subr.mxu0 0.0
    %8411 = vmatpush2.msra.mxu0 %v7929
    %8412 = vmatprep.mubr.f32.mxu0 %v7263
    %8413 = vmatmul.mubr.f32.gmra.mxu0 %v7261
    %v8414 = vpop.f32.mrf.mxu0
    %v8415 = vadd.f32 %v8340, %v8414
    %v8416 = vpop.f32.mrf.mxu0
    %8417 = vmatprep.mubr.f32.mxu0 %v7267
    %8418 = vmatmul.mubr.f32.gmra.mxu0 %v7265
    %v8419 = vpop.f32.mrf.mxu0
    %v8420 = vadd.f32 %v8345, %v8419
    %v8421 = vpop.f32.mrf.mxu0
    %8422 = vdwg.mxu0
    %8423 = vmatprep.subr.mxu0 0.0
    %8424 = vmatpush1.msra.mxu0 %v7960
    %8425 = vmatprep.subr.mxu0 0.0
    %8426 = vmatpush1.msra.mxu0 %v7959
    %8427 = vmatprep.subr.mxu0 0.0
    %8428 = vmatpush1.msra.mxu0 %v7958
    %8429 = vmatprep.subr.mxu0 0.0
    %8430 = vmatpush1.msra.mxu0 %v7957
    %8431 = vmatprep.subr.mxu0 0.0
    %8432 = vmatpush1.msra.mxu0 %v7956
    %8433 = vmatprep.subr.mxu0 0.0
    %8434 = vmatpush1.msra.mxu0 %v7955
    %8435 = vmatprep.subr.mxu0 0.0
    %8436 = vmatpush1.msra.mxu0 %v7954
    %8437 = vmatprep.subr.mxu0 0.0
    %8438 = vmatpush1.msra.mxu0 %v7953
    %8439 = vmatprep.subr.mxu0 0.0
    %8440 = vmatpush1.msra.mxu0 %v7952
    %8441 = vmatprep.subr.mxu0 0.0
    %8442 = vmatpush1.msra.mxu0 %v7951
    %8443 = vmatprep.subr.mxu0 0.0
    %8444 = vmatpush1.msra.mxu0 %v7950
    %8445 = vmatprep.subr.mxu0 0.0
    %8446 = vmatpush1.msra.mxu0 %v7949
    %8447 = vmatprep.subr.mxu0 0.0
    %8448 = vmatpush1.msra.mxu0 %v7948
    %8449 = vmatprep.subr.mxu0 0.0
    %8450 = vmatpush1.msra.mxu0 %v7947
    %8451 = vmatprep.subr.mxu0 0.0
    %8452 = vmatpush1.msra.mxu0 %v7946
    %8453 = vmatprep.subr.mxu0 0.0
    %8454 = vmatpush1.msra.mxu0 %v7945
    %8455 = vmatprep.subr.mxu0 0.0
    %8456 = vmatpush2.msra.mxu0 %v7976
    %8457 = vmatprep.subr.mxu0 0.0
    %8458 = vmatpush2.msra.mxu0 %v7975
    %8459 = vmatprep.subr.mxu0 0.0
    %8460 = vmatpush2.msra.mxu0 %v7974
    %8461 = vmatprep.subr.mxu0 0.0
    %8462 = vmatpush2.msra.mxu0 %v7973
    %8463 = vmatprep.subr.mxu0 0.0
    %8464 = vmatpush2.msra.mxu0 %v7972
    %8465 = vmatprep.subr.mxu0 0.0
    %8466 = vmatpush2.msra.mxu0 %v7971
    %8467 = vmatprep.subr.mxu0 0.0
    %8468 = vmatpush2.msra.mxu0 %v7970
    %8469 = vmatprep.subr.mxu0 0.0
    %8470 = vmatpush2.msra.mxu0 %v7969
    %8471 = vmatprep.subr.mxu0 0.0
    %8472 = vmatpush2.msra.mxu0 %v7968
    %8473 = vmatprep.subr.mxu0 0.0
    %8474 = vmatpush2.msra.mxu0 %v7967
    %8475 = vmatprep.subr.mxu0 0.0
    %8476 = vmatpush2.msra.mxu0 %v7966
    %8477 = vmatprep.subr.mxu0 0.0
    %8478 = vmatpush2.msra.mxu0 %v7965
    %8479 = vmatprep.subr.mxu0 0.0
    %8480 = vmatpush2.msra.mxu0 %v7964
    %8481 = vmatprep.subr.mxu0 0.0
    %8482 = vmatpush2.msra.mxu0 %v7963
    %8483 = vmatprep.subr.mxu0 0.0
    %8484 = vmatpush2.msra.mxu0 %v7962
    %8485 = vmatprep.subr.mxu0 0.0
    %8486 = vmatpush2.msra.mxu0 %v7961
    %8487 = vmatprep.mubr.f32.mxu0 %v7435
    %8488 = vmatmul.mubr.f32.gmra.mxu0 %v7433
    %v8489 = vpop.f32.mrf.mxu0
    %v8490 = vadd.f32 %v8415, %v8489
    %v8491 = vpop.f32.mrf.mxu0
    %8492 = vmatprep.mubr.f32.mxu0 %v7439
    %8493 = vmatmul.mubr.f32.gmra.mxu0 %v7437
    %v8494 = vpop.f32.mrf.mxu0
    %v8495 = vadd.f32 %v8420, %v8494
    %v8496 = vpop.f32.mrf.mxu0
    %8497 = vdwg.mxu0
    %8498 = vmatprep.subr.mxu0 0.0
    %8499 = vmatpush1.msra.mxu0 %v7992
    %8500 = vmatprep.subr.mxu0 0.0
    %8501 = vmatpush1.msra.mxu0 %v7991
    %8502 = vmatprep.subr.mxu0 0.0
    %8503 = vmatpush1.msra.mxu0 %v7990
    %8504 = vmatprep.subr.mxu0 0.0
    %8505 = vmatpush1.msra.mxu0 %v7989
    %8506 = vmatprep.subr.mxu0 0.0
    %8507 = vmatpush1.msra.mxu0 %v7988
    %8508 = vmatprep.subr.mxu0 0.0
    %8509 = vmatpush1.msra.mxu0 %v7987
    %8510 = vmatprep.subr.mxu0 0.0
    %8511 = vmatpush1.msra.mxu0 %v7986
    %8512 = vmatprep.subr.mxu0 0.0
    %8513 = vmatpush1.msra.mxu0 %v7985
    %8514 = vmatprep.subr.mxu0 0.0
    %8515 = vmatpush1.msra.mxu0 %v7984
    %8516 = vmatprep.subr.mxu0 0.0
    %8517 = vmatpush1.msra.mxu0 %v7983
    %8518 = vmatprep.subr.mxu0 0.0
    %8519 = vmatpush1.msra.mxu0 %v7982
    %8520 = vmatprep.subr.mxu0 0.0
    %8521 = vmatpush1.msra.mxu0 %v7981
    %8522 = vmatprep.subr.mxu0 0.0
    %8523 = vmatpush1.msra.mxu0 %v7980
    %8524 = vmatprep.subr.mxu0 0.0
    %8525 = vmatpush1.msra.mxu0 %v7979
    %8526 = vmatprep.subr.mxu0 0.0
    %8527 = vmatpush1.msra.mxu0 %v7978
    %8528 = vmatprep.subr.mxu0 0.0
    %8529 = vmatpush1.msra.mxu0 %v7977
    %8530 = vmatprep.subr.mxu0 0.0
    %8531 = vmatpush2.msra.mxu0 %v8008
    %8532 = vmatprep.subr.mxu0 0.0
    %8533 = vmatpush2.msra.mxu0 %v8007
    %8534 = vmatprep.subr.mxu0 0.0
    %8535 = vmatpush2.msra.mxu0 %v8006
    %8536 = vmatprep.subr.mxu0 0.0
    %8537 = vmatpush2.msra.mxu0 %v8005
    %8538 = vmatprep.subr.mxu0 0.0
    %8539 = vmatpush2.msra.mxu0 %v8004
    %8540 = vmatprep.subr.mxu0 0.0
    %8541 = vmatpush2.msra.mxu0 %v8003
    %8542 = vmatprep.subr.mxu0 0.0
    %8543 = vmatpush2.msra.mxu0 %v8002
    %8544 = vmatprep.subr.mxu0 0.0
    %8545 = vmatpush2.msra.mxu0 %v8001
    %8546 = vmatprep.subr.mxu0 0.0
    %8547 = vmatpush2.msra.mxu0 %v8000
    %8548 = vmatprep.subr.mxu0 0.0
    %8549 = vmatpush2.msra.mxu0 %v7999
    %8550 = vmatprep.subr.mxu0 0.0
    %8551 = vmatpush2.msra.mxu0 %v7998
    %8552 = vmatprep.subr.mxu0 0.0
    %8553 = vmatpush2.msra.mxu0 %v7997
    %8554 = vmatprep.subr.mxu0 0.0
    %8555 = vmatpush2.msra.mxu0 %v7996
    %8556 = vmatprep.subr.mxu0 0.0
    %8557 = vmatpush2.msra.mxu0 %v7995
    %8558 = vmatprep.subr.mxu0 0.0
    %8559 = vmatpush2.msra.mxu0 %v7994
    %8560 = vmatprep.subr.mxu0 0.0
    %8561 = vmatpush2.msra.mxu0 %v7993
    %8562 = vmatprep.mubr.f32.mxu0 %v7607
    %8563 = vmatmul.mubr.f32.gmra.mxu0 %v7605
    %v8564 = vpop.f32.mrf.mxu0
    %v8565 = vadd.f32 %v8490, %v8564
    %v8566 = vpop.f32.mrf.mxu0
    %8567 = vmatprep.mubr.f32.mxu0 %v7611
    %8568 = vmatmul.mubr.f32.gmra.mxu0 %v7609
    %v8569 = vpop.f32.mrf.mxu0
    %v8570 = vadd.f32 %v8495, %v8569
    %v8571 = vpop.f32.mrf.mxu0
    %8572 = vdwg.mxu0
    %8573 = vmatprep.subr.mxu0 0.0
    %8574 = vmatpush1.msra.mxu0 %v8024
    %8575 = vmatprep.subr.mxu0 0.0
    %8576 = vmatpush1.msra.mxu0 %v8023
    %8577 = vmatprep.subr.mxu0 0.0
    %8578 = vmatpush1.msra.mxu0 %v8022
    %8579 = vmatprep.subr.mxu0 0.0
    %8580 = vmatpush1.msra.mxu0 %v8021
    %8581 = vmatprep.subr.mxu0 0.0
    %8582 = vmatpush1.msra.mxu0 %v8020
    %8583 = vmatprep.subr.mxu0 0.0
    %8584 = vmatpush1.msra.mxu0 %v8019
    %8585 = vmatprep.subr.mxu0 0.0
    %8586 = vmatpush1.msra.mxu0 %v8018
    %8587 = vmatprep.subr.mxu0 0.0
    %8588 = vmatpush1.msra.mxu0 %v8017
    %8589 = vmatprep.subr.mxu0 0.0
    %8590 = vmatpush1.msra.mxu0 %v8016
    %8591 = vmatprep.subr.mxu0 0.0
    %8592 = vmatpush1.msra.mxu0 %v8015
    %8593 = vmatprep.subr.mxu0 0.0
    %8594 = vmatpush1.msra.mxu0 %v8014
    %8595 = vmatprep.subr.mxu0 0.0
    %8596 = vmatpush1.msra.mxu0 %v8013
    %8597 = vmatprep.subr.mxu0 0.0
    %8598 = vmatpush1.msra.mxu0 %v8012
    %8599 = vmatprep.subr.mxu0 0.0
    %8600 = vmatpush1.msra.mxu0 %v8011
    %8601 = vmatprep.subr.mxu0 0.0
    %8602 = vmatpush1.msra.mxu0 %v8010
    %8603 = vmatprep.subr.mxu0 0.0
    %8604 = vmatpush1.msra.mxu0 %v8009
    %8605 = vmatprep.subr.mxu0 0.0
    %8606 = vmatpush2.msra.mxu0 %v8040
    %8607 = vmatprep.subr.mxu0 0.0
    %8608 = vmatpush2.msra.mxu0 %v8039
    %8609 = vmatprep.subr.mxu0 0.0
    %8610 = vmatpush2.msra.mxu0 %v8038
    %8611 = vmatprep.subr.mxu0 0.0
    %8612 = vmatpush2.msra.mxu0 %v8037
    %8613 = vmatprep.subr.mxu0 0.0
    %8614 = vmatpush2.msra.mxu0 %v8036
    %8615 = vmatprep.subr.mxu0 0.0
    %8616 = vmatpush2.msra.mxu0 %v8035
    %8617 = vmatprep.subr.mxu0 0.0
    %8618 = vmatpush2.msra.mxu0 %v8034
    %8619 = vmatprep.subr.mxu0 0.0
    %8620 = vmatpush2.msra.mxu0 %v8033
    %8621 = vmatprep.subr.mxu0 0.0
    %8622 = vmatpush2.msra.mxu0 %v8032
    %8623 = vmatprep.subr.mxu0 0.0
    %8624 = vmatpush2.msra.mxu0 %v8031
    %8625 = vmatprep.subr.mxu0 0.0
    %8626 = vmatpush2.msra.mxu0 %v8030
    %8627 = vmatprep.subr.mxu0 0.0
    %8628 = vmatpush2.msra.mxu0 %v8029
    %8629 = vmatprep.subr.mxu0 0.0
    %8630 = vmatpush2.msra.mxu0 %v8028
    %8631 = vmatprep.subr.mxu0 0.0
    %8632 = vmatpush2.msra.mxu0 %v8027
    %8633 = vmatprep.subr.mxu0 0.0
    %8634 = vmatpush2.msra.mxu0 %v8026
    %8635 = vmatprep.subr.mxu0 0.0
    %8636 = vmatpush2.msra.mxu0 %v8025
    %8637 = vmatprep.mubr.f32.mxu0 %v7779
    %8638 = vmatmul.mubr.f32.gmra.mxu0 %v7777
    %v8639 = vpop.f32.mrf.mxu0
    %v8640 = vadd.f32 %v8565, %v8639
    %v8641 = vpop.f32.mrf.mxu0
    %8642 = vmatprep.mubr.f32.mxu0 %v7783
    %8643 = vmatmul.mubr.f32.gmra.mxu0 %v7781
    %v8644 = vpop.f32.mrf.mxu0
    %v8645 = vadd.f32 %v8570, %v8644
    %v8646 = vpop.f32.mrf.mxu0
    %8647 = vdwg.mxu0
    %v8648 = vld [vmem:[#allocation11] sm:$0xff]
    %v8649 = vld [vmem:[#allocation11 + $0x8] sm:$0xff]
    %v8650 = vld [vmem:[#allocation11 + $0x10] sm:$0xff]
    %v8651 = vld [vmem:[#allocation11 + $0x18] sm:$0xff]
    %v8652 = vld [vmem:[#allocation11 + $0x20] sm:$0xff]
    %v8653 = vld [vmem:[#allocation11 + $0x28] sm:$0xff]
    %v8654 = vld [vmem:[#allocation11 + $0x30] sm:$0xff]
    %v8655 = vld [vmem:[#allocation11 + $0x38] sm:$0xff]
    %v8656 = vld [vmem:[#allocation11 + $0x40] sm:$0xff]
    %v8657 = vld [vmem:[#allocation11 + $0x48] sm:$0xff]
    %v8658 = vld [vmem:[#allocation11 + $0x50] sm:$0xff]
    %v8659 = vld [vmem:[#allocation11 + $0x58] sm:$0xff]
    %v8660 = vld [vmem:[#allocation11 + $0x60] sm:$0xff]
    %v8661 = vld [vmem:[#allocation11 + $0x68] sm:$0xff]
    %v8662 = vld [vmem:[#allocation11 + $0x70] sm:$0xff]
    %v8663 = vld [vmem:[#allocation11 + $0x78] sm:$0xff]
    %v8664 = vld [vmem:[#allocation11 + $0x80] sm:$0xff]
    %v8665 = vld [vmem:[#allocation11 + $0x88] sm:$0xff]
    %v8666 = vld [vmem:[#allocation11 + $0x90] sm:$0xff]
    %v8667 = vld [vmem:[#allocation11 + $0x98] sm:$0xff]
    %v8668 = vld [vmem:[#allocation11 + $0xa0] sm:$0xff]
    %v8669 = vld [vmem:[#allocation11 + $0xa8] sm:$0xff]
    %v8670 = vld [vmem:[#allocation11 + $0xb0] sm:$0xff]
    %v8671 = vld [vmem:[#allocation11 + $0xb8] sm:$0xff]
    %v8672 = vld [vmem:[#allocation11 + $0xc0] sm:$0xff]
    %v8673 = vld [vmem:[#allocation11 + $0xc8] sm:$0xff]
    %v8674 = vld [vmem:[#allocation11 + $0xd0] sm:$0xff]
    %v8675 = vld [vmem:[#allocation11 + $0xd8] sm:$0xff]
    %v8676 = vld [vmem:[#allocation11 + $0xe0] sm:$0xff]
    %v8677 = vld [vmem:[#allocation11 + $0xe8] sm:$0xff]
    %v8678 = vld [vmem:[#allocation11 + $0xf0] sm:$0xff]
    %v8679 = vld [vmem:[#allocation11 + $0xf8] sm:$0xff]
    %8680 = vmatprep.subr.mxu0 %v8679
    %8681 = vmatpush1.msra.mxu0 %v8678
    %8682 = vmatprep.subr.mxu0 %v8677
    %8683 = vmatpush1.msra.mxu0 %v8676
    %8684 = vmatprep.subr.mxu0 %v8675
    %8685 = vmatpush1.msra.mxu0 %v8674
    %8686 = vmatprep.subr.mxu0 %v8673
    %8687 = vmatpush1.msra.mxu0 %v8672
    %8688 = vmatprep.subr.mxu0 %v8671
    %8689 = vmatpush1.msra.mxu0 %v8670
    %8690 = vmatprep.subr.mxu0 %v8669
    %8691 = vmatpush1.msra.mxu0 %v8668
    %8692 = vmatprep.subr.mxu0 %v8667
    %8693 = vmatpush1.msra.mxu0 %v8666
    %8694 = vmatprep.subr.mxu0 %v8665
    %8695 = vmatpush1.msra.mxu0 %v8664
    %8696 = vmatprep.subr.mxu0 %v8663
    %8697 = vmatpush1.msra.mxu0 %v8662
    %8698 = vmatprep.subr.mxu0 %v8661
    %8699 = vmatpush1.msra.mxu0 %v8660
    %8700 = vmatprep.subr.mxu0 %v8659
    %8701 = vmatpush1.msra.mxu0 %v8658
    %8702 = vmatprep.subr.mxu0 %v8657
    %8703 = vmatpush1.msra.mxu0 %v8656
    %8704 = vmatprep.subr.mxu0 %v8655
    %8705 = vmatpush1.msra.mxu0 %v8654
    %8706 = vmatprep.subr.mxu0 %v8653
    %8707 = vmatpush1.msra.mxu0 %v8652
    %8708 = vmatprep.subr.mxu0 %v8651
    %8709 = vmatpush1.msra.mxu0 %v8650
    %8710 = vmatprep.subr.mxu0 %v8649
    %8711 = vmatpush1.msra.mxu0 %v8648
    %8712 = vmatprep.subr.mxu0 0.0
    %8713 = vmatpush2.msra.mxu0 0.0
    %8714 = vmatprep.subr.mxu0 0.0
    %8715 = vmatpush2.msra.mxu0 0.0
    %8716 = vmatprep.subr.mxu0 0.0
    %8717 = vmatpush2.msra.mxu0 0.0
    %8718 = vmatprep.subr.mxu0 0.0
    %8719 = vmatpush2.msra.mxu0 0.0
    %8720 = vmatprep.subr.mxu0 0.0
    %8721 = vmatpush2.msra.mxu0 0.0
    %8722 = vmatprep.subr.mxu0 0.0
    %8723 = vmatpush2.msra.mxu0 0.0
    %8724 = vmatprep.subr.mxu0 0.0
    %8725 = vmatpush2.msra.mxu0 0.0
    %8726 = vmatprep.subr.mxu0 0.0
    %8727 = vmatpush2.msra.mxu0 0.0
    %8728 = vmatprep.subr.mxu0 0.0
    %8729 = vmatpush2.msra.mxu0 0.0
    %8730 = vmatprep.subr.mxu0 0.0
    %8731 = vmatpush2.msra.mxu0 0.0
    %8732 = vmatprep.subr.mxu0 0.0
    %8733 = vmatpush2.msra.mxu0 0.0
    %8734 = vmatprep.subr.mxu0 0.0
    %8735 = vmatpush2.msra.mxu0 0.0
    %8736 = vmatprep.subr.mxu0 0.0
    %8737 = vmatpush2.msra.mxu0 0.0
    %8738 = vmatprep.subr.mxu0 0.0
    %8739 = vmatpush2.msra.mxu0 0.0
    %8740 = vmatprep.subr.mxu0 0.0
    %8741 = vmatpush2.msra.mxu0 0.0
    %8742 = vmatprep.subr.mxu0 0.0
    %8743 = vmatpush2.msra.mxu0 0.0
    %8744 = vmatprep.mubr.f32.mxu0 0.0
    %8745 = vmatmul.mubr.f32.gmra.mxu0 %v8640
    %v8746 = vpop.f32.mrf.mxu0
    %v8747 = vadd.f32 0.0, %v8746
    %v8748 = vpop.f32.mrf.mxu0
    %v8749 = vadd.f32 0.0, %v8748
    %8750 = vmatprep.mubr.f32.mxu0 0.0
    %8751 = vmatmul.mubr.f32.gmra.mxu0 %v8645
    %v8752 = vpop.f32.mrf.mxu0
    %v8753 = vadd.f32 0.0, %v8752
    %v8754 = vpop.f32.mrf.mxu0
    %v8755 = vadd.f32 0.0, %v8754
    %8756 = vdwg.mxu0
    %v8757 = vmul.f32 %v8747, %v8747
    %v8758 = vmul.f32 %v8753, %v8753
    %v8759 = vmul.f32 %v8749, %v8749
    %v8760 = vmul.f32 %v8755, %v8755
    %v8761 = vadd.f32 %v8757, %v8759
    %v8762 = vadd.f32 %v8758, %v8760
    %v8763 = vld [vmem:[#allocation13] sm:$0xff]
    %v8764 = vld [vmem:[#allocation13 + $0x8] sm:$0xff]
    %v8765 = vld [vmem:[#allocation13 + $0x10] sm:$0xff]
    %v8766 = vld [vmem:[#allocation13 + $0x18] sm:$0xff]
    %v8767 = vld [vmem:[#allocation13 + $0x20] sm:$0xff]
    %v8768 = vld [vmem:[#allocation13 + $0x28] sm:$0xff]
    %v8769 = vld [vmem:[#allocation13 + $0x30] sm:$0xff]
    %v8770 = vld [vmem:[#allocation13 + $0x38] sm:$0xff]
    %v8771 = vld [vmem:[#allocation13 + $0x40] sm:$0xff]
    %v8772 = vld [vmem:[#allocation13 + $0x48] sm:$0xff]
    %v8773 = vld [vmem:[#allocation13 + $0x50] sm:$0xff]
    %v8774 = vld [vmem:[#allocation13 + $0x58] sm:$0xff]
    %v8775 = vld [vmem:[#allocation13 + $0x60] sm:$0xff]
    %v8776 = vld [vmem:[#allocation13 + $0x68] sm:$0xff]
    %v8777 = vld [vmem:[#allocation13 + $0x70] sm:$0xff]
    %v8778 = vld [vmem:[#allocation13 + $0x78] sm:$0xff]
    %v8779 = vld [vmem:[#allocation13 + $0x80] sm:$0xff]
    %v8780 = vld [vmem:[#allocation13 + $0x88] sm:$0xff]
    %v8781 = vld [vmem:[#allocation13 + $0x90] sm:$0xff]
    %v8782 = vld [vmem:[#allocation13 + $0x98] sm:$0xff]
    %v8783 = vld [vmem:[#allocation13 + $0xa0] sm:$0xff]
    %v8784 = vld [vmem:[#allocation13 + $0xa8] sm:$0xff]
    %v8785 = vld [vmem:[#allocation13 + $0xb0] sm:$0xff]
    %v8786 = vld [vmem:[#allocation13 + $0xb8] sm:$0xff]
    %v8787 = vld [vmem:[#allocation13 + $0xc0] sm:$0xff]
    %v8788 = vld [vmem:[#allocation13 + $0xc8] sm:$0xff]
    %v8789 = vld [vmem:[#allocation13 + $0xd0] sm:$0xff]
    %v8790 = vld [vmem:[#allocation13 + $0xd8] sm:$0xff]
    %v8791 = vld [vmem:[#allocation13 + $0xe0] sm:$0xff]
    %v8792 = vld [vmem:[#allocation13 + $0xe8] sm:$0xff]
    %v8793 = vld [vmem:[#allocation13 + $0xf0] sm:$0xff]
    %v8794 = vld [vmem:[#allocation13 + $0xf8] sm:$0xff]
    %8795 = vmatprep.subr.mxu0 %v8794
    %8796 = vmatpush1.msra.mxu0 %v8793
    %8797 = vmatprep.subr.mxu0 %v8792
    %8798 = vmatpush1.msra.mxu0 %v8791
    %8799 = vmatprep.subr.mxu0 %v8790
    %8800 = vmatpush1.msra.mxu0 %v8789
    %8801 = vmatprep.subr.mxu0 %v8788
    %8802 = vmatpush1.msra.mxu0 %v8787
    %8803 = vmatprep.subr.mxu0 %v8786
    %8804 = vmatpush1.msra.mxu0 %v8785
    %8805 = vmatprep.subr.mxu0 %v8784
    %8806 = vmatpush1.msra.mxu0 %v8783
    %8807 = vmatprep.subr.mxu0 %v8782
    %8808 = vmatpush1.msra.mxu0 %v8781
    %8809 = vmatprep.subr.mxu0 %v8780
    %8810 = vmatpush1.msra.mxu0 %v8779
    %8811 = vmatprep.subr.mxu0 %v8778
    %8812 = vmatpush1.msra.mxu0 %v8777
    %8813 = vmatprep.subr.mxu0 %v8776
    %8814 = vmatpush1.msra.mxu0 %v8775
    %8815 = vmatprep.subr.mxu0 %v8774
    %8816 = vmatpush1.msra.mxu0 %v8773
    %8817 = vmatprep.subr.mxu0 %v8772
    %8818 = vmatpush1.msra.mxu0 %v8771
    %8819 = vmatprep.subr.mxu0 %v8770
    %8820 = vmatpush1.msra.mxu0 %v8769
    %8821 = vmatprep.subr.mxu0 %v8768
    %8822 = vmatpush1.msra.mxu0 %v8767
    %8823 = vmatprep.subr.mxu0 %v8766
    %8824 = vmatpush1.msra.mxu0 %v8765
    %8825 = vmatprep.subr.mxu0 %v8764
    %8826 = vmatpush1.msra.mxu0 %v8763
    %8827 = vmatprep.subr.mxu0 0.0
    %8828 = vmatpush2.msra.mxu0 0.0
    %8829 = vmatprep.subr.mxu0 0.0
    %8830 = vmatpush2.msra.mxu0 0.0
    %8831 = vmatprep.subr.mxu0 0.0
    %8832 = vmatpush2.msra.mxu0 0.0
    %8833 = vmatprep.subr.mxu0 0.0
    %8834 = vmatpush2.msra.mxu0 0.0
    %8835 = vmatprep.subr.mxu0 0.0
    %8836 = vmatpush2.msra.mxu0 0.0
    %8837 = vmatprep.subr.mxu0 0.0
    %8838 = vmatpush2.msra.mxu0 0.0
    %8839 = vmatprep.subr.mxu0 0.0
    %8840 = vmatpush2.msra.mxu0 0.0
    %8841 = vmatprep.subr.mxu0 0.0
    %8842 = vmatpush2.msra.mxu0 0.0
    %8843 = vmatprep.subr.mxu0 0.0
    %8844 = vmatpush2.msra.mxu0 0.0
    %8845 = vmatprep.subr.mxu0 0.0
    %8846 = vmatpush2.msra.mxu0 0.0
    %8847 = vmatprep.subr.mxu0 0.0
    %8848 = vmatpush2.msra.mxu0 0.0
    %8849 = vmatprep.subr.mxu0 0.0
    %8850 = vmatpush2.msra.mxu0 0.0
    %8851 = vmatprep.subr.mxu0 0.0
    %8852 = vmatpush2.msra.mxu0 0.0
    %8853 = vmatprep.subr.mxu0 0.0
    %8854 = vmatpush2.msra.mxu0 0.0
    %8855 = vmatprep.subr.mxu0 0.0
    %8856 = vmatpush2.msra.mxu0 0.0
    %8857 = vmatprep.subr.mxu0 0.0
    %8858 = vmatpush2.msra.mxu0 0.0
    %8859 = vmatprep.mubr.f32.mxu0 0.0
    %8860 = vmatmul.mubr.f32.gmra.mxu0 %v8761
    %v8861 = vpop.f32.mrf.mxu0
    %v8862 = vadd.f32 0.0, %v8861
    %v8863 = vpop.f32.mrf.mxu0
    %v8864 = vadd.f32 0.0, %v8863
    %8865 = vmatprep.mubr.f32.mxu0 0.0
    %8866 = vmatmul.mubr.f32.gmra.mxu0 %v8762
    %v8867 = vpop.f32.mrf.mxu0
    %v8868 = vadd.f32 0.0, %v8867
    %v8869 = vpop.f32.mrf.mxu0
    %v8870 = vadd.f32 0.0, %v8869
    %8871 = vdwg.mxu0
    %v8872 = vmul.f32 %v8640, %v8640
    %v8873 = vmul.f32 %v8645, %v8645
    %vm8874 = vcmask 523264
    %v8875 = vsel %vm8874, %v8872, 0.0
    %8876 = vadd.xlane.f32.xlu0 %v8875
    %v8877 = vpop.xlane.xlu0 %8876
    %v8878 = vsel %vm8874, %v8873, 0.0
    %8879 = vadd.xlane.f32.xlu0 %v8878
    %v8880 = vpop.xlane.xlu0 %8879
    %v8881 = vmax.f32 %v8877, 1e-12
    %v8882 = vmax.f32 %v8880, 1e-12
    %v8883 = vrcp.pop %v8881
    %v8884 = vrcp.pop %v8882
    %v8885 = vmul.f32 %v8862, %v8883
    %v8886 = vmul.f32 %v8868, %v8884
    %8889 = vrot.lane.b32.xlu0 %v8872, 64
    %v8890 = vpop.permute.xlu0 %8889
    %8891 = vrot.lane.b32.xlu0 %v8873, 64
    %v8892 = vpop.permute.xlu0 %8891
    %v8895 = vsel %vm8874, %v8890, 0.0
    %8896 = vadd.xlane.f32.xlu0 %v8895
    %v8897 = vpop.xlane.xlu0 %8896
    %v8898 = vsel %vm8874, %v8892, 0.0
    %8899 = vadd.xlane.f32.xlu0 %v8898
    %v8900 = vpop.xlane.xlu0 %8899
    %v8901 = vmax.f32 %v8897, 1e-12
    %v8902 = vmax.f32 %v8900, 1e-12
    %v8903 = vrcp.pop %v8901
    %v8904 = vrcp.pop %v8902
    %v8905 = vmul.f32 %v8864, %v8903
    %v8906 = vmul.f32 %v8870, %v8904
    %v8907 = vadd.f32 %v8885, %v8905
    %v8908 = vadd.f32 %v8886, %v8906
    %v8909 = vld [vmem:[#allocation14] sm:$0x1]
    %v8911 = vlaneseq
    %v8912 = vshrl.u32 %v8911, 7
    %v8913 = vsub.s32 0, %v8912
    %v8914 = vrot.slane %v8909, %v8913
    %v8916 = vadd.f32 %v8907, %v8914
    %v8917 = vadd.f32 %v8908, %v8914
    %8918 = vst [vmem:[#allocation16] sm:$0xff] %v8916
    %8919 = vst [vmem:[#allocation16 + $0x8] sm:$0xff] %v8917
    // Predicated region
    $region66: #{tpu_custom_call.1} parent=1 // pred_check
      _
    $region67: #{tpu_custom_call.1} parent=1 // pred_check_branch
      %8921 = sbr.rel (0) target = $region69
    $region68: #{tpu_custom_call.1} parent=1 // pred_region
      %s8923 = ssub.s32 256, 256
      %8924 = vsyncadd [#allocation4], %s8923
      %s8925 = sshll.u32 [#allocation16], 4
      %s8926 = int_to_ptr.vmem [resolvable:$true] %s8925
      %8931 = dma.vmem_to_hbm [thread:$0]  %s8926, 256, %s8, [#allocation4], 128, 128, 8
    $region69: #{tpu_custom_call.1} parent=1 // pred_fallthru
      _
    // Predicated region
    $region70: #{tpu_custom_call.1} parent=1 // pred_check
      _
    $region71: #{tpu_custom_call.1} parent=1 // pred_check_branch
      %8933 = sbr.rel (0) target = $region73
    $region72: #{tpu_custom_call.1} parent=1 // pred_region
      %8934 = dma.done [#allocation4], 256
    $region73: #{tpu_custom_call.1} parent=1 // pred_fallthru
      _
    %8935 = vsyncpa [#allocation3], 1
    %8936 = vsyncpa [#allocation6], 1
    %8937 = vsyncpa [#allocation9], 1
    %8938 = vsyncpa [#allocation12], 1
    %8939 = vsyncpa [#allocation15], 1
    %8940 = vsyncpa [#allocation4], 1

</llo_original>
